<compile_context>
chip_gen: v5e
topology: v5e:2x2
jax: 0.10.0
libtpu: 0.0.40
codegen_flags: <defaults>
</compile_context>

<pallas_src>
import functools

import jax
import jax.numpy as jnp
from jax import lax
from jax.experimental import pallas as pl
from jax.experimental.pallas import tpu as pltpu

_BN_EPS = 1e-5
_GROWTH = 32
_BN_SIZE = 4
_BLOCK_CFG = (6, 12, 24, 16)


def _round_up(x, m):
    return (x + m - 1) // m * m


def _row_pad(m):
    """Row (sublane) padding: multiple of 16 (bf16 tile); large M -> multiple of 256."""
    mp = _round_up(m, 16)
    if mp > 512:
        mp = _round_up(m, 256)
    return mp


def _pick_tn(np_):
    """Output tile width scaled to the (128-aligned) output width."""
    for t in (512, 256):
        if np_ % t == 0:
            return t
    return 128


# --------------------------- Pallas kernels ---------------------------------

def _mm_fused_kernel(*refs, pre_act, post_act, cache_pre):
    """o = post(pre(a) @ b); pre/post are optional per-column affine(+ReLU) epilogues.

    pre is applied in bf16 (folded inference BN, negligible drift); when `cache_pre` the
    activated A tile is stored to a VMEM scratch at j==0 and reused for the other j tiles.
    """
    a_ref, b_ref = refs[0], refs[1]
    idx = 2
    pre = post = None
    if pre_act != "none":
        pre = (refs[idx], refs[idx + 1])
        idx += 2
    if post_act != "none":
        post = (refs[idx], refs[idx + 1])
        idx += 2
    o_ref = refs[idx]
    a_cache = refs[idx + 1] if cache_pre else None

    def _activated():
        a = a_ref[...]                                   # bf16 (tm, Kp)
        sc = pre[0][...].astype(jnp.bfloat16)            # zero-padded cols stay exactly 0
        sh = pre[1][...].astype(jnp.bfloat16)
        a = a * sc + sh
        if pre_act == "affine_relu":
            a = jnp.maximum(a, 0)
        return a

    if pre is None:
        a = a_ref[...]
    elif cache_pre:
        @pl.when(pl.program_id(1) == 0)
        def _():
            a_cache[...] = _activated()
        a = a_cache[...]
    else:
        a = _activated()

    y = jnp.dot(a, b_ref[...], preferred_element_type=jnp.float32)
    if post is not None:
        y = y * post[0][...] + post[1][...]
        if post_act == "affine_relu":
            y = jnp.maximum(y, 0.0)
    o_ref[...] = y.astype(o_ref.dtype)


def fused_matmul(a, w, *, pre=None, post=None, pre_relu=True, post_relu=True,
                 out_dtype=jnp.bfloat16):
    """a:(M,K) @ w:(Kp,Np) (pre-padded bf16 weight) with fused input/output affine(+ReLU).

    pre  = (scale, shift) of shape (1, Kp): applied to the matmul input columns (folded BN
           before the conv). post = (scale, shift) of shape (1, Np): applied to the output
           channels (folded BN after the conv, or a bias). Returns the padded (Mp, Np) array.
    """
    M, K = a.shape
    Kp, Np = w.shape
    assert K <= Kp and Np % 128 == 0
    Mp = _row_pad(M)
    tm = Mp if Mp <= 512 else (512 if Mp % 512 == 0 else 256)
    tn = _pick_tn(Np)

    # Skip the XLA-side pad copy when the activation is already padded (slab path).
    if M == Mp and K == Kp and a.dtype == jnp.bfloat16:
        a_p = a
    else:
        a_p = jnp.pad(a.astype(jnp.bfloat16), ((0, Mp - M), (0, Kp - K)))

    grid = (Mp // tm, Np // tn)
    cache_pre = (pre is not None) and grid[1] > 1

    args = [a_p, w]
    in_specs = [pl.BlockSpec((tm, Kp), lambda i, j: (i, 0)),
                pl.BlockSpec((Kp, tn), lambda i, j: (0, j))]
    pre_act = "none"
    if pre is not None:
        pre_act = "affine_relu" if pre_relu else "affine"
        args += [pre[0], pre[1]]
        in_specs += [pl.BlockSpec((1, Kp), lambda i, j: (0, 0)),
                     pl.BlockSpec((1, Kp), lambda i, j: (0, 0))]
    post_act = "none"
    if post is not None:
        post_act = "affine_relu" if post_relu else "affine"
        args += [post[0], post[1]]
        in_specs += [pl.BlockSpec((1, tn), lambda i, j: (0, j)),
                     pl.BlockSpec((1, tn), lambda i, j: (0, j))]

    scratch = [pltpu.VMEM((tm, Kp), jnp.bfloat16)] if cache_pre else []

    return pl.pallas_call(
        functools.partial(_mm_fused_kernel, pre_act=pre_act, post_act=post_act,
                          cache_pre=cache_pre),
        out_shape=jax.ShapeDtypeStruct((Mp, Np), out_dtype),
        grid_spec=pltpu.PrefetchScalarGridSpec(
            num_scalar_prefetch=0,
            grid=grid,
            in_specs=in_specs,
            out_specs=pl.BlockSpec((tm, tn), lambda i, j: (i, j)),
            scratch_shapes=scratch,
        ),
        # j is "arbitrary" so the cached-prologue (accumulator-like) axis never gets
        # megacore-split; i stays parallel.
        compiler_params=pltpu.CompilerParams(
            dimension_semantics=("parallel", "arbitrary")),
    )(*args)


def _window_reduce_kernel(*refs, op, count, fuse_affine_relu):
    x_ref = refs[0]
    o_ref = refs[-1]
    sc = sh = None
    if fuse_affine_relu:                         # norm5 + ReLU fused into GAP
        sc, sh = refs[1][...], refs[2][...]      # (1, tc), f32
    win = x_ref.shape[0]

    def load(k):
        v = x_ref[k]                             # (tm, tc) slice; no (win,tm,tc) f32 temp
        if fuse_affine_relu:
            v = jnp.maximum(v.astype(jnp.float32) * sc + sh, 0.0)
        return v

    if op == "max":                              # max is exact in bf16 -> no cast
        r = load(0)
        for k in range(1, win):
            r = jnp.maximum(r, load(k))
    else:                                        # mean: accumulate in f32
        r = load(0).astype(jnp.float32)
        for k in range(1, win):
            r = r + load(k).astype(jnp.float32)
        r = r * (1.0 / count)
    o_ref[...] = r.astype(o_ref.dtype)


def window_reduce(stacked, op, *, affine=None, out_dtype=jnp.bfloat16):
    """stacked:(win,M,C) -> (M,C) reduction over the window axis, tiled over rows/channels."""
    win, M, C = stacked.shape
    Cp = _round_up(C, 128)
    Mp = _row_pad(M)
    tm = Mp if Mp <= 512 else 256
    tc = min(Cp, 512)
    if Cp % tc:
        tc = 128
    x_p = jnp.pad(stacked, ((0, 0), (0, Mp - M), (0, Cp - C)))

    args = [x_p]
    in_specs = [pl.BlockSpec((win, tm, tc), lambda i, j: (0, i, j))]
    if affine is not None:
        sc = jnp.pad(affine[0].astype(jnp.float32), ((0, 0), (0, Cp - C)))
        sh = jnp.pad(affine[1].astype(jnp.float32), ((0, 0), (0, Cp - C)))
        args += [sc, sh]
        in_specs += [pl.BlockSpec((1, tc), lambda i, j: (0, j)),
                     pl.BlockSpec((1, tc), lambda i, j: (0, j))]

    out = pl.pallas_call(
        functools.partial(_window_reduce_kernel, op=op, count=win,
                          fuse_affine_relu=affine is not None),
        out_shape=jax.ShapeDtypeStruct((Mp, Cp), out_dtype),
        grid_spec=pltpu.PrefetchScalarGridSpec(
            num_scalar_prefetch=0,
            grid=(Mp // tm, Cp // tc),
            in_specs=in_specs,
            out_specs=pl.BlockSpec((tm, tc), lambda i, j: (i, j)),
        ),
        compiler_params=pltpu.CompilerParams(
            dimension_semantics=("parallel", "parallel")),
    )(*args)
    return out[:M, :C]


# --------------------------- NN ops on top of the kernels --------------------

def _im2col(x, kh, kw, stride, padding):
    """NHWC -> (N*Ho*Wo, kh*kw*C) patch matrix (column order matches w.reshape(kh*kw*C, cout))."""
    N, H, W, C = x.shape
    Ho = (H + 2 * padding - kh) // stride + 1
    Wo = (W + 2 * padding - kw) // stride + 1
    if kh == 1 and kw == 1 and stride == 1 and padding == 0:
        return x.reshape(N * H * W, C), Ho, Wo
    xp = jnp.pad(x, ((0, 0), (padding, padding), (padding, padding), (0, 0))) if padding else x
    # TODO(synk): read the kh*kw taps in-kernel via an extra K grid axis / manual DMA of
    # shifted slices instead of materializing the patch matrix (matters at 224x224).
    cols = [xp[:, di:di + stride * Ho:stride, dj:dj + stride * Wo:stride, :]
            for di in range(kh) for dj in range(kw)]
    return jnp.concatenate(cols, axis=-1).reshape(N * Ho * Wo, kh * kw * C), Ho, Wo


def maxpool_3x3_s2_p1(x):
    N, H, W, C = x.shape
    xp = jnp.pad(x, ((0, 0), (1, 1), (1, 1), (0, 0)), constant_values=-jnp.inf)
    Ho = (H - 1) // 2 + 1
    Wo = (W - 1) // 2 + 1
    # TODO(synk): index the padded tensor directly inside the reduce kernel instead of
    # stacking the 9 shifted views (small here; relevant at real image sizes).
    views = [xp[:, di:di + 2 * Ho:2, dj:dj + 2 * Wo:2, :].reshape(N * Ho * Wo, C)
             for di in range(3) for dj in range(3)]
    out = window_reduce(jnp.stack(views, axis=0), "max")
    return out.reshape(N, Ho, Wo, C)


def avgpool_2x2_s2(x):
    N, H, W, C = x.shape
    assert H % 2 == 0 and W % 2 == 0, "avgpool_2x2_s2 requires even spatial dims"
    Ho, Wo = H // 2, W // 2
    views = [x[:, di::2, dj::2, :].reshape(N * Ho * Wo, C)
             for di in range(2) for dj in range(2)]
    out = window_reduce(jnp.stack(views, axis=0), "mean")
    return out.reshape(N, Ho, Wo, C)


# --------------------------- DenseNet-121 parameters (packed) ----------------

def _folded_bn_vec(key, c):
    """Inference-mode BatchNorm folded to per-channel scale/shift (running stats)."""
    # TODO(synk): train-mode BatchNorm (per-batch statistics) not implemented.
    k1, k2, k3 = jax.random.split(key, 3)
    gamma = 1.0 + 0.05 * jax.random.normal(k1, (c,), jnp.float32)
    beta = 0.1 * jax.random.normal(k2, (c,), jnp.float32)
    mean = 0.1 * jax.random.normal(k3, (c,), jnp.float32)
    var = jnp.ones((c,), jnp.float32)
    scale = gamma / jnp.sqrt(var + _BN_EPS)
    shift = beta - mean * scale
    return scale, shift


def _conv_w(key, k, cin, cout):
    fan_in = k * k * cin
    return jax.random.normal(key, (k, k, cin, cout), jnp.float32) * (2.0 / fan_in) ** 0.5


def _pack_w(w, kp=None, npad=None):
    """(kh,kw,cin,cout) conv weight -> zero-padded (Kp, Np) bf16 matmul weight."""
    kh, kw, cin, cout = w.shape
    wm = w.reshape(kh * kw * cin, cout)
    kp = kp if kp is not None else _round_up(kh * kw * cin, 128)
    npad = npad if npad is not None else _round_up(cout, 128)
    return jnp.pad(wm, ((0, kp - wm.shape[0]), (0, npad - cout))).astype(jnp.bfloat16)


def _pad_vec(v, n):
    return jnp.pad(v, ((0, n - v.shape[0]),)).reshape(1, n).astype(jnp.float32)


def init_densenet121_params(key, num_classes):
    """Synthetic (PRNGKey-seeded) DenseNet-121 weights pre-packed for the fused kernels."""
    keys = iter(jax.random.split(key, 600))
    nk = lambda: next(keys)
    params = {"blocks": [], "transitions": []}

    w0 = _conv_w(nk(), 7, 3, 64)
    s0, t0 = _folded_bn_vec(nk(), 64)           # norm0 fused as conv0 epilogue
    params["conv0"] = {"w": _pack_w(w0), "qsc": _pad_vec(s0, 128), "qsh": _pad_vec(t0, 128)}

    c = 64
    for bi, n_layers in enumerate(_BLOCK_CFG):
        ctot = c + n_layers * _GROWTH           # 256 / 512 / 1024 / 1024 (mult of 128)
        w1s, psc1s, psh1s, qsc1s, qsh1s, w2s, offs = [], [], [], [], [], [], []
        for li in range(n_layers):
            cin = c + li * _GROWTH
            s1, t1 = _folded_bn_vec(nk(), cin)                   # norm1 (conv1 prologue)
            w1 = _conv_w(nk(), 1, cin, _BN_SIZE * _GROWTH)
            s2, t2 = _folded_bn_vec(nk(), _BN_SIZE * _GROWTH)    # norm2 (conv1 epilogue)
            w2 = _conv_w(nk(), 3, _BN_SIZE * _GROWTH, _GROWTH)
            # conv1 weight rows zero-padded to the full slab width -> the whole dense-block
            # slab is fed to the MXU unsliced (channels >= cin see zero weight), and the
            # zero-padded prologue scale/shift keep those columns exactly 0 even in bf16.
            w1s.append(_pack_w(w1, kp=ctot, npad=128))
            psc1s.append(_pad_vec(s1, ctot)); psh1s.append(_pad_vec(t1, ctot))
            qsc1s.append(_pad_vec(s2, 128));  qsh1s.append(_pad_vec(t2, 128))
            w2s.append(_pack_w(w2))                              # (1152, 128); 32 valid cols
            offs.append(cin)
        params["blocks"].append({
            "w1": jnp.stack(w1s), "psc1": jnp.stack(psc1s), "psh1": jnp.stack(psh1s),
            "qsc1": jnp.stack(qsc1s), "qsh1": jnp.stack(qsh1s),
            "w2": jnp.stack(w2s), "off": jnp.asarray(offs, jnp.int32),
        })
        c = ctot
        if bi != len(_BLOCK_CFG) - 1:
            st, tt = _folded_bn_vec(nk(), c)                     # transition norm (prologue)
            wt = _conv_w(nk(), 1, c, c // 2)
            params["transitions"].append(
                {"w": _pack_w(wt), "psc": _pad_vec(st, c), "psh": _pad_vec(tt, c)})
            c //= 2

    s5, t5 = _folded_bn_vec(nk(), c)            # c == 1024; fused into the GAP kernel
    params["norm5"] = {"sc": _pad_vec(s5, c), "sh": _pad_vec(t5, c)}
    ncp = _round_up(num_classes, 128)
    wc = jax.random.normal(nk(), (c, num_classes), jnp.float32) / jnp.sqrt(float(c))
    bc = 0.01 * jax.random.normal(nk(), (num_classes,), jnp.float32)
    params["classifier"] = {
        "w": jnp.pad(wc, ((0, 0), (0, ncp - num_classes))).astype(jnp.bfloat16),
        "qsc": jnp.ones((1, ncp), jnp.float32),
        "qsh": _pad_vec(bc, ncp),
        "b": bc,                                # unpadded; only its shape is used
    }
    return params


# --------------------------- Forward pass ------------------------------------

def _dense_block(slab, bp, M, Nb, H, W):
    """Run one dense block with a lax.scan over its (shape-uniform) layers."""
    K = _BN_SIZE * _GROWTH  # 128

    def body(slab, lp):
        # norm1+relu (prologue) -> 1x1 conv -> norm2+relu (epilogue), one fused kernel.
        # slab is already (Mp, ctot) bf16, so fused_matmul takes it with no extra pad copy.
        t = fused_matmul(slab, lp["w1"],
                         pre=(lp["psc1"], lp["psh1"]), pre_relu=True,
                         post=(lp["qsc1"], lp["qsh1"]), post_relu=True)
        t = t[:M, :K].reshape(Nb, H, W, K)
        # 3x3 conv (im2col + matmul), raw 32-channel output written into the slab slice.
        p2, _, _ = _im2col(t, 3, 3, 1, 1)
        y = fused_matmul(p2, lp["w2"])[:M, :_GROWTH]
        # TODO(synk): write the 32 growth channels straight into the slab from the kernel
        # (input_output_aliases + scalar-prefetched offset) instead of this DUS.
        slab = lax.dynamic_update_slice(slab, y, (0, lp["off"]))
        return slab, None

    slab, _ = lax.scan(body, slab, bp)
    return slab


@jax.jit
def cnn_model_forward(params, x_nchw):
    """CNNModel.forward: DenseNet-121 features -> ReLU -> GAP -> Linear(num_classes)."""
    x = jnp.transpose(x_nchw, (0, 2, 3, 1)).astype(jnp.bfloat16)   # NCHW -> NHWC, bf16 acts
    N = x.shape[0]

    # conv0 (7x7/2, p3) + norm0 + relu (fused epilogue), then maxpool 3x3/2.
    patches, Ho, Wo = _im2col(x, 7, 7, 2, 3)
    y = fused_matmul(patches, params["conv0"]["w"],
                     post=(params["conv0"]["qsc"], params["conv0"]["qsh"]), post_relu=True)
    x = y[:N * Ho * Wo, :64].reshape(N, Ho, Wo, 64)
    x = maxpool_3x3_s2_p1(x)

    c = 64
    for bi, bp in enumerate(params["blocks"]):
        Nb, H, W, _ = x.shape
        M = Nb * H * W
        Mp = _row_pad(M)
        ctot = c + int(bp["off"].shape[0]) * _GROWTH
        # Pre-allocated channel slab (replaces O(L^2) jnp.concatenate across dense layers).
        slab = jnp.zeros((Mp, ctot), jnp.bfloat16)
        slab = slab.at[:M, :c].set(x.reshape(M, c))
        slab = _dense_block(slab, bp, M, Nb, H, W)
        c = ctot
        if bi < len(params["transitions"]):
            tr = params["transitions"][bi]
            # transition: norm+relu (prologue) -> 1x1 conv -> avgpool 2x2/2.
            z = fused_matmul(slab, tr["w"], pre=(tr["psc"], tr["psh"]), pre_relu=True)
            c //= 2
            z = z[:M, :c].reshape(Nb, H, W, c)
            x = avgpool_2x2_s2(z)
        else:
            x = slab[:M].reshape(Nb, H, W, c)

    # norm5 + relu fused into global-average-pool, then the classifier matmul (+bias).
    Nb, H, W, C = x.shape
    stacked = jnp.transpose(x.reshape(Nb, H * W, C), (1, 0, 2))    # (HW, N, C)
    feats = window_reduce(stacked, "mean",
                          affine=(params["norm5"]["sc"], params["norm5"]["sh"]))
    logits = fused_matmul(feats, params["classifier"]["w"],
                          post=(params["classifier"]["qsc"], params["classifier"]["qsh"]),
                          post_relu=False, out_dtype=jnp.float32)
    nc = params["classifier"]["b"].shape[0]
    return logits[:Nb, :nc]


if __name__ == "__main__":
    class_names = ["cat", "dog", "car", "tree"]
    key = jax.random.PRNGKey(0)
    pkey, xkey = jax.random.split(key)
    params = init_densenet121_params(pkey, num_classes=len(class_names))
    x = jax.random.normal(xkey, (2, 3, 32, 32), jnp.float32)   # NCHW like PyTorch
    logits = jax.block_until_ready(cnn_model_forward(params, x))
    assert logits.shape == (2, len(class_names)), logits.shape
    assert bool(jnp.all(jnp.isfinite(logits)))
    print("KERNEL_OK")
</pallas_src>

<mosaic_0001>
module attributes {stable_mosaic.version = 11 : i64} {
  func.func @_mm_fused_kernel(%arg0: i32, %arg1: i32, %arg2: memref<512x256xbf16, #tpu.memory_space<vmem>>, %arg3: memref<256x128xbf16, #tpu.memory_space<vmem>>, %arg4: memref<1x128xf32, #tpu.memory_space<vmem>>, %arg5: memref<1x128xf32, #tpu.memory_space<vmem>>, %arg6: memref<512x128xbf16, #tpu.memory_space<vmem>>) attributes {dimension_semantics = [#tpu.dimension_semantics<parallel>, #tpu.dimension_semantics<arbitrary>], iteration_bounds = array<i64: 1, 1>, scalar_prefetch = 0 : i64, scratch_operands = 0 : i64, tpu.core_type = #tpu.core_type<tc>, window_params = [{transform_indices = @transform_0, window_bounds = array<i64: 512, 256>}, {transform_indices = @transform_1, window_bounds = array<i64: 256, 128>}, {transform_indices = @transform_2, window_bounds = array<i64: 1, 128>}, {transform_indices = @transform_3, window_bounds = array<i64: 1, 128>}, {transform_indices = @transform_4, window_bounds = array<i64: 512, 128>}]} {
    %c0 = arith.constant 0 : index
    %c0_0 = arith.constant 0 : index
    %0 = vector.load %arg2[%c0, %c0_0] : memref<512x256xbf16, #tpu.memory_space<vmem>>, vector<512x256xbf16>
    %c0_1 = arith.constant 0 : index
    %c0_2 = arith.constant 0 : index
    %1 = vector.load %arg3[%c0_1, %c0_2] : memref<256x128xbf16, #tpu.memory_space<vmem>>, vector<256x128xbf16>
    %cst = arith.constant dense<0.000000e+00> : vector<512x128xf32>
    %2 = tpu.matmul %0, %1, %cst {dimension_numbers = #tpu.dot_dimension_numbers<[1], [0], [0], [1], [0, 0, 1, 1], [], []>} : vector<512x256xbf16>, vector<256x128xbf16>, vector<512x128xf32> -> vector<512x128xf32>
    %c0_3 = arith.constant 0 : index
    %c0_4 = arith.constant 0 : index
    %3 = vector.load %arg4[%c0_3, %c0_4] : memref<1x128xf32, #tpu.memory_space<vmem>>, vector<1x128xf32>
    %4 = vector.broadcast %3 : vector<1x128xf32> to vector<512x128xf32>
    %5 = arith.mulf %2, %4 : vector<512x128xf32>
    %c0_5 = arith.constant 0 : index
    %c0_6 = arith.constant 0 : index
    %6 = vector.load %arg5[%c0_5, %c0_6] : memref<1x128xf32, #tpu.memory_space<vmem>>, vector<1x128xf32>
    %7 = vector.broadcast %6 : vector<1x128xf32> to vector<512x128xf32>
    %8 = arith.addf %5, %7 : vector<512x128xf32>
    %cst_7 = arith.constant 0.000000e+00 : f32
    %9 = vector.broadcast %cst_7 : f32 to vector<512x128xf32>
    %10 = arith.maximumf %8, %9 : vector<512x128xf32>
    %11 = arith.truncf %10 : vector<512x128xf32> to vector<512x128xbf16>
    %c0_8 = arith.constant 0 : index
    %c0_9 = arith.constant 0 : index
    %12 = vector.load %arg6[%c0_8, %c0_9] : memref<512x128xbf16, #tpu.memory_space<vmem>>, vector<512x128xbf16>
    tpu.vector_store %arg6[%c0_8, %c0_9], %11 {strides = array<i32>} : memref<512x128xbf16, #tpu.memory_space<vmem>>, vector<512x128xbf16>,
    return
  }
  func.func @transform_0(%arg0: i32, %arg1: i32) -> (i32, i32) {
    %c0_i32 = arith.constant 0 : i32
    %c0_i32_0 = arith.constant 0 : i32
    return %arg0, %c0_i32 : i32, i32
  }
  func.func @transform_1(%arg0: i32, %arg1: i32) -> (i32, i32) {
    %c0_i32 = arith.constant 0 : i32
    %c0_i32_0 = arith.constant 0 : i32
    return %c0_i32, %arg1 : i32, i32
  }
  func.func @transform_2(%arg0: i32, %arg1: i32) -> (i32, i32) {
    %c0_i32 = arith.constant 0 : i32
    %c0_i32_0 = arith.constant 0 : i32
    return %c0_i32, %arg1 : i32, i32
  }
  func.func @transform_3(%arg0: i32, %arg1: i32) -> (i32, i32) {
    %c0_i32 = arith.constant 0 : i32
    %c0_i32_0 = arith.constant 0 : i32
    return %c0_i32, %arg1 : i32, i32
  }
  func.func @transform_4(%arg0: i32, %arg1: i32) -> (i32, i32) {
    %c0_i32 = arith.constant 0 : i32
    return %arg0, %arg1 : i32, i32
  }
}

module attributes {stable_mosaic.version = 11 : i64} {
  func.func @_window_reduce_kernel(%arg0: i32, %arg1: i32, %arg2: memref<9x128x128xbf16, #tpu.memory_space<vmem>>, %arg3: memref<128x128xbf16, #tpu.memory_space<vmem>>) attributes {dimension_semantics = [#tpu.dimension_semantics<parallel>, #tpu.dimension_semantics<parallel>], iteration_bounds = array<i64: 1, 1>, scalar_prefetch = 0 : i64, scratch_operands = 0 : i64, tpu.core_type = #tpu.core_type<tc>, window_params = [{transform_indices = @transform_0, window_bounds = array<i64: 9, 128, 128>}, {transform_indices = @transform_1, window_bounds = array<i64: 128, 128>}]} {
    %c0 = arith.constant 0 : index
    %c0_0 = arith.constant 0 : index
    %c0_1 = arith.constant 0 : index
    %0 = vector.load %arg2[%c0, %c0_0, %c0_1] : memref<9x128x128xbf16, #tpu.memory_space<vmem>>, vector<1x128x128xbf16>
    %1 = vector.shape_cast %0 : vector<1x128x128xbf16> to vector<128x128xbf16>
    %c1 = arith.constant 1 : index
    %c0_2 = arith.constant 0 : index
    %c0_3 = arith.constant 0 : index
    %2 = vector.load %arg2[%c1, %c0_2, %c0_3] : memref<9x128x128xbf16, #tpu.memory_space<vmem>>, vector<1x128x128xbf16>
    %3 = vector.shape_cast %2 : vector<1x128x128xbf16> to vector<128x128xbf16>
    %4 = arith.maximumf %1, %3 : vector<128x128xbf16>
    %c2 = arith.constant 2 : index
    %c0_4 = arith.constant 0 : index
    %c0_5 = arith.constant 0 : index
    %5 = vector.load %arg2[%c2, %c0_4, %c0_5] : memref<9x128x128xbf16, #tpu.memory_space<vmem>>, vector<1x128x128xbf16>
    %6 = vector.shape_cast %5 : vector<1x128x128xbf16> to vector<128x128xbf16>
    %7 = arith.maximumf %4, %6 : vector<128x128xbf16>
    %c3 = arith.constant 3 : index
    %c0_6 = arith.constant 0 : index
    %c0_7 = arith.constant 0 : index
    %8 = vector.load %arg2[%c3, %c0_6, %c0_7] : memref<9x128x128xbf16, #tpu.memory_space<vmem>>, vector<1x128x128xbf16>
    %9 = vector.shape_cast %8 : vector<1x128x128xbf16> to vector<128x128xbf16>
    %10 = arith.maximumf %7, %9 : vector<128x128xbf16>
    %c4 = arith.constant 4 : index
    %c0_8 = arith.constant 0 : index
    %c0_9 = arith.constant 0 : index
    %11 = vector.load %arg2[%c4, %c0_8, %c0_9] : memref<9x128x128xbf16, #tpu.memory_space<vmem>>, vector<1x128x128xbf16>
    %12 = vector.shape_cast %11 : vector<1x128x128xbf16> to vector<128x128xbf16>
    %13 = arith.maximumf %10, %12 : vector<128x128xbf16>
    %c5 = arith.constant 5 : index
    %c0_10 = arith.constant 0 : index
    %c0_11 = arith.constant 0 : index
    %14 = vector.load %arg2[%c5, %c0_10, %c0_11] : memref<9x128x128xbf16, #tpu.memory_space<vmem>>, vector<1x128x128xbf16>
    %15 = vector.shape_cast %14 : vector<1x128x128xbf16> to vector<128x128xbf16>
    %16 = arith.maximumf %13, %15 : vector<128x128xbf16>
    %c6 = arith.constant 6 : index
    %c0_12 = arith.constant 0 : index
    %c0_13 = arith.constant 0 : index
    %17 = vector.load %arg2[%c6, %c0_12, %c0_13] : memref<9x128x128xbf16, #tpu.memory_space<vmem>>, vector<1x128x128xbf16>
    %18 = vector.shape_cast %17 : vector<1x128x128xbf16> to vector<128x128xbf16>
    %19 = arith.maximumf %16, %18 : vector<128x128xbf16>
    %c7 = arith.constant 7 : index
    %c0_14 = arith.constant 0 : index
    %c0_15 = arith.constant 0 : index
    %20 = vector.load %arg2[%c7, %c0_14, %c0_15] : memref<9x128x128xbf16, #tpu.memory_space<vmem>>, vector<1x128x128xbf16>
    %21 = vector.shape_cast %20 : vector<1x128x128xbf16> to vector<128x128xbf16>
    %22 = arith.maximumf %19, %21 : vector<128x128xbf16>
    %c8 = arith.constant 8 : index
    %c0_16 = arith.constant 0 : index
    %c0_17 = arith.constant 0 : index
    %23 = vector.load %arg2[%c8, %c0_16, %c0_17] : memref<9x128x128xbf16, #tpu.memory_space<vmem>>, vector<1x128x128xbf16>
    %24 = vector.shape_cast %23 : vector<1x128x128xbf16> to vector<128x128xbf16>
    %25 = arith.maximumf %22, %24 : vector<128x128xbf16>
    %c0_18 = arith.constant 0 : index
    %c0_19 = arith.constant 0 : index
    %26 = vector.load %arg3[%c0_18, %c0_19] : memref<128x128xbf16, #tpu.memory_space<vmem>>, vector<128x128xbf16>
    tpu.vector_store %arg3[%c0_18, %c0_19], %25 {strides = array<i32>} : memref<128x128xbf16, #tpu.memory_space<vmem>>, vector<128x128xbf16>,
    return
  }
  func.func @transform_0(%arg0: i32, %arg1: i32) -> (i32, i32, i32) {
    %c0_i32 = arith.constant 0 : i32
    %c0_i32_0 = arith.constant 0 : i32
    return %c0_i32, %arg0, %arg1 : i32, i32, i32
  }
  func.func @transform_1(%arg0: i32, %arg1: i32) -> (i32, i32) {
    %c0_i32 = arith.constant 0 : i32
    return %arg0, %arg1 : i32, i32
  }
}

module attributes {stable_mosaic.version = 11 : i64} {
  func.func @_mm_fused_kernel(%arg0: i32, %arg1: i32, %arg2: memref<128x256xbf16, #tpu.memory_space<vmem>>, %arg3: memref<256x128xbf16, #tpu.memory_space<vmem>>, %arg4: memref<1x256xf32, #tpu.memory_space<vmem>>, %arg5: memref<1x256xf32, #tpu.memory_space<vmem>>, %arg6: memref<1x128xf32, #tpu.memory_space<vmem>>, %arg7: memref<1x128xf32, #tpu.memory_space<vmem>>, %arg8: memref<128x128xbf16, #tpu.memory_space<vmem>>) attributes {dimension_semantics = [#tpu.dimension_semantics<parallel>, #tpu.dimension_semantics<arbitrary>], iteration_bounds = array<i64: 1, 1>, scalar_prefetch = 0 : i64, scratch_operands = 0 : i64, tpu.core_type = #tpu.core_type<tc>, window_params = [{transform_indices = @transform_0, window_bounds = array<i64: 128, 256>}, {transform_indices = @transform_1, window_bounds = array<i64: 256, 128>}, {pipeline_mode = #tpu.pipeline_mode<synchronous>, transform_indices = @transform_2, window_bounds = array<i64: 1, 256>}, {pipeline_mode = #tpu.pipeline_mode<synchronous>, transform_indices = @transform_3, window_bounds = array<i64: 1, 256>}, {transform_indices = @transform_4, window_bounds = array<i64: 1, 128>}, {transform_indices = @transform_5, window_bounds = array<i64: 1, 128>}, {transform_indices = @transform_6, window_bounds = array<i64: 128, 128>}]} {
    %c0 = arith.constant 0 : index
    %c0_0 = arith.constant 0 : index
    %0 = vector.load %arg2[%c0, %c0_0] : memref<128x256xbf16, #tpu.memory_space<vmem>>, vector<128x256xbf16>
    %c0_1 = arith.constant 0 : index
    %c0_2 = arith.constant 0 : index
    %1 = vector.load %arg4[%c0_1, %c0_2] : memref<1x256xf32, #tpu.memory_space<vmem>>, vector<1x256xf32>
    %2 = arith.truncf %1 : vector<1x256xf32> to vector<1x256xbf16>
    %c0_3 = arith.constant 0 : index
    %c0_4 = arith.constant 0 : index
    %3 = vector.load %arg5[%c0_3, %c0_4] : memref<1x256xf32, #tpu.memory_space<vmem>>, vector<1x256xf32>
    %4 = arith.truncf %3 : vector<1x256xf32> to vector<1x256xbf16>
    %5 = vector.broadcast %2 : vector<1x256xbf16> to vector<128x256xbf16>
    %6 = arith.mulf %0, %5 : vector<128x256xbf16>
    %7 = vector.broadcast %4 : vector<1x256xbf16> to vector<128x256xbf16>
    %8 = arith.addf %6, %7 : vector<128x256xbf16>
    %cst = arith.constant 0.000000e+00 : bf16
    %9 = vector.broadcast %cst : bf16 to vector<128x256xbf16>
    %10 = arith.maximumf %8, %9 : vector<128x256xbf16>
    %c0_5 = arith.constant 0 : index
    %c0_6 = arith.constant 0 : index
    %11 = vector.load %arg3[%c0_5, %c0_6] : memref<256x128xbf16, #tpu.memory_space<vmem>>, vector<256x128xbf16>
    %cst_7 = arith.constant dense<0.000000e+00> : vector<128x128xf32>
    %12 = tpu.matmul %10, %11, %cst_7 {dimension_numbers = #tpu.dot_dimension_numbers<[1], [0], [0], [1], [0, 0, 1, 1], [], []>} : vector<128x256xbf16>, vector<256x128xbf16>, vector<128x128xf32> -> vector<128x128xf32>
    %c0_8 = arith.constant 0 : index
    %c0_9 = arith.constant 0 : index
    %13 = vector.load %arg6[%c0_8, %c0_9] : memref<1x128xf32, #tpu.memory_space<vmem>>, vector<1x128xf32>
    %14 = vector.broadcast %13 : vector<1x128xf32> to vector<128x128xf32>
    %15 = arith.mulf %12, %14 : vector<128x128xf32>
    %c0_10 = arith.constant 0 : index
    %c0_11 = arith.constant 0 : index
    %16 = vector.load %arg7[%c0_10, %c0_11] : memref<1x128xf32, #tpu.memory_space<vmem>>, vector<1x128xf32>
    %17 = vector.broadcast %16 : vector<1x128xf32> to vector<128x128xf32>
    %18 = arith.addf %15, %17 : vector<128x128xf32>
    %cst_12 = arith.constant 0.000000e+00 : f32
    %19 = vector.broadcast %cst_12 : f32 to vector<128x128xf32>
    %20 = arith.maximumf %18, %19 : vector<128x128xf32>
    %21 = arith.truncf %20 : vector<128x128xf32> to vector<128x128xbf16>
    %c0_13 = arith.constant 0 : index
    %c0_14 = arith.constant 0 : index
    %22 = vector.load %arg8[%c0_13, %c0_14] : memref<128x128xbf16, #tpu.memory_space<vmem>>, vector<128x128xbf16>
    tpu.vector_store %arg8[%c0_13, %c0_14], %21 {strides = array<i32>} : memref<128x128xbf16, #tpu.memory_space<vmem>>, vector<128x128xbf16>,
    return
  }
  func.func @transform_0(%arg0: i32, %arg1: i32) -> (i32, i32) {
    %c0_i32 = arith.constant 0 : i32
    %c0_i32_0 = arith.constant 0 : i32
    return %arg0, %c0_i32 : i32, i32
  }
  func.func @transform_1(%arg0: i32, %arg1: i32) -> (i32, i32) {
    %c0_i32 = arith.constant 0 : i32
    %c0_i32_0 = arith.constant 0 : i32
    return %c0_i32, %arg1 : i32, i32
  }
  func.func @transform_2(%arg0: i32, %arg1: i32) -> (i32, i32) {
    %c0_i32 = arith.constant 0 : i32
    %c0_i32_0 = arith.constant 0 : i32
    %c0_i32_1 = arith.constant 0 : i32
    return %c0_i32, %c0_i32_0 : i32, i32
  }
  func.func @transform_3(%arg0: i32, %arg1: i32) -> (i32, i32) {
    %c0_i32 = arith.constant 0 : i32
    %c0_i32_0 = arith.constant 0 : i32
    %c0_i32_1 = arith.constant 0 : i32
    return %c0_i32, %c0_i32_0 : i32, i32
  }
  func.func @transform_4(%arg0: i32, %arg1: i32) -> (i32, i32) {
    %c0_i32 = arith.constant 0 : i32
    %c0_i32_0 = arith.constant 0 : i32
    return %c0_i32, %arg1 : i32, i32
  }
  func.func @transform_5(%arg0: i32, %arg1: i32) -> (i32, i32) {
    %c0_i32 = arith.constant 0 : i32
    %c0_i32_0 = arith.constant 0 : i32
    return %c0_i32, %arg1 : i32, i32
  }
  func.func @transform_6(%arg0: i32, %arg1: i32) -> (i32, i32) {
    %c0_i32 = arith.constant 0 : i32
    return %arg0, %arg1 : i32, i32
  }
}

module attributes {stable_mosaic.version = 11 : i64} {
  func.func @_mm_fused_kernel(%arg0: i32, %arg1: i32, %arg2: memref<128x1152xbf16, #tpu.memory_space<vmem>>, %arg3: memref<1152x128xbf16, #tpu.memory_space<vmem>>, %arg4: memref<128x128xbf16, #tpu.memory_space<vmem>>) attributes {dimension_semantics = [#tpu.dimension_semantics<parallel>, #tpu.dimension_semantics<arbitrary>], iteration_bounds = array<i64: 1, 1>, scalar_prefetch = 0 : i64, scratch_operands = 0 : i64, tpu.core_type = #tpu.core_type<tc>, window_params = [{transform_indices = @transform_0, window_bounds = array<i64: 128, 1152>}, {transform_indices = @transform_1, window_bounds = array<i64: 1152, 128>}, {transform_indices = @transform_2, window_bounds = array<i64: 128, 128>}]} {
    %c0 = arith.constant 0 : index
    %c0_0 = arith.constant 0 : index
    %0 = vector.load %arg2[%c0, %c0_0] : memref<128x1152xbf16, #tpu.memory_space<vmem>>, vector<128x1152xbf16>
    %c0_1 = arith.constant 0 : index
    %c0_2 = arith.constant 0 : index
    %1 = vector.load %arg3[%c0_1, %c0_2] : memref<1152x128xbf16, #tpu.memory_space<vmem>>, vector<1152x128xbf16>
    %cst = arith.constant dense<0.000000e+00> : vector<128x128xf32>
    %2 = tpu.matmul %0, %1, %cst {dimension_numbers = #tpu.dot_dimension_numbers<[1], [0], [0], [1], [0, 0, 1, 1], [], []>} : vector<128x1152xbf16>, vector<1152x128xbf16>, vector<128x128xf32> -> vector<128x128xf32>
    %3 = arith.truncf %2 : vector<128x128xf32> to vector<128x128xbf16>
    %c0_3 = arith.constant 0 : index
    %c0_4 = arith.constant 0 : index
    %4 = vector.load %arg4[%c0_3, %c0_4] : memref<128x128xbf16, #tpu.memory_space<vmem>>, vector<128x128xbf16>
    tpu.vector_store %arg4[%c0_3, %c0_4], %3 {strides = array<i32>} : memref<128x128xbf16, #tpu.memory_space<vmem>>, vector<128x128xbf16>,
    return
  }
  func.func @transform_0(%arg0: i32, %arg1: i32) -> (i32, i32) {
    %c0_i32 = arith.constant 0 : i32
    %c0_i32_0 = arith.constant 0 : i32
    return %arg0, %c0_i32 : i32, i32
  }
  func.func @transform_1(%arg0: i32, %arg1: i32) -> (i32, i32) {
    %c0_i32 = arith.constant 0 : i32
    %c0_i32_0 = arith.constant 0 : i32
    return %c0_i32, %arg1 : i32, i32
  }
  func.func @transform_2(%arg0: i32, %arg1: i32) -> (i32, i32) {
    %c0_i32 = arith.constant 0 : i32
    return %arg0, %arg1 : i32, i32
  }
}

module attributes {stable_mosaic.version = 11 : i64} {
  func.func @_mm_fused_kernel(%arg0: i32, %arg1: i32, %arg2: memref<128x256xbf16, #tpu.memory_space<vmem>>, %arg3: memref<256x128xbf16, #tpu.memory_space<vmem>>, %arg4: memref<1x256xf32, #tpu.memory_space<vmem>>, %arg5: memref<1x256xf32, #tpu.memory_space<vmem>>, %arg6: memref<128x128xbf16, #tpu.memory_space<vmem>>) attributes {dimension_semantics = [#tpu.dimension_semantics<parallel>, #tpu.dimension_semantics<arbitrary>], iteration_bounds = array<i64: 1, 1>, scalar_prefetch = 0 : i64, scratch_operands = 0 : i64, tpu.core_type = #tpu.core_type<tc>, window_params = [{transform_indices = @transform_0, window_bounds = array<i64: 128, 256>}, {transform_indices = @transform_1, window_bounds = array<i64: 256, 128>}, {pipeline_mode = #tpu.pipeline_mode<synchronous>, transform_indices = @transform_2, window_bounds = array<i64: 1, 256>}, {pipeline_mode = #tpu.pipeline_mode<synchronous>, transform_indices = @transform_3, window_bounds = array<i64: 1, 256>}, {transform_indices = @transform_4, window_bounds = array<i64: 128, 128>}]} {
    %c0 = arith.constant 0 : index
    %c0_0 = arith.constant 0 : index
    %0 = vector.load %arg2[%c0, %c0_0] : memref<128x256xbf16, #tpu.memory_space<vmem>>, vector<128x256xbf16>
    %c0_1 = arith.constant 0 : index
    %c0_2 = arith.constant 0 : index
    %1 = vector.load %arg4[%c0_1, %c0_2] : memref<1x256xf32, #tpu.memory_space<vmem>>, vector<1x256xf32>
    %2 = arith.truncf %1 : vector<1x256xf32> to vector<1x256xbf16>
    %c0_3 = arith.constant 0 : index
    %c0_4 = arith.constant 0 : index
    %3 = vector.load %arg5[%c0_3, %c0_4] : memref<1x256xf32, #tpu.memory_space<vmem>>, vector<1x256xf32>
    %4 = arith.truncf %3 : vector<1x256xf32> to vector<1x256xbf16>
    %5 = vector.broadcast %2 : vector<1x256xbf16> to vector<128x256xbf16>
    %6 = arith.mulf %0, %5 : vector<128x256xbf16>
    %7 = vector.broadcast %4 : vector<1x256xbf16> to vector<128x256xbf16>
    %8 = arith.addf %6, %7 : vector<128x256xbf16>
    %cst = arith.constant 0.000000e+00 : bf16
    %9 = vector.broadcast %cst : bf16 to vector<128x256xbf16>
    %10 = arith.maximumf %8, %9 : vector<128x256xbf16>
    %c0_5 = arith.constant 0 : index
    %c0_6 = arith.constant 0 : index
    %11 = vector.load %arg3[%c0_5, %c0_6] : memref<256x128xbf16, #tpu.memory_space<vmem>>, vector<256x128xbf16>
    %cst_7 = arith.constant dense<0.000000e+00> : vector<128x128xf32>
    %12 = tpu.matmul %10, %11, %cst_7 {dimension_numbers = #tpu.dot_dimension_numbers<[1], [0], [0], [1], [0, 0, 1, 1], [], []>} : vector<128x256xbf16>, vector<256x128xbf16>, vector<128x128xf32> -> vector<128x128xf32>
    %13 = arith.truncf %12 : vector<128x128xf32> to vector<128x128xbf16>
    %c0_8 = arith.constant 0 : index
    %c0_9 = arith.constant 0 : index
    %14 = vector.load %arg6[%c0_8, %c0_9] : memref<128x128xbf16, #tpu.memory_space<vmem>>, vector<128x128xbf16>
    tpu.vector_store %arg6[%c0_8, %c0_9], %13 {strides = array<i32>} : memref<128x128xbf16, #tpu.memory_space<vmem>>, vector<128x128xbf16>,
    return
  }
  func.func @transform_0(%arg0: i32, %arg1: i32) -> (i32, i32) {
    %c0_i32 = arith.constant 0 : i32
    %c0_i32_0 = arith.constant 0 : i32
    return %arg0, %c0_i32 : i32, i32
  }
  func.func @transform_1(%arg0: i32, %arg1: i32) -> (i32, i32) {
    %c0_i32 = arith.constant 0 : i32
    %c0_i32_0 = arith.constant 0 : i32
    return %c0_i32, %arg1 : i32, i32
  }
  func.func @transform_2(%arg0: i32, %arg1: i32) -> (i32, i32) {
    %c0_i32 = arith.constant 0 : i32
    %c0_i32_0 = arith.constant 0 : i32
    %c0_i32_1 = arith.constant 0 : i32
    return %c0_i32, %c0_i32_0 : i32, i32
  }
  func.func @transform_3(%arg0: i32, %arg1: i32) -> (i32, i32) {
    %c0_i32 = arith.constant 0 : i32
    %c0_i32_0 = arith.constant 0 : i32
    %c0_i32_1 = arith.constant 0 : i32
    return %c0_i32, %c0_i32_0 : i32, i32
  }
  func.func @transform_4(%arg0: i32, %arg1: i32) -> (i32, i32) {
    %c0_i32 = arith.constant 0 : i32
    return %arg0, %arg1 : i32, i32
  }
}

module attributes {stable_mosaic.version = 11 : i64} {
  func.func @_window_reduce_kernel(%arg0: i32, %arg1: i32, %arg2: memref<4x32x128xbf16, #tpu.memory_space<vmem>>, %arg3: memref<32x128xbf16, #tpu.memory_space<vmem>>) attributes {dimension_semantics = [#tpu.dimension_semantics<parallel>, #tpu.dimension_semantics<parallel>], iteration_bounds = array<i64: 1, 1>, scalar_prefetch = 0 : i64, scratch_operands = 0 : i64, tpu.core_type = #tpu.core_type<tc>, window_params = [{transform_indices = @transform_0, window_bounds = array<i64: 4, 32, 128>}, {transform_indices = @transform_1, window_bounds = array<i64: 32, 128>}]} {
    %c0 = arith.constant 0 : index
    %c0_0 = arith.constant 0 : index
    %c0_1 = arith.constant 0 : index
    %0 = vector.load %arg2[%c0, %c0_0, %c0_1] : memref<4x32x128xbf16, #tpu.memory_space<vmem>>, vector<1x32x128xbf16>
    %1 = vector.shape_cast %0 : vector<1x32x128xbf16> to vector<32x128xbf16>
    %2 = arith.extf %1 : vector<32x128xbf16> to vector<32x128xf32>
    %c1 = arith.constant 1 : index
    %c0_2 = arith.constant 0 : index
    %c0_3 = arith.constant 0 : index
    %3 = vector.load %arg2[%c1, %c0_2, %c0_3] : memref<4x32x128xbf16, #tpu.memory_space<vmem>>, vector<1x32x128xbf16>
    %4 = vector.shape_cast %3 : vector<1x32x128xbf16> to vector<32x128xbf16>
    %5 = arith.extf %4 : vector<32x128xbf16> to vector<32x128xf32>
    %6 = arith.addf %2, %5 : vector<32x128xf32>
    %c2 = arith.constant 2 : index
    %c0_4 = arith.constant 0 : index
    %c0_5 = arith.constant 0 : index
    %7 = vector.load %arg2[%c2, %c0_4, %c0_5] : memref<4x32x128xbf16, #tpu.memory_space<vmem>>, vector<1x32x128xbf16>
    %8 = vector.shape_cast %7 : vector<1x32x128xbf16> to vector<32x128xbf16>
    %9 = arith.extf %8 : vector<32x128xbf16> to vector<32x128xf32>
    %10 = arith.addf %6, %9 : vector<32x128xf32>
    %c3 = arith.constant 3 : index
    %c0_6 = arith.constant 0 : index
    %c0_7 = arith.constant 0 : index
    %11 = vector.load %arg2[%c3, %c0_6, %c0_7] : memref<4x32x128xbf16, #tpu.memory_space<vmem>>, vector<1x32x128xbf16>
    %12 = vector.shape_cast %11 : vector<1x32x128xbf16> to vector<32x128xbf16>
    %13 = arith.extf %12 : vector<32x128xbf16> to vector<32x128xf32>
    %14 = arith.addf %10, %13 : vector<32x128xf32>
    %cst = arith.constant 2.500000e-01 : f32
    %15 = vector.broadcast %cst : f32 to vector<32x128xf32>
    %16 = arith.mulf %14, %15 : vector<32x128xf32>
    %17 = arith.truncf %16 : vector<32x128xf32> to vector<32x128xbf16>
    %c0_8 = arith.constant 0 : index
    %c0_9 = arith.constant 0 : index
    %18 = vector.load %arg3[%c0_8, %c0_9] : memref<32x128xbf16, #tpu.memory_space<vmem>>, vector<32x128xbf16>
    tpu.vector_store %arg3[%c0_8, %c0_9], %17 {strides = array<i32>} : memref<32x128xbf16, #tpu.memory_space<vmem>>, vector<32x128xbf16>,
    return
  }
  func.func @transform_0(%arg0: i32, %arg1: i32) -> (i32, i32, i32) {
    %c0_i32 = arith.constant 0 : i32
    %c0_i32_0 = arith.constant 0 : i32
    return %c0_i32, %arg0, %arg1 : i32, i32, i32
  }
  func.func @transform_1(%arg0: i32, %arg1: i32) -> (i32, i32) {
    %c0_i32 = arith.constant 0 : i32
    return %arg0, %arg1 : i32, i32
  }
}

module attributes {stable_mosaic.version = 11 : i64} {
  func.func @_mm_fused_kernel(%arg0: i32, %arg1: i32, %arg2: memref<32x512xbf16, #tpu.memory_space<vmem>>, %arg3: memref<512x128xbf16, #tpu.memory_space<vmem>>, %arg4: memref<1x512xf32, #tpu.memory_space<vmem>>, %arg5: memref<1x512xf32, #tpu.memory_space<vmem>>, %arg6: memref<1x128xf32, #tpu.memory_space<vmem>>, %arg7: memref<1x128xf32, #tpu.memory_space<vmem>>, %arg8: memref<32x128xbf16, #tpu.memory_space<vmem>>) attributes {dimension_semantics = [#tpu.dimension_semantics<parallel>, #tpu.dimension_semantics<arbitrary>], iteration_bounds = array<i64: 1, 1>, scalar_prefetch = 0 : i64, scratch_operands = 0 : i64, tpu.core_type = #tpu.core_type<tc>, window_params = [{transform_indices = @transform_0, window_bounds = array<i64: 32, 512>}, {transform_indices = @transform_1, window_bounds = array<i64: 512, 128>}, {pipeline_mode = #tpu.pipeline_mode<synchronous>, transform_indices = @transform_2, window_bounds = array<i64: 1, 512>}, {pipeline_mode = #tpu.pipeline_mode<synchronous>, transform_indices = @transform_3, window_bounds = array<i64: 1, 512>}, {transform_indices = @transform_4, window_bounds = array<i64: 1, 128>}, {transform_indices = @transform_5, window_bounds = array<i64: 1, 128>}, {transform_indices = @transform_6, window_bounds = array<i64: 32, 128>}]} {
    %c0 = arith.constant 0 : index
    %c0_0 = arith.constant 0 : index
    %0 = vector.load %arg2[%c0, %c0_0] : memref<32x512xbf16, #tpu.memory_space<vmem>>, vector<32x512xbf16>
    %c0_1 = arith.constant 0 : index
    %c0_2 = arith.constant 0 : index
    %1 = vector.load %arg4[%c0_1, %c0_2] : memref<1x512xf32, #tpu.memory_space<vmem>>, vector<1x512xf32>
    %2 = arith.truncf %1 : vector<1x512xf32> to vector<1x512xbf16>
    %c0_3 = arith.constant 0 : index
    %c0_4 = arith.constant 0 : index
    %3 = vector.load %arg5[%c0_3, %c0_4] : memref<1x512xf32, #tpu.memory_space<vmem>>, vector<1x512xf32>
    %4 = arith.truncf %3 : vector<1x512xf32> to vector<1x512xbf16>
    %5 = vector.broadcast %2 : vector<1x512xbf16> to vector<32x512xbf16>
    %6 = arith.mulf %0, %5 : vector<32x512xbf16>
    %7 = vector.broadcast %4 : vector<1x512xbf16> to vector<32x512xbf16>
    %8 = arith.addf %6, %7 : vector<32x512xbf16>
    %cst = arith.constant 0.000000e+00 : bf16
    %9 = vector.broadcast %cst : bf16 to vector<32x512xbf16>
    %10 = arith.maximumf %8, %9 : vector<32x512xbf16>
    %c0_5 = arith.constant 0 : index
    %c0_6 = arith.constant 0 : index
    %11 = vector.load %arg3[%c0_5, %c0_6] : memref<512x128xbf16, #tpu.memory_space<vmem>>, vector<512x128xbf16>
    %cst_7 = arith.constant dense<0.000000e+00> : vector<32x128xf32>
    %12 = tpu.matmul %10, %11, %cst_7 {dimension_numbers = #tpu.dot_dimension_numbers<[1], [0], [0], [1], [0, 0, 1, 1], [], []>} : vector<32x512xbf16>, vector<512x128xbf16>, vector<32x128xf32> -> vector<32x128xf32>
    %c0_8 = arith.constant 0 : index
    %c0_9 = arith.constant 0 : index
    %13 = vector.load %arg6[%c0_8, %c0_9] : memref<1x128xf32, #tpu.memory_space<vmem>>, vector<1x128xf32>
    %14 = vector.broadcast %13 : vector<1x128xf32> to vector<32x128xf32>
    %15 = arith.mulf %12, %14 : vector<32x128xf32>
    %c0_10 = arith.constant 0 : index
    %c0_11 = arith.constant 0 : index
    %16 = vector.load %arg7[%c0_10, %c0_11] : memref<1x128xf32, #tpu.memory_space<vmem>>, vector<1x128xf32>
    %17 = vector.broadcast %16 : vector<1x128xf32> to vector<32x128xf32>
    %18 = arith.addf %15, %17 : vector<32x128xf32>
    %cst_12 = arith.constant 0.000000e+00 : f32
    %19 = vector.broadcast %cst_12 : f32 to vector<32x128xf32>
    %20 = arith.maximumf %18, %19 : vector<32x128xf32>
    %21 = arith.truncf %20 : vector<32x128xf32> to vector<32x128xbf16>
    %c0_13 = arith.constant 0 : index
    %c0_14 = arith.constant 0 : index
    %22 = vector.load %arg8[%c0_13, %c0_14] : memref<32x128xbf16, #tpu.memory_space<vmem>>, vector<32x128xbf16>
    tpu.vector_store %arg8[%c0_13, %c0_14], %21 {strides = array<i32>} : memref<32x128xbf16, #tpu.memory_space<vmem>>, vector<32x128xbf16>,
    return
  }
  func.func @transform_0(%arg0: i32, %arg1: i32) -> (i32, i32) {
    %c0_i32 = arith.constant 0 : i32
    %c0_i32_0 = arith.constant 0 : i32
    return %arg0, %c0_i32 : i32, i32
  }
  func.func @transform_1(%arg0: i32, %arg1: i32) -> (i32, i32) {
    %c0_i32 = arith.constant 0 : i32
    %c0_i32_0 = arith.constant 0 : i32
    return %c0_i32, %arg1 : i32, i32
  }
  func.func @transform_2(%arg0: i32, %arg1: i32) -> (i32, i32) {
    %c0_i32 = arith.constant 0 : i32
    %c0_i32_0 = arith.constant 0 : i32
    %c0_i32_1 = arith.constant 0 : i32
    return %c0_i32, %c0_i32_0 : i32, i32
  }
  func.func @transform_3(%arg0: i32, %arg1: i32) -> (i32, i32) {
    %c0_i32 = arith.constant 0 : i32
    %c0_i32_0 = arith.constant 0 : i32
    %c0_i32_1 = arith.constant 0 : i32
    return %c0_i32, %c0_i32_0 : i32, i32
  }
  func.func @transform_4(%arg0: i32, %arg1: i32) -> (i32, i32) {
    %c0_i32 = arith.constant 0 : i32
    %c0_i32_0 = arith.constant 0 : i32
    return %c0_i32, %arg1 : i32, i32
  }
  func.func @transform_5(%arg0: i32, %arg1: i32) -> (i32, i32) {
    %c0_i32 = arith.constant 0 : i32
    %c0_i32_0 = arith.constant 0 : i32
    return %c0_i32, %arg1 : i32, i32
  }
  func.func @transform_6(%arg0: i32, %arg1: i32) -> (i32, i32) {
    %c0_i32 = arith.constant 0 : i32
    return %arg0, %arg1 : i32, i32
  }
}

module attributes {stable_mosaic.version = 11 : i64} {
  func.func @_mm_fused_kernel(%arg0: i32, %arg1: i32, %arg2: memref<32x1152xbf16, #tpu.memory_space<vmem>>, %arg3: memref<1152x128xbf16, #tpu.memory_space<vmem>>, %arg4: memref<32x128xbf16, #tpu.memory_space<vmem>>) attributes {dimension_semantics = [#tpu.dimension_semantics<parallel>, #tpu.dimension_semantics<arbitrary>], iteration_bounds = array<i64: 1, 1>, scalar_prefetch = 0 : i64, scratch_operands = 0 : i64, tpu.core_type = #tpu.core_type<tc>, window_params = [{transform_indices = @transform_0, window_bounds = array<i64: 32, 1152>}, {transform_indices = @transform_1, window_bounds = array<i64: 1152, 128>}, {transform_indices = @transform_2, window_bounds = array<i64: 32, 128>}]} {
    %c0 = arith.constant 0 : index
    %c0_0 = arith.constant 0 : index
    %0 = vector.load %arg2[%c0, %c0_0] : memref<32x1152xbf16, #tpu.memory_space<vmem>>, vector<32x1152xbf16>
    %c0_1 = arith.constant 0 : index
    %c0_2 = arith.constant 0 : index
    %1 = vector.load %arg3[%c0_1, %c0_2] : memref<1152x128xbf16, #tpu.memory_space<vmem>>, vector<1152x128xbf16>
    %cst = arith.constant dense<0.000000e+00> : vector<32x128xf32>
    %2 = tpu.matmul %0, %1, %cst {dimension_numbers = #tpu.dot_dimension_numbers<[1], [0], [0], [1], [0, 0, 1, 1], [], []>} : vector<32x1152xbf16>, vector<1152x128xbf16>, vector<32x128xf32> -> vector<32x128xf32>
    %3 = arith.truncf %2 : vector<32x128xf32> to vector<32x128xbf16>
    %c0_3 = arith.constant 0 : index
    %c0_4 = arith.constant 0 : index
    %4 = vector.load %arg4[%c0_3, %c0_4] : memref<32x128xbf16, #tpu.memory_space<vmem>>, vector<32x128xbf16>
    tpu.vector_store %arg4[%c0_3, %c0_4], %3 {strides = array<i32>} : memref<32x128xbf16, #tpu.memory_space<vmem>>, vector<32x128xbf16>,
    return
  }
  func.func @transform_0(%arg0: i32, %arg1: i32) -> (i32, i32) {
    %c0_i32 = arith.constant 0 : i32
    %c0_i32_0 = arith.constant 0 : i32
    return %arg0, %c0_i32 : i32, i32
  }
  func.func @transform_1(%arg0: i32, %arg1: i32) -> (i32, i32) {
    %c0_i32 = arith.constant 0 : i32
    %c0_i32_0 = arith.constant 0 : i32
    return %c0_i32, %arg1 : i32, i32
  }
  func.func @transform_2(%arg0: i32, %arg1: i32) -> (i32, i32) {
    %c0_i32 = arith.constant 0 : i32
    return %arg0, %arg1 : i32, i32
  }
}

module attributes {stable_mosaic.version = 11 : i64} {
  func.func @_mm_fused_kernel(%arg0: i32, %arg1: i32, %arg2: memref<32x512xbf16, #tpu.memory_space<vmem>>, %arg3: memref<512x256xbf16, #tpu.memory_space<vmem>>, %arg4: memref<1x512xf32, #tpu.memory_space<vmem>>, %arg5: memref<1x512xf32, #tpu.memory_space<vmem>>, %arg6: memref<32x256xbf16, #tpu.memory_space<vmem>>) attributes {dimension_semantics = [#tpu.dimension_semantics<parallel>, #tpu.dimension_semantics<arbitrary>], iteration_bounds = array<i64: 1, 1>, scalar_prefetch = 0 : i64, scratch_operands = 0 : i64, tpu.core_type = #tpu.core_type<tc>, window_params = [{transform_indices = @transform_0, window_bounds = array<i64: 32, 512>}, {transform_indices = @transform_1, window_bounds = array<i64: 512, 256>}, {pipeline_mode = #tpu.pipeline_mode<synchronous>, transform_indices = @transform_2, window_bounds = array<i64: 1, 512>}, {pipeline_mode = #tpu.pipeline_mode<synchronous>, transform_indices = @transform_3, window_bounds = array<i64: 1, 512>}, {transform_indices = @transform_4, window_bounds = array<i64: 32, 256>}]} {
    %c0 = arith.constant 0 : index
    %c0_0 = arith.constant 0 : index
    %0 = vector.load %arg2[%c0, %c0_0] : memref<32x512xbf16, #tpu.memory_space<vmem>>, vector<32x512xbf16>
    %c0_1 = arith.constant 0 : index
    %c0_2 = arith.constant 0 : index
    %1 = vector.load %arg4[%c0_1, %c0_2] : memref<1x512xf32, #tpu.memory_space<vmem>>, vector<1x512xf32>
    %2 = arith.truncf %1 : vector<1x512xf32> to vector<1x512xbf16>
    %c0_3 = arith.constant 0 : index
    %c0_4 = arith.constant 0 : index
    %3 = vector.load %arg5[%c0_3, %c0_4] : memref<1x512xf32, #tpu.memory_space<vmem>>, vector<1x512xf32>
    %4 = arith.truncf %3 : vector<1x512xf32> to vector<1x512xbf16>
    %5 = vector.broadcast %2 : vector<1x512xbf16> to vector<32x512xbf16>
    %6 = arith.mulf %0, %5 : vector<32x512xbf16>
    %7 = vector.broadcast %4 : vector<1x512xbf16> to vector<32x512xbf16>
    %8 = arith.addf %6, %7 : vector<32x512xbf16>
    %cst = arith.constant 0.000000e+00 : bf16
    %9 = vector.broadcast %cst : bf16 to vector<32x512xbf16>
    %10 = arith.maximumf %8, %9 : vector<32x512xbf16>
    %c0_5 = arith.constant 0 : index
    %c0_6 = arith.constant 0 : index
    %11 = vector.load %arg3[%c0_5, %c0_6] : memref<512x256xbf16, #tpu.memory_space<vmem>>, vector<512x256xbf16>
    %cst_7 = arith.constant dense<0.000000e+00> : vector<32x256xf32>
    %12 = tpu.matmul %10, %11, %cst_7 {dimension_numbers = #tpu.dot_dimension_numbers<[1], [0], [0], [1], [0, 0, 1, 1], [], []>} : vector<32x512xbf16>, vector<512x256xbf16>, vector<32x256xf32> -> vector<32x256xf32>
    %13 = arith.truncf %12 : vector<32x256xf32> to vector<32x256xbf16>
    %c0_8 = arith.constant 0 : index
    %c0_9 = arith.constant 0 : index
    %14 = vector.load %arg6[%c0_8, %c0_9] : memref<32x256xbf16, #tpu.memory_space<vmem>>, vector<32x256xbf16>
    tpu.vector_store %arg6[%c0_8, %c0_9], %13 {strides = array<i32>} : memref<32x256xbf16, #tpu.memory_space<vmem>>, vector<32x256xbf16>,
    return
  }
  func.func @transform_0(%arg0: i32, %arg1: i32) -> (i32, i32) {
    %c0_i32 = arith.constant 0 : i32
    %c0_i32_0 = arith.constant 0 : i32
    return %arg0, %c0_i32 : i32, i32
  }
  func.func @transform_1(%arg0: i32, %arg1: i32) -> (i32, i32) {
    %c0_i32 = arith.constant 0 : i32
    %c0_i32_0 = arith.constant 0 : i32
    return %c0_i32, %arg1 : i32, i32
  }
  func.func @transform_2(%arg0: i32, %arg1: i32) -> (i32, i32) {
    %c0_i32 = arith.constant 0 : i32
    %c0_i32_0 = arith.constant 0 : i32
    %c0_i32_1 = arith.constant 0 : i32
    return %c0_i32, %c0_i32_0 : i32, i32
  }
  func.func @transform_3(%arg0: i32, %arg1: i32) -> (i32, i32) {
    %c0_i32 = arith.constant 0 : i32
    %c0_i32_0 = arith.constant 0 : i32
    %c0_i32_1 = arith.constant 0 : i32
    return %c0_i32, %c0_i32_0 : i32, i32
  }
  func.func @transform_4(%arg0: i32, %arg1: i32) -> (i32, i32) {
    %c0_i32 = arith.constant 0 : i32
    return %arg0, %arg1 : i32, i32
  }
}

module attributes {stable_mosaic.version = 11 : i64} {
  func.func @_window_reduce_kernel(%arg0: i32, %arg1: i32, %arg2: memref<4x16x256xbf16, #tpu.memory_space<vmem>>, %arg3: memref<16x256xbf16, #tpu.memory_space<vmem>>) attributes {dimension_semantics = [#tpu.dimension_semantics<parallel>, #tpu.dimension_semantics<parallel>], iteration_bounds = array<i64: 1, 1>, scalar_prefetch = 0 : i64, scratch_operands = 0 : i64, tpu.core_type = #tpu.core_type<tc>, window_params = [{transform_indices = @transform_0, window_bounds = array<i64: 4, 16, 256>}, {transform_indices = @transform_1, window_bounds = array<i64: 16, 256>}]} {
    %c0 = arith.constant 0 : index
    %c0_0 = arith.constant 0 : index
    %c0_1 = arith.constant 0 : index
    %0 = vector.load %arg2[%c0, %c0_0, %c0_1] : memref<4x16x256xbf16, #tpu.memory_space<vmem>>, vector<1x16x256xbf16>
    %1 = vector.shape_cast %0 : vector<1x16x256xbf16> to vector<16x256xbf16>
    %2 = arith.extf %1 : vector<16x256xbf16> to vector<16x256xf32>
    %c1 = arith.constant 1 : index
    %c0_2 = arith.constant 0 : index
    %c0_3 = arith.constant 0 : index
    %3 = vector.load %arg2[%c1, %c0_2, %c0_3] : memref<4x16x256xbf16, #tpu.memory_space<vmem>>, vector<1x16x256xbf16>
    %4 = vector.shape_cast %3 : vector<1x16x256xbf16> to vector<16x256xbf16>
    %5 = arith.extf %4 : vector<16x256xbf16> to vector<16x256xf32>
    %6 = arith.addf %2, %5 : vector<16x256xf32>
    %c2 = arith.constant 2 : index
    %c0_4 = arith.constant 0 : index
    %c0_5 = arith.constant 0 : index
    %7 = vector.load %arg2[%c2, %c0_4, %c0_5] : memref<4x16x256xbf16, #tpu.memory_space<vmem>>, vector<1x16x256xbf16>
    %8 = vector.shape_cast %7 : vector<1x16x256xbf16> to vector<16x256xbf16>
    %9 = arith.extf %8 : vector<16x256xbf16> to vector<16x256xf32>
    %10 = arith.addf %6, %9 : vector<16x256xf32>
    %c3 = arith.constant 3 : index
    %c0_6 = arith.constant 0 : index
    %c0_7 = arith.constant 0 : index
    %11 = vector.load %arg2[%c3, %c0_6, %c0_7] : memref<4x16x256xbf16, #tpu.memory_space<vmem>>, vector<1x16x256xbf16>
    %12 = vector.shape_cast %11 : vector<1x16x256xbf16> to vector<16x256xbf16>
    %13 = arith.extf %12 : vector<16x256xbf16> to vector<16x256xf32>
    %14 = arith.addf %10, %13 : vector<16x256xf32>
    %cst = arith.constant 2.500000e-01 : f32
    %15 = vector.broadcast %cst : f32 to vector<16x256xf32>
    %16 = arith.mulf %14, %15 : vector<16x256xf32>
    %17 = arith.truncf %16 : vector<16x256xf32> to vector<16x256xbf16>
    %c0_8 = arith.constant 0 : index
    %c0_9 = arith.constant 0 : index
    %18 = vector.load %arg3[%c0_8, %c0_9] : memref<16x256xbf16, #tpu.memory_space<vmem>>, vector<16x256xbf16>
    tpu.vector_store %arg3[%c0_8, %c0_9], %17 {strides = array<i32>} : memref<16x256xbf16, #tpu.memory_space<vmem>>, vector<16x256xbf16>,
    return
  }
  func.func @transform_0(%arg0: i32, %arg1: i32) -> (i32, i32, i32) {
    %c0_i32 = arith.constant 0 : i32
    %c0_i32_0 = arith.constant 0 : i32
    return %c0_i32, %arg0, %arg1 : i32, i32, i32
  }
  func.func @transform_1(%arg0: i32, %arg1: i32) -> (i32, i32) {
    %c0_i32 = arith.constant 0 : i32
    return %arg0, %arg1 : i32, i32
  }
}

module attributes {stable_mosaic.version = 11 : i64} {
  func.func @_mm_fused_kernel(%arg0: i32, %arg1: i32, %arg2: memref<16x1024xbf16, #tpu.memory_space<vmem>>, %arg3: memref<1024x128xbf16, #tpu.memory_space<vmem>>, %arg4: memref<1x1024xf32, #tpu.memory_space<vmem>>, %arg5: memref<1x1024xf32, #tpu.memory_space<vmem>>, %arg6: memref<1x128xf32, #tpu.memory_space<vmem>>, %arg7: memref<1x128xf32, #tpu.memory_space<vmem>>, %arg8: memref<16x128xbf16, #tpu.memory_space<vmem>>) attributes {dimension_semantics = [#tpu.dimension_semantics<parallel>, #tpu.dimension_semantics<arbitrary>], iteration_bounds = array<i64: 1, 1>, scalar_prefetch = 0 : i64, scratch_operands = 0 : i64, tpu.core_type = #tpu.core_type<tc>, window_params = [{transform_indices = @transform_0, window_bounds = array<i64: 16, 1024>}, {transform_indices = @transform_1, window_bounds = array<i64: 1024, 128>}, {pipeline_mode = #tpu.pipeline_mode<synchronous>, transform_indices = @transform_2, window_bounds = array<i64: 1, 1024>}, {pipeline_mode = #tpu.pipeline_mode<synchronous>, transform_indices = @transform_3, window_bounds = array<i64: 1, 1024>}, {transform_indices = @transform_4, window_bounds = array<i64: 1, 128>}, {transform_indices = @transform_5, window_bounds = array<i64: 1, 128>}, {transform_indices = @transform_6, window_bounds = array<i64: 16, 128>}]} {
    %c0 = arith.constant 0 : index
    %c0_0 = arith.constant 0 : index
    %0 = vector.load %arg2[%c0, %c0_0] : memref<16x1024xbf16, #tpu.memory_space<vmem>>, vector<16x1024xbf16>
    %c0_1 = arith.constant 0 : index
    %c0_2 = arith.constant 0 : index
    %1 = vector.load %arg4[%c0_1, %c0_2] : memref<1x1024xf32, #tpu.memory_space<vmem>>, vector<1x1024xf32>
    %2 = arith.truncf %1 : vector<1x1024xf32> to vector<1x1024xbf16>
    %c0_3 = arith.constant 0 : index
    %c0_4 = arith.constant 0 : index
    %3 = vector.load %arg5[%c0_3, %c0_4] : memref<1x1024xf32, #tpu.memory_space<vmem>>, vector<1x1024xf32>
    %4 = arith.truncf %3 : vector<1x1024xf32> to vector<1x1024xbf16>
    %5 = vector.broadcast %2 : vector<1x1024xbf16> to vector<16x1024xbf16>
    %6 = arith.mulf %0, %5 : vector<16x1024xbf16>
    %7 = vector.broadcast %4 : vector<1x1024xbf16> to vector<16x1024xbf16>
    %8 = arith.addf %6, %7 : vector<16x1024xbf16>
    %cst = arith.constant 0.000000e+00 : bf16
    %9 = vector.broadcast %cst : bf16 to vector<16x1024xbf16>
    %10 = arith.maximumf %8, %9 : vector<16x1024xbf16>
    %c0_5 = arith.constant 0 : index
    %c0_6 = arith.constant 0 : index
    %11 = vector.load %arg3[%c0_5, %c0_6] : memref<1024x128xbf16, #tpu.memory_space<vmem>>, vector<1024x128xbf16>
    %cst_7 = arith.constant dense<0.000000e+00> : vector<16x128xf32>
    %12 = tpu.matmul %10, %11, %cst_7 {dimension_numbers = #tpu.dot_dimension_numbers<[1], [0], [0], [1], [0, 0, 1, 1], [], []>} : vector<16x1024xbf16>, vector<1024x128xbf16>, vector<16x128xf32> -> vector<16x128xf32>
    %c0_8 = arith.constant 0 : index
    %c0_9 = arith.constant 0 : index
    %13 = vector.load %arg6[%c0_8, %c0_9] : memref<1x128xf32, #tpu.memory_space<vmem>>, vector<1x128xf32>
    %14 = vector.broadcast %13 : vector<1x128xf32> to vector<16x128xf32>
    %15 = arith.mulf %12, %14 : vector<16x128xf32>
    %c0_10 = arith.constant 0 : index
    %c0_11 = arith.constant 0 : index
    %16 = vector.load %arg7[%c0_10, %c0_11] : memref<1x128xf32, #tpu.memory_space<vmem>>, vector<1x128xf32>
    %17 = vector.broadcast %16 : vector<1x128xf32> to vector<16x128xf32>
    %18 = arith.addf %15, %17 : vector<16x128xf32>
    %cst_12 = arith.constant 0.000000e+00 : f32
    %19 = vector.broadcast %cst_12 : f32 to vector<16x128xf32>
    %20 = arith.maximumf %18, %19 : vector<16x128xf32>
    %21 = arith.truncf %20 : vector<16x128xf32> to vector<16x128xbf16>
    %c0_13 = arith.constant 0 : index
    %c0_14 = arith.constant 0 : index
    %22 = vector.load %arg8[%c0_13, %c0_14] : memref<16x128xbf16, #tpu.memory_space<vmem>>, vector<16x128xbf16>
    tpu.vector_store %arg8[%c0_13, %c0_14], %21 {strides = array<i32>} : memref<16x128xbf16, #tpu.memory_space<vmem>>, vector<16x128xbf16>,
    return
  }
  func.func @transform_0(%arg0: i32, %arg1: i32) -> (i32, i32) {
    %c0_i32 = arith.constant 0 : i32
    %c0_i32_0 = arith.constant 0 : i32
    return %arg0, %c0_i32 : i32, i32
  }
  func.func @transform_1(%arg0: i32, %arg1: i32) -> (i32, i32) {
    %c0_i32 = arith.constant 0 : i32
    %c0_i32_0 = arith.constant 0 : i32
    return %c0_i32, %arg1 : i32, i32
  }
  func.func @transform_2(%arg0: i32, %arg1: i32) -> (i32, i32) {
    %c0_i32 = arith.constant 0 : i32
    %c0_i32_0 = arith.constant 0 : i32
    %c0_i32_1 = arith.constant 0 : i32
    return %c0_i32, %c0_i32_0 : i32, i32
  }
  func.func @transform_3(%arg0: i32, %arg1: i32) -> (i32, i32) {
    %c0_i32 = arith.constant 0 : i32
    %c0_i32_0 = arith.constant 0 : i32
    %c0_i32_1 = arith.constant 0 : i32
    return %c0_i32, %c0_i32_0 : i32, i32
  }
  func.func @transform_4(%arg0: i32, %arg1: i32) -> (i32, i32) {
    %c0_i32 = arith.constant 0 : i32
    %c0_i32_0 = arith.constant 0 : i32
    return %c0_i32, %arg1 : i32, i32
  }
  func.func @transform_5(%arg0: i32, %arg1: i32) -> (i32, i32) {
    %c0_i32 = arith.constant 0 : i32
    %c0_i32_0 = arith.constant 0 : i32
    return %c0_i32, %arg1 : i32, i32
  }
  func.func @transform_6(%arg0: i32, %arg1: i32) -> (i32, i32) {
    %c0_i32 = arith.constant 0 : i32
    return %arg0, %arg1 : i32, i32
  }
}

module attributes {stable_mosaic.version = 11 : i64} {
  func.func @_mm_fused_kernel(%arg0: i32, %arg1: i32, %arg2: memref<16x1152xbf16, #tpu.memory_space<vmem>>, %arg3: memref<1152x128xbf16, #tpu.memory_space<vmem>>, %arg4: memref<16x128xbf16, #tpu.memory_space<vmem>>) attributes {dimension_semantics = [#tpu.dimension_semantics<parallel>, #tpu.dimension_semantics<arbitrary>], iteration_bounds = array<i64: 1, 1>, scalar_prefetch = 0 : i64, scratch_operands = 0 : i64, tpu.core_type = #tpu.core_type<tc>, window_params = [{transform_indices = @transform_0, window_bounds = array<i64: 16, 1152>}, {transform_indices = @transform_1, window_bounds = array<i64: 1152, 128>}, {transform_indices = @transform_2, window_bounds = array<i64: 16, 128>}]} {
    %c0 = arith.constant 0 : index
    %c0_0 = arith.constant 0 : index
    %0 = vector.load %arg2[%c0, %c0_0] : memref<16x1152xbf16, #tpu.memory_space<vmem>>, vector<16x1152xbf16>
    %c0_1 = arith.constant 0 : index
    %c0_2 = arith.constant 0 : index
    %1 = vector.load %arg3[%c0_1, %c0_2] : memref<1152x128xbf16, #tpu.memory_space<vmem>>, vector<1152x128xbf16>
    %cst = arith.constant dense<0.000000e+00> : vector<16x128xf32>
    %2 = tpu.matmul %0, %1, %cst {dimension_numbers = #tpu.dot_dimension_numbers<[1], [0], [0], [1], [0, 0, 1, 1], [], []>} : vector<16x1152xbf16>, vector<1152x128xbf16>, vector<16x128xf32> -> vector<16x128xf32>
    %3 = arith.truncf %2 : vector<16x128xf32> to vector<16x128xbf16>
    %c0_3 = arith.constant 0 : index
    %c0_4 = arith.constant 0 : index
    %4 = vector.load %arg4[%c0_3, %c0_4] : memref<16x128xbf16, #tpu.memory_space<vmem>>, vector<16x128xbf16>
    tpu.vector_store %arg4[%c0_3, %c0_4], %3 {strides = array<i32>} : memref<16x128xbf16, #tpu.memory_space<vmem>>, vector<16x128xbf16>,
    return
  }
  func.func @transform_0(%arg0: i32, %arg1: i32) -> (i32, i32) {
    %c0_i32 = arith.constant 0 : i32
    %c0_i32_0 = arith.constant 0 : i32
    return %arg0, %c0_i32 : i32, i32
  }
  func.func @transform_1(%arg0: i32, %arg1: i32) -> (i32, i32) {
    %c0_i32 = arith.constant 0 : i32
    %c0_i32_0 = arith.constant 0 : i32
    return %c0_i32, %arg1 : i32, i32
  }
  func.func @transform_2(%arg0: i32, %arg1: i32) -> (i32, i32) {
    %c0_i32 = arith.constant 0 : i32
    return %arg0, %arg1 : i32, i32
  }
}

module attributes {stable_mosaic.version = 11 : i64} {
  func.func @_mm_fused_kernel(%arg0: i32, %arg1: i32, %arg2: memref<16x1024xbf16, #tpu.memory_space<vmem>>, %arg3: memref<1024x512xbf16, #tpu.memory_space<vmem>>, %arg4: memref<1x1024xf32, #tpu.memory_space<vmem>>, %arg5: memref<1x1024xf32, #tpu.memory_space<vmem>>, %arg6: memref<16x512xbf16, #tpu.memory_space<vmem>>) attributes {dimension_semantics = [#tpu.dimension_semantics<parallel>, #tpu.dimension_semantics<arbitrary>], iteration_bounds = array<i64: 1, 1>, scalar_prefetch = 0 : i64, scratch_operands = 0 : i64, tpu.core_type = #tpu.core_type<tc>, window_params = [{transform_indices = @transform_0, window_bounds = array<i64: 16, 1024>}, {transform_indices = @transform_1, window_bounds = array<i64: 1024, 512>}, {pipeline_mode = #tpu.pipeline_mode<synchronous>, transform_indices = @transform_2, window_bounds = array<i64: 1, 1024>}, {pipeline_mode = #tpu.pipeline_mode<synchronous>, transform_indices = @transform_3, window_bounds = array<i64: 1, 1024>}, {transform_indices = @transform_4, window_bounds = array<i64: 16, 512>}]} {
    %c0 = arith.constant 0 : index
    %c0_0 = arith.constant 0 : index
    %0 = vector.load %arg2[%c0, %c0_0] : memref<16x1024xbf16, #tpu.memory_space<vmem>>, vector<16x1024xbf16>
    %c0_1 = arith.constant 0 : index
    %c0_2 = arith.constant 0 : index
    %1 = vector.load %arg4[%c0_1, %c0_2] : memref<1x1024xf32, #tpu.memory_space<vmem>>, vector<1x1024xf32>
    %2 = arith.truncf %1 : vector<1x1024xf32> to vector<1x1024xbf16>
    %c0_3 = arith.constant 0 : index
    %c0_4 = arith.constant 0 : index
    %3 = vector.load %arg5[%c0_3, %c0_4] : memref<1x1024xf32, #tpu.memory_space<vmem>>, vector<1x1024xf32>
    %4 = arith.truncf %3 : vector<1x1024xf32> to vector<1x1024xbf16>
    %5 = vector.broadcast %2 : vector<1x1024xbf16> to vector<16x1024xbf16>
    %6 = arith.mulf %0, %5 : vector<16x1024xbf16>
    %7 = vector.broadcast %4 : vector<1x1024xbf16> to vector<16x1024xbf16>
    %8 = arith.addf %6, %7 : vector<16x1024xbf16>
    %cst = arith.constant 0.000000e+00 : bf16
    %9 = vector.broadcast %cst : bf16 to vector<16x1024xbf16>
    %10 = arith.maximumf %8, %9 : vector<16x1024xbf16>
    %c0_5 = arith.constant 0 : index
    %c0_6 = arith.constant 0 : index
    %11 = vector.load %arg3[%c0_5, %c0_6] : memref<1024x512xbf16, #tpu.memory_space<vmem>>, vector<1024x512xbf16>
    %cst_7 = arith.constant dense<0.000000e+00> : vector<16x512xf32>
    %12 = tpu.matmul %10, %11, %cst_7 {dimension_numbers = #tpu.dot_dimension_numbers<[1], [0], [0], [1], [0, 0, 1, 1], [], []>} : vector<16x1024xbf16>, vector<1024x512xbf16>, vector<16x512xf32> -> vector<16x512xf32>
    %13 = arith.truncf %12 : vector<16x512xf32> to vector<16x512xbf16>
    %c0_8 = arith.constant 0 : index
    %c0_9 = arith.constant 0 : index
    %14 = vector.load %arg6[%c0_8, %c0_9] : memref<16x512xbf16, #tpu.memory_space<vmem>>, vector<16x512xbf16>
    tpu.vector_store %arg6[%c0_8, %c0_9], %13 {strides = array<i32>} : memref<16x512xbf16, #tpu.memory_space<vmem>>, vector<16x512xbf16>,
    return
  }
  func.func @transform_0(%arg0: i32, %arg1: i32) -> (i32, i32) {
    %c0_i32 = arith.constant 0 : i32
    %c0_i32_0 = arith.constant 0 : i32
    return %arg0, %c0_i32 : i32, i32
  }
  func.func @transform_1(%arg0: i32, %arg1: i32) -> (i32, i32) {
    %c0_i32 = arith.constant 0 : i32
    %c0_i32_0 = arith.constant 0 : i32
    return %c0_i32, %arg1 : i32, i32
  }
  func.func @transform_2(%arg0: i32, %arg1: i32) -> (i32, i32) {
    %c0_i32 = arith.constant 0 : i32
    %c0_i32_0 = arith.constant 0 : i32
    %c0_i32_1 = arith.constant 0 : i32
    return %c0_i32, %c0_i32_0 : i32, i32
  }
  func.func @transform_3(%arg0: i32, %arg1: i32) -> (i32, i32) {
    %c0_i32 = arith.constant 0 : i32
    %c0_i32_0 = arith.constant 0 : i32
    %c0_i32_1 = arith.constant 0 : i32
    return %c0_i32, %c0_i32_0 : i32, i32
  }
  func.func @transform_4(%arg0: i32, %arg1: i32) -> (i32, i32) {
    %c0_i32 = arith.constant 0 : i32
    return %arg0, %arg1 : i32, i32
  }
}

module attributes {stable_mosaic.version = 11 : i64} {
  func.func @_window_reduce_kernel(%arg0: i32, %arg1: i32, %arg2: memref<4x16x512xbf16, #tpu.memory_space<vmem>>, %arg3: memref<16x512xbf16, #tpu.memory_space<vmem>>) attributes {dimension_semantics = [#tpu.dimension_semantics<parallel>, #tpu.dimension_semantics<parallel>], iteration_bounds = array<i64: 1, 1>, scalar_prefetch = 0 : i64, scratch_operands = 0 : i64, tpu.core_type = #tpu.core_type<tc>, window_params = [{transform_indices = @transform_0, window_bounds = array<i64: 4, 16, 512>}, {transform_indices = @transform_1, window_bounds = array<i64: 16, 512>}]} {
    %c0 = arith.constant 0 : index
    %c0_0 = arith.constant 0 : index
    %c0_1 = arith.constant 0 : index
    %0 = vector.load %arg2[%c0, %c0_0, %c0_1] : memref<4x16x512xbf16, #tpu.memory_space<vmem>>, vector<1x16x512xbf16>
    %1 = vector.shape_cast %0 : vector<1x16x512xbf16> to vector<16x512xbf16>
    %2 = arith.extf %1 : vector<16x512xbf16> to vector<16x512xf32>
    %c1 = arith.constant 1 : index
    %c0_2 = arith.constant 0 : index
    %c0_3 = arith.constant 0 : index
    %3 = vector.load %arg2[%c1, %c0_2, %c0_3] : memref<4x16x512xbf16, #tpu.memory_space<vmem>>, vector<1x16x512xbf16>
    %4 = vector.shape_cast %3 : vector<1x16x512xbf16> to vector<16x512xbf16>
    %5 = arith.extf %4 : vector<16x512xbf16> to vector<16x512xf32>
    %6 = arith.addf %2, %5 : vector<16x512xf32>
    %c2 = arith.constant 2 : index
    %c0_4 = arith.constant 0 : index
    %c0_5 = arith.constant 0 : index
    %7 = vector.load %arg2[%c2, %c0_4, %c0_5] : memref<4x16x512xbf16, #tpu.memory_space<vmem>>, vector<1x16x512xbf16>
    %8 = vector.shape_cast %7 : vector<1x16x512xbf16> to vector<16x512xbf16>
    %9 = arith.extf %8 : vector<16x512xbf16> to vector<16x512xf32>
    %10 = arith.addf %6, %9 : vector<16x512xf32>
    %c3 = arith.constant 3 : index
    %c0_6 = arith.constant 0 : index
    %c0_7 = arith.constant 0 : index
    %11 = vector.load %arg2[%c3, %c0_6, %c0_7] : memref<4x16x512xbf16, #tpu.memory_space<vmem>>, vector<1x16x512xbf16>
    %12 = vector.shape_cast %11 : vector<1x16x512xbf16> to vector<16x512xbf16>
    %13 = arith.extf %12 : vector<16x512xbf16> to vector<16x512xf32>
    %14 = arith.addf %10, %13 : vector<16x512xf32>
    %cst = arith.constant 2.500000e-01 : f32
    %15 = vector.broadcast %cst : f32 to vector<16x512xf32>
    %16 = arith.mulf %14, %15 : vector<16x512xf32>
    %17 = arith.truncf %16 : vector<16x512xf32> to vector<16x512xbf16>
    %c0_8 = arith.constant 0 : index
    %c0_9 = arith.constant 0 : index
    %18 = vector.load %arg3[%c0_8, %c0_9] : memref<16x512xbf16, #tpu.memory_space<vmem>>, vector<16x512xbf16>
    tpu.vector_store %arg3[%c0_8, %c0_9], %17 {strides = array<i32>} : memref<16x512xbf16, #tpu.memory_space<vmem>>, vector<16x512xbf16>,
    return
  }
  func.func @transform_0(%arg0: i32, %arg1: i32) -> (i32, i32, i32) {
    %c0_i32 = arith.constant 0 : i32
    %c0_i32_0 = arith.constant 0 : i32
    return %c0_i32, %arg0, %arg1 : i32, i32, i32
  }
  func.func @transform_1(%arg0: i32, %arg1: i32) -> (i32, i32) {
    %c0_i32 = arith.constant 0 : i32
    return %arg0, %arg1 : i32, i32
  }
}

module attributes {stable_mosaic.version = 11 : i64} {
  func.func @_mm_fused_kernel(%arg0: i32, %arg1: i32, %arg2: memref<16x1024xbf16, #tpu.memory_space<vmem>>, %arg3: memref<1024x128xbf16, #tpu.memory_space<vmem>>, %arg4: memref<1x128xf32, #tpu.memory_space<vmem>>, %arg5: memref<1x128xf32, #tpu.memory_space<vmem>>, %arg6: memref<16x128xf32, #tpu.memory_space<vmem>>) attributes {dimension_semantics = [#tpu.dimension_semantics<parallel>, #tpu.dimension_semantics<arbitrary>], iteration_bounds = array<i64: 1, 1>, scalar_prefetch = 0 : i64, scratch_operands = 0 : i64, tpu.core_type = #tpu.core_type<tc>, window_params = [{transform_indices = @transform_0, window_bounds = array<i64: 16, 1024>}, {transform_indices = @transform_1, window_bounds = array<i64: 1024, 128>}, {transform_indices = @transform_2, window_bounds = array<i64: 1, 128>}, {transform_indices = @transform_3, window_bounds = array<i64: 1, 128>}, {transform_indices = @transform_4, window_bounds = array<i64: 16, 128>}]} {
    %c0 = arith.constant 0 : index
    %c0_0 = arith.constant 0 : index
    %0 = vector.load %arg2[%c0, %c0_0] : memref<16x1024xbf16, #tpu.memory_space<vmem>>, vector<16x1024xbf16>
    %c0_1 = arith.constant 0 : index
    %c0_2 = arith.constant 0 : index
    %1 = vector.load %arg3[%c0_1, %c0_2] : memref<1024x128xbf16, #tpu.memory_space<vmem>>, vector<1024x128xbf16>
    %cst = arith.constant dense<0.000000e+00> : vector<16x128xf32>
    %2 = tpu.matmul %0, %1, %cst {dimension_numbers = #tpu.dot_dimension_numbers<[1], [0], [0], [1], [0, 0, 1, 1], [], []>} : vector<16x1024xbf16>, vector<1024x128xbf16>, vector<16x128xf32> -> vector<16x128xf32>
    %c0_3 = arith.constant 0 : index
    %c0_4 = arith.constant 0 : index
    %3 = vector.load %arg4[%c0_3, %c0_4] : memref<1x128xf32, #tpu.memory_space<vmem>>, vector<1x128xf32>
    %4 = vector.broadcast %3 : vector<1x128xf32> to vector<16x128xf32>
    %5 = arith.mulf %2, %4 : vector<16x128xf32>
    %c0_5 = arith.constant 0 : index
    %c0_6 = arith.constant 0 : index
    %6 = vector.load %arg5[%c0_5, %c0_6] : memref<1x128xf32, #tpu.memory_space<vmem>>, vector<1x128xf32>
    %7 = vector.broadcast %6 : vector<1x128xf32> to vector<16x128xf32>
    %8 = arith.addf %5, %7 : vector<16x128xf32>
    %c0_7 = arith.constant 0 : index
    %c0_8 = arith.constant 0 : index
    %9 = vector.load %arg6[%c0_7, %c0_8] : memref<16x128xf32, #tpu.memory_space<vmem>>, vector<16x128xf32>
    tpu.vector_store %arg6[%c0_7, %c0_8], %8 {strides = array<i32>} : memref<16x128xf32, #tpu.memory_space<vmem>>, vector<16x128xf32>,
    return
  }
  func.func @transform_0(%arg0: i32, %arg1: i32) -> (i32, i32) {
    %c0_i32 = arith.constant 0 : i32
    %c0_i32_0 = arith.constant 0 : i32
    return %arg0, %c0_i32 : i32, i32
  }
  func.func @transform_1(%arg0: i32, %arg1: i32) -> (i32, i32) {
    %c0_i32 = arith.constant 0 : i32
    %c0_i32_0 = arith.constant 0 : i32
    return %c0_i32, %arg1 : i32, i32
  }
  func.func @transform_2(%arg0: i32, %arg1: i32) -> (i32, i32) {
    %c0_i32 = arith.constant 0 : i32
    %c0_i32_0 = arith.constant 0 : i32
    return %c0_i32, %arg1 : i32, i32
  }
  func.func @transform_3(%arg0: i32, %arg1: i32) -> (i32, i32) {
    %c0_i32 = arith.constant 0 : i32
    %c0_i32_0 = arith.constant 0 : i32
    return %c0_i32, %arg1 : i32, i32
  }
  func.func @transform_4(%arg0: i32, %arg1: i32) -> (i32, i32) {
    %c0_i32 = arith.constant 0 : i32
    return %arg0, %arg1 : i32, i32
  }
}

module attributes {stable_mosaic.version = 11 : i64} {
  func.func @_window_reduce_kernel(%arg0: i32, %arg1: i32, %arg2: memref<1x16x512xbf16, #tpu.memory_space<vmem>>, %arg3: memref<1x512xf32, #tpu.memory_space<vmem>>, %arg4: memref<1x512xf32, #tpu.memory_space<vmem>>, %arg5: memref<16x512xbf16, #tpu.memory_space<vmem>>) attributes {dimension_semantics = [#tpu.dimension_semantics<parallel>, #tpu.dimension_semantics<parallel>], iteration_bounds = array<i64: 1, 2>, scalar_prefetch = 0 : i64, scratch_operands = 0 : i64, tpu.core_type = #tpu.core_type<tc>, window_params = [{transform_indices = @transform_0, window_bounds = array<i64: 1, 16, 512>}, {transform_indices = @transform_1, window_bounds = array<i64: 1, 512>}, {transform_indices = @transform_2, window_bounds = array<i64: 1, 512>}, {transform_indices = @transform_3, window_bounds = array<i64: 16, 512>}]} {
    %c0 = arith.constant 0 : index
    %c0_0 = arith.constant 0 : index
    %0 = vector.load %arg3[%c0, %c0_0] : memref<1x512xf32, #tpu.memory_space<vmem>>, vector<1x512xf32>
    %c0_1 = arith.constant 0 : index
    %c0_2 = arith.constant 0 : index
    %1 = vector.load %arg4[%c0_1, %c0_2] : memref<1x512xf32, #tpu.memory_space<vmem>>, vector<1x512xf32>
    %c0_3 = arith.constant 0 : index
    %c0_4 = arith.constant 0 : index
    %c0_5 = arith.constant 0 : index
    %2 = vector.load %arg2[%c0_3, %c0_4, %c0_5] : memref<1x16x512xbf16, #tpu.memory_space<vmem>>, vector<1x16x512xbf16>
    %3 = vector.shape_cast %2 : vector<1x16x512xbf16> to vector<16x512xbf16>
    %4 = arith.extf %3 : vector<16x512xbf16> to vector<16x512xf32>
    %5 = vector.broadcast %0 : vector<1x512xf32> to vector<16x512xf32>
    %6 = arith.mulf %4, %5 : vector<16x512xf32>
    %7 = vector.broadcast %1 : vector<1x512xf32> to vector<16x512xf32>
    %8 = arith.addf %6, %7 : vector<16x512xf32>
    %cst = arith.constant 0.000000e+00 : f32
    %9 = vector.broadcast %cst : f32 to vector<16x512xf32>
    %10 = arith.maximumf %8, %9 : vector<16x512xf32>
    %cst_6 = arith.constant 1.000000e+00 : f32
    %11 = vector.broadcast %cst_6 : f32 to vector<16x512xf32>
    %12 = arith.mulf %10, %11 : vector<16x512xf32>
    %13 = arith.truncf %12 : vector<16x512xf32> to vector<16x512xbf16>
    %c0_7 = arith.constant 0 : index
    %c0_8 = arith.constant 0 : index
    %14 = vector.load %arg5[%c0_7, %c0_8] : memref<16x512xbf16, #tpu.memory_space<vmem>>, vector<16x512xbf16>
    tpu.vector_store %arg5[%c0_7, %c0_8], %13 {strides = array<i32>} : memref<16x512xbf16, #tpu.memory_space<vmem>>, vector<16x512xbf16>,
    return
  }
  func.func @transform_0(%arg0: i32, %arg1: i32) -> (i32, i32, i32) {
    %c0_i32 = arith.constant 0 : i32
    %c0_i32_0 = arith.constant 0 : i32
    return %c0_i32, %arg0, %arg1 : i32, i32, i32
  }
  func.func @transform_1(%arg0: i32, %arg1: i32) -> (i32, i32) {
    %c0_i32 = arith.constant 0 : i32
    %c0_i32_0 = arith.constant 0 : i32
    return %c0_i32, %arg1 : i32, i32
  }
  func.func @transform_2(%arg0: i32, %arg1: i32) -> (i32, i32) {
    %c0_i32 = arith.constant 0 : i32
    %c0_i32_0 = arith.constant 0 : i32
    return %c0_i32, %arg1 : i32, i32
  }
  func.func @transform_3(%arg0: i32, %arg1: i32) -> (i32, i32) {
    %c0_i32 = arith.constant 0 : i32
    return %arg0, %arg1 : i32, i32
  }
}

</mosaic_0001>

<llo_original>
// kernel: cnn_model_forward.10
$region0: #{cnn_model_forward.10}
  #allocation0 [shape = 'u32[]', space=smem, size = 0x4, offset = 0x4, fixed_abs, tag = 'smem constant byte address 0x4 - core index']
  #allocation1 [shape = 'u32[72,128]{1,0:T(1,128)}', space=vmem, size = 0x9000, scoped, tag = 'internal scratch']
  %s0 = inlined_call_operand.vmem [shape: bf16[512,256], index: 0, kind: input, shape index: {}]
  %s1 = inlined_call_operand.vmem [shape: bf16[256,128], index: 1, kind: input, shape index: {}]
  %s2 = inlined_call_operand.vmem [shape: f32[1,128], index: 2, kind: input, shape index: {}]
  %s3 = inlined_call_operand.vmem [shape: f32[1,128], index: 3, kind: input, shape index: {}]
  %s4 = inlined_call_operand.vmem [shape: bf16[512,128], index: 4, kind: output, shape index: {}]
  %s5 = sld [smem:[#allocation0]]
  $region26: #{cnn_model_forward.10} parent=0
    _
  %s7 = ssub.s32 1, %s5
  %s8 = scalar_select 0, %s7, %s5
  // Predicated region
  $region2: #{cnn_model_forward.10} parent=0 // pred_check
    _
  $region3: #{cnn_model_forward.10} parent=0 // pred_check_branch
    %10 = sbr.rel (0) target = $region5
  $region4: #{cnn_model_forward.10} parent=0 // pred_region
    _
  $region5: #{cnn_model_forward.10} parent=0 // pred_fallthru
    _
  // Predicated region
  $region6: #{cnn_model_forward.10} parent=0 // pred_check
    _
  $region7: #{cnn_model_forward.10} parent=0 // pred_check_branch
    %12 = sbr.rel (0) target = $region9
  $region8: #{cnn_model_forward.10} parent=0 // pred_region
    _
  $region9: #{cnn_model_forward.10} parent=0 // pred_fallthru
    _
  // Predicated region
  $region10: #{cnn_model_forward.10} parent=0 // pred_check
    _
  $region11: #{cnn_model_forward.10} parent=0 // pred_check_branch
    %14 = sbr.rel (0) target = $region13
  $region12: #{cnn_model_forward.10} parent=0 // pred_region
    _
  $region13: #{cnn_model_forward.10} parent=0 // pred_fallthru
    _
  // Predicated region
  $region14: #{cnn_model_forward.10} parent=0 // pred_check
    _
  $region15: #{cnn_model_forward.10} parent=0 // pred_check_branch
    %16 = sbr.rel (0) target = $region17
  $region16: #{cnn_model_forward.10} parent=0 // pred_region
    _
  $region17: #{cnn_model_forward.10} parent=0 // pred_fallthru
    _
  %v17 = vld [vmem:[%s0] sm:$0xff]
  %v18 = vld [vmem:[%s0 + $0x8] sm:$0xff]
  %v19 = vld [vmem:[%s0 + $0x10] sm:$0xff]
  %v20 = vld [vmem:[%s0 + $0x18] sm:$0xff]
  %v21 = vld [vmem:[%s0 + $0x20] sm:$0xff]
  %v22 = vld [vmem:[%s0 + $0x28] sm:$0xff]
  %v23 = vld [vmem:[%s0 + $0x30] sm:$0xff]
  %v24 = vld [vmem:[%s0 + $0x38] sm:$0xff]
  %v25 = vld [vmem:[%s0 + $0x40] sm:$0xff]
  %v26 = vld [vmem:[%s0 + $0x48] sm:$0xff]
  %v27 = vld [vmem:[%s0 + $0x50] sm:$0xff]
  %v28 = vld [vmem:[%s0 + $0x58] sm:$0xff]
  %v29 = vld [vmem:[%s0 + $0x60] sm:$0xff]
  %v30 = vld [vmem:[%s0 + $0x68] sm:$0xff]
  %v31 = vld [vmem:[%s0 + $0x70] sm:$0xff]
  %v32 = vld [vmem:[%s0 + $0x78] sm:$0xff]
  %v33 = vld [vmem:[%s0 + $0x80] sm:$0xff]
  %v34 = vld [vmem:[%s0 + $0x88] sm:$0xff]
  %v35 = vld [vmem:[%s0 + $0x90] sm:$0xff]
  %v36 = vld [vmem:[%s0 + $0x98] sm:$0xff]
  %v37 = vld [vmem:[%s0 + $0xa0] sm:$0xff]
  %v38 = vld [vmem:[%s0 + $0xa8] sm:$0xff]
  %v39 = vld [vmem:[%s0 + $0xb0] sm:$0xff]
  %v40 = vld [vmem:[%s0 + $0xb8] sm:$0xff]
  %v41 = vld [vmem:[%s0 + $0xc0] sm:$0xff]
  %v42 = vld [vmem:[%s0 + $0xc8] sm:$0xff]
  %v43 = vld [vmem:[%s0 + $0xd0] sm:$0xff]
  %v44 = vld [vmem:[%s0 + $0xd8] sm:$0xff]
  %v45 = vld [vmem:[%s0 + $0xe0] sm:$0xff]
  %v46 = vld [vmem:[%s0 + $0xe8] sm:$0xff]
  %v47 = vld [vmem:[%s0 + $0xf0] sm:$0xff]
  %v48 = vld [vmem:[%s0 + $0xf8] sm:$0xff]
  %v49 = vld [vmem:[%s0 + $0x100] sm:$0xff]
  %v50 = vld [vmem:[%s0 + $0x108] sm:$0xff]
  %v51 = vld [vmem:[%s0 + $0x110] sm:$0xff]
  %v52 = vld [vmem:[%s0 + $0x118] sm:$0xff]
  %v53 = vld [vmem:[%s0 + $0x120] sm:$0xff]
  %v54 = vld [vmem:[%s0 + $0x128] sm:$0xff]
  %v55 = vld [vmem:[%s0 + $0x130] sm:$0xff]
  %v56 = vld [vmem:[%s0 + $0x138] sm:$0xff]
  %v57 = vld [vmem:[%s0 + $0x140] sm:$0xff]
  %v58 = vld [vmem:[%s0 + $0x148] sm:$0xff]
  %v59 = vld [vmem:[%s0 + $0x150] sm:$0xff]
  %v60 = vld [vmem:[%s0 + $0x158] sm:$0xff]
  %v61 = vld [vmem:[%s0 + $0x160] sm:$0xff]
  %v62 = vld [vmem:[%s0 + $0x168] sm:$0xff]
  %v63 = vld [vmem:[%s0 + $0x170] sm:$0xff]
  %v64 = vld [vmem:[%s0 + $0x178] sm:$0xff]
  %v65 = vld [vmem:[%s0 + $0x180] sm:$0xff]
  %v66 = vld [vmem:[%s0 + $0x188] sm:$0xff]
  %v67 = vld [vmem:[%s0 + $0x190] sm:$0xff]
  %v68 = vld [vmem:[%s0 + $0x198] sm:$0xff]
  %v69 = vld [vmem:[%s0 + $0x1a0] sm:$0xff]
  %v70 = vld [vmem:[%s0 + $0x1a8] sm:$0xff]
  %v71 = vld [vmem:[%s0 + $0x1b0] sm:$0xff]
  %v72 = vld [vmem:[%s0 + $0x1b8] sm:$0xff]
  %v73 = vld [vmem:[%s0 + $0x1c0] sm:$0xff]
  %v74 = vld [vmem:[%s0 + $0x1c8] sm:$0xff]
  %v75 = vld [vmem:[%s0 + $0x1d0] sm:$0xff]
  %v76 = vld [vmem:[%s0 + $0x1d8] sm:$0xff]
  %v77 = vld [vmem:[%s0 + $0x1e0] sm:$0xff]
  %v78 = vld [vmem:[%s0 + $0x1e8] sm:$0xff]
  %v79 = vld [vmem:[%s0 + $0x1f0] sm:$0xff]
  %v80 = vld [vmem:[%s0 + $0x1f8] sm:$0xff]
  %v81 = vld [vmem:[%s1] sm:$0xf]
  %v82 = vld [vmem:[%s1 + $0x4] sm:$0xf]
  %v83 = vld [vmem:[%s1 + $0x8] sm:$0xf]
  %v84 = vld [vmem:[%s1 + $0xc] sm:$0xf]
  %v85 = vld [vmem:[%s1 + $0x10] sm:$0xf]
  %v86 = vld [vmem:[%s1 + $0x14] sm:$0xf]
  %v87 = vld [vmem:[%s1 + $0x18] sm:$0xf]
  %v88 = vld [vmem:[%s1 + $0x1c] sm:$0xf]
  %v89 = vld [vmem:[%s1 + $0x20] sm:$0xf]
  %v90 = vld [vmem:[%s1 + $0x24] sm:$0xf]
  %v91 = vld [vmem:[%s1 + $0x28] sm:$0xf]
  %v92 = vld [vmem:[%s1 + $0x2c] sm:$0xf]
  %v93 = vld [vmem:[%s1 + $0x30] sm:$0xf]
  %v94 = vld [vmem:[%s1 + $0x34] sm:$0xf]
  %v95 = vld [vmem:[%s1 + $0x38] sm:$0xf]
  %v96 = vld [vmem:[%s1 + $0x3c] sm:$0xf]
  %v97 = vld [vmem:[%s1 + $0x40] sm:$0xf]
  %v98 = vld [vmem:[%s1 + $0x44] sm:$0xf]
  %v99 = vld [vmem:[%s1 + $0x48] sm:$0xf]
  %v100 = vld [vmem:[%s1 + $0x4c] sm:$0xf]
  %v101 = vld [vmem:[%s1 + $0x50] sm:$0xf]
  %v102 = vld [vmem:[%s1 + $0x54] sm:$0xf]
  %v103 = vld [vmem:[%s1 + $0x58] sm:$0xf]
  %v104 = vld [vmem:[%s1 + $0x5c] sm:$0xf]
  %v105 = vld [vmem:[%s1 + $0x60] sm:$0xf]
  %v106 = vld [vmem:[%s1 + $0x64] sm:$0xf]
  %v107 = vld [vmem:[%s1 + $0x68] sm:$0xf]
  %v108 = vld [vmem:[%s1 + $0x6c] sm:$0xf]
  %v109 = vld [vmem:[%s1 + $0x70] sm:$0xf]
  %v110 = vld [vmem:[%s1 + $0x74] sm:$0xf]
  %v111 = vld [vmem:[%s1 + $0x78] sm:$0xf]
  %v112 = vld [vmem:[%s1 + $0x7c] sm:$0xf]
  %v177 = vunpack.c.l.b16 %v17
  %v178 = vunpack.c.h.b16 %v17
  %v179 = vunpack.c.l.b16 %v18
  %v180 = vunpack.c.h.b16 %v18
  %v181 = vunpack.c.l.b16 %v19
  %v182 = vunpack.c.h.b16 %v19
  %v183 = vunpack.c.l.b16 %v20
  %v184 = vunpack.c.h.b16 %v20
  %v185 = vunpack.c.l.b16 %v21
  %v186 = vunpack.c.h.b16 %v21
  %v187 = vunpack.c.l.b16 %v22
  %v188 = vunpack.c.h.b16 %v22
  %v189 = vunpack.c.l.b16 %v23
  %v190 = vunpack.c.h.b16 %v23
  %v191 = vunpack.c.l.b16 %v24
  %v192 = vunpack.c.h.b16 %v24
  %v193 = vunpack.c.l.b16 %v25
  %v194 = vunpack.c.h.b16 %v25
  %v195 = vunpack.c.l.b16 %v26
  %v196 = vunpack.c.h.b16 %v26
  %v197 = vunpack.c.l.b16 %v27
  %v198 = vunpack.c.h.b16 %v27
  %v199 = vunpack.c.l.b16 %v28
  %v200 = vunpack.c.h.b16 %v28
  %v201 = vunpack.c.l.b16 %v29
  %v202 = vunpack.c.h.b16 %v29
  %v203 = vunpack.c.l.b16 %v30
  %v204 = vunpack.c.h.b16 %v30
  %v205 = vunpack.c.l.b16 %v31
  %v206 = vunpack.c.h.b16 %v31
  %v207 = vunpack.c.l.b16 %v32
  %v208 = vunpack.c.h.b16 %v32
  %v209 = vunpack.c.l.b16 %v33
  %v210 = vunpack.c.h.b16 %v33
  %v211 = vunpack.c.l.b16 %v34
  %v212 = vunpack.c.h.b16 %v34
  %v213 = vunpack.c.l.b16 %v35
  %v214 = vunpack.c.h.b16 %v35
  %v215 = vunpack.c.l.b16 %v36
  %v216 = vunpack.c.h.b16 %v36
  %v217 = vunpack.c.l.b16 %v37
  %v218 = vunpack.c.h.b16 %v37
  %v219 = vunpack.c.l.b16 %v38
  %v220 = vunpack.c.h.b16 %v38
  %v221 = vunpack.c.l.b16 %v39
  %v222 = vunpack.c.h.b16 %v39
  %v223 = vunpack.c.l.b16 %v40
  %v224 = vunpack.c.h.b16 %v40
  %v225 = vunpack.c.l.b16 %v41
  %v226 = vunpack.c.h.b16 %v41
  %v227 = vunpack.c.l.b16 %v42
  %v228 = vunpack.c.h.b16 %v42
  %v229 = vunpack.c.l.b16 %v43
  %v230 = vunpack.c.h.b16 %v43
  %v231 = vunpack.c.l.b16 %v44
  %v232 = vunpack.c.h.b16 %v44
  %v233 = vunpack.c.l.b16 %v45
  %v234 = vunpack.c.h.b16 %v45
  %v235 = vunpack.c.l.b16 %v46
  %v236 = vunpack.c.h.b16 %v46
  %v237 = vunpack.c.l.b16 %v47
  %v238 = vunpack.c.h.b16 %v47
  %v239 = vunpack.c.l.b16 %v48
  %v240 = vunpack.c.h.b16 %v48
  %v241 = vunpack.c.l.b16 %v49
  %v242 = vunpack.c.h.b16 %v49
  %v243 = vunpack.c.l.b16 %v50
  %v244 = vunpack.c.h.b16 %v50
  %v245 = vunpack.c.l.b16 %v51
  %v246 = vunpack.c.h.b16 %v51
  %v247 = vunpack.c.l.b16 %v52
  %v248 = vunpack.c.h.b16 %v52
  %v249 = vunpack.c.l.b16 %v53
  %v250 = vunpack.c.h.b16 %v53
  %v251 = vunpack.c.l.b16 %v54
  %v252 = vunpack.c.h.b16 %v54
  %v253 = vunpack.c.l.b16 %v55
  %v254 = vunpack.c.h.b16 %v55
  %v255 = vunpack.c.l.b16 %v56
  %v256 = vunpack.c.h.b16 %v56
  %v257 = vunpack.c.l.b16 %v57
  %v258 = vunpack.c.h.b16 %v57
  %v259 = vunpack.c.l.b16 %v58
  %v260 = vunpack.c.h.b16 %v58
  %v261 = vunpack.c.l.b16 %v59
  %v262 = vunpack.c.h.b16 %v59
  %v263 = vunpack.c.l.b16 %v60
  %v264 = vunpack.c.h.b16 %v60
  %v265 = vunpack.c.l.b16 %v61
  %v266 = vunpack.c.h.b16 %v61
  %v267 = vunpack.c.l.b16 %v62
  %v268 = vunpack.c.h.b16 %v62
  %v269 = vunpack.c.l.b16 %v63
  %v270 = vunpack.c.h.b16 %v63
  %v271 = vunpack.c.l.b16 %v64
  %v272 = vunpack.c.h.b16 %v64
  %v273 = vunpack.c.l.b16 %v65
  %v274 = vunpack.c.h.b16 %v65
  %v275 = vunpack.c.l.b16 %v66
  %v276 = vunpack.c.h.b16 %v66
  %v277 = vunpack.c.l.b16 %v67
  %v278 = vunpack.c.h.b16 %v67
  %v279 = vunpack.c.l.b16 %v68
  %v280 = vunpack.c.h.b16 %v68
  %v281 = vunpack.c.l.b16 %v69
  %v282 = vunpack.c.h.b16 %v69
  %v283 = vunpack.c.l.b16 %v70
  %v284 = vunpack.c.h.b16 %v70
  %v285 = vunpack.c.l.b16 %v71
  %v286 = vunpack.c.h.b16 %v71
  %v287 = vunpack.c.l.b16 %v72
  %v288 = vunpack.c.h.b16 %v72
  %v289 = vunpack.c.l.b16 %v73
  %v290 = vunpack.c.h.b16 %v73
  %v291 = vunpack.c.l.b16 %v74
  %v292 = vunpack.c.h.b16 %v74
  %v293 = vunpack.c.l.b16 %v75
  %v294 = vunpack.c.h.b16 %v75
  %v295 = vunpack.c.l.b16 %v76
  %v296 = vunpack.c.h.b16 %v76
  %v297 = vunpack.c.l.b16 %v77
  %v298 = vunpack.c.h.b16 %v77
  %v299 = vunpack.c.l.b16 %v78
  %v300 = vunpack.c.h.b16 %v78
  %v301 = vunpack.c.l.b16 %v79
  %v302 = vunpack.c.h.b16 %v79
  %v303 = vunpack.c.l.b16 %v80
  %v304 = vunpack.c.h.b16 %v80
  %v305 = vpack.c.b16 %v179, %v177
  %v306 = vpack.c.b16 %v180, %v178
  %v307 = vpack.c.b16 %v183, %v181
  %v308 = vpack.c.b16 %v184, %v182
  %v309 = vpack.c.b16 %v187, %v185
  %v310 = vpack.c.b16 %v188, %v186
  %v311 = vpack.c.b16 %v191, %v189
  %v312 = vpack.c.b16 %v192, %v190
  %v313 = vpack.c.b16 %v195, %v193
  %v314 = vpack.c.b16 %v196, %v194
  %v315 = vpack.c.b16 %v199, %v197
  %v316 = vpack.c.b16 %v200, %v198
  %v317 = vpack.c.b16 %v203, %v201
  %v318 = vpack.c.b16 %v204, %v202
  %v319 = vpack.c.b16 %v207, %v205
  %v320 = vpack.c.b16 %v208, %v206
  %v321 = vpack.c.b16 %v211, %v209
  %v322 = vpack.c.b16 %v212, %v210
  %v323 = vpack.c.b16 %v215, %v213
  %v324 = vpack.c.b16 %v216, %v214
  %v325 = vpack.c.b16 %v219, %v217
  %v326 = vpack.c.b16 %v220, %v218
  %v327 = vpack.c.b16 %v223, %v221
  %v328 = vpack.c.b16 %v224, %v222
  %v329 = vpack.c.b16 %v227, %v225
  %v330 = vpack.c.b16 %v228, %v226
  %v331 = vpack.c.b16 %v231, %v229
  %v332 = vpack.c.b16 %v232, %v230
  %v333 = vpack.c.b16 %v235, %v233
  %v334 = vpack.c.b16 %v236, %v234
  %v335 = vpack.c.b16 %v239, %v237
  %v336 = vpack.c.b16 %v240, %v238
  %v337 = vpack.c.b16 %v243, %v241
  %v338 = vpack.c.b16 %v244, %v242
  %v339 = vpack.c.b16 %v247, %v245
  %v340 = vpack.c.b16 %v248, %v246
  %v341 = vpack.c.b16 %v251, %v249
  %v342 = vpack.c.b16 %v252, %v250
  %v343 = vpack.c.b16 %v255, %v253
  %v344 = vpack.c.b16 %v256, %v254
  %v345 = vpack.c.b16 %v259, %v257
  %v346 = vpack.c.b16 %v260, %v258
  %v347 = vpack.c.b16 %v263, %v261
  %v348 = vpack.c.b16 %v264, %v262
  %v349 = vpack.c.b16 %v267, %v265
  %v350 = vpack.c.b16 %v268, %v266
  %v351 = vpack.c.b16 %v271, %v269
  %v352 = vpack.c.b16 %v272, %v270
  %v353 = vpack.c.b16 %v275, %v273
  %v354 = vpack.c.b16 %v276, %v274
  %v355 = vpack.c.b16 %v279, %v277
  %v356 = vpack.c.b16 %v280, %v278
  %v357 = vpack.c.b16 %v283, %v281
  %v358 = vpack.c.b16 %v284, %v282
  %v359 = vpack.c.b16 %v287, %v285
  %v360 = vpack.c.b16 %v288, %v286
  %v361 = vpack.c.b16 %v291, %v289
  %v362 = vpack.c.b16 %v292, %v290
  %v363 = vpack.c.b16 %v295, %v293
  %v364 = vpack.c.b16 %v296, %v294
  %v365 = vpack.c.b16 %v299, %v297
  %v366 = vpack.c.b16 %v300, %v298
  %v367 = vpack.c.b16 %v303, %v301
  %v368 = vpack.c.b16 %v304, %v302
  %v465 = vunpack.c.l.b16 %v81
  %v466 = vunpack.c.l.b16 %v82
  %v467 = vunpack.c.l.b16 %v83
  %v468 = vunpack.c.l.b16 %v84
  %v469 = vunpack.c.l.b16 %v85
  %v470 = vunpack.c.l.b16 %v86
  %v471 = vunpack.c.l.b16 %v87
  %v472 = vunpack.c.l.b16 %v88
  %v473 = vunpack.c.l.b16 %v89
  %v474 = vunpack.c.l.b16 %v90
  %v475 = vunpack.c.l.b16 %v91
  %v476 = vunpack.c.l.b16 %v92
  %v477 = vunpack.c.l.b16 %v93
  %v478 = vunpack.c.l.b16 %v94
  %v479 = vunpack.c.l.b16 %v95
  %v480 = vunpack.c.l.b16 %v96
  %v481 = vunpack.c.l.b16 %v97
  %v482 = vunpack.c.l.b16 %v98
  %v483 = vunpack.c.l.b16 %v99
  %v484 = vunpack.c.l.b16 %v100
  %v485 = vunpack.c.l.b16 %v101
  %v486 = vunpack.c.l.b16 %v102
  %v487 = vunpack.c.l.b16 %v103
  %v488 = vunpack.c.l.b16 %v104
  %v489 = vunpack.c.l.b16 %v105
  %v490 = vunpack.c.l.b16 %v106
  %v491 = vunpack.c.l.b16 %v107
  %v492 = vunpack.c.l.b16 %v108
  %v493 = vunpack.c.l.b16 %v109
  %v494 = vunpack.c.l.b16 %v110
  %v495 = vunpack.c.l.b16 %v111
  %v496 = vunpack.c.l.b16 %v112
  %v497 = vpack.c.b16 %v466, %v465
  %v498 = vpack.c.b16 %v468, %v467
  %v499 = vpack.c.b16 %v470, %v469
  %v500 = vpack.c.b16 %v472, %v471
  %v501 = vpack.c.b16 %v474, %v473
  %v502 = vpack.c.b16 %v476, %v475
  %v503 = vpack.c.b16 %v478, %v477
  %v504 = vpack.c.b16 %v480, %v479
  %v505 = vpack.c.b16 %v482, %v481
  %v506 = vpack.c.b16 %v484, %v483
  %v507 = vpack.c.b16 %v486, %v485
  %v508 = vpack.c.b16 %v488, %v487
  %v509 = vpack.c.b16 %v490, %v489
  %v510 = vpack.c.b16 %v492, %v491
  %v511 = vpack.c.b16 %v494, %v493
  %v512 = vpack.c.b16 %v496, %v495
  %529 = vmatpush.bf16.msra.mxu0 %v504
  %530 = vmatpush.bf16.msra.mxu0 %v503
  %531 = vmatpush.bf16.msra.mxu0 %v502
  %532 = vmatpush.bf16.msra.mxu0 %v501
  %533 = vmatpush.bf16.msra.mxu0 %v500
  %534 = vmatpush.bf16.msra.mxu0 %v499
  %535 = vmatpush.bf16.msra.mxu0 %v498
  %536 = vmatpush.bf16.msra.mxu0 %v497
  %537 = vmatmul.bf16.gmra.mxu0 %v305
  %v538 = vpop.f32.mrf.mxu0
  %v539 = vadd.f32 0.0, %v538
  %v540 = vpop.f32.mrf.mxu0
  %v541 = vadd.f32 0.0, %v540
  %542 = vmatmul.bf16.gmra.mxu0 %v307
  %v543 = vpop.f32.mrf.mxu0
  %v544 = vadd.f32 0.0, %v543
  %v545 = vpop.f32.mrf.mxu0
  %v546 = vadd.f32 0.0, %v545
  %547 = vmatmul.bf16.gmra.mxu0 %v309
  %v548 = vpop.f32.mrf.mxu0
  %v549 = vadd.f32 0.0, %v548
  %v550 = vpop.f32.mrf.mxu0
  %v551 = vadd.f32 0.0, %v550
  %552 = vmatmul.bf16.gmra.mxu0 %v311
  %v553 = vpop.f32.mrf.mxu0
  %v554 = vadd.f32 0.0, %v553
  %v555 = vpop.f32.mrf.mxu0
  %v556 = vadd.f32 0.0, %v555
  %557 = vmatmul.bf16.gmra.mxu0 %v313
  %v558 = vpop.f32.mrf.mxu0
  %v559 = vadd.f32 0.0, %v558
  %v560 = vpop.f32.mrf.mxu0
  %v561 = vadd.f32 0.0, %v560
  %562 = vmatmul.bf16.gmra.mxu0 %v315
  %v563 = vpop.f32.mrf.mxu0
  %v564 = vadd.f32 0.0, %v563
  %v565 = vpop.f32.mrf.mxu0
  %v566 = vadd.f32 0.0, %v565
  %567 = vmatmul.bf16.gmra.mxu0 %v317
  %v568 = vpop.f32.mrf.mxu0
  %v569 = vadd.f32 0.0, %v568
  %v570 = vpop.f32.mrf.mxu0
  %v571 = vadd.f32 0.0, %v570
  %572 = vmatmul.bf16.gmra.mxu0 %v319
  %v573 = vpop.f32.mrf.mxu0
  %v574 = vadd.f32 0.0, %v573
  %v575 = vpop.f32.mrf.mxu0
  %v576 = vadd.f32 0.0, %v575
  %577 = vmatmul.bf16.gmra.mxu0 %v321
  %v578 = vpop.f32.mrf.mxu0
  %v579 = vadd.f32 0.0, %v578
  %v580 = vpop.f32.mrf.mxu0
  %v581 = vadd.f32 0.0, %v580
  %582 = vmatmul.bf16.gmra.mxu0 %v323
  %v583 = vpop.f32.mrf.mxu0
  %v584 = vadd.f32 0.0, %v583
  %v585 = vpop.f32.mrf.mxu0
  %v586 = vadd.f32 0.0, %v585
  %587 = vmatmul.bf16.gmra.mxu0 %v325
  %v588 = vpop.f32.mrf.mxu0
  %v589 = vadd.f32 0.0, %v588
  %v590 = vpop.f32.mrf.mxu0
  %v591 = vadd.f32 0.0, %v590
  %592 = vmatmul.bf16.gmra.mxu0 %v327
  %v593 = vpop.f32.mrf.mxu0
  %v594 = vadd.f32 0.0, %v593
  %v595 = vpop.f32.mrf.mxu0
  %v596 = vadd.f32 0.0, %v595
  %597 = vmatmul.bf16.gmra.mxu0 %v329
  %v598 = vpop.f32.mrf.mxu0
  %v599 = vadd.f32 0.0, %v598
  %v600 = vpop.f32.mrf.mxu0
  %v601 = vadd.f32 0.0, %v600
  %602 = vmatmul.bf16.gmra.mxu0 %v331
  %v603 = vpop.f32.mrf.mxu0
  %v604 = vadd.f32 0.0, %v603
  %v605 = vpop.f32.mrf.mxu0
  %v606 = vadd.f32 0.0, %v605
  %607 = vmatmul.bf16.gmra.mxu0 %v333
  %v608 = vpop.f32.mrf.mxu0
  %v609 = vadd.f32 0.0, %v608
  %v610 = vpop.f32.mrf.mxu0
  %v611 = vadd.f32 0.0, %v610
  %612 = vmatmul.bf16.gmra.mxu0 %v335
  %v613 = vpop.f32.mrf.mxu0
  %v614 = vadd.f32 0.0, %v613
  %v615 = vpop.f32.mrf.mxu0
  %v616 = vadd.f32 0.0, %v615
  %617 = vmatmul.bf16.gmra.mxu0 %v337
  %v618 = vpop.f32.mrf.mxu0
  %v619 = vadd.f32 0.0, %v618
  %v620 = vpop.f32.mrf.mxu0
  %v621 = vadd.f32 0.0, %v620
  %622 = vmatmul.bf16.gmra.mxu0 %v339
  %v623 = vpop.f32.mrf.mxu0
  %v624 = vadd.f32 0.0, %v623
  %v625 = vpop.f32.mrf.mxu0
  %v626 = vadd.f32 0.0, %v625
  %627 = vmatmul.bf16.gmra.mxu0 %v341
  %v628 = vpop.f32.mrf.mxu0
  %v629 = vadd.f32 0.0, %v628
  %v630 = vpop.f32.mrf.mxu0
  %v631 = vadd.f32 0.0, %v630
  %632 = vmatmul.bf16.gmra.mxu0 %v343
  %v633 = vpop.f32.mrf.mxu0
  %v634 = vadd.f32 0.0, %v633
  %v635 = vpop.f32.mrf.mxu0
  %v636 = vadd.f32 0.0, %v635
  %637 = vmatmul.bf16.gmra.mxu0 %v345
  %v638 = vpop.f32.mrf.mxu0
  %v639 = vadd.f32 0.0, %v638
  %v640 = vpop.f32.mrf.mxu0
  %v641 = vadd.f32 0.0, %v640
  %642 = vmatmul.bf16.gmra.mxu0 %v347
  %v643 = vpop.f32.mrf.mxu0
  %v644 = vadd.f32 0.0, %v643
  %v645 = vpop.f32.mrf.mxu0
  %v646 = vadd.f32 0.0, %v645
  %647 = vmatmul.bf16.gmra.mxu0 %v349
  %v648 = vpop.f32.mrf.mxu0
  %v649 = vadd.f32 0.0, %v648
  %v650 = vpop.f32.mrf.mxu0
  %v651 = vadd.f32 0.0, %v650
  %652 = vmatmul.bf16.gmra.mxu0 %v351
  %v653 = vpop.f32.mrf.mxu0
  %v654 = vadd.f32 0.0, %v653
  %v655 = vpop.f32.mrf.mxu0
  %v656 = vadd.f32 0.0, %v655
  %657 = vmatmul.bf16.gmra.mxu0 %v353
  %v658 = vpop.f32.mrf.mxu0
  %v659 = vadd.f32 0.0, %v658
  %v660 = vpop.f32.mrf.mxu0
  %v661 = vadd.f32 0.0, %v660
  %662 = vmatmul.bf16.gmra.mxu0 %v355
  %v663 = vpop.f32.mrf.mxu0
  %v664 = vadd.f32 0.0, %v663
  %v665 = vpop.f32.mrf.mxu0
  %v666 = vadd.f32 0.0, %v665
  %667 = vmatmul.bf16.gmra.mxu0 %v357
  %v668 = vpop.f32.mrf.mxu0
  %v669 = vadd.f32 0.0, %v668
  %v670 = vpop.f32.mrf.mxu0
  %v671 = vadd.f32 0.0, %v670
  %672 = vmatmul.bf16.gmra.mxu0 %v359
  %v673 = vpop.f32.mrf.mxu0
  %v674 = vadd.f32 0.0, %v673
  %v675 = vpop.f32.mrf.mxu0
  %v676 = vadd.f32 0.0, %v675
  %677 = vmatmul.bf16.gmra.mxu0 %v361
  %v678 = vpop.f32.mrf.mxu0
  %v679 = vadd.f32 0.0, %v678
  %v680 = vpop.f32.mrf.mxu0
  %v681 = vadd.f32 0.0, %v680
  %682 = vmatmul.bf16.gmra.mxu0 %v363
  %v683 = vpop.f32.mrf.mxu0
  %v684 = vadd.f32 0.0, %v683
  %v685 = vpop.f32.mrf.mxu0
  %v686 = vadd.f32 0.0, %v685
  %687 = vmatmul.bf16.gmra.mxu0 %v365
  %v688 = vpop.f32.mrf.mxu0
  %v689 = vadd.f32 0.0, %v688
  %v690 = vpop.f32.mrf.mxu0
  %v691 = vadd.f32 0.0, %v690
  %692 = vmatmul.bf16.gmra.mxu0 %v367
  %v693 = vpop.f32.mrf.mxu0
  %v694 = vadd.f32 0.0, %v693
  %v695 = vpop.f32.mrf.mxu0
  %v696 = vadd.f32 0.0, %v695
  %697 = vdwg.mxu0
  %698 = vmatpush.bf16.msra.mxu0 %v512
  %699 = vmatpush.bf16.msra.mxu0 %v511
  %700 = vmatpush.bf16.msra.mxu0 %v510
  %701 = vmatpush.bf16.msra.mxu0 %v509
  %702 = vmatpush.bf16.msra.mxu0 %v508
  %703 = vmatpush.bf16.msra.mxu0 %v507
  %704 = vmatpush.bf16.msra.mxu0 %v506
  %705 = vmatpush.bf16.msra.mxu0 %v505
  %706 = vmatmul.bf16.gmra.mxu0 %v306
  %v707 = vpop.f32.mrf.mxu0
  %v708 = vadd.f32 %v539, %v707
  %v709 = vpop.f32.mrf.mxu0
  %v710 = vadd.f32 %v541, %v709
  %711 = vmatmul.bf16.gmra.mxu0 %v308
  %v712 = vpop.f32.mrf.mxu0
  %v713 = vadd.f32 %v544, %v712
  %v714 = vpop.f32.mrf.mxu0
  %v715 = vadd.f32 %v546, %v714
  %716 = vmatmul.bf16.gmra.mxu0 %v310
  %v717 = vpop.f32.mrf.mxu0
  %v718 = vadd.f32 %v549, %v717
  %v719 = vpop.f32.mrf.mxu0
  %v720 = vadd.f32 %v551, %v719
  %721 = vmatmul.bf16.gmra.mxu0 %v312
  %v722 = vpop.f32.mrf.mxu0
  %v723 = vadd.f32 %v554, %v722
  %v724 = vpop.f32.mrf.mxu0
  %v725 = vadd.f32 %v556, %v724
  %726 = vmatmul.bf16.gmra.mxu0 %v314
  %v727 = vpop.f32.mrf.mxu0
  %v728 = vadd.f32 %v559, %v727
  %v729 = vpop.f32.mrf.mxu0
  %v730 = vadd.f32 %v561, %v729
  %731 = vmatmul.bf16.gmra.mxu0 %v316
  %v732 = vpop.f32.mrf.mxu0
  %v733 = vadd.f32 %v564, %v732
  %v734 = vpop.f32.mrf.mxu0
  %v735 = vadd.f32 %v566, %v734
  %736 = vmatmul.bf16.gmra.mxu0 %v318
  %v737 = vpop.f32.mrf.mxu0
  %v738 = vadd.f32 %v569, %v737
  %v739 = vpop.f32.mrf.mxu0
  %v740 = vadd.f32 %v571, %v739
  %741 = vmatmul.bf16.gmra.mxu0 %v320
  %v742 = vpop.f32.mrf.mxu0
  %v743 = vadd.f32 %v574, %v742
  %v744 = vpop.f32.mrf.mxu0
  %v745 = vadd.f32 %v576, %v744
  %746 = vmatmul.bf16.gmra.mxu0 %v322
  %v747 = vpop.f32.mrf.mxu0
  %v748 = vadd.f32 %v579, %v747
  %v749 = vpop.f32.mrf.mxu0
  %v750 = vadd.f32 %v581, %v749
  %751 = vmatmul.bf16.gmra.mxu0 %v324
  %v752 = vpop.f32.mrf.mxu0
  %v753 = vadd.f32 %v584, %v752
  %v754 = vpop.f32.mrf.mxu0
  %v755 = vadd.f32 %v586, %v754
  %756 = vmatmul.bf16.gmra.mxu0 %v326
  %v757 = vpop.f32.mrf.mxu0
  %v758 = vadd.f32 %v589, %v757
  %v759 = vpop.f32.mrf.mxu0
  %v760 = vadd.f32 %v591, %v759
  %761 = vmatmul.bf16.gmra.mxu0 %v328
  %v762 = vpop.f32.mrf.mxu0
  %v763 = vadd.f32 %v594, %v762
  %v764 = vpop.f32.mrf.mxu0
  %v765 = vadd.f32 %v596, %v764
  %766 = vmatmul.bf16.gmra.mxu0 %v330
  %v767 = vpop.f32.mrf.mxu0
  %v768 = vadd.f32 %v599, %v767
  %v769 = vpop.f32.mrf.mxu0
  %v770 = vadd.f32 %v601, %v769
  %771 = vmatmul.bf16.gmra.mxu0 %v332
  %v772 = vpop.f32.mrf.mxu0
  %v773 = vadd.f32 %v604, %v772
  %v774 = vpop.f32.mrf.mxu0
  %v775 = vadd.f32 %v606, %v774
  %776 = vmatmul.bf16.gmra.mxu0 %v334
  %v777 = vpop.f32.mrf.mxu0
  %v778 = vadd.f32 %v609, %v777
  %v779 = vpop.f32.mrf.mxu0
  %v780 = vadd.f32 %v611, %v779
  %781 = vmatmul.bf16.gmra.mxu0 %v336
  %v782 = vpop.f32.mrf.mxu0
  %v783 = vadd.f32 %v614, %v782
  %v784 = vpop.f32.mrf.mxu0
  %v785 = vadd.f32 %v616, %v784
  %786 = vmatmul.bf16.gmra.mxu0 %v338
  %v787 = vpop.f32.mrf.mxu0
  %v788 = vadd.f32 %v619, %v787
  %v789 = vpop.f32.mrf.mxu0
  %v790 = vadd.f32 %v621, %v789
  %791 = vmatmul.bf16.gmra.mxu0 %v340
  %v792 = vpop.f32.mrf.mxu0
  %v793 = vadd.f32 %v624, %v792
  %v794 = vpop.f32.mrf.mxu0
  %v795 = vadd.f32 %v626, %v794
  %796 = vmatmul.bf16.gmra.mxu0 %v342
  %v797 = vpop.f32.mrf.mxu0
  %v798 = vadd.f32 %v629, %v797
  %v799 = vpop.f32.mrf.mxu0
  %v800 = vadd.f32 %v631, %v799
  %801 = vmatmul.bf16.gmra.mxu0 %v344
  %v802 = vpop.f32.mrf.mxu0
  %v803 = vadd.f32 %v634, %v802
  %v804 = vpop.f32.mrf.mxu0
  %v805 = vadd.f32 %v636, %v804
  %806 = vmatmul.bf16.gmra.mxu0 %v346
  %v807 = vpop.f32.mrf.mxu0
  %v808 = vadd.f32 %v639, %v807
  %v809 = vpop.f32.mrf.mxu0
  %v810 = vadd.f32 %v641, %v809
  %811 = vmatmul.bf16.gmra.mxu0 %v348
  %v812 = vpop.f32.mrf.mxu0
  %v813 = vadd.f32 %v644, %v812
  %v814 = vpop.f32.mrf.mxu0
  %v815 = vadd.f32 %v646, %v814
  %816 = vmatmul.bf16.gmra.mxu0 %v350
  %v817 = vpop.f32.mrf.mxu0
  %v818 = vadd.f32 %v649, %v817
  %v819 = vpop.f32.mrf.mxu0
  %v820 = vadd.f32 %v651, %v819
  %821 = vmatmul.bf16.gmra.mxu0 %v352
  %v822 = vpop.f32.mrf.mxu0
  %v823 = vadd.f32 %v654, %v822
  %v824 = vpop.f32.mrf.mxu0
  %v825 = vadd.f32 %v656, %v824
  %826 = vmatmul.bf16.gmra.mxu0 %v354
  %v827 = vpop.f32.mrf.mxu0
  %v828 = vadd.f32 %v659, %v827
  %v829 = vpop.f32.mrf.mxu0
  %v830 = vadd.f32 %v661, %v829
  %831 = vmatmul.bf16.gmra.mxu0 %v356
  %v832 = vpop.f32.mrf.mxu0
  %v833 = vadd.f32 %v664, %v832
  %v834 = vpop.f32.mrf.mxu0
  %v835 = vadd.f32 %v666, %v834
  %836 = vmatmul.bf16.gmra.mxu0 %v358
  %v837 = vpop.f32.mrf.mxu0
  %v838 = vadd.f32 %v669, %v837
  %v839 = vpop.f32.mrf.mxu0
  %v840 = vadd.f32 %v671, %v839
  %841 = vmatmul.bf16.gmra.mxu0 %v360
  %v842 = vpop.f32.mrf.mxu0
  %v843 = vadd.f32 %v674, %v842
  %v844 = vpop.f32.mrf.mxu0
  %v845 = vadd.f32 %v676, %v844
  %846 = vmatmul.bf16.gmra.mxu0 %v362
  %v847 = vpop.f32.mrf.mxu0
  %v848 = vadd.f32 %v679, %v847
  %v849 = vpop.f32.mrf.mxu0
  %v850 = vadd.f32 %v681, %v849
  %851 = vmatmul.bf16.gmra.mxu0 %v364
  %v852 = vpop.f32.mrf.mxu0
  %v853 = vadd.f32 %v684, %v852
  %v854 = vpop.f32.mrf.mxu0
  %v855 = vadd.f32 %v686, %v854
  %856 = vmatmul.bf16.gmra.mxu0 %v366
  %v857 = vpop.f32.mrf.mxu0
  %v858 = vadd.f32 %v689, %v857
  %v859 = vpop.f32.mrf.mxu0
  %v860 = vadd.f32 %v691, %v859
  %861 = vmatmul.bf16.gmra.mxu0 %v368
  %v862 = vpop.f32.mrf.mxu0
  %v863 = vadd.f32 %v694, %v862
  %v864 = vpop.f32.mrf.mxu0
  %v865 = vadd.f32 %v696, %v864
  %866 = vdwg.mxu0
  %v867 = vld [vmem:[%s2] sm:$0x1]
  %v869 = vperm.slane %v867, 0
  %v871 = vmul.f32 %v708, %v869
  %v872 = vmul.f32 %v710, %v869
  %v873 = vmul.f32 %v713, %v869
  %v874 = vmul.f32 %v715, %v869
  %v875 = vmul.f32 %v718, %v869
  %v876 = vmul.f32 %v720, %v869
  %v877 = vmul.f32 %v723, %v869
  %v878 = vmul.f32 %v725, %v869
  %v879 = vmul.f32 %v728, %v869
  %v880 = vmul.f32 %v730, %v869
  %v881 = vmul.f32 %v733, %v869
  %v882 = vmul.f32 %v735, %v869
  %v883 = vmul.f32 %v738, %v869
  %v884 = vmul.f32 %v740, %v869
  %v885 = vmul.f32 %v743, %v869
  %v886 = vmul.f32 %v745, %v869
  %v887 = vmul.f32 %v748, %v869
  %v888 = vmul.f32 %v750, %v869
  %v889 = vmul.f32 %v753, %v869
  %v890 = vmul.f32 %v755, %v869
  %v891 = vmul.f32 %v758, %v869
  %v892 = vmul.f32 %v760, %v869
  %v893 = vmul.f32 %v763, %v869
  %v894 = vmul.f32 %v765, %v869
  %v895 = vmul.f32 %v768, %v869
  %v896 = vmul.f32 %v770, %v869
  %v897 = vmul.f32 %v773, %v869
  %v898 = vmul.f32 %v775, %v869
  %v899 = vmul.f32 %v778, %v869
  %v900 = vmul.f32 %v780, %v869
  %v901 = vmul.f32 %v783, %v869
  %v902 = vmul.f32 %v785, %v869
  %v903 = vmul.f32 %v788, %v869
  %v904 = vmul.f32 %v790, %v869
  %v905 = vmul.f32 %v793, %v869
  %v906 = vmul.f32 %v795, %v869
  %v907 = vmul.f32 %v798, %v869
  %v908 = vmul.f32 %v800, %v869
  %v909 = vmul.f32 %v803, %v869
  %v910 = vmul.f32 %v805, %v869
  %v911 = vmul.f32 %v808, %v869
  %v912 = vmul.f32 %v810, %v869
  %v913 = vmul.f32 %v813, %v869
  %v914 = vmul.f32 %v815, %v869
  %v915 = vmul.f32 %v818, %v869
  %v916 = vmul.f32 %v820, %v869
  %v917 = vmul.f32 %v823, %v869
  %v918 = vmul.f32 %v825, %v869
  %v919 = vmul.f32 %v828, %v869
  %v920 = vmul.f32 %v830, %v869
  %v921 = vmul.f32 %v833, %v869
  %v922 = vmul.f32 %v835, %v869
  %v923 = vmul.f32 %v838, %v869
  %v924 = vmul.f32 %v840, %v869
  %v925 = vmul.f32 %v843, %v869
  %v926 = vmul.f32 %v845, %v869
  %v927 = vmul.f32 %v848, %v869
  %v928 = vmul.f32 %v850, %v869
  %v929 = vmul.f32 %v853, %v869
  %v930 = vmul.f32 %v855, %v869
  %v931 = vmul.f32 %v858, %v869
  %v932 = vmul.f32 %v860, %v869
  %v933 = vmul.f32 %v863, %v869
  %v934 = vmul.f32 %v865, %v869
  %v935 = vld [vmem:[%s3] sm:$0x1]
  %v937 = vperm.slane %v935, 0
  %v939 = vadd.f32 %v871, %v937
  %v940 = vadd.f32 %v872, %v937
  %v941 = vadd.f32 %v873, %v937
  %v942 = vadd.f32 %v874, %v937
  %v943 = vadd.f32 %v875, %v937
  %v944 = vadd.f32 %v876, %v937
  %v945 = vadd.f32 %v877, %v937
  %v946 = vadd.f32 %v878, %v937
  %v947 = vadd.f32 %v879, %v937
  %v948 = vadd.f32 %v880, %v937
  %v949 = vadd.f32 %v881, %v937
  %v950 = vadd.f32 %v882, %v937
  %v951 = vadd.f32 %v883, %v937
  %v952 = vadd.f32 %v884, %v937
  %v953 = vadd.f32 %v885, %v937
  %v954 = vadd.f32 %v886, %v937
  %v955 = vadd.f32 %v887, %v937
  %v956 = vadd.f32 %v888, %v937
  %v957 = vadd.f32 %v889, %v937
  %v958 = vadd.f32 %v890, %v937
  %v959 = vadd.f32 %v891, %v937
  %v960 = vadd.f32 %v892, %v937
  %v961 = vadd.f32 %v893, %v937
  %v962 = vadd.f32 %v894, %v937
  %v963 = vadd.f32 %v895, %v937
  %v964 = vadd.f32 %v896, %v937
  %v965 = vadd.f32 %v897, %v937
  %v966 = vadd.f32 %v898, %v937
  %v967 = vadd.f32 %v899, %v937
  %v968 = vadd.f32 %v900, %v937
  %v969 = vadd.f32 %v901, %v937
  %v970 = vadd.f32 %v902, %v937
  %v971 = vadd.f32 %v903, %v937
  %v972 = vadd.f32 %v904, %v937
  %v973 = vadd.f32 %v905, %v937
  %v974 = vadd.f32 %v906, %v937
  %v975 = vadd.f32 %v907, %v937
  %v976 = vadd.f32 %v908, %v937
  %v977 = vadd.f32 %v909, %v937
  %v978 = vadd.f32 %v910, %v937
  %v979 = vadd.f32 %v911, %v937
  %v980 = vadd.f32 %v912, %v937
  %v981 = vadd.f32 %v913, %v937
  %v982 = vadd.f32 %v914, %v937
  %v983 = vadd.f32 %v915, %v937
  %v984 = vadd.f32 %v916, %v937
  %v985 = vadd.f32 %v917, %v937
  %v986 = vadd.f32 %v918, %v937
  %v987 = vadd.f32 %v919, %v937
  %v988 = vadd.f32 %v920, %v937
  %v989 = vadd.f32 %v921, %v937
  %v990 = vadd.f32 %v922, %v937
  %v991 = vadd.f32 %v923, %v937
  %v992 = vadd.f32 %v924, %v937
  %v993 = vadd.f32 %v925, %v937
  %v994 = vadd.f32 %v926, %v937
  %v995 = vadd.f32 %v927, %v937
  %v996 = vadd.f32 %v928, %v937
  %v997 = vadd.f32 %v929, %v937
  %v998 = vadd.f32 %v930, %v937
  %v999 = vadd.f32 %v931, %v937
  %v1000 = vadd.f32 %v932, %v937
  %v1001 = vadd.f32 %v933, %v937
  %v1002 = vadd.f32 %v934, %v937
  %v1003 = vmax.f32 %v939, 0.0
  %v1004 = vmax.f32 %v940, 0.0
  %v1005 = vmax.f32 %v941, 0.0
  %v1006 = vmax.f32 %v942, 0.0
  %v1007 = vmax.f32 %v943, 0.0
  %v1008 = vmax.f32 %v944, 0.0
  %v1009 = vmax.f32 %v945, 0.0
  %v1010 = vmax.f32 %v946, 0.0
  %v1011 = vmax.f32 %v947, 0.0
  %v1012 = vmax.f32 %v948, 0.0
  %v1013 = vmax.f32 %v949, 0.0
  %v1014 = vmax.f32 %v950, 0.0
  %v1015 = vmax.f32 %v951, 0.0
  %v1016 = vmax.f32 %v952, 0.0
  %v1017 = vmax.f32 %v953, 0.0
  %v1018 = vmax.f32 %v954, 0.0
  %v1019 = vmax.f32 %v955, 0.0
  %v1020 = vmax.f32 %v956, 0.0
  %v1021 = vmax.f32 %v957, 0.0
  %v1022 = vmax.f32 %v958, 0.0
  %v1023 = vmax.f32 %v959, 0.0
  %v1024 = vmax.f32 %v960, 0.0
  %v1025 = vmax.f32 %v961, 0.0
  %v1026 = vmax.f32 %v962, 0.0
  %v1027 = vmax.f32 %v963, 0.0
  %v1028 = vmax.f32 %v964, 0.0
  %v1029 = vmax.f32 %v965, 0.0
  %v1030 = vmax.f32 %v966, 0.0
  %v1031 = vmax.f32 %v967, 0.0
  %v1032 = vmax.f32 %v968, 0.0
  %v1033 = vmax.f32 %v969, 0.0
  %v1034 = vmax.f32 %v970, 0.0
  %v1035 = vmax.f32 %v971, 0.0
  %v1036 = vmax.f32 %v972, 0.0
  %v1037 = vmax.f32 %v973, 0.0
  %v1038 = vmax.f32 %v974, 0.0
  %v1039 = vmax.f32 %v975, 0.0
  %v1040 = vmax.f32 %v976, 0.0
  %v1041 = vmax.f32 %v977, 0.0
  %v1042 = vmax.f32 %v978, 0.0
  %v1043 = vmax.f32 %v979, 0.0
  %v1044 = vmax.f32 %v980, 0.0
  %v1045 = vmax.f32 %v981, 0.0
  %v1046 = vmax.f32 %v982, 0.0
  %v1047 = vmax.f32 %v983, 0.0
  %v1048 = vmax.f32 %v984, 0.0
  %v1049 = vmax.f32 %v985, 0.0
  %v1050 = vmax.f32 %v986, 0.0
  %v1051 = vmax.f32 %v987, 0.0
  %v1052 = vmax.f32 %v988, 0.0
  %v1053 = vmax.f32 %v989, 0.0
  %v1054 = vmax.f32 %v990, 0.0
  %v1055 = vmax.f32 %v991, 0.0
  %v1056 = vmax.f32 %v992, 0.0
  %v1057 = vmax.f32 %v993, 0.0
  %v1058 = vmax.f32 %v994, 0.0
  %v1059 = vmax.f32 %v995, 0.0
  %v1060 = vmax.f32 %v996, 0.0
  %v1061 = vmax.f32 %v997, 0.0
  %v1062 = vmax.f32 %v998, 0.0
  %v1063 = vmax.f32 %v999, 0.0
  %v1064 = vmax.f32 %v1000, 0.0
  %v1065 = vmax.f32 %v1001, 0.0
  %v1066 = vmax.f32 %v1002, 0.0
  %v1067 = vpack.c.bf16 %v1003, %v1003
  %v1068 = vpack.c.bf16 %v1004, %v1004
  %v1069 = vpack.c.bf16 %v1005, %v1005
  %v1070 = vpack.c.bf16 %v1006, %v1006
  %v1071 = vpack.c.bf16 %v1007, %v1007
  %v1072 = vpack.c.bf16 %v1008, %v1008
  %v1073 = vpack.c.bf16 %v1009, %v1009
  %v1074 = vpack.c.bf16 %v1010, %v1010
  %v1075 = vpack.c.bf16 %v1011, %v1011
  %v1076 = vpack.c.bf16 %v1012, %v1012
  %v1077 = vpack.c.bf16 %v1013, %v1013
  %v1078 = vpack.c.bf16 %v1014, %v1014
  %v1079 = vpack.c.bf16 %v1015, %v1015
  %v1080 = vpack.c.bf16 %v1016, %v1016
  %v1081 = vpack.c.bf16 %v1017, %v1017
  %v1082 = vpack.c.bf16 %v1018, %v1018
  %v1083 = vpack.c.bf16 %v1019, %v1019
  %v1084 = vpack.c.bf16 %v1020, %v1020
  %v1085 = vpack.c.bf16 %v1021, %v1021
  %v1086 = vpack.c.bf16 %v1022, %v1022
  %v1087 = vpack.c.bf16 %v1023, %v1023
  %v1088 = vpack.c.bf16 %v1024, %v1024
  %v1089 = vpack.c.bf16 %v1025, %v1025
  %v1090 = vpack.c.bf16 %v1026, %v1026
  %v1091 = vpack.c.bf16 %v1027, %v1027
  %v1092 = vpack.c.bf16 %v1028, %v1028
  %v1093 = vpack.c.bf16 %v1029, %v1029
  %v1094 = vpack.c.bf16 %v1030, %v1030
  %v1095 = vpack.c.bf16 %v1031, %v1031
  %v1096 = vpack.c.bf16 %v1032, %v1032
  %v1097 = vpack.c.bf16 %v1033, %v1033
  %v1098 = vpack.c.bf16 %v1034, %v1034
  %v1099 = vpack.c.bf16 %v1035, %v1035
  %v1100 = vpack.c.bf16 %v1036, %v1036
  %v1101 = vpack.c.bf16 %v1037, %v1037
  %v1102 = vpack.c.bf16 %v1038, %v1038
  %v1103 = vpack.c.bf16 %v1039, %v1039
  %v1104 = vpack.c.bf16 %v1040, %v1040
  %v1105 = vpack.c.bf16 %v1041, %v1041
  %v1106 = vpack.c.bf16 %v1042, %v1042
  %v1107 = vpack.c.bf16 %v1043, %v1043
  %v1108 = vpack.c.bf16 %v1044, %v1044
  %v1109 = vpack.c.bf16 %v1045, %v1045
  %v1110 = vpack.c.bf16 %v1046, %v1046
  %v1111 = vpack.c.bf16 %v1047, %v1047
  %v1112 = vpack.c.bf16 %v1048, %v1048
  %v1113 = vpack.c.bf16 %v1049, %v1049
  %v1114 = vpack.c.bf16 %v1050, %v1050
  %v1115 = vpack.c.bf16 %v1051, %v1051
  %v1116 = vpack.c.bf16 %v1052, %v1052
  %v1117 = vpack.c.bf16 %v1053, %v1053
  %v1118 = vpack.c.bf16 %v1054, %v1054
  %v1119 = vpack.c.bf16 %v1055, %v1055
  %v1120 = vpack.c.bf16 %v1056, %v1056
  %v1121 = vpack.c.bf16 %v1057, %v1057
  %v1122 = vpack.c.bf16 %v1058, %v1058
  %v1123 = vpack.c.bf16 %v1059, %v1059
  %v1124 = vpack.c.bf16 %v1060, %v1060
  %v1125 = vpack.c.bf16 %v1061, %v1061
  %v1126 = vpack.c.bf16 %v1062, %v1062
  %v1127 = vpack.c.bf16 %v1063, %v1063
  %v1128 = vpack.c.bf16 %v1064, %v1064
  %v1129 = vpack.c.bf16 %v1065, %v1065
  %v1130 = vpack.c.bf16 %v1066, %v1066
  %1131 = vst [vmem:[%s4] sm:$0xf] %v1067
  %1132 = vst [vmem:[%s4 + $0x4] sm:$0xf] %v1068
  %1133 = vst [vmem:[%s4 + $0x8] sm:$0xf] %v1069
  %1134 = vst [vmem:[%s4 + $0xc] sm:$0xf] %v1070
  %1135 = vst [vmem:[%s4 + $0x10] sm:$0xf] %v1071
  %1136 = vst [vmem:[%s4 + $0x14] sm:$0xf] %v1072
  %1137 = vst [vmem:[%s4 + $0x18] sm:$0xf] %v1073
  %1138 = vst [vmem:[%s4 + $0x1c] sm:$0xf] %v1074
  %1139 = vst [vmem:[%s4 + $0x20] sm:$0xf] %v1075
  %1140 = vst [vmem:[%s4 + $0x24] sm:$0xf] %v1076
  %1141 = vst [vmem:[%s4 + $0x28] sm:$0xf] %v1077
  %1142 = vst [vmem:[%s4 + $0x2c] sm:$0xf] %v1078
  %1143 = vst [vmem:[%s4 + $0x30] sm:$0xf] %v1079
  %1144 = vst [vmem:[%s4 + $0x34] sm:$0xf] %v1080
  %1145 = vst [vmem:[%s4 + $0x38] sm:$0xf] %v1081
  %1146 = vst [vmem:[%s4 + $0x3c] sm:$0xf] %v1082
  %1147 = vst [vmem:[%s4 + $0x40] sm:$0xf] %v1083
  %1148 = vst [vmem:[%s4 + $0x44] sm:$0xf] %v1084
  %1149 = vst [vmem:[%s4 + $0x48] sm:$0xf] %v1085
  %1150 = vst [vmem:[%s4 + $0x4c] sm:$0xf] %v1086
  %1151 = vst [vmem:[%s4 + $0x50] sm:$0xf] %v1087
  %1152 = vst [vmem:[%s4 + $0x54] sm:$0xf] %v1088
  %1153 = vst [vmem:[%s4 + $0x58] sm:$0xf] %v1089
  %1154 = vst [vmem:[%s4 + $0x5c] sm:$0xf] %v1090
  %1155 = vst [vmem:[%s4 + $0x60] sm:$0xf] %v1091
  %1156 = vst [vmem:[%s4 + $0x64] sm:$0xf] %v1092
  %1157 = vst [vmem:[%s4 + $0x68] sm:$0xf] %v1093
  %1158 = vst [vmem:[%s4 + $0x6c] sm:$0xf] %v1094
  %1159 = vst [vmem:[%s4 + $0x70] sm:$0xf] %v1095
  %1160 = vst [vmem:[%s4 + $0x74] sm:$0xf] %v1096
  %1161 = vst [vmem:[%s4 + $0x78] sm:$0xf] %v1097
  %1162 = vst [vmem:[%s4 + $0x7c] sm:$0xf] %v1098
  %1163 = vst [vmem:[%s4 + $0x80] sm:$0xf] %v1099
  %1164 = vst [vmem:[%s4 + $0x84] sm:$0xf] %v1100
  %1165 = vst [vmem:[%s4 + $0x88] sm:$0xf] %v1101
  %1166 = vst [vmem:[%s4 + $0x8c] sm:$0xf] %v1102
  %1167 = vst [vmem:[%s4 + $0x90] sm:$0xf] %v1103
  %1168 = vst [vmem:[%s4 + $0x94] sm:$0xf] %v1104
  %1169 = vst [vmem:[%s4 + $0x98] sm:$0xf] %v1105
  %1170 = vst [vmem:[%s4 + $0x9c] sm:$0xf] %v1106
  %1171 = vst [vmem:[%s4 + $0xa0] sm:$0xf] %v1107
  %1172 = vst [vmem:[%s4 + $0xa4] sm:$0xf] %v1108
  %1173 = vst [vmem:[%s4 + $0xa8] sm:$0xf] %v1109
  %1174 = vst [vmem:[%s4 + $0xac] sm:$0xf] %v1110
  %1175 = vst [vmem:[%s4 + $0xb0] sm:$0xf] %v1111
  %1176 = vst [vmem:[%s4 + $0xb4] sm:$0xf] %v1112
  %1177 = vst [vmem:[%s4 + $0xb8] sm:$0xf] %v1113
  %1178 = vst [vmem:[%s4 + $0xbc] sm:$0xf] %v1114
  %1179 = vst [vmem:[%s4 + $0xc0] sm:$0xf] %v1115
  %1180 = vst [vmem:[%s4 + $0xc4] sm:$0xf] %v1116
  %1181 = vst [vmem:[%s4 + $0xc8] sm:$0xf] %v1117
  %1182 = vst [vmem:[%s4 + $0xcc] sm:$0xf] %v1118
  %1183 = vst [vmem:[%s4 + $0xd0] sm:$0xf] %v1119
  %1184 = vst [vmem:[%s4 + $0xd4] sm:$0xf] %v1120
  %1185 = vst [vmem:[%s4 + $0xd8] sm:$0xf] %v1121
  %1186 = vst [vmem:[%s4 + $0xdc] sm:$0xf] %v1122
  %1187 = vst [vmem:[%s4 + $0xe0] sm:$0xf] %v1123
  %1188 = vst [vmem:[%s4 + $0xe4] sm:$0xf] %v1124
  %1189 = vst [vmem:[%s4 + $0xe8] sm:$0xf] %v1125
  %1190 = vst [vmem:[%s4 + $0xec] sm:$0xf] %v1126
  %1191 = vst [vmem:[%s4 + $0xf0] sm:$0xf] %v1127
  %1192 = vst [vmem:[%s4 + $0xf4] sm:$0xf] %v1128
  %1193 = vst [vmem:[%s4 + $0xf8] sm:$0xf] %v1129
  %1194 = vst [vmem:[%s4 + $0xfc] sm:$0xf] %v1130
  // Predicated region
  $region18: #{cnn_model_forward.10} parent=0 // pred_check
    _
  $region19: #{cnn_model_forward.10} parent=0 // pred_check_branch
    %1196 = sbr.rel (0) target = $region21
  $region20: #{cnn_model_forward.10} parent=0 // pred_region
    _
  $region21: #{cnn_model_forward.10} parent=0 // pred_fallthru
    _
  // Predicated region
  $region22: #{cnn_model_forward.10} parent=0 // pred_check
    _
  $region23: #{cnn_model_forward.10} parent=0 // pred_check_branch
    %1198 = sbr.rel (0) target = $region25
  $region24: #{cnn_model_forward.10} parent=0 // pred_region
    _
  $region25: #{cnn_model_forward.10} parent=0 // pred_fallthru
    _

// kernel: closed_call.52
$region0: #{closed_call.52}
  #allocation0 [shape = 'u32[]', space=smem, size = 0x4, offset = 0x4, fixed_abs, tag = 'smem constant byte address 0x4 - core index']
  #allocation1 [shape = 'u32[72,128]{1,0:T(1,128)}', space=vmem, size = 0x9000, scoped, tag = 'internal scratch']
  %s0 = inlined_call_operand.vmem [shape: bf16[128,256], index: 0, kind: input, shape index: {}]
  %s1 = inlined_call_operand.vmem [shape: bf16[256,128], index: 1, kind: input, shape index: {}]
  %s2 = inlined_call_operand.vmem [shape: f32[1,256], index: 2, kind: input, shape index: {}]
  %s3 = inlined_call_operand.vmem [shape: f32[1,256], index: 3, kind: input, shape index: {}]
  %s4 = inlined_call_operand.vmem [shape: f32[1,128], index: 4, kind: input, shape index: {}]
  %s5 = inlined_call_operand.vmem [shape: f32[1,128], index: 5, kind: input, shape index: {}]
  %s6 = inlined_call_operand.vmem [shape: bf16[128,128], index: 6, kind: output, shape index: {}]
  %s7 = sld [smem:[#allocation0]]
  $region34: #{closed_call.52} parent=0
    _
  %s9 = ssub.s32 1, %s7
  %s10 = scalar_select 0, %s9, %s7
  // Predicated region
  $region2: #{closed_call.52} parent=0 // pred_check
    _
  $region3: #{closed_call.52} parent=0 // pred_check_branch
    %12 = sbr.rel (0) target = $region5
  $region4: #{closed_call.52} parent=0 // pred_region
    _
  $region5: #{closed_call.52} parent=0 // pred_fallthru
    _
  // Predicated region
  $region6: #{closed_call.52} parent=0 // pred_check
    _
  $region7: #{closed_call.52} parent=0 // pred_check_branch
    %14 = sbr.rel (0) target = $region9
  $region8: #{closed_call.52} parent=0 // pred_region
    _
  $region9: #{closed_call.52} parent=0 // pred_fallthru
    _
  // Predicated region
  $region10: #{closed_call.52} parent=0 // pred_check
    _
  $region11: #{closed_call.52} parent=0 // pred_check_branch
    %16 = sbr.rel (0) target = $region13
  $region12: #{closed_call.52} parent=0 // pred_region
    _
  $region13: #{closed_call.52} parent=0 // pred_fallthru
    _
  // Predicated region
  $region14: #{closed_call.52} parent=0 // pred_check
    _
  $region15: #{closed_call.52} parent=0 // pred_check_branch
    %18 = sbr.rel (0) target = $region17
  $region16: #{closed_call.52} parent=0 // pred_region
    _
  $region17: #{closed_call.52} parent=0 // pred_fallthru
    _
  // Predicated region
  $region18: #{closed_call.52} parent=0 // pred_check
    _
  $region19: #{closed_call.52} parent=0 // pred_check_branch
    %20 = sbr.rel (0) target = $region21
  $region20: #{closed_call.52} parent=0 // pred_region
    _
  $region21: #{closed_call.52} parent=0 // pred_fallthru
    _
  // Predicated region
  $region22: #{closed_call.52} parent=0 // pred_check
    _
  $region23: #{closed_call.52} parent=0 // pred_check_branch
    %22 = sbr.rel (0) target = $region25
  $region24: #{closed_call.52} parent=0 // pred_region
    _
  $region25: #{closed_call.52} parent=0 // pred_fallthru
    _
  %v23 = vld [vmem:[%s0] sm:$0xff]
  %v24 = vld [vmem:[%s0 + $0x8] sm:$0xff]
  %v25 = vld [vmem:[%s0 + $0x10] sm:$0xff]
  %v26 = vld [vmem:[%s0 + $0x18] sm:$0xff]
  %v27 = vld [vmem:[%s0 + $0x20] sm:$0xff]
  %v28 = vld [vmem:[%s0 + $0x28] sm:$0xff]
  %v29 = vld [vmem:[%s0 + $0x30] sm:$0xff]
  %v30 = vld [vmem:[%s0 + $0x38] sm:$0xff]
  %v31 = vld [vmem:[%s0 + $0x40] sm:$0xff]
  %v32 = vld [vmem:[%s0 + $0x48] sm:$0xff]
  %v33 = vld [vmem:[%s0 + $0x50] sm:$0xff]
  %v34 = vld [vmem:[%s0 + $0x58] sm:$0xff]
  %v35 = vld [vmem:[%s0 + $0x60] sm:$0xff]
  %v36 = vld [vmem:[%s0 + $0x68] sm:$0xff]
  %v37 = vld [vmem:[%s0 + $0x70] sm:$0xff]
  %v38 = vld [vmem:[%s0 + $0x78] sm:$0xff]
  %v39 = vld [vmem:[%s2] sm:$0x3]
  %v41 = vperm.slane %v39, 0
  %v42 = vperm.slane %v39, 1
  %v45 = vpack.c.bf16 %v42, %v41
  %v46 = vld [vmem:[%s3] sm:$0x3]
  %v48 = vperm.slane %v46, 0
  %v49 = vperm.slane %v46, 1
  %v52 = vpack.c.bf16 %v49, %v48
  %v54 = vunpack.c.l.b16 %v45
  %v55 = vunpack.c.h.b16 %v45
  %v56 = vpack.c.b16 %v54, %v54
  %v57 = vpack.c.b16 %v55, %v55
  %v59 = vpack.i.b16 %v56, %v56
  %v61 = vperm.slane %v59, 0
  %v63 = vpack.i.b16 %v57, %v57
  %v65 = vperm.slane %v63, 0
  %v66 = vunpack.c.l.bf16 %v23
  %v67 = vunpack.c.h.bf16 %v23
  %v68 = vunpack.c.l.bf16 %v24
  %v69 = vunpack.c.h.bf16 %v24
  %v70 = vunpack.c.l.bf16 %v25
  %v71 = vunpack.c.h.bf16 %v25
  %v72 = vunpack.c.l.bf16 %v26
  %v73 = vunpack.c.h.bf16 %v26
  %v74 = vunpack.c.l.bf16 %v27
  %v75 = vunpack.c.h.bf16 %v27
  %v76 = vunpack.c.l.bf16 %v28
  %v77 = vunpack.c.h.bf16 %v28
  %v78 = vunpack.c.l.bf16 %v29
  %v79 = vunpack.c.h.bf16 %v29
  %v80 = vunpack.c.l.bf16 %v30
  %v81 = vunpack.c.h.bf16 %v30
  %v82 = vunpack.c.l.bf16 %v31
  %v83 = vunpack.c.h.bf16 %v31
  %v84 = vunpack.c.l.bf16 %v32
  %v85 = vunpack.c.h.bf16 %v32
  %v86 = vunpack.c.l.bf16 %v33
  %v87 = vunpack.c.h.bf16 %v33
  %v88 = vunpack.c.l.bf16 %v34
  %v89 = vunpack.c.h.bf16 %v34
  %v90 = vunpack.c.l.bf16 %v35
  %v91 = vunpack.c.h.bf16 %v35
  %v92 = vunpack.c.l.bf16 %v36
  %v93 = vunpack.c.h.bf16 %v36
  %v94 = vunpack.c.l.bf16 %v37
  %v95 = vunpack.c.h.bf16 %v37
  %v96 = vunpack.c.l.bf16 %v38
  %v97 = vunpack.c.h.bf16 %v38
  %v98 = vunpack.c.l.bf16 %v61
  %v99 = vunpack.c.l.bf16 %v65
  %v100 = vmul.f32 %v66, %v98
  %v101 = vmul.f32 %v67, %v99
  %v102 = vmul.f32 %v68, %v98
  %v103 = vmul.f32 %v69, %v99
  %v104 = vmul.f32 %v70, %v98
  %v105 = vmul.f32 %v71, %v99
  %v106 = vmul.f32 %v72, %v98
  %v107 = vmul.f32 %v73, %v99
  %v108 = vmul.f32 %v74, %v98
  %v109 = vmul.f32 %v75, %v99
  %v110 = vmul.f32 %v76, %v98
  %v111 = vmul.f32 %v77, %v99
  %v112 = vmul.f32 %v78, %v98
  %v113 = vmul.f32 %v79, %v99
  %v114 = vmul.f32 %v80, %v98
  %v115 = vmul.f32 %v81, %v99
  %v116 = vmul.f32 %v82, %v98
  %v117 = vmul.f32 %v83, %v99
  %v118 = vmul.f32 %v84, %v98
  %v119 = vmul.f32 %v85, %v99
  %v120 = vmul.f32 %v86, %v98
  %v121 = vmul.f32 %v87, %v99
  %v122 = vmul.f32 %v88, %v98
  %v123 = vmul.f32 %v89, %v99
  %v124 = vmul.f32 %v90, %v98
  %v125 = vmul.f32 %v91, %v99
  %v126 = vmul.f32 %v92, %v98
  %v127 = vmul.f32 %v93, %v99
  %v128 = vmul.f32 %v94, %v98
  %v129 = vmul.f32 %v95, %v99
  %v130 = vmul.f32 %v96, %v98
  %v131 = vmul.f32 %v97, %v99
  %v132 = vpack.c.bf16 %v101, %v100
  %v133 = vpack.c.bf16 %v103, %v102
  %v134 = vpack.c.bf16 %v105, %v104
  %v135 = vpack.c.bf16 %v107, %v106
  %v136 = vpack.c.bf16 %v109, %v108
  %v137 = vpack.c.bf16 %v111, %v110
  %v138 = vpack.c.bf16 %v113, %v112
  %v139 = vpack.c.bf16 %v115, %v114
  %v140 = vpack.c.bf16 %v117, %v116
  %v141 = vpack.c.bf16 %v119, %v118
  %v142 = vpack.c.bf16 %v121, %v120
  %v143 = vpack.c.bf16 %v123, %v122
  %v144 = vpack.c.bf16 %v125, %v124
  %v145 = vpack.c.bf16 %v127, %v126
  %v146 = vpack.c.bf16 %v129, %v128
  %v147 = vpack.c.bf16 %v131, %v130
  %v149 = vunpack.c.l.b16 %v52
  %v150 = vunpack.c.h.b16 %v52
  %v151 = vpack.c.b16 %v149, %v149
  %v152 = vpack.c.b16 %v150, %v150
  %v154 = vpack.i.b16 %v151, %v151
  %v156 = vperm.slane %v154, 0
  %v158 = vpack.i.b16 %v152, %v152
  %v160 = vperm.slane %v158, 0
  %v161 = vunpack.c.l.bf16 %v132
  %v162 = vunpack.c.h.bf16 %v132
  %v163 = vunpack.c.l.bf16 %v133
  %v164 = vunpack.c.h.bf16 %v133
  %v165 = vunpack.c.l.bf16 %v134
  %v166 = vunpack.c.h.bf16 %v134
  %v167 = vunpack.c.l.bf16 %v135
  %v168 = vunpack.c.h.bf16 %v135
  %v169 = vunpack.c.l.bf16 %v136
  %v170 = vunpack.c.h.bf16 %v136
  %v171 = vunpack.c.l.bf16 %v137
  %v172 = vunpack.c.h.bf16 %v137
  %v173 = vunpack.c.l.bf16 %v138
  %v174 = vunpack.c.h.bf16 %v138
  %v175 = vunpack.c.l.bf16 %v139
  %v176 = vunpack.c.h.bf16 %v139
  %v177 = vunpack.c.l.bf16 %v140
  %v178 = vunpack.c.h.bf16 %v140
  %v179 = vunpack.c.l.bf16 %v141
  %v180 = vunpack.c.h.bf16 %v141
  %v181 = vunpack.c.l.bf16 %v142
  %v182 = vunpack.c.h.bf16 %v142
  %v183 = vunpack.c.l.bf16 %v143
  %v184 = vunpack.c.h.bf16 %v143
  %v185 = vunpack.c.l.bf16 %v144
  %v186 = vunpack.c.h.bf16 %v144
  %v187 = vunpack.c.l.bf16 %v145
  %v188 = vunpack.c.h.bf16 %v145
  %v189 = vunpack.c.l.bf16 %v146
  %v190 = vunpack.c.h.bf16 %v146
  %v191 = vunpack.c.l.bf16 %v147
  %v192 = vunpack.c.h.bf16 %v147
  %v193 = vunpack.c.l.bf16 %v156
  %v194 = vunpack.c.l.bf16 %v160
  %v195 = vadd.f32 %v161, %v193
  %v196 = vadd.f32 %v162, %v194
  %v197 = vadd.f32 %v163, %v193
  %v198 = vadd.f32 %v164, %v194
  %v199 = vadd.f32 %v165, %v193
  %v200 = vadd.f32 %v166, %v194
  %v201 = vadd.f32 %v167, %v193
  %v202 = vadd.f32 %v168, %v194
  %v203 = vadd.f32 %v169, %v193
  %v204 = vadd.f32 %v170, %v194
  %v205 = vadd.f32 %v171, %v193
  %v206 = vadd.f32 %v172, %v194
  %v207 = vadd.f32 %v173, %v193
  %v208 = vadd.f32 %v174, %v194
  %v209 = vadd.f32 %v175, %v193
  %v210 = vadd.f32 %v176, %v194
  %v211 = vadd.f32 %v177, %v193
  %v212 = vadd.f32 %v178, %v194
  %v213 = vadd.f32 %v179, %v193
  %v214 = vadd.f32 %v180, %v194
  %v215 = vadd.f32 %v181, %v193
  %v216 = vadd.f32 %v182, %v194
  %v217 = vadd.f32 %v183, %v193
  %v218 = vadd.f32 %v184, %v194
  %v219 = vadd.f32 %v185, %v193
  %v220 = vadd.f32 %v186, %v194
  %v221 = vadd.f32 %v187, %v193
  %v222 = vadd.f32 %v188, %v194
  %v223 = vadd.f32 %v189, %v193
  %v224 = vadd.f32 %v190, %v194
  %v225 = vadd.f32 %v191, %v193
  %v226 = vadd.f32 %v192, %v194
  %v227 = vpack.c.bf16 %v196, %v195
  %v228 = vpack.c.bf16 %v198, %v197
  %v229 = vpack.c.bf16 %v200, %v199
  %v230 = vpack.c.bf16 %v202, %v201
  %v231 = vpack.c.bf16 %v204, %v203
  %v232 = vpack.c.bf16 %v206, %v205
  %v233 = vpack.c.bf16 %v208, %v207
  %v234 = vpack.c.bf16 %v210, %v209
  %v235 = vpack.c.bf16 %v212, %v211
  %v236 = vpack.c.bf16 %v214, %v213
  %v237 = vpack.c.bf16 %v216, %v215
  %v238 = vpack.c.bf16 %v218, %v217
  %v239 = vpack.c.bf16 %v220, %v219
  %v240 = vpack.c.bf16 %v222, %v221
  %v241 = vpack.c.bf16 %v224, %v223
  %v242 = vpack.c.bf16 %v226, %v225
  %v243 = vunpack.c.l.bf16 %v227
  %v244 = vunpack.c.h.bf16 %v227
  %v245 = vunpack.c.l.bf16 %v228
  %v246 = vunpack.c.h.bf16 %v228
  %v247 = vunpack.c.l.bf16 %v229
  %v248 = vunpack.c.h.bf16 %v229
  %v249 = vunpack.c.l.bf16 %v230
  %v250 = vunpack.c.h.bf16 %v230
  %v251 = vunpack.c.l.bf16 %v231
  %v252 = vunpack.c.h.bf16 %v231
  %v253 = vunpack.c.l.bf16 %v232
  %v254 = vunpack.c.h.bf16 %v232
  %v255 = vunpack.c.l.bf16 %v233
  %v256 = vunpack.c.h.bf16 %v233
  %v257 = vunpack.c.l.bf16 %v234
  %v258 = vunpack.c.h.bf16 %v234
  %v259 = vunpack.c.l.bf16 %v235
  %v260 = vunpack.c.h.bf16 %v235
  %v261 = vunpack.c.l.bf16 %v236
  %v262 = vunpack.c.h.bf16 %v236
  %v263 = vunpack.c.l.bf16 %v237
  %v264 = vunpack.c.h.bf16 %v237
  %v265 = vunpack.c.l.bf16 %v238
  %v266 = vunpack.c.h.bf16 %v238
  %v267 = vunpack.c.l.bf16 %v239
  %v268 = vunpack.c.h.bf16 %v239
  %v269 = vunpack.c.l.bf16 %v240
  %v270 = vunpack.c.h.bf16 %v240
  %v271 = vunpack.c.l.bf16 %v241
  %v272 = vunpack.c.h.bf16 %v241
  %v273 = vunpack.c.l.bf16 %v242
  %v274 = vunpack.c.h.bf16 %v242
  %v275 = vmax.f32 %v243, 0.0
  %v276 = vmax.f32 %v244, 0.0
  %v277 = vmax.f32 %v245, 0.0
  %v278 = vmax.f32 %v246, 0.0
  %v279 = vmax.f32 %v247, 0.0
  %v280 = vmax.f32 %v248, 0.0
  %v281 = vmax.f32 %v249, 0.0
  %v282 = vmax.f32 %v250, 0.0
  %v283 = vmax.f32 %v251, 0.0
  %v284 = vmax.f32 %v252, 0.0
  %v285 = vmax.f32 %v253, 0.0
  %v286 = vmax.f32 %v254, 0.0
  %v287 = vmax.f32 %v255, 0.0
  %v288 = vmax.f32 %v256, 0.0
  %v289 = vmax.f32 %v257, 0.0
  %v290 = vmax.f32 %v258, 0.0
  %v291 = vmax.f32 %v259, 0.0
  %v292 = vmax.f32 %v260, 0.0
  %v293 = vmax.f32 %v261, 0.0
  %v294 = vmax.f32 %v262, 0.0
  %v295 = vmax.f32 %v263, 0.0
  %v296 = vmax.f32 %v264, 0.0
  %v297 = vmax.f32 %v265, 0.0
  %v298 = vmax.f32 %v266, 0.0
  %v299 = vmax.f32 %v267, 0.0
  %v300 = vmax.f32 %v268, 0.0
  %v301 = vmax.f32 %v269, 0.0
  %v302 = vmax.f32 %v270, 0.0
  %v303 = vmax.f32 %v271, 0.0
  %v304 = vmax.f32 %v272, 0.0
  %v305 = vmax.f32 %v273, 0.0
  %v306 = vmax.f32 %v274, 0.0
  %v307 = vpack.c.bf16 %v277, %v275
  %v308 = vpack.c.bf16 %v278, %v276
  %v309 = vpack.c.bf16 %v281, %v279
  %v310 = vpack.c.bf16 %v282, %v280
  %v311 = vpack.c.bf16 %v285, %v283
  %v312 = vpack.c.bf16 %v286, %v284
  %v313 = vpack.c.bf16 %v289, %v287
  %v314 = vpack.c.bf16 %v290, %v288
  %v315 = vpack.c.bf16 %v293, %v291
  %v316 = vpack.c.bf16 %v294, %v292
  %v317 = vpack.c.bf16 %v297, %v295
  %v318 = vpack.c.bf16 %v298, %v296
  %v319 = vpack.c.bf16 %v301, %v299
  %v320 = vpack.c.bf16 %v302, %v300
  %v321 = vpack.c.bf16 %v305, %v303
  %v322 = vpack.c.bf16 %v306, %v304
  %v323 = vld [vmem:[%s1] sm:$0xf]
  %v324 = vld [vmem:[%s1 + $0x4] sm:$0xf]
  %v325 = vld [vmem:[%s1 + $0x8] sm:$0xf]
  %v326 = vld [vmem:[%s1 + $0xc] sm:$0xf]
  %v327 = vld [vmem:[%s1 + $0x10] sm:$0xf]
  %v328 = vld [vmem:[%s1 + $0x14] sm:$0xf]
  %v329 = vld [vmem:[%s1 + $0x18] sm:$0xf]
  %v330 = vld [vmem:[%s1 + $0x1c] sm:$0xf]
  %v331 = vld [vmem:[%s1 + $0x20] sm:$0xf]
  %v332 = vld [vmem:[%s1 + $0x24] sm:$0xf]
  %v333 = vld [vmem:[%s1 + $0x28] sm:$0xf]
  %v334 = vld [vmem:[%s1 + $0x2c] sm:$0xf]
  %v335 = vld [vmem:[%s1 + $0x30] sm:$0xf]
  %v336 = vld [vmem:[%s1 + $0x34] sm:$0xf]
  %v337 = vld [vmem:[%s1 + $0x38] sm:$0xf]
  %v338 = vld [vmem:[%s1 + $0x3c] sm:$0xf]
  %v339 = vld [vmem:[%s1 + $0x40] sm:$0xf]
  %v340 = vld [vmem:[%s1 + $0x44] sm:$0xf]
  %v341 = vld [vmem:[%s1 + $0x48] sm:$0xf]
  %v342 = vld [vmem:[%s1 + $0x4c] sm:$0xf]
  %v343 = vld [vmem:[%s1 + $0x50] sm:$0xf]
  %v344 = vld [vmem:[%s1 + $0x54] sm:$0xf]
  %v345 = vld [vmem:[%s1 + $0x58] sm:$0xf]
  %v346 = vld [vmem:[%s1 + $0x5c] sm:$0xf]
  %v347 = vld [vmem:[%s1 + $0x60] sm:$0xf]
  %v348 = vld [vmem:[%s1 + $0x64] sm:$0xf]
  %v349 = vld [vmem:[%s1 + $0x68] sm:$0xf]
  %v350 = vld [vmem:[%s1 + $0x6c] sm:$0xf]
  %v351 = vld [vmem:[%s1 + $0x70] sm:$0xf]
  %v352 = vld [vmem:[%s1 + $0x74] sm:$0xf]
  %v353 = vld [vmem:[%s1 + $0x78] sm:$0xf]
  %v354 = vld [vmem:[%s1 + $0x7c] sm:$0xf]
  %v387 = vunpack.c.l.b16 %v323
  %v388 = vunpack.c.l.b16 %v324
  %v389 = vunpack.c.l.b16 %v325
  %v390 = vunpack.c.l.b16 %v326
  %v391 = vunpack.c.l.b16 %v327
  %v392 = vunpack.c.l.b16 %v328
  %v393 = vunpack.c.l.b16 %v329
  %v394 = vunpack.c.l.b16 %v330
  %v395 = vunpack.c.l.b16 %v331
  %v396 = vunpack.c.l.b16 %v332
  %v397 = vunpack.c.l.b16 %v333
  %v398 = vunpack.c.l.b16 %v334
  %v399 = vunpack.c.l.b16 %v335
  %v400 = vunpack.c.l.b16 %v336
  %v401 = vunpack.c.l.b16 %v337
  %v402 = vunpack.c.l.b16 %v338
  %v403 = vunpack.c.l.b16 %v339
  %v404 = vunpack.c.l.b16 %v340
  %v405 = vunpack.c.l.b16 %v341
  %v406 = vunpack.c.l.b16 %v342
  %v407 = vunpack.c.l.b16 %v343
  %v408 = vunpack.c.l.b16 %v344
  %v409 = vunpack.c.l.b16 %v345
  %v410 = vunpack.c.l.b16 %v346
  %v411 = vunpack.c.l.b16 %v347
  %v412 = vunpack.c.l.b16 %v348
  %v413 = vunpack.c.l.b16 %v349
  %v414 = vunpack.c.l.b16 %v350
  %v415 = vunpack.c.l.b16 %v351
  %v416 = vunpack.c.l.b16 %v352
  %v417 = vunpack.c.l.b16 %v353
  %v418 = vunpack.c.l.b16 %v354
  %v419 = vpack.c.b16 %v388, %v387
  %v420 = vpack.c.b16 %v390, %v389
  %v421 = vpack.c.b16 %v392, %v391
  %v422 = vpack.c.b16 %v394, %v393
  %v423 = vpack.c.b16 %v396, %v395
  %v424 = vpack.c.b16 %v398, %v397
  %v425 = vpack.c.b16 %v400, %v399
  %v426 = vpack.c.b16 %v402, %v401
  %v427 = vpack.c.b16 %v404, %v403
  %v428 = vpack.c.b16 %v406, %v405
  %v429 = vpack.c.b16 %v408, %v407
  %v430 = vpack.c.b16 %v410, %v409
  %v431 = vpack.c.b16 %v412, %v411
  %v432 = vpack.c.b16 %v414, %v413
  %v433 = vpack.c.b16 %v416, %v415
  %v434 = vpack.c.b16 %v418, %v417
  %451 = vmatpush.bf16.msra.mxu0 %v426
  %452 = vmatpush.bf16.msra.mxu0 %v425
  %453 = vmatpush.bf16.msra.mxu0 %v424
  %454 = vmatpush.bf16.msra.mxu0 %v423
  %455 = vmatpush.bf16.msra.mxu0 %v422
  %456 = vmatpush.bf16.msra.mxu0 %v421
  %457 = vmatpush.bf16.msra.mxu0 %v420
  %458 = vmatpush.bf16.msra.mxu0 %v419
  %459 = vmatmul.bf16.gmra.mxu0 %v307
  %v460 = vpop.f32.mrf.mxu0
  %v461 = vadd.f32 0.0, %v460
  %v462 = vpop.f32.mrf.mxu0
  %v463 = vadd.f32 0.0, %v462
  %464 = vmatmul.bf16.gmra.mxu0 %v309
  %v465 = vpop.f32.mrf.mxu0
  %v466 = vadd.f32 0.0, %v465
  %v467 = vpop.f32.mrf.mxu0
  %v468 = vadd.f32 0.0, %v467
  %469 = vmatmul.bf16.gmra.mxu0 %v311
  %v470 = vpop.f32.mrf.mxu0
  %v471 = vadd.f32 0.0, %v470
  %v472 = vpop.f32.mrf.mxu0
  %v473 = vadd.f32 0.0, %v472
  %474 = vmatmul.bf16.gmra.mxu0 %v313
  %v475 = vpop.f32.mrf.mxu0
  %v476 = vadd.f32 0.0, %v475
  %v477 = vpop.f32.mrf.mxu0
  %v478 = vadd.f32 0.0, %v477
  %479 = vmatmul.bf16.gmra.mxu0 %v315
  %v480 = vpop.f32.mrf.mxu0
  %v481 = vadd.f32 0.0, %v480
  %v482 = vpop.f32.mrf.mxu0
  %v483 = vadd.f32 0.0, %v482
  %484 = vmatmul.bf16.gmra.mxu0 %v317
  %v485 = vpop.f32.mrf.mxu0
  %v486 = vadd.f32 0.0, %v485
  %v487 = vpop.f32.mrf.mxu0
  %v488 = vadd.f32 0.0, %v487
  %489 = vmatmul.bf16.gmra.mxu0 %v319
  %v490 = vpop.f32.mrf.mxu0
  %v491 = vadd.f32 0.0, %v490
  %v492 = vpop.f32.mrf.mxu0
  %v493 = vadd.f32 0.0, %v492
  %494 = vmatmul.bf16.gmra.mxu0 %v321
  %v495 = vpop.f32.mrf.mxu0
  %v496 = vadd.f32 0.0, %v495
  %v497 = vpop.f32.mrf.mxu0
  %v498 = vadd.f32 0.0, %v497
  %499 = vdwg.mxu0
  %500 = vmatpush.bf16.msra.mxu0 %v434
  %501 = vmatpush.bf16.msra.mxu0 %v433
  %502 = vmatpush.bf16.msra.mxu0 %v432
  %503 = vmatpush.bf16.msra.mxu0 %v431
  %504 = vmatpush.bf16.msra.mxu0 %v430
  %505 = vmatpush.bf16.msra.mxu0 %v429
  %506 = vmatpush.bf16.msra.mxu0 %v428
  %507 = vmatpush.bf16.msra.mxu0 %v427
  %508 = vmatmul.bf16.gmra.mxu0 %v308
  %v509 = vpop.f32.mrf.mxu0
  %v510 = vadd.f32 %v461, %v509
  %v511 = vpop.f32.mrf.mxu0
  %v512 = vadd.f32 %v463, %v511
  %513 = vmatmul.bf16.gmra.mxu0 %v310
  %v514 = vpop.f32.mrf.mxu0
  %v515 = vadd.f32 %v466, %v514
  %v516 = vpop.f32.mrf.mxu0
  %v517 = vadd.f32 %v468, %v516
  %518 = vmatmul.bf16.gmra.mxu0 %v312
  %v519 = vpop.f32.mrf.mxu0
  %v520 = vadd.f32 %v471, %v519
  %v521 = vpop.f32.mrf.mxu0
  %v522 = vadd.f32 %v473, %v521
  %523 = vmatmul.bf16.gmra.mxu0 %v314
  %v524 = vpop.f32.mrf.mxu0
  %v525 = vadd.f32 %v476, %v524
  %v526 = vpop.f32.mrf.mxu0
  %v527 = vadd.f32 %v478, %v526
  %528 = vmatmul.bf16.gmra.mxu0 %v316
  %v529 = vpop.f32.mrf.mxu0
  %v530 = vadd.f32 %v481, %v529
  %v531 = vpop.f32.mrf.mxu0
  %v532 = vadd.f32 %v483, %v531
  %533 = vmatmul.bf16.gmra.mxu0 %v318
  %v534 = vpop.f32.mrf.mxu0
  %v535 = vadd.f32 %v486, %v534
  %v536 = vpop.f32.mrf.mxu0
  %v537 = vadd.f32 %v488, %v536
  %538 = vmatmul.bf16.gmra.mxu0 %v320
  %v539 = vpop.f32.mrf.mxu0
  %v540 = vadd.f32 %v491, %v539
  %v541 = vpop.f32.mrf.mxu0
  %v542 = vadd.f32 %v493, %v541
  %543 = vmatmul.bf16.gmra.mxu0 %v322
  %v544 = vpop.f32.mrf.mxu0
  %v545 = vadd.f32 %v496, %v544
  %v546 = vpop.f32.mrf.mxu0
  %v547 = vadd.f32 %v498, %v546
  %548 = vdwg.mxu0
  %v549 = vld [vmem:[%s4] sm:$0x1]
  %v551 = vperm.slane %v549, 0
  %v553 = vmul.f32 %v510, %v551
  %v554 = vmul.f32 %v512, %v551
  %v555 = vmul.f32 %v515, %v551
  %v556 = vmul.f32 %v517, %v551
  %v557 = vmul.f32 %v520, %v551
  %v558 = vmul.f32 %v522, %v551
  %v559 = vmul.f32 %v525, %v551
  %v560 = vmul.f32 %v527, %v551
  %v561 = vmul.f32 %v530, %v551
  %v562 = vmul.f32 %v532, %v551
  %v563 = vmul.f32 %v535, %v551
  %v564 = vmul.f32 %v537, %v551
  %v565 = vmul.f32 %v540, %v551
  %v566 = vmul.f32 %v542, %v551
  %v567 = vmul.f32 %v545, %v551
  %v568 = vmul.f32 %v547, %v551
  %v569 = vld [vmem:[%s5] sm:$0x1]
  %v571 = vperm.slane %v569, 0
  %v573 = vadd.f32 %v553, %v571
  %v574 = vadd.f32 %v554, %v571
  %v575 = vadd.f32 %v555, %v571
  %v576 = vadd.f32 %v556, %v571
  %v577 = vadd.f32 %v557, %v571
  %v578 = vadd.f32 %v558, %v571
  %v579 = vadd.f32 %v559, %v571
  %v580 = vadd.f32 %v560, %v571
  %v581 = vadd.f32 %v561, %v571
  %v582 = vadd.f32 %v562, %v571
  %v583 = vadd.f32 %v563, %v571
  %v584 = vadd.f32 %v564, %v571
  %v585 = vadd.f32 %v565, %v571
  %v586 = vadd.f32 %v566, %v571
  %v587 = vadd.f32 %v567, %v571
  %v588 = vadd.f32 %v568, %v571
  %v589 = vmax.f32 %v573, 0.0
  %v590 = vmax.f32 %v574, 0.0
  %v591 = vmax.f32 %v575, 0.0
  %v592 = vmax.f32 %v576, 0.0
  %v593 = vmax.f32 %v577, 0.0
  %v594 = vmax.f32 %v578, 0.0
  %v595 = vmax.f32 %v579, 0.0
  %v596 = vmax.f32 %v580, 0.0
  %v597 = vmax.f32 %v581, 0.0
  %v598 = vmax.f32 %v582, 0.0
  %v599 = vmax.f32 %v583, 0.0
  %v600 = vmax.f32 %v584, 0.0
  %v601 = vmax.f32 %v585, 0.0
  %v602 = vmax.f32 %v586, 0.0
  %v603 = vmax.f32 %v587, 0.0
  %v604 = vmax.f32 %v588, 0.0
  %v605 = vpack.c.bf16 %v589, %v589
  %v606 = vpack.c.bf16 %v590, %v590
  %v607 = vpack.c.bf16 %v591, %v591
  %v608 = vpack.c.bf16 %v592, %v592
  %v609 = vpack.c.bf16 %v593, %v593
  %v610 = vpack.c.bf16 %v594, %v594
  %v611 = vpack.c.bf16 %v595, %v595
  %v612 = vpack.c.bf16 %v596, %v596
  %v613 = vpack.c.bf16 %v597, %v597
  %v614 = vpack.c.bf16 %v598, %v598
  %v615 = vpack.c.bf16 %v599, %v599
  %v616 = vpack.c.bf16 %v600, %v600
  %v617 = vpack.c.bf16 %v601, %v601
  %v618 = vpack.c.bf16 %v602, %v602
  %v619 = vpack.c.bf16 %v603, %v603
  %v620 = vpack.c.bf16 %v604, %v604
  %621 = vst [vmem:[%s6] sm:$0xf] %v605
  %622 = vst [vmem:[%s6 + $0x4] sm:$0xf] %v606
  %623 = vst [vmem:[%s6 + $0x8] sm:$0xf] %v607
  %624 = vst [vmem:[%s6 + $0xc] sm:$0xf] %v608
  %625 = vst [vmem:[%s6 + $0x10] sm:$0xf] %v609
  %626 = vst [vmem:[%s6 + $0x14] sm:$0xf] %v610
  %627 = vst [vmem:[%s6 + $0x18] sm:$0xf] %v611
  %628 = vst [vmem:[%s6 + $0x1c] sm:$0xf] %v612
  %629 = vst [vmem:[%s6 + $0x20] sm:$0xf] %v613
  %630 = vst [vmem:[%s6 + $0x24] sm:$0xf] %v614
  %631 = vst [vmem:[%s6 + $0x28] sm:$0xf] %v615
  %632 = vst [vmem:[%s6 + $0x2c] sm:$0xf] %v616
  %633 = vst [vmem:[%s6 + $0x30] sm:$0xf] %v617
  %634 = vst [vmem:[%s6 + $0x34] sm:$0xf] %v618
  %635 = vst [vmem:[%s6 + $0x38] sm:$0xf] %v619
  %636 = vst [vmem:[%s6 + $0x3c] sm:$0xf] %v620
  // Predicated region
  $region26: #{closed_call.52} parent=0 // pred_check
    _
  $region27: #{closed_call.52} parent=0 // pred_check_branch
    %638 = sbr.rel (0) target = $region29
  $region28: #{closed_call.52} parent=0 // pred_region
    _
  $region29: #{closed_call.52} parent=0 // pred_fallthru
    _
  // Predicated region
  $region30: #{closed_call.52} parent=0 // pred_check
    _
  $region31: #{closed_call.52} parent=0 // pred_check_branch
    %640 = sbr.rel (0) target = $region33
  $region32: #{closed_call.52} parent=0 // pred_region
    _
  $region33: #{closed_call.52} parent=0 // pred_fallthru
    _

// kernel: cnn_model_forward.11
$region0: #{cnn_model_forward.11}
  #allocation0 [shape = 'u32[]', space=smem, size = 0x4, offset = 0x4, fixed_abs, tag = 'smem constant byte address 0x4 - core index']
  #allocation1 [shape = 'u32[72,128]{1,0:T(1,128)}', space=vmem, size = 0x9000, scoped, tag = 'internal scratch']
  %s0 = inlined_call_operand.vmem [shape: bf16[9,128,128], index: 0, kind: input, shape index: {}]
  %s1 = inlined_call_operand.vmem [shape: bf16[128,128], index: 1, kind: output, shape index: {}]
  %s2 = sld [smem:[#allocation0]]
  $region14: #{cnn_model_forward.11} parent=0
    _
  %s4 = ssub.s32 1, %s2
  %s5 = scalar_select 0, %s4, %s2
  // Predicated region
  $region2: #{cnn_model_forward.11} parent=0 // pred_check
    _
  $region3: #{cnn_model_forward.11} parent=0 // pred_check_branch
    %7 = sbr.rel (0) target = $region5
  $region4: #{cnn_model_forward.11} parent=0 // pred_region
    _
  $region5: #{cnn_model_forward.11} parent=0 // pred_fallthru
    _
  %v8 = vld [vmem:[%s0] sm:$0xf]
  %v9 = vld [vmem:[%s0 + $0x4] sm:$0xf]
  %v10 = vld [vmem:[%s0 + $0x8] sm:$0xf]
  %v11 = vld [vmem:[%s0 + $0xc] sm:$0xf]
  %v12 = vld [vmem:[%s0 + $0x10] sm:$0xf]
  %v13 = vld [vmem:[%s0 + $0x14] sm:$0xf]
  %v14 = vld [vmem:[%s0 + $0x18] sm:$0xf]
  %v15 = vld [vmem:[%s0 + $0x1c] sm:$0xf]
  %v16 = vld [vmem:[%s0 + $0x20] sm:$0xf]
  %v17 = vld [vmem:[%s0 + $0x24] sm:$0xf]
  %v18 = vld [vmem:[%s0 + $0x28] sm:$0xf]
  %v19 = vld [vmem:[%s0 + $0x2c] sm:$0xf]
  %v20 = vld [vmem:[%s0 + $0x30] sm:$0xf]
  %v21 = vld [vmem:[%s0 + $0x34] sm:$0xf]
  %v22 = vld [vmem:[%s0 + $0x38] sm:$0xf]
  %v23 = vld [vmem:[%s0 + $0x3c] sm:$0xf]
  %s24 = scalar_lea.vmem %s0, 64
  %v25 = vld [vmem:[%s24] sm:$0xf]
  %v26 = vld [vmem:[%s24 + $0x4] sm:$0xf]
  %v27 = vld [vmem:[%s24 + $0x8] sm:$0xf]
  %v28 = vld [vmem:[%s24 + $0xc] sm:$0xf]
  %v29 = vld [vmem:[%s24 + $0x10] sm:$0xf]
  %v30 = vld [vmem:[%s24 + $0x14] sm:$0xf]
  %v31 = vld [vmem:[%s24 + $0x18] sm:$0xf]
  %v32 = vld [vmem:[%s24 + $0x1c] sm:$0xf]
  %v33 = vld [vmem:[%s24 + $0x20] sm:$0xf]
  %v34 = vld [vmem:[%s24 + $0x24] sm:$0xf]
  %v35 = vld [vmem:[%s24 + $0x28] sm:$0xf]
  %v36 = vld [vmem:[%s24 + $0x2c] sm:$0xf]
  %v37 = vld [vmem:[%s24 + $0x30] sm:$0xf]
  %v38 = vld [vmem:[%s24 + $0x34] sm:$0xf]
  %v39 = vld [vmem:[%s24 + $0x38] sm:$0xf]
  %v40 = vld [vmem:[%s24 + $0x3c] sm:$0xf]
  %v41 = vunpack.c.l.bf16 %v8
  %v42 = vunpack.c.l.bf16 %v9
  %v43 = vunpack.c.l.bf16 %v10
  %v44 = vunpack.c.l.bf16 %v11
  %v45 = vunpack.c.l.bf16 %v12
  %v46 = vunpack.c.l.bf16 %v13
  %v47 = vunpack.c.l.bf16 %v14
  %v48 = vunpack.c.l.bf16 %v15
  %v49 = vunpack.c.l.bf16 %v16
  %v50 = vunpack.c.l.bf16 %v17
  %v51 = vunpack.c.l.bf16 %v18
  %v52 = vunpack.c.l.bf16 %v19
  %v53 = vunpack.c.l.bf16 %v20
  %v54 = vunpack.c.l.bf16 %v21
  %v55 = vunpack.c.l.bf16 %v22
  %v56 = vunpack.c.l.bf16 %v23
  %v57 = vunpack.c.l.bf16 %v25
  %v58 = vunpack.c.l.bf16 %v26
  %v59 = vunpack.c.l.bf16 %v27
  %v60 = vunpack.c.l.bf16 %v28
  %v61 = vunpack.c.l.bf16 %v29
  %v62 = vunpack.c.l.bf16 %v30
  %v63 = vunpack.c.l.bf16 %v31
  %v64 = vunpack.c.l.bf16 %v32
  %v65 = vunpack.c.l.bf16 %v33
  %v66 = vunpack.c.l.bf16 %v34
  %v67 = vunpack.c.l.bf16 %v35
  %v68 = vunpack.c.l.bf16 %v36
  %v69 = vunpack.c.l.bf16 %v37
  %v70 = vunpack.c.l.bf16 %v38
  %v71 = vunpack.c.l.bf16 %v39
  %v72 = vunpack.c.l.bf16 %v40
  %v73 = vmax.f32 %v41, %v57
  %v74 = vmax.f32 %v42, %v58
  %v75 = vmax.f32 %v43, %v59
  %v76 = vmax.f32 %v44, %v60
  %v77 = vmax.f32 %v45, %v61
  %v78 = vmax.f32 %v46, %v62
  %v79 = vmax.f32 %v47, %v63
  %v80 = vmax.f32 %v48, %v64
  %v81 = vmax.f32 %v49, %v65
  %v82 = vmax.f32 %v50, %v66
  %v83 = vmax.f32 %v51, %v67
  %v84 = vmax.f32 %v52, %v68
  %v85 = vmax.f32 %v53, %v69
  %v86 = vmax.f32 %v54, %v70
  %v87 = vmax.f32 %v55, %v71
  %v88 = vmax.f32 %v56, %v72
  %v89 = vpack.c.bf16 %v73, %v73
  %v90 = vpack.c.bf16 %v74, %v74
  %v91 = vpack.c.bf16 %v75, %v75
  %v92 = vpack.c.bf16 %v76, %v76
  %v93 = vpack.c.bf16 %v77, %v77
  %v94 = vpack.c.bf16 %v78, %v78
  %v95 = vpack.c.bf16 %v79, %v79
  %v96 = vpack.c.bf16 %v80, %v80
  %v97 = vpack.c.bf16 %v81, %v81
  %v98 = vpack.c.bf16 %v82, %v82
  %v99 = vpack.c.bf16 %v83, %v83
  %v100 = vpack.c.bf16 %v84, %v84
  %v101 = vpack.c.bf16 %v85, %v85
  %v102 = vpack.c.bf16 %v86, %v86
  %v103 = vpack.c.bf16 %v87, %v87
  %v104 = vpack.c.bf16 %v88, %v88
  %s105 = scalar_lea.vmem %s0, 128
  %v106 = vld [vmem:[%s105] sm:$0xf]
  %v107 = vld [vmem:[%s105 + $0x4] sm:$0xf]
  %v108 = vld [vmem:[%s105 + $0x8] sm:$0xf]
  %v109 = vld [vmem:[%s105 + $0xc] sm:$0xf]
  %v110 = vld [vmem:[%s105 + $0x10] sm:$0xf]
  %v111 = vld [vmem:[%s105 + $0x14] sm:$0xf]
  %v112 = vld [vmem:[%s105 + $0x18] sm:$0xf]
  %v113 = vld [vmem:[%s105 + $0x1c] sm:$0xf]
  %v114 = vld [vmem:[%s105 + $0x20] sm:$0xf]
  %v115 = vld [vmem:[%s105 + $0x24] sm:$0xf]
  %v116 = vld [vmem:[%s105 + $0x28] sm:$0xf]
  %v117 = vld [vmem:[%s105 + $0x2c] sm:$0xf]
  %v118 = vld [vmem:[%s105 + $0x30] sm:$0xf]
  %v119 = vld [vmem:[%s105 + $0x34] sm:$0xf]
  %v120 = vld [vmem:[%s105 + $0x38] sm:$0xf]
  %v121 = vld [vmem:[%s105 + $0x3c] sm:$0xf]
  %v122 = vunpack.c.l.bf16 %v89
  %v123 = vunpack.c.l.bf16 %v90
  %v124 = vunpack.c.l.bf16 %v91
  %v125 = vunpack.c.l.bf16 %v92
  %v126 = vunpack.c.l.bf16 %v93
  %v127 = vunpack.c.l.bf16 %v94
  %v128 = vunpack.c.l.bf16 %v95
  %v129 = vunpack.c.l.bf16 %v96
  %v130 = vunpack.c.l.bf16 %v97
  %v131 = vunpack.c.l.bf16 %v98
  %v132 = vunpack.c.l.bf16 %v99
  %v133 = vunpack.c.l.bf16 %v100
  %v134 = vunpack.c.l.bf16 %v101
  %v135 = vunpack.c.l.bf16 %v102
  %v136 = vunpack.c.l.bf16 %v103
  %v137 = vunpack.c.l.bf16 %v104
  %v138 = vunpack.c.l.bf16 %v106
  %v139 = vunpack.c.l.bf16 %v107
  %v140 = vunpack.c.l.bf16 %v108
  %v141 = vunpack.c.l.bf16 %v109
  %v142 = vunpack.c.l.bf16 %v110
  %v143 = vunpack.c.l.bf16 %v111
  %v144 = vunpack.c.l.bf16 %v112
  %v145 = vunpack.c.l.bf16 %v113
  %v146 = vunpack.c.l.bf16 %v114
  %v147 = vunpack.c.l.bf16 %v115
  %v148 = vunpack.c.l.bf16 %v116
  %v149 = vunpack.c.l.bf16 %v117
  %v150 = vunpack.c.l.bf16 %v118
  %v151 = vunpack.c.l.bf16 %v119
  %v152 = vunpack.c.l.bf16 %v120
  %v153 = vunpack.c.l.bf16 %v121
  %v154 = vmax.f32 %v122, %v138
  %v155 = vmax.f32 %v123, %v139
  %v156 = vmax.f32 %v124, %v140
  %v157 = vmax.f32 %v125, %v141
  %v158 = vmax.f32 %v126, %v142
  %v159 = vmax.f32 %v127, %v143
  %v160 = vmax.f32 %v128, %v144
  %v161 = vmax.f32 %v129, %v145
  %v162 = vmax.f32 %v130, %v146
  %v163 = vmax.f32 %v131, %v147
  %v164 = vmax.f32 %v132, %v148
  %v165 = vmax.f32 %v133, %v149
  %v166 = vmax.f32 %v134, %v150
  %v167 = vmax.f32 %v135, %v151
  %v168 = vmax.f32 %v136, %v152
  %v169 = vmax.f32 %v137, %v153
  %v170 = vpack.c.bf16 %v154, %v154
  %v171 = vpack.c.bf16 %v155, %v155
  %v172 = vpack.c.bf16 %v156, %v156
  %v173 = vpack.c.bf16 %v157, %v157
  %v174 = vpack.c.bf16 %v158, %v158
  %v175 = vpack.c.bf16 %v159, %v159
  %v176 = vpack.c.bf16 %v160, %v160
  %v177 = vpack.c.bf16 %v161, %v161
  %v178 = vpack.c.bf16 %v162, %v162
  %v179 = vpack.c.bf16 %v163, %v163
  %v180 = vpack.c.bf16 %v164, %v164
  %v181 = vpack.c.bf16 %v165, %v165
  %v182 = vpack.c.bf16 %v166, %v166
  %v183 = vpack.c.bf16 %v167, %v167
  %v184 = vpack.c.bf16 %v168, %v168
  %v185 = vpack.c.bf16 %v169, %v169
  %s186 = scalar_lea.vmem %s0, 192
  %v187 = vld [vmem:[%s186] sm:$0xf]
  %v188 = vld [vmem:[%s186 + $0x4] sm:$0xf]
  %v189 = vld [vmem:[%s186 + $0x8] sm:$0xf]
  %v190 = vld [vmem:[%s186 + $0xc] sm:$0xf]
  %v191 = vld [vmem:[%s186 + $0x10] sm:$0xf]
  %v192 = vld [vmem:[%s186 + $0x14] sm:$0xf]
  %v193 = vld [vmem:[%s186 + $0x18] sm:$0xf]
  %v194 = vld [vmem:[%s186 + $0x1c] sm:$0xf]
  %v195 = vld [vmem:[%s186 + $0x20] sm:$0xf]
  %v196 = vld [vmem:[%s186 + $0x24] sm:$0xf]
  %v197 = vld [vmem:[%s186 + $0x28] sm:$0xf]
  %v198 = vld [vmem:[%s186 + $0x2c] sm:$0xf]
  %v199 = vld [vmem:[%s186 + $0x30] sm:$0xf]
  %v200 = vld [vmem:[%s186 + $0x34] sm:$0xf]
  %v201 = vld [vmem:[%s186 + $0x38] sm:$0xf]
  %v202 = vld [vmem:[%s186 + $0x3c] sm:$0xf]
  %v203 = vunpack.c.l.bf16 %v170
  %v204 = vunpack.c.l.bf16 %v171
  %v205 = vunpack.c.l.bf16 %v172
  %v206 = vunpack.c.l.bf16 %v173
  %v207 = vunpack.c.l.bf16 %v174
  %v208 = vunpack.c.l.bf16 %v175
  %v209 = vunpack.c.l.bf16 %v176
  %v210 = vunpack.c.l.bf16 %v177
  %v211 = vunpack.c.l.bf16 %v178
  %v212 = vunpack.c.l.bf16 %v179
  %v213 = vunpack.c.l.bf16 %v180
  %v214 = vunpack.c.l.bf16 %v181
  %v215 = vunpack.c.l.bf16 %v182
  %v216 = vunpack.c.l.bf16 %v183
  %v217 = vunpack.c.l.bf16 %v184
  %v218 = vunpack.c.l.bf16 %v185
  %v219 = vunpack.c.l.bf16 %v187
  %v220 = vunpack.c.l.bf16 %v188
  %v221 = vunpack.c.l.bf16 %v189
  %v222 = vunpack.c.l.bf16 %v190
  %v223 = vunpack.c.l.bf16 %v191
  %v224 = vunpack.c.l.bf16 %v192
  %v225 = vunpack.c.l.bf16 %v193
  %v226 = vunpack.c.l.bf16 %v194
  %v227 = vunpack.c.l.bf16 %v195
  %v228 = vunpack.c.l.bf16 %v196
  %v229 = vunpack.c.l.bf16 %v197
  %v230 = vunpack.c.l.bf16 %v198
  %v231 = vunpack.c.l.bf16 %v199
  %v232 = vunpack.c.l.bf16 %v200
  %v233 = vunpack.c.l.bf16 %v201
  %v234 = vunpack.c.l.bf16 %v202
  %v235 = vmax.f32 %v203, %v219
  %v236 = vmax.f32 %v204, %v220
  %v237 = vmax.f32 %v205, %v221
  %v238 = vmax.f32 %v206, %v222
  %v239 = vmax.f32 %v207, %v223
  %v240 = vmax.f32 %v208, %v224
  %v241 = vmax.f32 %v209, %v225
  %v242 = vmax.f32 %v210, %v226
  %v243 = vmax.f32 %v211, %v227
  %v244 = vmax.f32 %v212, %v228
  %v245 = vmax.f32 %v213, %v229
  %v246 = vmax.f32 %v214, %v230
  %v247 = vmax.f32 %v215, %v231
  %v248 = vmax.f32 %v216, %v232
  %v249 = vmax.f32 %v217, %v233
  %v250 = vmax.f32 %v218, %v234
  %v251 = vpack.c.bf16 %v235, %v235
  %v252 = vpack.c.bf16 %v236, %v236
  %v253 = vpack.c.bf16 %v237, %v237
  %v254 = vpack.c.bf16 %v238, %v238
  %v255 = vpack.c.bf16 %v239, %v239
  %v256 = vpack.c.bf16 %v240, %v240
  %v257 = vpack.c.bf16 %v241, %v241
  %v258 = vpack.c.bf16 %v242, %v242
  %v259 = vpack.c.bf16 %v243, %v243
  %v260 = vpack.c.bf16 %v244, %v244
  %v261 = vpack.c.bf16 %v245, %v245
  %v262 = vpack.c.bf16 %v246, %v246
  %v263 = vpack.c.bf16 %v247, %v247
  %v264 = vpack.c.bf16 %v248, %v248
  %v265 = vpack.c.bf16 %v249, %v249
  %v266 = vpack.c.bf16 %v250, %v250
  %s267 = scalar_lea.vmem %s0, 256
  %v268 = vld [vmem:[%s267] sm:$0xf]
  %v269 = vld [vmem:[%s267 + $0x4] sm:$0xf]
  %v270 = vld [vmem:[%s267 + $0x8] sm:$0xf]
  %v271 = vld [vmem:[%s267 + $0xc] sm:$0xf]
  %v272 = vld [vmem:[%s267 + $0x10] sm:$0xf]
  %v273 = vld [vmem:[%s267 + $0x14] sm:$0xf]
  %v274 = vld [vmem:[%s267 + $0x18] sm:$0xf]
  %v275 = vld [vmem:[%s267 + $0x1c] sm:$0xf]
  %v276 = vld [vmem:[%s267 + $0x20] sm:$0xf]
  %v277 = vld [vmem:[%s267 + $0x24] sm:$0xf]
  %v278 = vld [vmem:[%s267 + $0x28] sm:$0xf]
  %v279 = vld [vmem:[%s267 + $0x2c] sm:$0xf]
  %v280 = vld [vmem:[%s267 + $0x30] sm:$0xf]
  %v281 = vld [vmem:[%s267 + $0x34] sm:$0xf]
  %v282 = vld [vmem:[%s267 + $0x38] sm:$0xf]
  %v283 = vld [vmem:[%s267 + $0x3c] sm:$0xf]
  %v284 = vunpack.c.l.bf16 %v251
  %v285 = vunpack.c.l.bf16 %v252
  %v286 = vunpack.c.l.bf16 %v253
  %v287 = vunpack.c.l.bf16 %v254
  %v288 = vunpack.c.l.bf16 %v255
  %v289 = vunpack.c.l.bf16 %v256
  %v290 = vunpack.c.l.bf16 %v257
  %v291 = vunpack.c.l.bf16 %v258
  %v292 = vunpack.c.l.bf16 %v259
  %v293 = vunpack.c.l.bf16 %v260
  %v294 = vunpack.c.l.bf16 %v261
  %v295 = vunpack.c.l.bf16 %v262
  %v296 = vunpack.c.l.bf16 %v263
  %v297 = vunpack.c.l.bf16 %v264
  %v298 = vunpack.c.l.bf16 %v265
  %v299 = vunpack.c.l.bf16 %v266
  %v300 = vunpack.c.l.bf16 %v268
  %v301 = vunpack.c.l.bf16 %v269
  %v302 = vunpack.c.l.bf16 %v270
  %v303 = vunpack.c.l.bf16 %v271
  %v304 = vunpack.c.l.bf16 %v272
  %v305 = vunpack.c.l.bf16 %v273
  %v306 = vunpack.c.l.bf16 %v274
  %v307 = vunpack.c.l.bf16 %v275
  %v308 = vunpack.c.l.bf16 %v276
  %v309 = vunpack.c.l.bf16 %v277
  %v310 = vunpack.c.l.bf16 %v278
  %v311 = vunpack.c.l.bf16 %v279
  %v312 = vunpack.c.l.bf16 %v280
  %v313 = vunpack.c.l.bf16 %v281
  %v314 = vunpack.c.l.bf16 %v282
  %v315 = vunpack.c.l.bf16 %v283
  %v316 = vmax.f32 %v284, %v300
  %v317 = vmax.f32 %v285, %v301
  %v318 = vmax.f32 %v286, %v302
  %v319 = vmax.f32 %v287, %v303
  %v320 = vmax.f32 %v288, %v304
  %v321 = vmax.f32 %v289, %v305
  %v322 = vmax.f32 %v290, %v306
  %v323 = vmax.f32 %v291, %v307
  %v324 = vmax.f32 %v292, %v308
  %v325 = vmax.f32 %v293, %v309
  %v326 = vmax.f32 %v294, %v310
  %v327 = vmax.f32 %v295, %v311
  %v328 = vmax.f32 %v296, %v312
  %v329 = vmax.f32 %v297, %v313
  %v330 = vmax.f32 %v298, %v314
  %v331 = vmax.f32 %v299, %v315
  %v332 = vpack.c.bf16 %v316, %v316
  %v333 = vpack.c.bf16 %v317, %v317
  %v334 = vpack.c.bf16 %v318, %v318
  %v335 = vpack.c.bf16 %v319, %v319
  %v336 = vpack.c.bf16 %v320, %v320
  %v337 = vpack.c.bf16 %v321, %v321
  %v338 = vpack.c.bf16 %v322, %v322
  %v339 = vpack.c.bf16 %v323, %v323
  %v340 = vpack.c.bf16 %v324, %v324
  %v341 = vpack.c.bf16 %v325, %v325
  %v342 = vpack.c.bf16 %v326, %v326
  %v343 = vpack.c.bf16 %v327, %v327
  %v344 = vpack.c.bf16 %v328, %v328
  %v345 = vpack.c.bf16 %v329, %v329
  %v346 = vpack.c.bf16 %v330, %v330
  %v347 = vpack.c.bf16 %v331, %v331
  %s348 = scalar_lea.vmem %s0, 320
  %v349 = vld [vmem:[%s348] sm:$0xf]
  %v350 = vld [vmem:[%s348 + $0x4] sm:$0xf]
  %v351 = vld [vmem:[%s348 + $0x8] sm:$0xf]
  %v352 = vld [vmem:[%s348 + $0xc] sm:$0xf]
  %v353 = vld [vmem:[%s348 + $0x10] sm:$0xf]
  %v354 = vld [vmem:[%s348 + $0x14] sm:$0xf]
  %v355 = vld [vmem:[%s348 + $0x18] sm:$0xf]
  %v356 = vld [vmem:[%s348 + $0x1c] sm:$0xf]
  %v357 = vld [vmem:[%s348 + $0x20] sm:$0xf]
  %v358 = vld [vmem:[%s348 + $0x24] sm:$0xf]
  %v359 = vld [vmem:[%s348 + $0x28] sm:$0xf]
  %v360 = vld [vmem:[%s348 + $0x2c] sm:$0xf]
  %v361 = vld [vmem:[%s348 + $0x30] sm:$0xf]
  %v362 = vld [vmem:[%s348 + $0x34] sm:$0xf]
  %v363 = vld [vmem:[%s348 + $0x38] sm:$0xf]
  %v364 = vld [vmem:[%s348 + $0x3c] sm:$0xf]
  %v365 = vunpack.c.l.bf16 %v332
  %v366 = vunpack.c.l.bf16 %v333
  %v367 = vunpack.c.l.bf16 %v334
  %v368 = vunpack.c.l.bf16 %v335
  %v369 = vunpack.c.l.bf16 %v336
  %v370 = vunpack.c.l.bf16 %v337
  %v371 = vunpack.c.l.bf16 %v338
  %v372 = vunpack.c.l.bf16 %v339
  %v373 = vunpack.c.l.bf16 %v340
  %v374 = vunpack.c.l.bf16 %v341
  %v375 = vunpack.c.l.bf16 %v342
  %v376 = vunpack.c.l.bf16 %v343
  %v377 = vunpack.c.l.bf16 %v344
  %v378 = vunpack.c.l.bf16 %v345
  %v379 = vunpack.c.l.bf16 %v346
  %v380 = vunpack.c.l.bf16 %v347
  %v381 = vunpack.c.l.bf16 %v349
  %v382 = vunpack.c.l.bf16 %v350
  %v383 = vunpack.c.l.bf16 %v351
  %v384 = vunpack.c.l.bf16 %v352
  %v385 = vunpack.c.l.bf16 %v353
  %v386 = vunpack.c.l.bf16 %v354
  %v387 = vunpack.c.l.bf16 %v355
  %v388 = vunpack.c.l.bf16 %v356
  %v389 = vunpack.c.l.bf16 %v357
  %v390 = vunpack.c.l.bf16 %v358
  %v391 = vunpack.c.l.bf16 %v359
  %v392 = vunpack.c.l.bf16 %v360
  %v393 = vunpack.c.l.bf16 %v361
  %v394 = vunpack.c.l.bf16 %v362
  %v395 = vunpack.c.l.bf16 %v363
  %v396 = vunpack.c.l.bf16 %v364
  %v397 = vmax.f32 %v365, %v381
  %v398 = vmax.f32 %v366, %v382
  %v399 = vmax.f32 %v367, %v383
  %v400 = vmax.f32 %v368, %v384
  %v401 = vmax.f32 %v369, %v385
  %v402 = vmax.f32 %v370, %v386
  %v403 = vmax.f32 %v371, %v387
  %v404 = vmax.f32 %v372, %v388
  %v405 = vmax.f32 %v373, %v389
  %v406 = vmax.f32 %v374, %v390
  %v407 = vmax.f32 %v375, %v391
  %v408 = vmax.f32 %v376, %v392
  %v409 = vmax.f32 %v377, %v393
  %v410 = vmax.f32 %v378, %v394
  %v411 = vmax.f32 %v379, %v395
  %v412 = vmax.f32 %v380, %v396
  %v413 = vpack.c.bf16 %v397, %v397
  %v414 = vpack.c.bf16 %v398, %v398
  %v415 = vpack.c.bf16 %v399, %v399
  %v416 = vpack.c.bf16 %v400, %v400
  %v417 = vpack.c.bf16 %v401, %v401
  %v418 = vpack.c.bf16 %v402, %v402
  %v419 = vpack.c.bf16 %v403, %v403
  %v420 = vpack.c.bf16 %v404, %v404
  %v421 = vpack.c.bf16 %v405, %v405
  %v422 = vpack.c.bf16 %v406, %v406
  %v423 = vpack.c.bf16 %v407, %v407
  %v424 = vpack.c.bf16 %v408, %v408
  %v425 = vpack.c.bf16 %v409, %v409
  %v426 = vpack.c.bf16 %v410, %v410
  %v427 = vpack.c.bf16 %v411, %v411
  %v428 = vpack.c.bf16 %v412, %v412
  %s429 = scalar_lea.vmem %s0, 384
  %v430 = vld [vmem:[%s429] sm:$0xf]
  %v431 = vld [vmem:[%s429 + $0x4] sm:$0xf]
  %v432 = vld [vmem:[%s429 + $0x8] sm:$0xf]
  %v433 = vld [vmem:[%s429 + $0xc] sm:$0xf]
  %v434 = vld [vmem:[%s429 + $0x10] sm:$0xf]
  %v435 = vld [vmem:[%s429 + $0x14] sm:$0xf]
  %v436 = vld [vmem:[%s429 + $0x18] sm:$0xf]
  %v437 = vld [vmem:[%s429 + $0x1c] sm:$0xf]
  %v438 = vld [vmem:[%s429 + $0x20] sm:$0xf]
  %v439 = vld [vmem:[%s429 + $0x24] sm:$0xf]
  %v440 = vld [vmem:[%s429 + $0x28] sm:$0xf]
  %v441 = vld [vmem:[%s429 + $0x2c] sm:$0xf]
  %v442 = vld [vmem:[%s429 + $0x30] sm:$0xf]
  %v443 = vld [vmem:[%s429 + $0x34] sm:$0xf]
  %v444 = vld [vmem:[%s429 + $0x38] sm:$0xf]
  %v445 = vld [vmem:[%s429 + $0x3c] sm:$0xf]
  %v446 = vunpack.c.l.bf16 %v413
  %v447 = vunpack.c.l.bf16 %v414
  %v448 = vunpack.c.l.bf16 %v415
  %v449 = vunpack.c.l.bf16 %v416
  %v450 = vunpack.c.l.bf16 %v417
  %v451 = vunpack.c.l.bf16 %v418
  %v452 = vunpack.c.l.bf16 %v419
  %v453 = vunpack.c.l.bf16 %v420
  %v454 = vunpack.c.l.bf16 %v421
  %v455 = vunpack.c.l.bf16 %v422
  %v456 = vunpack.c.l.bf16 %v423
  %v457 = vunpack.c.l.bf16 %v424
  %v458 = vunpack.c.l.bf16 %v425
  %v459 = vunpack.c.l.bf16 %v426
  %v460 = vunpack.c.l.bf16 %v427
  %v461 = vunpack.c.l.bf16 %v428
  %v462 = vunpack.c.l.bf16 %v430
  %v463 = vunpack.c.l.bf16 %v431
  %v464 = vunpack.c.l.bf16 %v432
  %v465 = vunpack.c.l.bf16 %v433
  %v466 = vunpack.c.l.bf16 %v434
  %v467 = vunpack.c.l.bf16 %v435
  %v468 = vunpack.c.l.bf16 %v436
  %v469 = vunpack.c.l.bf16 %v437
  %v470 = vunpack.c.l.bf16 %v438
  %v471 = vunpack.c.l.bf16 %v439
  %v472 = vunpack.c.l.bf16 %v440
  %v473 = vunpack.c.l.bf16 %v441
  %v474 = vunpack.c.l.bf16 %v442
  %v475 = vunpack.c.l.bf16 %v443
  %v476 = vunpack.c.l.bf16 %v444
  %v477 = vunpack.c.l.bf16 %v445
  %v478 = vmax.f32 %v446, %v462
  %v479 = vmax.f32 %v447, %v463
  %v480 = vmax.f32 %v448, %v464
  %v481 = vmax.f32 %v449, %v465
  %v482 = vmax.f32 %v450, %v466
  %v483 = vmax.f32 %v451, %v467
  %v484 = vmax.f32 %v452, %v468
  %v485 = vmax.f32 %v453, %v469
  %v486 = vmax.f32 %v454, %v470
  %v487 = vmax.f32 %v455, %v471
  %v488 = vmax.f32 %v456, %v472
  %v489 = vmax.f32 %v457, %v473
  %v490 = vmax.f32 %v458, %v474
  %v491 = vmax.f32 %v459, %v475
  %v492 = vmax.f32 %v460, %v476
  %v493 = vmax.f32 %v461, %v477
  %v494 = vpack.c.bf16 %v478, %v478
  %v495 = vpack.c.bf16 %v479, %v479
  %v496 = vpack.c.bf16 %v480, %v480
  %v497 = vpack.c.bf16 %v481, %v481
  %v498 = vpack.c.bf16 %v482, %v482
  %v499 = vpack.c.bf16 %v483, %v483
  %v500 = vpack.c.bf16 %v484, %v484
  %v501 = vpack.c.bf16 %v485, %v485
  %v502 = vpack.c.bf16 %v486, %v486
  %v503 = vpack.c.bf16 %v487, %v487
  %v504 = vpack.c.bf16 %v488, %v488
  %v505 = vpack.c.bf16 %v489, %v489
  %v506 = vpack.c.bf16 %v490, %v490
  %v507 = vpack.c.bf16 %v491, %v491
  %v508 = vpack.c.bf16 %v492, %v492
  %v509 = vpack.c.bf16 %v493, %v493
  %s510 = scalar_lea.vmem %s0, 448
  %v511 = vld [vmem:[%s510] sm:$0xf]
  %v512 = vld [vmem:[%s510 + $0x4] sm:$0xf]
  %v513 = vld [vmem:[%s510 + $0x8] sm:$0xf]
  %v514 = vld [vmem:[%s510 + $0xc] sm:$0xf]
  %v515 = vld [vmem:[%s510 + $0x10] sm:$0xf]
  %v516 = vld [vmem:[%s510 + $0x14] sm:$0xf]
  %v517 = vld [vmem:[%s510 + $0x18] sm:$0xf]
  %v518 = vld [vmem:[%s510 + $0x1c] sm:$0xf]
  %v519 = vld [vmem:[%s510 + $0x20] sm:$0xf]
  %v520 = vld [vmem:[%s510 + $0x24] sm:$0xf]
  %v521 = vld [vmem:[%s510 + $0x28] sm:$0xf]
  %v522 = vld [vmem:[%s510 + $0x2c] sm:$0xf]
  %v523 = vld [vmem:[%s510 + $0x30] sm:$0xf]
  %v524 = vld [vmem:[%s510 + $0x34] sm:$0xf]
  %v525 = vld [vmem:[%s510 + $0x38] sm:$0xf]
  %v526 = vld [vmem:[%s510 + $0x3c] sm:$0xf]
  %v527 = vunpack.c.l.bf16 %v494
  %v528 = vunpack.c.l.bf16 %v495
  %v529 = vunpack.c.l.bf16 %v496
  %v530 = vunpack.c.l.bf16 %v497
  %v531 = vunpack.c.l.bf16 %v498
  %v532 = vunpack.c.l.bf16 %v499
  %v533 = vunpack.c.l.bf16 %v500
  %v534 = vunpack.c.l.bf16 %v501
  %v535 = vunpack.c.l.bf16 %v502
  %v536 = vunpack.c.l.bf16 %v503
  %v537 = vunpack.c.l.bf16 %v504
  %v538 = vunpack.c.l.bf16 %v505
  %v539 = vunpack.c.l.bf16 %v506
  %v540 = vunpack.c.l.bf16 %v507
  %v541 = vunpack.c.l.bf16 %v508
  %v542 = vunpack.c.l.bf16 %v509
  %v543 = vunpack.c.l.bf16 %v511
  %v544 = vunpack.c.l.bf16 %v512
  %v545 = vunpack.c.l.bf16 %v513
  %v546 = vunpack.c.l.bf16 %v514
  %v547 = vunpack.c.l.bf16 %v515
  %v548 = vunpack.c.l.bf16 %v516
  %v549 = vunpack.c.l.bf16 %v517
  %v550 = vunpack.c.l.bf16 %v518
  %v551 = vunpack.c.l.bf16 %v519
  %v552 = vunpack.c.l.bf16 %v520
  %v553 = vunpack.c.l.bf16 %v521
  %v554 = vunpack.c.l.bf16 %v522
  %v555 = vunpack.c.l.bf16 %v523
  %v556 = vunpack.c.l.bf16 %v524
  %v557 = vunpack.c.l.bf16 %v525
  %v558 = vunpack.c.l.bf16 %v526
  %v559 = vmax.f32 %v527, %v543
  %v560 = vmax.f32 %v528, %v544
  %v561 = vmax.f32 %v529, %v545
  %v562 = vmax.f32 %v530, %v546
  %v563 = vmax.f32 %v531, %v547
  %v564 = vmax.f32 %v532, %v548
  %v565 = vmax.f32 %v533, %v549
  %v566 = vmax.f32 %v534, %v550
  %v567 = vmax.f32 %v535, %v551
  %v568 = vmax.f32 %v536, %v552
  %v569 = vmax.f32 %v537, %v553
  %v570 = vmax.f32 %v538, %v554
  %v571 = vmax.f32 %v539, %v555
  %v572 = vmax.f32 %v540, %v556
  %v573 = vmax.f32 %v541, %v557
  %v574 = vmax.f32 %v542, %v558
  %v575 = vpack.c.bf16 %v559, %v559
  %v576 = vpack.c.bf16 %v560, %v560
  %v577 = vpack.c.bf16 %v561, %v561
  %v578 = vpack.c.bf16 %v562, %v562
  %v579 = vpack.c.bf16 %v563, %v563
  %v580 = vpack.c.bf16 %v564, %v564
  %v581 = vpack.c.bf16 %v565, %v565
  %v582 = vpack.c.bf16 %v566, %v566
  %v583 = vpack.c.bf16 %v567, %v567
  %v584 = vpack.c.bf16 %v568, %v568
  %v585 = vpack.c.bf16 %v569, %v569
  %v586 = vpack.c.bf16 %v570, %v570
  %v587 = vpack.c.bf16 %v571, %v571
  %v588 = vpack.c.bf16 %v572, %v572
  %v589 = vpack.c.bf16 %v573, %v573
  %v590 = vpack.c.bf16 %v574, %v574
  %s591 = scalar_lea.vmem %s0, 512
  %v592 = vld [vmem:[%s591] sm:$0xf]
  %v593 = vld [vmem:[%s591 + $0x4] sm:$0xf]
  %v594 = vld [vmem:[%s591 + $0x8] sm:$0xf]
  %v595 = vld [vmem:[%s591 + $0xc] sm:$0xf]
  %v596 = vld [vmem:[%s591 + $0x10] sm:$0xf]
  %v597 = vld [vmem:[%s591 + $0x14] sm:$0xf]
  %v598 = vld [vmem:[%s591 + $0x18] sm:$0xf]
  %v599 = vld [vmem:[%s591 + $0x1c] sm:$0xf]
  %v600 = vld [vmem:[%s591 + $0x20] sm:$0xf]
  %v601 = vld [vmem:[%s591 + $0x24] sm:$0xf]
  %v602 = vld [vmem:[%s591 + $0x28] sm:$0xf]
  %v603 = vld [vmem:[%s591 + $0x2c] sm:$0xf]
  %v604 = vld [vmem:[%s591 + $0x30] sm:$0xf]
  %v605 = vld [vmem:[%s591 + $0x34] sm:$0xf]
  %v606 = vld [vmem:[%s591 + $0x38] sm:$0xf]
  %v607 = vld [vmem:[%s591 + $0x3c] sm:$0xf]
  %v608 = vunpack.c.l.bf16 %v575
  %v609 = vunpack.c.l.bf16 %v576
  %v610 = vunpack.c.l.bf16 %v577
  %v611 = vunpack.c.l.bf16 %v578
  %v612 = vunpack.c.l.bf16 %v579
  %v613 = vunpack.c.l.bf16 %v580
  %v614 = vunpack.c.l.bf16 %v581
  %v615 = vunpack.c.l.bf16 %v582
  %v616 = vunpack.c.l.bf16 %v583
  %v617 = vunpack.c.l.bf16 %v584
  %v618 = vunpack.c.l.bf16 %v585
  %v619 = vunpack.c.l.bf16 %v586
  %v620 = vunpack.c.l.bf16 %v587
  %v621 = vunpack.c.l.bf16 %v588
  %v622 = vunpack.c.l.bf16 %v589
  %v623 = vunpack.c.l.bf16 %v590
  %v624 = vunpack.c.l.bf16 %v592
  %v625 = vunpack.c.l.bf16 %v593
  %v626 = vunpack.c.l.bf16 %v594
  %v627 = vunpack.c.l.bf16 %v595
  %v628 = vunpack.c.l.bf16 %v596
  %v629 = vunpack.c.l.bf16 %v597
  %v630 = vunpack.c.l.bf16 %v598
  %v631 = vunpack.c.l.bf16 %v599
  %v632 = vunpack.c.l.bf16 %v600
  %v633 = vunpack.c.l.bf16 %v601
  %v634 = vunpack.c.l.bf16 %v602
  %v635 = vunpack.c.l.bf16 %v603
  %v636 = vunpack.c.l.bf16 %v604
  %v637 = vunpack.c.l.bf16 %v605
  %v638 = vunpack.c.l.bf16 %v606
  %v639 = vunpack.c.l.bf16 %v607
  %v640 = vmax.f32 %v608, %v624
  %v641 = vmax.f32 %v609, %v625
  %v642 = vmax.f32 %v610, %v626
  %v643 = vmax.f32 %v611, %v627
  %v644 = vmax.f32 %v612, %v628
  %v645 = vmax.f32 %v613, %v629
  %v646 = vmax.f32 %v614, %v630
  %v647 = vmax.f32 %v615, %v631
  %v648 = vmax.f32 %v616, %v632
  %v649 = vmax.f32 %v617, %v633
  %v650 = vmax.f32 %v618, %v634
  %v651 = vmax.f32 %v619, %v635
  %v652 = vmax.f32 %v620, %v636
  %v653 = vmax.f32 %v621, %v637
  %v654 = vmax.f32 %v622, %v638
  %v655 = vmax.f32 %v623, %v639
  %v656 = vpack.c.bf16 %v640, %v640
  %v657 = vpack.c.bf16 %v641, %v641
  %v658 = vpack.c.bf16 %v642, %v642
  %v659 = vpack.c.bf16 %v643, %v643
  %v660 = vpack.c.bf16 %v644, %v644
  %v661 = vpack.c.bf16 %v645, %v645
  %v662 = vpack.c.bf16 %v646, %v646
  %v663 = vpack.c.bf16 %v647, %v647
  %v664 = vpack.c.bf16 %v648, %v648
  %v665 = vpack.c.bf16 %v649, %v649
  %v666 = vpack.c.bf16 %v650, %v650
  %v667 = vpack.c.bf16 %v651, %v651
  %v668 = vpack.c.bf16 %v652, %v652
  %v669 = vpack.c.bf16 %v653, %v653
  %v670 = vpack.c.bf16 %v654, %v654
  %v671 = vpack.c.bf16 %v655, %v655
  %672 = vst [vmem:[%s1] sm:$0xf] %v656
  %673 = vst [vmem:[%s1 + $0x4] sm:$0xf] %v657
  %674 = vst [vmem:[%s1 + $0x8] sm:$0xf] %v658
  %675 = vst [vmem:[%s1 + $0xc] sm:$0xf] %v659
  %676 = vst [vmem:[%s1 + $0x10] sm:$0xf] %v660
  %677 = vst [vmem:[%s1 + $0x14] sm:$0xf] %v661
  %678 = vst [vmem:[%s1 + $0x18] sm:$0xf] %v662
  %679 = vst [vmem:[%s1 + $0x1c] sm:$0xf] %v663
  %680 = vst [vmem:[%s1 + $0x20] sm:$0xf] %v664
  %681 = vst [vmem:[%s1 + $0x24] sm:$0xf] %v665
  %682 = vst [vmem:[%s1 + $0x28] sm:$0xf] %v666
  %683 = vst [vmem:[%s1 + $0x2c] sm:$0xf] %v667
  %684 = vst [vmem:[%s1 + $0x30] sm:$0xf] %v668
  %685 = vst [vmem:[%s1 + $0x34] sm:$0xf] %v669
  %686 = vst [vmem:[%s1 + $0x38] sm:$0xf] %v670
  %687 = vst [vmem:[%s1 + $0x3c] sm:$0xf] %v671
  // Predicated region
  $region6: #{cnn_model_forward.11} parent=0 // pred_check
    _
  $region7: #{cnn_model_forward.11} parent=0 // pred_check_branch
    %689 = sbr.rel (0) target = $region9
  $region8: #{cnn_model_forward.11} parent=0 // pred_region
    _
  $region9: #{cnn_model_forward.11} parent=0 // pred_fallthru
    _
  // Predicated region
  $region10: #{cnn_model_forward.11} parent=0 // pred_check
    _
  $region11: #{cnn_model_forward.11} parent=0 // pred_check_branch
    %691 = sbr.rel (0) target = $region13
  $region12: #{cnn_model_forward.11} parent=0 // pred_region
    _
  $region13: #{cnn_model_forward.11} parent=0 // pred_fallthru
    _

// kernel: closed_call.53
$region0: #{closed_call.53}
  #allocation0 [shape = 'u32[]', space=smem, size = 0x4, offset = 0x4, fixed_abs, tag = 'smem constant byte address 0x4 - core index']
  #allocation1 [shape = 'u32[72,128]{1,0:T(1,128)}', space=vmem, size = 0x9000, scoped, tag = 'internal scratch']
  %s0 = inlined_call_operand.vmem [shape: bf16[128,1152], index: 0, kind: input, shape index: {}]
  %s1 = inlined_call_operand.vmem [shape: bf16[1152,128], index: 1, kind: input, shape index: {}]
  %s2 = inlined_call_operand.vmem [shape: bf16[128,128], index: 2, kind: output, shape index: {}]
  %s3 = sld [smem:[#allocation0]]
  $region18: #{closed_call.53} parent=0
    _
  %s5 = ssub.s32 1, %s3
  %s6 = scalar_select 0, %s5, %s3
  // Predicated region
  $region2: #{closed_call.53} parent=0 // pred_check
    _
  $region3: #{closed_call.53} parent=0 // pred_check_branch
    %8 = sbr.rel (0) target = $region5
  $region4: #{closed_call.53} parent=0 // pred_region
    _
  $region5: #{closed_call.53} parent=0 // pred_fallthru
    _
  // Predicated region
  $region6: #{closed_call.53} parent=0 // pred_check
    _
  $region7: #{closed_call.53} parent=0 // pred_check_branch
    %10 = sbr.rel (0) target = $region9
  $region8: #{closed_call.53} parent=0 // pred_region
    _
  $region9: #{closed_call.53} parent=0 // pred_fallthru
    _
  %v11 = vld [vmem:[%s0] sm:$0xff]
  %v12 = vld [vmem:[%s0 + $0x8] sm:$0xff]
  %v13 = vld [vmem:[%s0 + $0x10] sm:$0xff]
  %v14 = vld [vmem:[%s0 + $0x18] sm:$0xff]
  %v15 = vld [vmem:[%s0 + $0x20] sm:$0xf]
  %v16 = vld [vmem:[%s0 + $0x24] sm:$0xff]
  %v17 = vld [vmem:[%s0 + $0x2c] sm:$0xff]
  %v18 = vld [vmem:[%s0 + $0x34] sm:$0xff]
  %v19 = vld [vmem:[%s0 + $0x3c] sm:$0xff]
  %v20 = vld [vmem:[%s0 + $0x44] sm:$0xf]
  %v21 = vld [vmem:[%s0 + $0x48] sm:$0xff]
  %v22 = vld [vmem:[%s0 + $0x50] sm:$0xff]
  %v23 = vld [vmem:[%s0 + $0x58] sm:$0xff]
  %v24 = vld [vmem:[%s0 + $0x60] sm:$0xff]
  %v25 = vld [vmem:[%s0 + $0x68] sm:$0xf]
  %v26 = vld [vmem:[%s0 + $0x6c] sm:$0xff]
  %v27 = vld [vmem:[%s0 + $0x74] sm:$0xff]
  %v28 = vld [vmem:[%s0 + $0x7c] sm:$0xff]
  %v29 = vld [vmem:[%s0 + $0x84] sm:$0xff]
  %v30 = vld [vmem:[%s0 + $0x8c] sm:$0xf]
  %v31 = vld [vmem:[%s0 + $0x90] sm:$0xff]
  %v32 = vld [vmem:[%s0 + $0x98] sm:$0xff]
  %v33 = vld [vmem:[%s0 + $0xa0] sm:$0xff]
  %v34 = vld [vmem:[%s0 + $0xa8] sm:$0xff]
  %v35 = vld [vmem:[%s0 + $0xb0] sm:$0xf]
  %v36 = vld [vmem:[%s0 + $0xb4] sm:$0xff]
  %v37 = vld [vmem:[%s0 + $0xbc] sm:$0xff]
  %v38 = vld [vmem:[%s0 + $0xc4] sm:$0xff]
  %v39 = vld [vmem:[%s0 + $0xcc] sm:$0xff]
  %v40 = vld [vmem:[%s0 + $0xd4] sm:$0xf]
  %v41 = vld [vmem:[%s0 + $0xd8] sm:$0xff]
  %v42 = vld [vmem:[%s0 + $0xe0] sm:$0xff]
  %v43 = vld [vmem:[%s0 + $0xe8] sm:$0xff]
  %v44 = vld [vmem:[%s0 + $0xf0] sm:$0xff]
  %v45 = vld [vmem:[%s0 + $0xf8] sm:$0xf]
  %v46 = vld [vmem:[%s0 + $0xfc] sm:$0xff]
  %v47 = vld [vmem:[%s0 + $0x104] sm:$0xff]
  %v48 = vld [vmem:[%s0 + $0x10c] sm:$0xff]
  %v49 = vld [vmem:[%s0 + $0x114] sm:$0xff]
  %v50 = vld [vmem:[%s0 + $0x11c] sm:$0xf]
  %v51 = vld [vmem:[%s0 + $0x120] sm:$0xff]
  %v52 = vld [vmem:[%s0 + $0x128] sm:$0xff]
  %v53 = vld [vmem:[%s0 + $0x130] sm:$0xff]
  %v54 = vld [vmem:[%s0 + $0x138] sm:$0xff]
  %v55 = vld [vmem:[%s0 + $0x140] sm:$0xf]
  %v56 = vld [vmem:[%s0 + $0x144] sm:$0xff]
  %v57 = vld [vmem:[%s0 + $0x14c] sm:$0xff]
  %v58 = vld [vmem:[%s0 + $0x154] sm:$0xff]
  %v59 = vld [vmem:[%s0 + $0x15c] sm:$0xff]
  %v60 = vld [vmem:[%s0 + $0x164] sm:$0xf]
  %v61 = vld [vmem:[%s0 + $0x168] sm:$0xff]
  %v62 = vld [vmem:[%s0 + $0x170] sm:$0xff]
  %v63 = vld [vmem:[%s0 + $0x178] sm:$0xff]
  %v64 = vld [vmem:[%s0 + $0x180] sm:$0xff]
  %v65 = vld [vmem:[%s0 + $0x188] sm:$0xf]
  %v66 = vld [vmem:[%s0 + $0x18c] sm:$0xff]
  %v67 = vld [vmem:[%s0 + $0x194] sm:$0xff]
  %v68 = vld [vmem:[%s0 + $0x19c] sm:$0xff]
  %v69 = vld [vmem:[%s0 + $0x1a4] sm:$0xff]
  %v70 = vld [vmem:[%s0 + $0x1ac] sm:$0xf]
  %v71 = vld [vmem:[%s0 + $0x1b0] sm:$0xff]
  %v72 = vld [vmem:[%s0 + $0x1b8] sm:$0xff]
  %v73 = vld [vmem:[%s0 + $0x1c0] sm:$0xff]
  %v74 = vld [vmem:[%s0 + $0x1c8] sm:$0xff]
  %v75 = vld [vmem:[%s0 + $0x1d0] sm:$0xf]
  %v76 = vld [vmem:[%s0 + $0x1d4] sm:$0xff]
  %v77 = vld [vmem:[%s0 + $0x1dc] sm:$0xff]
  %v78 = vld [vmem:[%s0 + $0x1e4] sm:$0xff]
  %v79 = vld [vmem:[%s0 + $0x1ec] sm:$0xff]
  %v80 = vld [vmem:[%s0 + $0x1f4] sm:$0xf]
  %v81 = vld [vmem:[%s0 + $0x1f8] sm:$0xff]
  %v82 = vld [vmem:[%s0 + $0x200] sm:$0xff]
  %v83 = vld [vmem:[%s0 + $0x208] sm:$0xff]
  %v84 = vld [vmem:[%s0 + $0x210] sm:$0xff]
  %v85 = vld [vmem:[%s0 + $0x218] sm:$0xf]
  %v86 = vld [vmem:[%s0 + $0x21c] sm:$0xff]
  %v87 = vld [vmem:[%s0 + $0x224] sm:$0xff]
  %v88 = vld [vmem:[%s0 + $0x22c] sm:$0xff]
  %v89 = vld [vmem:[%s0 + $0x234] sm:$0xff]
  %v90 = vld [vmem:[%s0 + $0x23c] sm:$0xf]
  %v91 = vld [vmem:[%s1] sm:$0xf]
  %v92 = vld [vmem:[%s1 + $0x4] sm:$0xf]
  %v93 = vld [vmem:[%s1 + $0x8] sm:$0xf]
  %v94 = vld [vmem:[%s1 + $0xc] sm:$0xf]
  %v95 = vld [vmem:[%s1 + $0x10] sm:$0xf]
  %v96 = vld [vmem:[%s1 + $0x14] sm:$0xf]
  %v97 = vld [vmem:[%s1 + $0x18] sm:$0xf]
  %v98 = vld [vmem:[%s1 + $0x1c] sm:$0xf]
  %v99 = vld [vmem:[%s1 + $0x20] sm:$0xf]
  %v100 = vld [vmem:[%s1 + $0x24] sm:$0xf]
  %v101 = vld [vmem:[%s1 + $0x28] sm:$0xf]
  %v102 = vld [vmem:[%s1 + $0x2c] sm:$0xf]
  %v103 = vld [vmem:[%s1 + $0x30] sm:$0xf]
  %v104 = vld [vmem:[%s1 + $0x34] sm:$0xf]
  %v105 = vld [vmem:[%s1 + $0x38] sm:$0xf]
  %v106 = vld [vmem:[%s1 + $0x3c] sm:$0xf]
  %v107 = vld [vmem:[%s1 + $0x40] sm:$0xf]
  %v108 = vld [vmem:[%s1 + $0x44] sm:$0xf]
  %v109 = vld [vmem:[%s1 + $0x48] sm:$0xf]
  %v110 = vld [vmem:[%s1 + $0x4c] sm:$0xf]
  %v111 = vld [vmem:[%s1 + $0x50] sm:$0xf]
  %v112 = vld [vmem:[%s1 + $0x54] sm:$0xf]
  %v113 = vld [vmem:[%s1 + $0x58] sm:$0xf]
  %v114 = vld [vmem:[%s1 + $0x5c] sm:$0xf]
  %v115 = vld [vmem:[%s1 + $0x60] sm:$0xf]
  %v116 = vld [vmem:[%s1 + $0x64] sm:$0xf]
  %v117 = vld [vmem:[%s1 + $0x68] sm:$0xf]
  %v118 = vld [vmem:[%s1 + $0x6c] sm:$0xf]
  %v119 = vld [vmem:[%s1 + $0x70] sm:$0xf]
  %v120 = vld [vmem:[%s1 + $0x74] sm:$0xf]
  %v121 = vld [vmem:[%s1 + $0x78] sm:$0xf]
  %v122 = vld [vmem:[%s1 + $0x7c] sm:$0xf]
  %v123 = vld [vmem:[%s1 + $0x80] sm:$0xf]
  %v124 = vld [vmem:[%s1 + $0x84] sm:$0xf]
  %v125 = vld [vmem:[%s1 + $0x88] sm:$0xf]
  %v126 = vld [vmem:[%s1 + $0x8c] sm:$0xf]
  %v127 = vld [vmem:[%s1 + $0x90] sm:$0xf]
  %v128 = vld [vmem:[%s1 + $0x94] sm:$0xf]
  %v129 = vld [vmem:[%s1 + $0x98] sm:$0xf]
  %v130 = vld [vmem:[%s1 + $0x9c] sm:$0xf]
  %v131 = vld [vmem:[%s1 + $0xa0] sm:$0xf]
  %v132 = vld [vmem:[%s1 + $0xa4] sm:$0xf]
  %v133 = vld [vmem:[%s1 + $0xa8] sm:$0xf]
  %v134 = vld [vmem:[%s1 + $0xac] sm:$0xf]
  %v135 = vld [vmem:[%s1 + $0xb0] sm:$0xf]
  %v136 = vld [vmem:[%s1 + $0xb4] sm:$0xf]
  %v137 = vld [vmem:[%s1 + $0xb8] sm:$0xf]
  %v138 = vld [vmem:[%s1 + $0xbc] sm:$0xf]
  %v139 = vld [vmem:[%s1 + $0xc0] sm:$0xf]
  %v140 = vld [vmem:[%s1 + $0xc4] sm:$0xf]
  %v141 = vld [vmem:[%s1 + $0xc8] sm:$0xf]
  %v142 = vld [vmem:[%s1 + $0xcc] sm:$0xf]
  %v143 = vld [vmem:[%s1 + $0xd0] sm:$0xf]
  %v144 = vld [vmem:[%s1 + $0xd4] sm:$0xf]
  %v145 = vld [vmem:[%s1 + $0xd8] sm:$0xf]
  %v146 = vld [vmem:[%s1 + $0xdc] sm:$0xf]
  %v147 = vld [vmem:[%s1 + $0xe0] sm:$0xf]
  %v148 = vld [vmem:[%s1 + $0xe4] sm:$0xf]
  %v149 = vld [vmem:[%s1 + $0xe8] sm:$0xf]
  %v150 = vld [vmem:[%s1 + $0xec] sm:$0xf]
  %v151 = vld [vmem:[%s1 + $0xf0] sm:$0xf]
  %v152 = vld [vmem:[%s1 + $0xf4] sm:$0xf]
  %v153 = vld [vmem:[%s1 + $0xf8] sm:$0xf]
  %v154 = vld [vmem:[%s1 + $0xfc] sm:$0xf]
  %v155 = vld [vmem:[%s1 + $0x100] sm:$0xf]
  %v156 = vld [vmem:[%s1 + $0x104] sm:$0xf]
  %v157 = vld [vmem:[%s1 + $0x108] sm:$0xf]
  %v158 = vld [vmem:[%s1 + $0x10c] sm:$0xf]
  %v159 = vld [vmem:[%s1 + $0x110] sm:$0xf]
  %v160 = vld [vmem:[%s1 + $0x114] sm:$0xf]
  %v161 = vld [vmem:[%s1 + $0x118] sm:$0xf]
  %v162 = vld [vmem:[%s1 + $0x11c] sm:$0xf]
  %v163 = vld [vmem:[%s1 + $0x120] sm:$0xf]
  %v164 = vld [vmem:[%s1 + $0x124] sm:$0xf]
  %v165 = vld [vmem:[%s1 + $0x128] sm:$0xf]
  %v166 = vld [vmem:[%s1 + $0x12c] sm:$0xf]
  %v167 = vld [vmem:[%s1 + $0x130] sm:$0xf]
  %v168 = vld [vmem:[%s1 + $0x134] sm:$0xf]
  %v169 = vld [vmem:[%s1 + $0x138] sm:$0xf]
  %v170 = vld [vmem:[%s1 + $0x13c] sm:$0xf]
  %v171 = vld [vmem:[%s1 + $0x140] sm:$0xf]
  %v172 = vld [vmem:[%s1 + $0x144] sm:$0xf]
  %v173 = vld [vmem:[%s1 + $0x148] sm:$0xf]
  %v174 = vld [vmem:[%s1 + $0x14c] sm:$0xf]
  %v175 = vld [vmem:[%s1 + $0x150] sm:$0xf]
  %v176 = vld [vmem:[%s1 + $0x154] sm:$0xf]
  %v177 = vld [vmem:[%s1 + $0x158] sm:$0xf]
  %v178 = vld [vmem:[%s1 + $0x15c] sm:$0xf]
  %v179 = vld [vmem:[%s1 + $0x160] sm:$0xf]
  %v180 = vld [vmem:[%s1 + $0x164] sm:$0xf]
  %v181 = vld [vmem:[%s1 + $0x168] sm:$0xf]
  %v182 = vld [vmem:[%s1 + $0x16c] sm:$0xf]
  %v183 = vld [vmem:[%s1 + $0x170] sm:$0xf]
  %v184 = vld [vmem:[%s1 + $0x174] sm:$0xf]
  %v185 = vld [vmem:[%s1 + $0x178] sm:$0xf]
  %v186 = vld [vmem:[%s1 + $0x17c] sm:$0xf]
  %v187 = vld [vmem:[%s1 + $0x180] sm:$0xf]
  %v188 = vld [vmem:[%s1 + $0x184] sm:$0xf]
  %v189 = vld [vmem:[%s1 + $0x188] sm:$0xf]
  %v190 = vld [vmem:[%s1 + $0x18c] sm:$0xf]
  %v191 = vld [vmem:[%s1 + $0x190] sm:$0xf]
  %v192 = vld [vmem:[%s1 + $0x194] sm:$0xf]
  %v193 = vld [vmem:[%s1 + $0x198] sm:$0xf]
  %v194 = vld [vmem:[%s1 + $0x19c] sm:$0xf]
  %v195 = vld [vmem:[%s1 + $0x1a0] sm:$0xf]
  %v196 = vld [vmem:[%s1 + $0x1a4] sm:$0xf]
  %v197 = vld [vmem:[%s1 + $0x1a8] sm:$0xf]
  %v198 = vld [vmem:[%s1 + $0x1ac] sm:$0xf]
  %v199 = vld [vmem:[%s1 + $0x1b0] sm:$0xf]
  %v200 = vld [vmem:[%s1 + $0x1b4] sm:$0xf]
  %v201 = vld [vmem:[%s1 + $0x1b8] sm:$0xf]
  %v202 = vld [vmem:[%s1 + $0x1bc] sm:$0xf]
  %v203 = vld [vmem:[%s1 + $0x1c0] sm:$0xf]
  %v204 = vld [vmem:[%s1 + $0x1c4] sm:$0xf]
  %v205 = vld [vmem:[%s1 + $0x1c8] sm:$0xf]
  %v206 = vld [vmem:[%s1 + $0x1cc] sm:$0xf]
  %v207 = vld [vmem:[%s1 + $0x1d0] sm:$0xf]
  %v208 = vld [vmem:[%s1 + $0x1d4] sm:$0xf]
  %v209 = vld [vmem:[%s1 + $0x1d8] sm:$0xf]
  %v210 = vld [vmem:[%s1 + $0x1dc] sm:$0xf]
  %v211 = vld [vmem:[%s1 + $0x1e0] sm:$0xf]
  %v212 = vld [vmem:[%s1 + $0x1e4] sm:$0xf]
  %v213 = vld [vmem:[%s1 + $0x1e8] sm:$0xf]
  %v214 = vld [vmem:[%s1 + $0x1ec] sm:$0xf]
  %v215 = vld [vmem:[%s1 + $0x1f0] sm:$0xf]
  %v216 = vld [vmem:[%s1 + $0x1f4] sm:$0xf]
  %v217 = vld [vmem:[%s1 + $0x1f8] sm:$0xf]
  %v218 = vld [vmem:[%s1 + $0x1fc] sm:$0xf]
  %v219 = vld [vmem:[%s1 + $0x200] sm:$0xf]
  %v220 = vld [vmem:[%s1 + $0x204] sm:$0xf]
  %v221 = vld [vmem:[%s1 + $0x208] sm:$0xf]
  %v222 = vld [vmem:[%s1 + $0x20c] sm:$0xf]
  %v223 = vld [vmem:[%s1 + $0x210] sm:$0xf]
  %v224 = vld [vmem:[%s1 + $0x214] sm:$0xf]
  %v225 = vld [vmem:[%s1 + $0x218] sm:$0xf]
  %v226 = vld [vmem:[%s1 + $0x21c] sm:$0xf]
  %v227 = vld [vmem:[%s1 + $0x220] sm:$0xf]
  %v228 = vld [vmem:[%s1 + $0x224] sm:$0xf]
  %v229 = vld [vmem:[%s1 + $0x228] sm:$0xf]
  %v230 = vld [vmem:[%s1 + $0x22c] sm:$0xf]
  %v231 = vld [vmem:[%s1 + $0x230] sm:$0xf]
  %v232 = vld [vmem:[%s1 + $0x234] sm:$0xf]
  %v233 = vld [vmem:[%s1 + $0x238] sm:$0xf]
  %v234 = vld [vmem:[%s1 + $0x23c] sm:$0xf]
  %v315 = vunpack.c.l.b16 %v11
  %v316 = vunpack.c.h.b16 %v11
  %v317 = vunpack.c.l.b16 %v12
  %v318 = vunpack.c.h.b16 %v12
  %v319 = vunpack.c.l.b16 %v13
  %v320 = vunpack.c.h.b16 %v13
  %v321 = vunpack.c.l.b16 %v14
  %v322 = vunpack.c.h.b16 %v14
  %v323 = vunpack.c.l.b16 %v15
  %v324 = vunpack.c.l.b16 %v16
  %v325 = vunpack.c.h.b16 %v16
  %v326 = vunpack.c.l.b16 %v17
  %v327 = vunpack.c.h.b16 %v17
  %v328 = vunpack.c.l.b16 %v18
  %v329 = vunpack.c.h.b16 %v18
  %v330 = vunpack.c.l.b16 %v19
  %v331 = vunpack.c.h.b16 %v19
  %v332 = vunpack.c.l.b16 %v20
  %v333 = vunpack.c.l.b16 %v21
  %v334 = vunpack.c.h.b16 %v21
  %v335 = vunpack.c.l.b16 %v22
  %v336 = vunpack.c.h.b16 %v22
  %v337 = vunpack.c.l.b16 %v23
  %v338 = vunpack.c.h.b16 %v23
  %v339 = vunpack.c.l.b16 %v24
  %v340 = vunpack.c.h.b16 %v24
  %v341 = vunpack.c.l.b16 %v25
  %v342 = vunpack.c.l.b16 %v26
  %v343 = vunpack.c.h.b16 %v26
  %v344 = vunpack.c.l.b16 %v27
  %v345 = vunpack.c.h.b16 %v27
  %v346 = vunpack.c.l.b16 %v28
  %v347 = vunpack.c.h.b16 %v28
  %v348 = vunpack.c.l.b16 %v29
  %v349 = vunpack.c.h.b16 %v29
  %v350 = vunpack.c.l.b16 %v30
  %v351 = vunpack.c.l.b16 %v31
  %v352 = vunpack.c.h.b16 %v31
  %v353 = vunpack.c.l.b16 %v32
  %v354 = vunpack.c.h.b16 %v32
  %v355 = vunpack.c.l.b16 %v33
  %v356 = vunpack.c.h.b16 %v33
  %v357 = vunpack.c.l.b16 %v34
  %v358 = vunpack.c.h.b16 %v34
  %v359 = vunpack.c.l.b16 %v35
  %v360 = vunpack.c.l.b16 %v36
  %v361 = vunpack.c.h.b16 %v36
  %v362 = vunpack.c.l.b16 %v37
  %v363 = vunpack.c.h.b16 %v37
  %v364 = vunpack.c.l.b16 %v38
  %v365 = vunpack.c.h.b16 %v38
  %v366 = vunpack.c.l.b16 %v39
  %v367 = vunpack.c.h.b16 %v39
  %v368 = vunpack.c.l.b16 %v40
  %v369 = vunpack.c.l.b16 %v41
  %v370 = vunpack.c.h.b16 %v41
  %v371 = vunpack.c.l.b16 %v42
  %v372 = vunpack.c.h.b16 %v42
  %v373 = vunpack.c.l.b16 %v43
  %v374 = vunpack.c.h.b16 %v43
  %v375 = vunpack.c.l.b16 %v44
  %v376 = vunpack.c.h.b16 %v44
  %v377 = vunpack.c.l.b16 %v45
  %v378 = vunpack.c.l.b16 %v46
  %v379 = vunpack.c.h.b16 %v46
  %v380 = vunpack.c.l.b16 %v47
  %v381 = vunpack.c.h.b16 %v47
  %v382 = vunpack.c.l.b16 %v48
  %v383 = vunpack.c.h.b16 %v48
  %v384 = vunpack.c.l.b16 %v49
  %v385 = vunpack.c.h.b16 %v49
  %v386 = vunpack.c.l.b16 %v50
  %v387 = vunpack.c.l.b16 %v51
  %v388 = vunpack.c.h.b16 %v51
  %v389 = vunpack.c.l.b16 %v52
  %v390 = vunpack.c.h.b16 %v52
  %v391 = vunpack.c.l.b16 %v53
  %v392 = vunpack.c.h.b16 %v53
  %v393 = vunpack.c.l.b16 %v54
  %v394 = vunpack.c.h.b16 %v54
  %v395 = vunpack.c.l.b16 %v55
  %v396 = vunpack.c.l.b16 %v56
  %v397 = vunpack.c.h.b16 %v56
  %v398 = vunpack.c.l.b16 %v57
  %v399 = vunpack.c.h.b16 %v57
  %v400 = vunpack.c.l.b16 %v58
  %v401 = vunpack.c.h.b16 %v58
  %v402 = vunpack.c.l.b16 %v59
  %v403 = vunpack.c.h.b16 %v59
  %v404 = vunpack.c.l.b16 %v60
  %v405 = vunpack.c.l.b16 %v61
  %v406 = vunpack.c.h.b16 %v61
  %v407 = vunpack.c.l.b16 %v62
  %v408 = vunpack.c.h.b16 %v62
  %v409 = vunpack.c.l.b16 %v63
  %v410 = vunpack.c.h.b16 %v63
  %v411 = vunpack.c.l.b16 %v64
  %v412 = vunpack.c.h.b16 %v64
  %v413 = vunpack.c.l.b16 %v65
  %v414 = vunpack.c.l.b16 %v66
  %v415 = vunpack.c.h.b16 %v66
  %v416 = vunpack.c.l.b16 %v67
  %v417 = vunpack.c.h.b16 %v67
  %v418 = vunpack.c.l.b16 %v68
  %v419 = vunpack.c.h.b16 %v68
  %v420 = vunpack.c.l.b16 %v69
  %v421 = vunpack.c.h.b16 %v69
  %v422 = vunpack.c.l.b16 %v70
  %v423 = vunpack.c.l.b16 %v71
  %v424 = vunpack.c.h.b16 %v71
  %v425 = vunpack.c.l.b16 %v72
  %v426 = vunpack.c.h.b16 %v72
  %v427 = vunpack.c.l.b16 %v73
  %v428 = vunpack.c.h.b16 %v73
  %v429 = vunpack.c.l.b16 %v74
  %v430 = vunpack.c.h.b16 %v74
  %v431 = vunpack.c.l.b16 %v75
  %v432 = vunpack.c.l.b16 %v76
  %v433 = vunpack.c.h.b16 %v76
  %v434 = vunpack.c.l.b16 %v77
  %v435 = vunpack.c.h.b16 %v77
  %v436 = vunpack.c.l.b16 %v78
  %v437 = vunpack.c.h.b16 %v78
  %v438 = vunpack.c.l.b16 %v79
  %v439 = vunpack.c.h.b16 %v79
  %v440 = vunpack.c.l.b16 %v80
  %v441 = vunpack.c.l.b16 %v81
  %v442 = vunpack.c.h.b16 %v81
  %v443 = vunpack.c.l.b16 %v82
  %v444 = vunpack.c.h.b16 %v82
  %v445 = vunpack.c.l.b16 %v83
  %v446 = vunpack.c.h.b16 %v83
  %v447 = vunpack.c.l.b16 %v84
  %v448 = vunpack.c.h.b16 %v84
  %v449 = vunpack.c.l.b16 %v85
  %v450 = vunpack.c.l.b16 %v86
  %v451 = vunpack.c.h.b16 %v86
  %v452 = vunpack.c.l.b16 %v87
  %v453 = vunpack.c.h.b16 %v87
  %v454 = vunpack.c.l.b16 %v88
  %v455 = vunpack.c.h.b16 %v88
  %v456 = vunpack.c.l.b16 %v89
  %v457 = vunpack.c.h.b16 %v89
  %v458 = vunpack.c.l.b16 %v90
  %v459 = vpack.c.b16 %v324, %v315
  %v460 = vpack.c.b16 %v325, %v316
  %v461 = vpack.c.b16 %v326, %v317
  %v462 = vpack.c.b16 %v327, %v318
  %v463 = vpack.c.b16 %v328, %v319
  %v464 = vpack.c.b16 %v329, %v320
  %v465 = vpack.c.b16 %v330, %v321
  %v466 = vpack.c.b16 %v331, %v322
  %v467 = vpack.c.b16 %v332, %v323
  %v468 = vpack.c.b16 %v342, %v333
  %v469 = vpack.c.b16 %v343, %v334
  %v470 = vpack.c.b16 %v344, %v335
  %v471 = vpack.c.b16 %v345, %v336
  %v472 = vpack.c.b16 %v346, %v337
  %v473 = vpack.c.b16 %v347, %v338
  %v474 = vpack.c.b16 %v348, %v339
  %v475 = vpack.c.b16 %v349, %v340
  %v476 = vpack.c.b16 %v350, %v341
  %v477 = vpack.c.b16 %v360, %v351
  %v478 = vpack.c.b16 %v361, %v352
  %v479 = vpack.c.b16 %v362, %v353
  %v480 = vpack.c.b16 %v363, %v354
  %v481 = vpack.c.b16 %v364, %v355
  %v482 = vpack.c.b16 %v365, %v356
  %v483 = vpack.c.b16 %v366, %v357
  %v484 = vpack.c.b16 %v367, %v358
  %v485 = vpack.c.b16 %v368, %v359
  %v486 = vpack.c.b16 %v378, %v369
  %v487 = vpack.c.b16 %v379, %v370
  %v488 = vpack.c.b16 %v380, %v371
  %v489 = vpack.c.b16 %v381, %v372
  %v490 = vpack.c.b16 %v382, %v373
  %v491 = vpack.c.b16 %v383, %v374
  %v492 = vpack.c.b16 %v384, %v375
  %v493 = vpack.c.b16 %v385, %v376
  %v494 = vpack.c.b16 %v386, %v377
  %v495 = vpack.c.b16 %v396, %v387
  %v496 = vpack.c.b16 %v397, %v388
  %v497 = vpack.c.b16 %v398, %v389
  %v498 = vpack.c.b16 %v399, %v390
  %v499 = vpack.c.b16 %v400, %v391
  %v500 = vpack.c.b16 %v401, %v392
  %v501 = vpack.c.b16 %v402, %v393
  %v502 = vpack.c.b16 %v403, %v394
  %v503 = vpack.c.b16 %v404, %v395
  %v504 = vpack.c.b16 %v414, %v405
  %v505 = vpack.c.b16 %v415, %v406
  %v506 = vpack.c.b16 %v416, %v407
  %v507 = vpack.c.b16 %v417, %v408
  %v508 = vpack.c.b16 %v418, %v409
  %v509 = vpack.c.b16 %v419, %v410
  %v510 = vpack.c.b16 %v420, %v411
  %v511 = vpack.c.b16 %v421, %v412
  %v512 = vpack.c.b16 %v422, %v413
  %v513 = vpack.c.b16 %v432, %v423
  %v514 = vpack.c.b16 %v433, %v424
  %v515 = vpack.c.b16 %v434, %v425
  %v516 = vpack.c.b16 %v435, %v426
  %v517 = vpack.c.b16 %v436, %v427
  %v518 = vpack.c.b16 %v437, %v428
  %v519 = vpack.c.b16 %v438, %v429
  %v520 = vpack.c.b16 %v439, %v430
  %v521 = vpack.c.b16 %v440, %v431
  %v522 = vpack.c.b16 %v450, %v441
  %v523 = vpack.c.b16 %v451, %v442
  %v524 = vpack.c.b16 %v452, %v443
  %v525 = vpack.c.b16 %v453, %v444
  %v526 = vpack.c.b16 %v454, %v445
  %v527 = vpack.c.b16 %v455, %v446
  %v528 = vpack.c.b16 %v456, %v447
  %v529 = vpack.c.b16 %v457, %v448
  %v530 = vpack.c.b16 %v458, %v449
  %v747 = vunpack.c.l.b16 %v91
  %v748 = vunpack.c.l.b16 %v92
  %v749 = vunpack.c.l.b16 %v93
  %v750 = vunpack.c.l.b16 %v94
  %v751 = vunpack.c.l.b16 %v95
  %v752 = vunpack.c.l.b16 %v96
  %v753 = vunpack.c.l.b16 %v97
  %v754 = vunpack.c.l.b16 %v98
  %v755 = vunpack.c.l.b16 %v99
  %v756 = vunpack.c.l.b16 %v100
  %v757 = vunpack.c.l.b16 %v101
  %v758 = vunpack.c.l.b16 %v102
  %v759 = vunpack.c.l.b16 %v103
  %v760 = vunpack.c.l.b16 %v104
  %v761 = vunpack.c.l.b16 %v105
  %v762 = vunpack.c.l.b16 %v106
  %v763 = vunpack.c.l.b16 %v107
  %v764 = vunpack.c.l.b16 %v108
  %v765 = vunpack.c.l.b16 %v109
  %v766 = vunpack.c.l.b16 %v110
  %v767 = vunpack.c.l.b16 %v111
  %v768 = vunpack.c.l.b16 %v112
  %v769 = vunpack.c.l.b16 %v113
  %v770 = vunpack.c.l.b16 %v114
  %v771 = vunpack.c.l.b16 %v115
  %v772 = vunpack.c.l.b16 %v116
  %v773 = vunpack.c.l.b16 %v117
  %v774 = vunpack.c.l.b16 %v118
  %v775 = vunpack.c.l.b16 %v119
  %v776 = vunpack.c.l.b16 %v120
  %v777 = vunpack.c.l.b16 %v121
  %v778 = vunpack.c.l.b16 %v122
  %v779 = vunpack.c.l.b16 %v123
  %v780 = vunpack.c.l.b16 %v124
  %v781 = vunpack.c.l.b16 %v125
  %v782 = vunpack.c.l.b16 %v126
  %v783 = vunpack.c.l.b16 %v127
  %v784 = vunpack.c.l.b16 %v128
  %v785 = vunpack.c.l.b16 %v129
  %v786 = vunpack.c.l.b16 %v130
  %v787 = vunpack.c.l.b16 %v131
  %v788 = vunpack.c.l.b16 %v132
  %v789 = vunpack.c.l.b16 %v133
  %v790 = vunpack.c.l.b16 %v134
  %v791 = vunpack.c.l.b16 %v135
  %v792 = vunpack.c.l.b16 %v136
  %v793 = vunpack.c.l.b16 %v137
  %v794 = vunpack.c.l.b16 %v138
  %v795 = vunpack.c.l.b16 %v139
  %v796 = vunpack.c.l.b16 %v140
  %v797 = vunpack.c.l.b16 %v141
  %v798 = vunpack.c.l.b16 %v142
  %v799 = vunpack.c.l.b16 %v143
  %v800 = vunpack.c.l.b16 %v144
  %v801 = vunpack.c.l.b16 %v145
  %v802 = vunpack.c.l.b16 %v146
  %v803 = vunpack.c.l.b16 %v147
  %v804 = vunpack.c.l.b16 %v148
  %v805 = vunpack.c.l.b16 %v149
  %v806 = vunpack.c.l.b16 %v150
  %v807 = vunpack.c.l.b16 %v151
  %v808 = vunpack.c.l.b16 %v152
  %v809 = vunpack.c.l.b16 %v153
  %v810 = vunpack.c.l.b16 %v154
  %v811 = vunpack.c.l.b16 %v155
  %v812 = vunpack.c.l.b16 %v156
  %v813 = vunpack.c.l.b16 %v157
  %v814 = vunpack.c.l.b16 %v158
  %v815 = vunpack.c.l.b16 %v159
  %v816 = vunpack.c.l.b16 %v160
  %v817 = vunpack.c.l.b16 %v161
  %v818 = vunpack.c.l.b16 %v162
  %v819 = vunpack.c.l.b16 %v163
  %v820 = vunpack.c.l.b16 %v164
  %v821 = vunpack.c.l.b16 %v165
  %v822 = vunpack.c.l.b16 %v166
  %v823 = vunpack.c.l.b16 %v167
  %v824 = vunpack.c.l.b16 %v168
  %v825 = vunpack.c.l.b16 %v169
  %v826 = vunpack.c.l.b16 %v170
  %v827 = vunpack.c.l.b16 %v171
  %v828 = vunpack.c.l.b16 %v172
  %v829 = vunpack.c.l.b16 %v173
  %v830 = vunpack.c.l.b16 %v174
  %v831 = vunpack.c.l.b16 %v175
  %v832 = vunpack.c.l.b16 %v176
  %v833 = vunpack.c.l.b16 %v177
  %v834 = vunpack.c.l.b16 %v178
  %v835 = vunpack.c.l.b16 %v179
  %v836 = vunpack.c.l.b16 %v180
  %v837 = vunpack.c.l.b16 %v181
  %v838 = vunpack.c.l.b16 %v182
  %v839 = vunpack.c.l.b16 %v183
  %v840 = vunpack.c.l.b16 %v184
  %v841 = vunpack.c.l.b16 %v185
  %v842 = vunpack.c.l.b16 %v186
  %v843 = vunpack.c.l.b16 %v187
  %v844 = vunpack.c.l.b16 %v188
  %v845 = vunpack.c.l.b16 %v189
  %v846 = vunpack.c.l.b16 %v190
  %v847 = vunpack.c.l.b16 %v191
  %v848 = vunpack.c.l.b16 %v192
  %v849 = vunpack.c.l.b16 %v193
  %v850 = vunpack.c.l.b16 %v194
  %v851 = vunpack.c.l.b16 %v195
  %v852 = vunpack.c.l.b16 %v196
  %v853 = vunpack.c.l.b16 %v197
  %v854 = vunpack.c.l.b16 %v198
  %v855 = vunpack.c.l.b16 %v199
  %v856 = vunpack.c.l.b16 %v200
  %v857 = vunpack.c.l.b16 %v201
  %v858 = vunpack.c.l.b16 %v202
  %v859 = vunpack.c.l.b16 %v203
  %v860 = vunpack.c.l.b16 %v204
  %v861 = vunpack.c.l.b16 %v205
  %v862 = vunpack.c.l.b16 %v206
  %v863 = vunpack.c.l.b16 %v207
  %v864 = vunpack.c.l.b16 %v208
  %v865 = vunpack.c.l.b16 %v209
  %v866 = vunpack.c.l.b16 %v210
  %v867 = vunpack.c.l.b16 %v211
  %v868 = vunpack.c.l.b16 %v212
  %v869 = vunpack.c.l.b16 %v213
  %v870 = vunpack.c.l.b16 %v214
  %v871 = vunpack.c.l.b16 %v215
  %v872 = vunpack.c.l.b16 %v216
  %v873 = vunpack.c.l.b16 %v217
  %v874 = vunpack.c.l.b16 %v218
  %v875 = vunpack.c.l.b16 %v219
  %v876 = vunpack.c.l.b16 %v220
  %v877 = vunpack.c.l.b16 %v221
  %v878 = vunpack.c.l.b16 %v222
  %v879 = vunpack.c.l.b16 %v223
  %v880 = vunpack.c.l.b16 %v224
  %v881 = vunpack.c.l.b16 %v225
  %v882 = vunpack.c.l.b16 %v226
  %v883 = vunpack.c.l.b16 %v227
  %v884 = vunpack.c.l.b16 %v228
  %v885 = vunpack.c.l.b16 %v229
  %v886 = vunpack.c.l.b16 %v230
  %v887 = vunpack.c.l.b16 %v231
  %v888 = vunpack.c.l.b16 %v232
  %v889 = vunpack.c.l.b16 %v233
  %v890 = vunpack.c.l.b16 %v234
  %v891 = vpack.c.b16 %v748, %v747
  %v892 = vpack.c.b16 %v750, %v749
  %v893 = vpack.c.b16 %v752, %v751
  %v894 = vpack.c.b16 %v754, %v753
  %v895 = vpack.c.b16 %v756, %v755
  %v896 = vpack.c.b16 %v758, %v757
  %v897 = vpack.c.b16 %v760, %v759
  %v898 = vpack.c.b16 %v762, %v761
  %v899 = vpack.c.b16 %v764, %v763
  %v900 = vpack.c.b16 %v766, %v765
  %v901 = vpack.c.b16 %v768, %v767
  %v902 = vpack.c.b16 %v770, %v769
  %v903 = vpack.c.b16 %v772, %v771
  %v904 = vpack.c.b16 %v774, %v773
  %v905 = vpack.c.b16 %v776, %v775
  %v906 = vpack.c.b16 %v778, %v777
  %v907 = vpack.c.b16 %v780, %v779
  %v908 = vpack.c.b16 %v782, %v781
  %v909 = vpack.c.b16 %v784, %v783
  %v910 = vpack.c.b16 %v786, %v785
  %v911 = vpack.c.b16 %v788, %v787
  %v912 = vpack.c.b16 %v790, %v789
  %v913 = vpack.c.b16 %v792, %v791
  %v914 = vpack.c.b16 %v794, %v793
  %v915 = vpack.c.b16 %v796, %v795
  %v916 = vpack.c.b16 %v798, %v797
  %v917 = vpack.c.b16 %v800, %v799
  %v918 = vpack.c.b16 %v802, %v801
  %v919 = vpack.c.b16 %v804, %v803
  %v920 = vpack.c.b16 %v806, %v805
  %v921 = vpack.c.b16 %v808, %v807
  %v922 = vpack.c.b16 %v810, %v809
  %v923 = vpack.c.b16 %v812, %v811
  %v924 = vpack.c.b16 %v814, %v813
  %v925 = vpack.c.b16 %v816, %v815
  %v926 = vpack.c.b16 %v818, %v817
  %v927 = vpack.c.b16 %v820, %v819
  %v928 = vpack.c.b16 %v822, %v821
  %v929 = vpack.c.b16 %v824, %v823
  %v930 = vpack.c.b16 %v826, %v825
  %v931 = vpack.c.b16 %v828, %v827
  %v932 = vpack.c.b16 %v830, %v829
  %v933 = vpack.c.b16 %v832, %v831
  %v934 = vpack.c.b16 %v834, %v833
  %v935 = vpack.c.b16 %v836, %v835
  %v936 = vpack.c.b16 %v838, %v837
  %v937 = vpack.c.b16 %v840, %v839
  %v938 = vpack.c.b16 %v842, %v841
  %v939 = vpack.c.b16 %v844, %v843
  %v940 = vpack.c.b16 %v846, %v845
  %v941 = vpack.c.b16 %v848, %v847
  %v942 = vpack.c.b16 %v850, %v849
  %v943 = vpack.c.b16 %v852, %v851
  %v944 = vpack.c.b16 %v854, %v853
  %v945 = vpack.c.b16 %v856, %v855
  %v946 = vpack.c.b16 %v858, %v857
  %v947 = vpack.c.b16 %v860, %v859
  %v948 = vpack.c.b16 %v862, %v861
  %v949 = vpack.c.b16 %v864, %v863
  %v950 = vpack.c.b16 %v866, %v865
  %v951 = vpack.c.b16 %v868, %v867
  %v952 = vpack.c.b16 %v870, %v869
  %v953 = vpack.c.b16 %v872, %v871
  %v954 = vpack.c.b16 %v874, %v873
  %v955 = vpack.c.b16 %v876, %v875
  %v956 = vpack.c.b16 %v878, %v877
  %v957 = vpack.c.b16 %v880, %v879
  %v958 = vpack.c.b16 %v882, %v881
  %v959 = vpack.c.b16 %v884, %v883
  %v960 = vpack.c.b16 %v886, %v885
  %v961 = vpack.c.b16 %v888, %v887
  %v962 = vpack.c.b16 %v890, %v889
  %1035 = vmatpush.bf16.msra.mxu0 %v898
  %1036 = vmatpush.bf16.msra.mxu0 %v897
  %1037 = vmatpush.bf16.msra.mxu0 %v896
  %1038 = vmatpush.bf16.msra.mxu0 %v895
  %1039 = vmatpush.bf16.msra.mxu0 %v894
  %1040 = vmatpush.bf16.msra.mxu0 %v893
  %1041 = vmatpush.bf16.msra.mxu0 %v892
  %1042 = vmatpush.bf16.msra.mxu0 %v891
  %1043 = vmatmul.bf16.gmra.mxu0 %v459
  %v1044 = vpop.f32.mrf.mxu0
  %v1045 = vadd.f32 0.0, %v1044
  %v1046 = vpop.f32.mrf.mxu0
  %v1047 = vadd.f32 0.0, %v1046
  %1048 = vmatmul.bf16.gmra.mxu0 %v468
  %v1049 = vpop.f32.mrf.mxu0
  %v1050 = vadd.f32 0.0, %v1049
  %v1051 = vpop.f32.mrf.mxu0
  %v1052 = vadd.f32 0.0, %v1051
  %1053 = vmatmul.bf16.gmra.mxu0 %v477
  %v1054 = vpop.f32.mrf.mxu0
  %v1055 = vadd.f32 0.0, %v1054
  %v1056 = vpop.f32.mrf.mxu0
  %v1057 = vadd.f32 0.0, %v1056
  %1058 = vmatmul.bf16.gmra.mxu0 %v486
  %v1059 = vpop.f32.mrf.mxu0
  %v1060 = vadd.f32 0.0, %v1059
  %v1061 = vpop.f32.mrf.mxu0
  %v1062 = vadd.f32 0.0, %v1061
  %1063 = vmatmul.bf16.gmra.mxu0 %v495
  %v1064 = vpop.f32.mrf.mxu0
  %v1065 = vadd.f32 0.0, %v1064
  %v1066 = vpop.f32.mrf.mxu0
  %v1067 = vadd.f32 0.0, %v1066
  %1068 = vmatmul.bf16.gmra.mxu0 %v504
  %v1069 = vpop.f32.mrf.mxu0
  %v1070 = vadd.f32 0.0, %v1069
  %v1071 = vpop.f32.mrf.mxu0
  %v1072 = vadd.f32 0.0, %v1071
  %1073 = vmatmul.bf16.gmra.mxu0 %v513
  %v1074 = vpop.f32.mrf.mxu0
  %v1075 = vadd.f32 0.0, %v1074
  %v1076 = vpop.f32.mrf.mxu0
  %v1077 = vadd.f32 0.0, %v1076
  %1078 = vmatmul.bf16.gmra.mxu0 %v522
  %v1079 = vpop.f32.mrf.mxu0
  %v1080 = vadd.f32 0.0, %v1079
  %v1081 = vpop.f32.mrf.mxu0
  %v1082 = vadd.f32 0.0, %v1081
  %1083 = vdwg.mxu0
  %1084 = vmatpush.bf16.msra.mxu0 %v906
  %1085 = vmatpush.bf16.msra.mxu0 %v905
  %1086 = vmatpush.bf16.msra.mxu0 %v904
  %1087 = vmatpush.bf16.msra.mxu0 %v903
  %1088 = vmatpush.bf16.msra.mxu0 %v902
  %1089 = vmatpush.bf16.msra.mxu0 %v901
  %1090 = vmatpush.bf16.msra.mxu0 %v900
  %1091 = vmatpush.bf16.msra.mxu0 %v899
  %1092 = vmatmul.bf16.gmra.mxu0 %v460
  %v1093 = vpop.f32.mrf.mxu0
  %v1094 = vadd.f32 %v1045, %v1093
  %v1095 = vpop.f32.mrf.mxu0
  %v1096 = vadd.f32 %v1047, %v1095
  %1097 = vmatmul.bf16.gmra.mxu0 %v469
  %v1098 = vpop.f32.mrf.mxu0
  %v1099 = vadd.f32 %v1050, %v1098
  %v1100 = vpop.f32.mrf.mxu0
  %v1101 = vadd.f32 %v1052, %v1100
  %1102 = vmatmul.bf16.gmra.mxu0 %v478
  %v1103 = vpop.f32.mrf.mxu0
  %v1104 = vadd.f32 %v1055, %v1103
  %v1105 = vpop.f32.mrf.mxu0
  %v1106 = vadd.f32 %v1057, %v1105
  %1107 = vmatmul.bf16.gmra.mxu0 %v487
  %v1108 = vpop.f32.mrf.mxu0
  %v1109 = vadd.f32 %v1060, %v1108
  %v1110 = vpop.f32.mrf.mxu0
  %v1111 = vadd.f32 %v1062, %v1110
  %1112 = vmatmul.bf16.gmra.mxu0 %v496
  %v1113 = vpop.f32.mrf.mxu0
  %v1114 = vadd.f32 %v1065, %v1113
  %v1115 = vpop.f32.mrf.mxu0
  %v1116 = vadd.f32 %v1067, %v1115
  %1117 = vmatmul.bf16.gmra.mxu0 %v505
  %v1118 = vpop.f32.mrf.mxu0
  %v1119 = vadd.f32 %v1070, %v1118
  %v1120 = vpop.f32.mrf.mxu0
  %v1121 = vadd.f32 %v1072, %v1120
  %1122 = vmatmul.bf16.gmra.mxu0 %v514
  %v1123 = vpop.f32.mrf.mxu0
  %v1124 = vadd.f32 %v1075, %v1123
  %v1125 = vpop.f32.mrf.mxu0
  %v1126 = vadd.f32 %v1077, %v1125
  %1127 = vmatmul.bf16.gmra.mxu0 %v523
  %v1128 = vpop.f32.mrf.mxu0
  %v1129 = vadd.f32 %v1080, %v1128
  %v1130 = vpop.f32.mrf.mxu0
  %v1131 = vadd.f32 %v1082, %v1130
  %1132 = vdwg.mxu0
  %1133 = vmatpush.bf16.msra.mxu0 %v914
  %1134 = vmatpush.bf16.msra.mxu0 %v913
  %1135 = vmatpush.bf16.msra.mxu0 %v912
  %1136 = vmatpush.bf16.msra.mxu0 %v911
  %1137 = vmatpush.bf16.msra.mxu0 %v910
  %1138 = vmatpush.bf16.msra.mxu0 %v909
  %1139 = vmatpush.bf16.msra.mxu0 %v908
  %1140 = vmatpush.bf16.msra.mxu0 %v907
  %1141 = vmatmul.bf16.gmra.mxu0 %v461
  %v1142 = vpop.f32.mrf.mxu0
  %v1143 = vadd.f32 %v1094, %v1142
  %v1144 = vpop.f32.mrf.mxu0
  %v1145 = vadd.f32 %v1096, %v1144
  %1146 = vmatmul.bf16.gmra.mxu0 %v470
  %v1147 = vpop.f32.mrf.mxu0
  %v1148 = vadd.f32 %v1099, %v1147
  %v1149 = vpop.f32.mrf.mxu0
  %v1150 = vadd.f32 %v1101, %v1149
  %1151 = vmatmul.bf16.gmra.mxu0 %v479
  %v1152 = vpop.f32.mrf.mxu0
  %v1153 = vadd.f32 %v1104, %v1152
  %v1154 = vpop.f32.mrf.mxu0
  %v1155 = vadd.f32 %v1106, %v1154
  %1156 = vmatmul.bf16.gmra.mxu0 %v488
  %v1157 = vpop.f32.mrf.mxu0
  %v1158 = vadd.f32 %v1109, %v1157
  %v1159 = vpop.f32.mrf.mxu0
  %v1160 = vadd.f32 %v1111, %v1159
  %1161 = vmatmul.bf16.gmra.mxu0 %v497
  %v1162 = vpop.f32.mrf.mxu0
  %v1163 = vadd.f32 %v1114, %v1162
  %v1164 = vpop.f32.mrf.mxu0
  %v1165 = vadd.f32 %v1116, %v1164
  %1166 = vmatmul.bf16.gmra.mxu0 %v506
  %v1167 = vpop.f32.mrf.mxu0
  %v1168 = vadd.f32 %v1119, %v1167
  %v1169 = vpop.f32.mrf.mxu0
  %v1170 = vadd.f32 %v1121, %v1169
  %1171 = vmatmul.bf16.gmra.mxu0 %v515
  %v1172 = vpop.f32.mrf.mxu0
  %v1173 = vadd.f32 %v1124, %v1172
  %v1174 = vpop.f32.mrf.mxu0
  %v1175 = vadd.f32 %v1126, %v1174
  %1176 = vmatmul.bf16.gmra.mxu0 %v524
  %v1177 = vpop.f32.mrf.mxu0
  %v1178 = vadd.f32 %v1129, %v1177
  %v1179 = vpop.f32.mrf.mxu0
  %v1180 = vadd.f32 %v1131, %v1179
  %1181 = vdwg.mxu0
  %1182 = vmatpush.bf16.msra.mxu0 %v922
  %1183 = vmatpush.bf16.msra.mxu0 %v921
  %1184 = vmatpush.bf16.msra.mxu0 %v920
  %1185 = vmatpush.bf16.msra.mxu0 %v919
  %1186 = vmatpush.bf16.msra.mxu0 %v918
  %1187 = vmatpush.bf16.msra.mxu0 %v917
  %1188 = vmatpush.bf16.msra.mxu0 %v916
  %1189 = vmatpush.bf16.msra.mxu0 %v915
  %1190 = vmatmul.bf16.gmra.mxu0 %v462
  %v1191 = vpop.f32.mrf.mxu0
  %v1192 = vadd.f32 %v1143, %v1191
  %v1193 = vpop.f32.mrf.mxu0
  %v1194 = vadd.f32 %v1145, %v1193
  %1195 = vmatmul.bf16.gmra.mxu0 %v471
  %v1196 = vpop.f32.mrf.mxu0
  %v1197 = vadd.f32 %v1148, %v1196
  %v1198 = vpop.f32.mrf.mxu0
  %v1199 = vadd.f32 %v1150, %v1198
  %1200 = vmatmul.bf16.gmra.mxu0 %v480
  %v1201 = vpop.f32.mrf.mxu0
  %v1202 = vadd.f32 %v1153, %v1201
  %v1203 = vpop.f32.mrf.mxu0
  %v1204 = vadd.f32 %v1155, %v1203
  %1205 = vmatmul.bf16.gmra.mxu0 %v489
  %v1206 = vpop.f32.mrf.mxu0
  %v1207 = vadd.f32 %v1158, %v1206
  %v1208 = vpop.f32.mrf.mxu0
  %v1209 = vadd.f32 %v1160, %v1208
  %1210 = vmatmul.bf16.gmra.mxu0 %v498
  %v1211 = vpop.f32.mrf.mxu0
  %v1212 = vadd.f32 %v1163, %v1211
  %v1213 = vpop.f32.mrf.mxu0
  %v1214 = vadd.f32 %v1165, %v1213
  %1215 = vmatmul.bf16.gmra.mxu0 %v507
  %v1216 = vpop.f32.mrf.mxu0
  %v1217 = vadd.f32 %v1168, %v1216
  %v1218 = vpop.f32.mrf.mxu0
  %v1219 = vadd.f32 %v1170, %v1218
  %1220 = vmatmul.bf16.gmra.mxu0 %v516
  %v1221 = vpop.f32.mrf.mxu0
  %v1222 = vadd.f32 %v1173, %v1221
  %v1223 = vpop.f32.mrf.mxu0
  %v1224 = vadd.f32 %v1175, %v1223
  %1225 = vmatmul.bf16.gmra.mxu0 %v525
  %v1226 = vpop.f32.mrf.mxu0
  %v1227 = vadd.f32 %v1178, %v1226
  %v1228 = vpop.f32.mrf.mxu0
  %v1229 = vadd.f32 %v1180, %v1228
  %1230 = vdwg.mxu0
  %1231 = vmatpush.bf16.msra.mxu0 %v930
  %1232 = vmatpush.bf16.msra.mxu0 %v929
  %1233 = vmatpush.bf16.msra.mxu0 %v928
  %1234 = vmatpush.bf16.msra.mxu0 %v927
  %1235 = vmatpush.bf16.msra.mxu0 %v926
  %1236 = vmatpush.bf16.msra.mxu0 %v925
  %1237 = vmatpush.bf16.msra.mxu0 %v924
  %1238 = vmatpush.bf16.msra.mxu0 %v923
  %1239 = vmatmul.bf16.gmra.mxu0 %v463
  %v1240 = vpop.f32.mrf.mxu0
  %v1241 = vadd.f32 %v1192, %v1240
  %v1242 = vpop.f32.mrf.mxu0
  %v1243 = vadd.f32 %v1194, %v1242
  %1244 = vmatmul.bf16.gmra.mxu0 %v472
  %v1245 = vpop.f32.mrf.mxu0
  %v1246 = vadd.f32 %v1197, %v1245
  %v1247 = vpop.f32.mrf.mxu0
  %v1248 = vadd.f32 %v1199, %v1247
  %1249 = vmatmul.bf16.gmra.mxu0 %v481
  %v1250 = vpop.f32.mrf.mxu0
  %v1251 = vadd.f32 %v1202, %v1250
  %v1252 = vpop.f32.mrf.mxu0
  %v1253 = vadd.f32 %v1204, %v1252
  %1254 = vmatmul.bf16.gmra.mxu0 %v490
  %v1255 = vpop.f32.mrf.mxu0
  %v1256 = vadd.f32 %v1207, %v1255
  %v1257 = vpop.f32.mrf.mxu0
  %v1258 = vadd.f32 %v1209, %v1257
  %1259 = vmatmul.bf16.gmra.mxu0 %v499
  %v1260 = vpop.f32.mrf.mxu0
  %v1261 = vadd.f32 %v1212, %v1260
  %v1262 = vpop.f32.mrf.mxu0
  %v1263 = vadd.f32 %v1214, %v1262
  %1264 = vmatmul.bf16.gmra.mxu0 %v508
  %v1265 = vpop.f32.mrf.mxu0
  %v1266 = vadd.f32 %v1217, %v1265
  %v1267 = vpop.f32.mrf.mxu0
  %v1268 = vadd.f32 %v1219, %v1267
  %1269 = vmatmul.bf16.gmra.mxu0 %v517
  %v1270 = vpop.f32.mrf.mxu0
  %v1271 = vadd.f32 %v1222, %v1270
  %v1272 = vpop.f32.mrf.mxu0
  %v1273 = vadd.f32 %v1224, %v1272
  %1274 = vmatmul.bf16.gmra.mxu0 %v526
  %v1275 = vpop.f32.mrf.mxu0
  %v1276 = vadd.f32 %v1227, %v1275
  %v1277 = vpop.f32.mrf.mxu0
  %v1278 = vadd.f32 %v1229, %v1277
  %1279 = vdwg.mxu0
  %1280 = vmatpush.bf16.msra.mxu0 %v938
  %1281 = vmatpush.bf16.msra.mxu0 %v937
  %1282 = vmatpush.bf16.msra.mxu0 %v936
  %1283 = vmatpush.bf16.msra.mxu0 %v935
  %1284 = vmatpush.bf16.msra.mxu0 %v934
  %1285 = vmatpush.bf16.msra.mxu0 %v933
  %1286 = vmatpush.bf16.msra.mxu0 %v932
  %1287 = vmatpush.bf16.msra.mxu0 %v931
  %1288 = vmatmul.bf16.gmra.mxu0 %v464
  %v1289 = vpop.f32.mrf.mxu0
  %v1290 = vadd.f32 %v1241, %v1289
  %v1291 = vpop.f32.mrf.mxu0
  %v1292 = vadd.f32 %v1243, %v1291
  %1293 = vmatmul.bf16.gmra.mxu0 %v473
  %v1294 = vpop.f32.mrf.mxu0
  %v1295 = vadd.f32 %v1246, %v1294
  %v1296 = vpop.f32.mrf.mxu0
  %v1297 = vadd.f32 %v1248, %v1296
  %1298 = vmatmul.bf16.gmra.mxu0 %v482
  %v1299 = vpop.f32.mrf.mxu0
  %v1300 = vadd.f32 %v1251, %v1299
  %v1301 = vpop.f32.mrf.mxu0
  %v1302 = vadd.f32 %v1253, %v1301
  %1303 = vmatmul.bf16.gmra.mxu0 %v491
  %v1304 = vpop.f32.mrf.mxu0
  %v1305 = vadd.f32 %v1256, %v1304
  %v1306 = vpop.f32.mrf.mxu0
  %v1307 = vadd.f32 %v1258, %v1306
  %1308 = vmatmul.bf16.gmra.mxu0 %v500
  %v1309 = vpop.f32.mrf.mxu0
  %v1310 = vadd.f32 %v1261, %v1309
  %v1311 = vpop.f32.mrf.mxu0
  %v1312 = vadd.f32 %v1263, %v1311
  %1313 = vmatmul.bf16.gmra.mxu0 %v509
  %v1314 = vpop.f32.mrf.mxu0
  %v1315 = vadd.f32 %v1266, %v1314
  %v1316 = vpop.f32.mrf.mxu0
  %v1317 = vadd.f32 %v1268, %v1316
  %1318 = vmatmul.bf16.gmra.mxu0 %v518
  %v1319 = vpop.f32.mrf.mxu0
  %v1320 = vadd.f32 %v1271, %v1319
  %v1321 = vpop.f32.mrf.mxu0
  %v1322 = vadd.f32 %v1273, %v1321
  %1323 = vmatmul.bf16.gmra.mxu0 %v527
  %v1324 = vpop.f32.mrf.mxu0
  %v1325 = vadd.f32 %v1276, %v1324
  %v1326 = vpop.f32.mrf.mxu0
  %v1327 = vadd.f32 %v1278, %v1326
  %1328 = vdwg.mxu0
  %1329 = vmatpush.bf16.msra.mxu0 %v946
  %1330 = vmatpush.bf16.msra.mxu0 %v945
  %1331 = vmatpush.bf16.msra.mxu0 %v944
  %1332 = vmatpush.bf16.msra.mxu0 %v943
  %1333 = vmatpush.bf16.msra.mxu0 %v942
  %1334 = vmatpush.bf16.msra.mxu0 %v941
  %1335 = vmatpush.bf16.msra.mxu0 %v940
  %1336 = vmatpush.bf16.msra.mxu0 %v939
  %1337 = vmatmul.bf16.gmra.mxu0 %v465
  %v1338 = vpop.f32.mrf.mxu0
  %v1339 = vadd.f32 %v1290, %v1338
  %v1340 = vpop.f32.mrf.mxu0
  %v1341 = vadd.f32 %v1292, %v1340
  %1342 = vmatmul.bf16.gmra.mxu0 %v474
  %v1343 = vpop.f32.mrf.mxu0
  %v1344 = vadd.f32 %v1295, %v1343
  %v1345 = vpop.f32.mrf.mxu0
  %v1346 = vadd.f32 %v1297, %v1345
  %1347 = vmatmul.bf16.gmra.mxu0 %v483
  %v1348 = vpop.f32.mrf.mxu0
  %v1349 = vadd.f32 %v1300, %v1348
  %v1350 = vpop.f32.mrf.mxu0
  %v1351 = vadd.f32 %v1302, %v1350
  %1352 = vmatmul.bf16.gmra.mxu0 %v492
  %v1353 = vpop.f32.mrf.mxu0
  %v1354 = vadd.f32 %v1305, %v1353
  %v1355 = vpop.f32.mrf.mxu0
  %v1356 = vadd.f32 %v1307, %v1355
  %1357 = vmatmul.bf16.gmra.mxu0 %v501
  %v1358 = vpop.f32.mrf.mxu0
  %v1359 = vadd.f32 %v1310, %v1358
  %v1360 = vpop.f32.mrf.mxu0
  %v1361 = vadd.f32 %v1312, %v1360
  %1362 = vmatmul.bf16.gmra.mxu0 %v510
  %v1363 = vpop.f32.mrf.mxu0
  %v1364 = vadd.f32 %v1315, %v1363
  %v1365 = vpop.f32.mrf.mxu0
  %v1366 = vadd.f32 %v1317, %v1365
  %1367 = vmatmul.bf16.gmra.mxu0 %v519
  %v1368 = vpop.f32.mrf.mxu0
  %v1369 = vadd.f32 %v1320, %v1368
  %v1370 = vpop.f32.mrf.mxu0
  %v1371 = vadd.f32 %v1322, %v1370
  %1372 = vmatmul.bf16.gmra.mxu0 %v528
  %v1373 = vpop.f32.mrf.mxu0
  %v1374 = vadd.f32 %v1325, %v1373
  %v1375 = vpop.f32.mrf.mxu0
  %v1376 = vadd.f32 %v1327, %v1375
  %1377 = vdwg.mxu0
  %1378 = vmatpush.bf16.msra.mxu0 %v954
  %1379 = vmatpush.bf16.msra.mxu0 %v953
  %1380 = vmatpush.bf16.msra.mxu0 %v952
  %1381 = vmatpush.bf16.msra.mxu0 %v951
  %1382 = vmatpush.bf16.msra.mxu0 %v950
  %1383 = vmatpush.bf16.msra.mxu0 %v949
  %1384 = vmatpush.bf16.msra.mxu0 %v948
  %1385 = vmatpush.bf16.msra.mxu0 %v947
  %1386 = vmatmul.bf16.gmra.mxu0 %v466
  %v1387 = vpop.f32.mrf.mxu0
  %v1388 = vadd.f32 %v1339, %v1387
  %v1389 = vpop.f32.mrf.mxu0
  %v1390 = vadd.f32 %v1341, %v1389
  %1391 = vmatmul.bf16.gmra.mxu0 %v475
  %v1392 = vpop.f32.mrf.mxu0
  %v1393 = vadd.f32 %v1344, %v1392
  %v1394 = vpop.f32.mrf.mxu0
  %v1395 = vadd.f32 %v1346, %v1394
  %1396 = vmatmul.bf16.gmra.mxu0 %v484
  %v1397 = vpop.f32.mrf.mxu0
  %v1398 = vadd.f32 %v1349, %v1397
  %v1399 = vpop.f32.mrf.mxu0
  %v1400 = vadd.f32 %v1351, %v1399
  %1401 = vmatmul.bf16.gmra.mxu0 %v493
  %v1402 = vpop.f32.mrf.mxu0
  %v1403 = vadd.f32 %v1354, %v1402
  %v1404 = vpop.f32.mrf.mxu0
  %v1405 = vadd.f32 %v1356, %v1404
  %1406 = vmatmul.bf16.gmra.mxu0 %v502
  %v1407 = vpop.f32.mrf.mxu0
  %v1408 = vadd.f32 %v1359, %v1407
  %v1409 = vpop.f32.mrf.mxu0
  %v1410 = vadd.f32 %v1361, %v1409
  %1411 = vmatmul.bf16.gmra.mxu0 %v511
  %v1412 = vpop.f32.mrf.mxu0
  %v1413 = vadd.f32 %v1364, %v1412
  %v1414 = vpop.f32.mrf.mxu0
  %v1415 = vadd.f32 %v1366, %v1414
  %1416 = vmatmul.bf16.gmra.mxu0 %v520
  %v1417 = vpop.f32.mrf.mxu0
  %v1418 = vadd.f32 %v1369, %v1417
  %v1419 = vpop.f32.mrf.mxu0
  %v1420 = vadd.f32 %v1371, %v1419
  %1421 = vmatmul.bf16.gmra.mxu0 %v529
  %v1422 = vpop.f32.mrf.mxu0
  %v1423 = vadd.f32 %v1374, %v1422
  %v1424 = vpop.f32.mrf.mxu0
  %v1425 = vadd.f32 %v1376, %v1424
  %1426 = vdwg.mxu0
  %1427 = vmatpush.bf16.msra.mxu0 %v962
  %1428 = vmatpush.bf16.msra.mxu0 %v961
  %1429 = vmatpush.bf16.msra.mxu0 %v960
  %1430 = vmatpush.bf16.msra.mxu0 %v959
  %1431 = vmatpush.bf16.msra.mxu0 %v958
  %1432 = vmatpush.bf16.msra.mxu0 %v957
  %1433 = vmatpush.bf16.msra.mxu0 %v956
  %1434 = vmatpush.bf16.msra.mxu0 %v955
  %1435 = vmatmul.bf16.gmra.mxu0 %v467
  %v1436 = vpop.f32.mrf.mxu0
  %v1437 = vadd.f32 %v1388, %v1436
  %v1438 = vpop.f32.mrf.mxu0
  %v1439 = vadd.f32 %v1390, %v1438
  %1440 = vmatmul.bf16.gmra.mxu0 %v476
  %v1441 = vpop.f32.mrf.mxu0
  %v1442 = vadd.f32 %v1393, %v1441
  %v1443 = vpop.f32.mrf.mxu0
  %v1444 = vadd.f32 %v1395, %v1443
  %1445 = vmatmul.bf16.gmra.mxu0 %v485
  %v1446 = vpop.f32.mrf.mxu0
  %v1447 = vadd.f32 %v1398, %v1446
  %v1448 = vpop.f32.mrf.mxu0
  %v1449 = vadd.f32 %v1400, %v1448
  %1450 = vmatmul.bf16.gmra.mxu0 %v494
  %v1451 = vpop.f32.mrf.mxu0
  %v1452 = vadd.f32 %v1403, %v1451
  %v1453 = vpop.f32.mrf.mxu0
  %v1454 = vadd.f32 %v1405, %v1453
  %1455 = vmatmul.bf16.gmra.mxu0 %v503
  %v1456 = vpop.f32.mrf.mxu0
  %v1457 = vadd.f32 %v1408, %v1456
  %v1458 = vpop.f32.mrf.mxu0
  %v1459 = vadd.f32 %v1410, %v1458
  %1460 = vmatmul.bf16.gmra.mxu0 %v512
  %v1461 = vpop.f32.mrf.mxu0
  %v1462 = vadd.f32 %v1413, %v1461
  %v1463 = vpop.f32.mrf.mxu0
  %v1464 = vadd.f32 %v1415, %v1463
  %1465 = vmatmul.bf16.gmra.mxu0 %v521
  %v1466 = vpop.f32.mrf.mxu0
  %v1467 = vadd.f32 %v1418, %v1466
  %v1468 = vpop.f32.mrf.mxu0
  %v1469 = vadd.f32 %v1420, %v1468
  %1470 = vmatmul.bf16.gmra.mxu0 %v530
  %v1471 = vpop.f32.mrf.mxu0
  %v1472 = vadd.f32 %v1423, %v1471
  %v1473 = vpop.f32.mrf.mxu0
  %v1474 = vadd.f32 %v1425, %v1473
  %1475 = vdwg.mxu0
  %v1476 = vpack.c.bf16 %v1437, %v1437
  %v1477 = vpack.c.bf16 %v1439, %v1439
  %v1478 = vpack.c.bf16 %v1442, %v1442
  %v1479 = vpack.c.bf16 %v1444, %v1444
  %v1480 = vpack.c.bf16 %v1447, %v1447
  %v1481 = vpack.c.bf16 %v1449, %v1449
  %v1482 = vpack.c.bf16 %v1452, %v1452
  %v1483 = vpack.c.bf16 %v1454, %v1454
  %v1484 = vpack.c.bf16 %v1457, %v1457
  %v1485 = vpack.c.bf16 %v1459, %v1459
  %v1486 = vpack.c.bf16 %v1462, %v1462
  %v1487 = vpack.c.bf16 %v1464, %v1464
  %v1488 = vpack.c.bf16 %v1467, %v1467
  %v1489 = vpack.c.bf16 %v1469, %v1469
  %v1490 = vpack.c.bf16 %v1472, %v1472
  %v1491 = vpack.c.bf16 %v1474, %v1474
  %1492 = vst [vmem:[%s2] sm:$0xf] %v1476
  %1493 = vst [vmem:[%s2 + $0x4] sm:$0xf] %v1477
  %1494 = vst [vmem:[%s2 + $0x8] sm:$0xf] %v1478
  %1495 = vst [vmem:[%s2 + $0xc] sm:$0xf] %v1479
  %1496 = vst [vmem:[%s2 + $0x10] sm:$0xf] %v1480
  %1497 = vst [vmem:[%s2 + $0x14] sm:$0xf] %v1481
  %1498 = vst [vmem:[%s2 + $0x18] sm:$0xf] %v1482
  %1499 = vst [vmem:[%s2 + $0x1c] sm:$0xf] %v1483
  %1500 = vst [vmem:[%s2 + $0x20] sm:$0xf] %v1484
  %1501 = vst [vmem:[%s2 + $0x24] sm:$0xf] %v1485
  %1502 = vst [vmem:[%s2 + $0x28] sm:$0xf] %v1486
  %1503 = vst [vmem:[%s2 + $0x2c] sm:$0xf] %v1487
  %1504 = vst [vmem:[%s2 + $0x30] sm:$0xf] %v1488
  %1505 = vst [vmem:[%s2 + $0x34] sm:$0xf] %v1489
  %1506 = vst [vmem:[%s2 + $0x38] sm:$0xf] %v1490
  %1507 = vst [vmem:[%s2 + $0x3c] sm:$0xf] %v1491
  // Predicated region
  $region10: #{closed_call.53} parent=0 // pred_check
    _
  $region11: #{closed_call.53} parent=0 // pred_check_branch
    %1509 = sbr.rel (0) target = $region13
  $region12: #{closed_call.53} parent=0 // pred_region
    _
  $region13: #{closed_call.53} parent=0 // pred_fallthru
    _
  // Predicated region
  $region14: #{closed_call.53} parent=0 // pred_check
    _
  $region15: #{closed_call.53} parent=0 // pred_check_branch
    %1511 = sbr.rel (0) target = $region17
  $region16: #{closed_call.53} parent=0 // pred_region
    _
  $region17: #{closed_call.53} parent=0 // pred_fallthru
    _

// kernel: cnn_model_forward.12
$region0: #{cnn_model_forward.12}
  #allocation0 [shape = 'u32[]', space=smem, size = 0x4, offset = 0x4, fixed_abs, tag = 'smem constant byte address 0x4 - core index']
  #allocation1 [shape = 'u32[72,128]{1,0:T(1,128)}', space=vmem, size = 0x9000, scoped, tag = 'internal scratch']
  %s0 = inlined_call_operand.vmem [shape: bf16[128,256], index: 0, kind: input, shape index: {}]
  %s1 = inlined_call_operand.vmem [shape: bf16[256,128], index: 1, kind: input, shape index: {}]
  %s2 = inlined_call_operand.vmem [shape: f32[1,256], index: 2, kind: input, shape index: {}]
  %s3 = inlined_call_operand.vmem [shape: f32[1,256], index: 3, kind: input, shape index: {}]
  %s4 = inlined_call_operand.vmem [shape: bf16[128,128], index: 4, kind: output, shape index: {}]
  %s5 = sld [smem:[#allocation0]]
  $region26: #{cnn_model_forward.12} parent=0
    _
  %s7 = ssub.s32 1, %s5
  %s8 = scalar_select 0, %s7, %s5
  // Predicated region
  $region2: #{cnn_model_forward.12} parent=0 // pred_check
    _
  $region3: #{cnn_model_forward.12} parent=0 // pred_check_branch
    %10 = sbr.rel (0) target = $region5
  $region4: #{cnn_model_forward.12} parent=0 // pred_region
    _
  $region5: #{cnn_model_forward.12} parent=0 // pred_fallthru
    _
  // Predicated region
  $region6: #{cnn_model_forward.12} parent=0 // pred_check
    _
  $region7: #{cnn_model_forward.12} parent=0 // pred_check_branch
    %12 = sbr.rel (0) target = $region9
  $region8: #{cnn_model_forward.12} parent=0 // pred_region
    _
  $region9: #{cnn_model_forward.12} parent=0 // pred_fallthru
    _
  // Predicated region
  $region10: #{cnn_model_forward.12} parent=0 // pred_check
    _
  $region11: #{cnn_model_forward.12} parent=0 // pred_check_branch
    %14 = sbr.rel (0) target = $region13
  $region12: #{cnn_model_forward.12} parent=0 // pred_region
    _
  $region13: #{cnn_model_forward.12} parent=0 // pred_fallthru
    _
  // Predicated region
  $region14: #{cnn_model_forward.12} parent=0 // pred_check
    _
  $region15: #{cnn_model_forward.12} parent=0 // pred_check_branch
    %16 = sbr.rel (0) target = $region17
  $region16: #{cnn_model_forward.12} parent=0 // pred_region
    _
  $region17: #{cnn_model_forward.12} parent=0 // pred_fallthru
    _
  %v17 = vld [vmem:[%s0] sm:$0xff]
  %v18 = vld [vmem:[%s0 + $0x8] sm:$0xff]
  %v19 = vld [vmem:[%s0 + $0x10] sm:$0xff]
  %v20 = vld [vmem:[%s0 + $0x18] sm:$0xff]
  %v21 = vld [vmem:[%s0 + $0x20] sm:$0xff]
  %v22 = vld [vmem:[%s0 + $0x28] sm:$0xff]
  %v23 = vld [vmem:[%s0 + $0x30] sm:$0xff]
  %v24 = vld [vmem:[%s0 + $0x38] sm:$0xff]
  %v25 = vld [vmem:[%s0 + $0x40] sm:$0xff]
  %v26 = vld [vmem:[%s0 + $0x48] sm:$0xff]
  %v27 = vld [vmem:[%s0 + $0x50] sm:$0xff]
  %v28 = vld [vmem:[%s0 + $0x58] sm:$0xff]
  %v29 = vld [vmem:[%s0 + $0x60] sm:$0xff]
  %v30 = vld [vmem:[%s0 + $0x68] sm:$0xff]
  %v31 = vld [vmem:[%s0 + $0x70] sm:$0xff]
  %v32 = vld [vmem:[%s0 + $0x78] sm:$0xff]
  %v33 = vld [vmem:[%s2] sm:$0x3]
  %v35 = vperm.slane %v33, 0
  %v36 = vperm.slane %v33, 1
  %v39 = vpack.c.bf16 %v36, %v35
  %v40 = vld [vmem:[%s3] sm:$0x3]
  %v42 = vperm.slane %v40, 0
  %v43 = vperm.slane %v40, 1
  %v46 = vpack.c.bf16 %v43, %v42
  %v48 = vunpack.c.l.b16 %v39
  %v49 = vunpack.c.h.b16 %v39
  %v50 = vpack.c.b16 %v48, %v48
  %v51 = vpack.c.b16 %v49, %v49
  %v53 = vpack.i.b16 %v50, %v50
  %v55 = vperm.slane %v53, 0
  %v57 = vpack.i.b16 %v51, %v51
  %v59 = vperm.slane %v57, 0
  %v60 = vunpack.c.l.bf16 %v17
  %v61 = vunpack.c.h.bf16 %v17
  %v62 = vunpack.c.l.bf16 %v18
  %v63 = vunpack.c.h.bf16 %v18
  %v64 = vunpack.c.l.bf16 %v19
  %v65 = vunpack.c.h.bf16 %v19
  %v66 = vunpack.c.l.bf16 %v20
  %v67 = vunpack.c.h.bf16 %v20
  %v68 = vunpack.c.l.bf16 %v21
  %v69 = vunpack.c.h.bf16 %v21
  %v70 = vunpack.c.l.bf16 %v22
  %v71 = vunpack.c.h.bf16 %v22
  %v72 = vunpack.c.l.bf16 %v23
  %v73 = vunpack.c.h.bf16 %v23
  %v74 = vunpack.c.l.bf16 %v24
  %v75 = vunpack.c.h.bf16 %v24
  %v76 = vunpack.c.l.bf16 %v25
  %v77 = vunpack.c.h.bf16 %v25
  %v78 = vunpack.c.l.bf16 %v26
  %v79 = vunpack.c.h.bf16 %v26
  %v80 = vunpack.c.l.bf16 %v27
  %v81 = vunpack.c.h.bf16 %v27
  %v82 = vunpack.c.l.bf16 %v28
  %v83 = vunpack.c.h.bf16 %v28
  %v84 = vunpack.c.l.bf16 %v29
  %v85 = vunpack.c.h.bf16 %v29
  %v86 = vunpack.c.l.bf16 %v30
  %v87 = vunpack.c.h.bf16 %v30
  %v88 = vunpack.c.l.bf16 %v31
  %v89 = vunpack.c.h.bf16 %v31
  %v90 = vunpack.c.l.bf16 %v32
  %v91 = vunpack.c.h.bf16 %v32
  %v92 = vunpack.c.l.bf16 %v55
  %v93 = vunpack.c.l.bf16 %v59
  %v94 = vmul.f32 %v60, %v92
  %v95 = vmul.f32 %v61, %v93
  %v96 = vmul.f32 %v62, %v92
  %v97 = vmul.f32 %v63, %v93
  %v98 = vmul.f32 %v64, %v92
  %v99 = vmul.f32 %v65, %v93
  %v100 = vmul.f32 %v66, %v92
  %v101 = vmul.f32 %v67, %v93
  %v102 = vmul.f32 %v68, %v92
  %v103 = vmul.f32 %v69, %v93
  %v104 = vmul.f32 %v70, %v92
  %v105 = vmul.f32 %v71, %v93
  %v106 = vmul.f32 %v72, %v92
  %v107 = vmul.f32 %v73, %v93
  %v108 = vmul.f32 %v74, %v92
  %v109 = vmul.f32 %v75, %v93
  %v110 = vmul.f32 %v76, %v92
  %v111 = vmul.f32 %v77, %v93
  %v112 = vmul.f32 %v78, %v92
  %v113 = vmul.f32 %v79, %v93
  %v114 = vmul.f32 %v80, %v92
  %v115 = vmul.f32 %v81, %v93
  %v116 = vmul.f32 %v82, %v92
  %v117 = vmul.f32 %v83, %v93
  %v118 = vmul.f32 %v84, %v92
  %v119 = vmul.f32 %v85, %v93
  %v120 = vmul.f32 %v86, %v92
  %v121 = vmul.f32 %v87, %v93
  %v122 = vmul.f32 %v88, %v92
  %v123 = vmul.f32 %v89, %v93
  %v124 = vmul.f32 %v90, %v92
  %v125 = vmul.f32 %v91, %v93
  %v126 = vpack.c.bf16 %v95, %v94
  %v127 = vpack.c.bf16 %v97, %v96
  %v128 = vpack.c.bf16 %v99, %v98
  %v129 = vpack.c.bf16 %v101, %v100
  %v130 = vpack.c.bf16 %v103, %v102
  %v131 = vpack.c.bf16 %v105, %v104
  %v132 = vpack.c.bf16 %v107, %v106
  %v133 = vpack.c.bf16 %v109, %v108
  %v134 = vpack.c.bf16 %v111, %v110
  %v135 = vpack.c.bf16 %v113, %v112
  %v136 = vpack.c.bf16 %v115, %v114
  %v137 = vpack.c.bf16 %v117, %v116
  %v138 = vpack.c.bf16 %v119, %v118
  %v139 = vpack.c.bf16 %v121, %v120
  %v140 = vpack.c.bf16 %v123, %v122
  %v141 = vpack.c.bf16 %v125, %v124
  %v143 = vunpack.c.l.b16 %v46
  %v144 = vunpack.c.h.b16 %v46
  %v145 = vpack.c.b16 %v143, %v143
  %v146 = vpack.c.b16 %v144, %v144
  %v148 = vpack.i.b16 %v145, %v145
  %v150 = vperm.slane %v148, 0
  %v152 = vpack.i.b16 %v146, %v146
  %v154 = vperm.slane %v152, 0
  %v155 = vunpack.c.l.bf16 %v126
  %v156 = vunpack.c.h.bf16 %v126
  %v157 = vunpack.c.l.bf16 %v127
  %v158 = vunpack.c.h.bf16 %v127
  %v159 = vunpack.c.l.bf16 %v128
  %v160 = vunpack.c.h.bf16 %v128
  %v161 = vunpack.c.l.bf16 %v129
  %v162 = vunpack.c.h.bf16 %v129
  %v163 = vunpack.c.l.bf16 %v130
  %v164 = vunpack.c.h.bf16 %v130
  %v165 = vunpack.c.l.bf16 %v131
  %v166 = vunpack.c.h.bf16 %v131
  %v167 = vunpack.c.l.bf16 %v132
  %v168 = vunpack.c.h.bf16 %v132
  %v169 = vunpack.c.l.bf16 %v133
  %v170 = vunpack.c.h.bf16 %v133
  %v171 = vunpack.c.l.bf16 %v134
  %v172 = vunpack.c.h.bf16 %v134
  %v173 = vunpack.c.l.bf16 %v135
  %v174 = vunpack.c.h.bf16 %v135
  %v175 = vunpack.c.l.bf16 %v136
  %v176 = vunpack.c.h.bf16 %v136
  %v177 = vunpack.c.l.bf16 %v137
  %v178 = vunpack.c.h.bf16 %v137
  %v179 = vunpack.c.l.bf16 %v138
  %v180 = vunpack.c.h.bf16 %v138
  %v181 = vunpack.c.l.bf16 %v139
  %v182 = vunpack.c.h.bf16 %v139
  %v183 = vunpack.c.l.bf16 %v140
  %v184 = vunpack.c.h.bf16 %v140
  %v185 = vunpack.c.l.bf16 %v141
  %v186 = vunpack.c.h.bf16 %v141
  %v187 = vunpack.c.l.bf16 %v150
  %v188 = vunpack.c.l.bf16 %v154
  %v189 = vadd.f32 %v155, %v187
  %v190 = vadd.f32 %v156, %v188
  %v191 = vadd.f32 %v157, %v187
  %v192 = vadd.f32 %v158, %v188
  %v193 = vadd.f32 %v159, %v187
  %v194 = vadd.f32 %v160, %v188
  %v195 = vadd.f32 %v161, %v187
  %v196 = vadd.f32 %v162, %v188
  %v197 = vadd.f32 %v163, %v187
  %v198 = vadd.f32 %v164, %v188
  %v199 = vadd.f32 %v165, %v187
  %v200 = vadd.f32 %v166, %v188
  %v201 = vadd.f32 %v167, %v187
  %v202 = vadd.f32 %v168, %v188
  %v203 = vadd.f32 %v169, %v187
  %v204 = vadd.f32 %v170, %v188
  %v205 = vadd.f32 %v171, %v187
  %v206 = vadd.f32 %v172, %v188
  %v207 = vadd.f32 %v173, %v187
  %v208 = vadd.f32 %v174, %v188
  %v209 = vadd.f32 %v175, %v187
  %v210 = vadd.f32 %v176, %v188
  %v211 = vadd.f32 %v177, %v187
  %v212 = vadd.f32 %v178, %v188
  %v213 = vadd.f32 %v179, %v187
  %v214 = vadd.f32 %v180, %v188
  %v215 = vadd.f32 %v181, %v187
  %v216 = vadd.f32 %v182, %v188
  %v217 = vadd.f32 %v183, %v187
  %v218 = vadd.f32 %v184, %v188
  %v219 = vadd.f32 %v185, %v187
  %v220 = vadd.f32 %v186, %v188
  %v221 = vpack.c.bf16 %v190, %v189
  %v222 = vpack.c.bf16 %v192, %v191
  %v223 = vpack.c.bf16 %v194, %v193
  %v224 = vpack.c.bf16 %v196, %v195
  %v225 = vpack.c.bf16 %v198, %v197
  %v226 = vpack.c.bf16 %v200, %v199
  %v227 = vpack.c.bf16 %v202, %v201
  %v228 = vpack.c.bf16 %v204, %v203
  %v229 = vpack.c.bf16 %v206, %v205
  %v230 = vpack.c.bf16 %v208, %v207
  %v231 = vpack.c.bf16 %v210, %v209
  %v232 = vpack.c.bf16 %v212, %v211
  %v233 = vpack.c.bf16 %v214, %v213
  %v234 = vpack.c.bf16 %v216, %v215
  %v235 = vpack.c.bf16 %v218, %v217
  %v236 = vpack.c.bf16 %v220, %v219
  %v237 = vunpack.c.l.bf16 %v221
  %v238 = vunpack.c.h.bf16 %v221
  %v239 = vunpack.c.l.bf16 %v222
  %v240 = vunpack.c.h.bf16 %v222
  %v241 = vunpack.c.l.bf16 %v223
  %v242 = vunpack.c.h.bf16 %v223
  %v243 = vunpack.c.l.bf16 %v224
  %v244 = vunpack.c.h.bf16 %v224
  %v245 = vunpack.c.l.bf16 %v225
  %v246 = vunpack.c.h.bf16 %v225
  %v247 = vunpack.c.l.bf16 %v226
  %v248 = vunpack.c.h.bf16 %v226
  %v249 = vunpack.c.l.bf16 %v227
  %v250 = vunpack.c.h.bf16 %v227
  %v251 = vunpack.c.l.bf16 %v228
  %v252 = vunpack.c.h.bf16 %v228
  %v253 = vunpack.c.l.bf16 %v229
  %v254 = vunpack.c.h.bf16 %v229
  %v255 = vunpack.c.l.bf16 %v230
  %v256 = vunpack.c.h.bf16 %v230
  %v257 = vunpack.c.l.bf16 %v231
  %v258 = vunpack.c.h.bf16 %v231
  %v259 = vunpack.c.l.bf16 %v232
  %v260 = vunpack.c.h.bf16 %v232
  %v261 = vunpack.c.l.bf16 %v233
  %v262 = vunpack.c.h.bf16 %v233
  %v263 = vunpack.c.l.bf16 %v234
  %v264 = vunpack.c.h.bf16 %v234
  %v265 = vunpack.c.l.bf16 %v235
  %v266 = vunpack.c.h.bf16 %v235
  %v267 = vunpack.c.l.bf16 %v236
  %v268 = vunpack.c.h.bf16 %v236
  %v269 = vmax.f32 %v237, 0.0
  %v270 = vmax.f32 %v238, 0.0
  %v271 = vmax.f32 %v239, 0.0
  %v272 = vmax.f32 %v240, 0.0
  %v273 = vmax.f32 %v241, 0.0
  %v274 = vmax.f32 %v242, 0.0
  %v275 = vmax.f32 %v243, 0.0
  %v276 = vmax.f32 %v244, 0.0
  %v277 = vmax.f32 %v245, 0.0
  %v278 = vmax.f32 %v246, 0.0
  %v279 = vmax.f32 %v247, 0.0
  %v280 = vmax.f32 %v248, 0.0
  %v281 = vmax.f32 %v249, 0.0
  %v282 = vmax.f32 %v250, 0.0
  %v283 = vmax.f32 %v251, 0.0
  %v284 = vmax.f32 %v252, 0.0
  %v285 = vmax.f32 %v253, 0.0
  %v286 = vmax.f32 %v254, 0.0
  %v287 = vmax.f32 %v255, 0.0
  %v288 = vmax.f32 %v256, 0.0
  %v289 = vmax.f32 %v257, 0.0
  %v290 = vmax.f32 %v258, 0.0
  %v291 = vmax.f32 %v259, 0.0
  %v292 = vmax.f32 %v260, 0.0
  %v293 = vmax.f32 %v261, 0.0
  %v294 = vmax.f32 %v262, 0.0
  %v295 = vmax.f32 %v263, 0.0
  %v296 = vmax.f32 %v264, 0.0
  %v297 = vmax.f32 %v265, 0.0
  %v298 = vmax.f32 %v266, 0.0
  %v299 = vmax.f32 %v267, 0.0
  %v300 = vmax.f32 %v268, 0.0
  %v301 = vpack.c.bf16 %v271, %v269
  %v302 = vpack.c.bf16 %v272, %v270
  %v303 = vpack.c.bf16 %v275, %v273
  %v304 = vpack.c.bf16 %v276, %v274
  %v305 = vpack.c.bf16 %v279, %v277
  %v306 = vpack.c.bf16 %v280, %v278
  %v307 = vpack.c.bf16 %v283, %v281
  %v308 = vpack.c.bf16 %v284, %v282
  %v309 = vpack.c.bf16 %v287, %v285
  %v310 = vpack.c.bf16 %v288, %v286
  %v311 = vpack.c.bf16 %v291, %v289
  %v312 = vpack.c.bf16 %v292, %v290
  %v313 = vpack.c.bf16 %v295, %v293
  %v314 = vpack.c.bf16 %v296, %v294
  %v315 = vpack.c.bf16 %v299, %v297
  %v316 = vpack.c.bf16 %v300, %v298
  %v317 = vld [vmem:[%s1] sm:$0xf]
  %v318 = vld [vmem:[%s1 + $0x4] sm:$0xf]
  %v319 = vld [vmem:[%s1 + $0x8] sm:$0xf]
  %v320 = vld [vmem:[%s1 + $0xc] sm:$0xf]
  %v321 = vld [vmem:[%s1 + $0x10] sm:$0xf]
  %v322 = vld [vmem:[%s1 + $0x14] sm:$0xf]
  %v323 = vld [vmem:[%s1 + $0x18] sm:$0xf]
  %v324 = vld [vmem:[%s1 + $0x1c] sm:$0xf]
  %v325 = vld [vmem:[%s1 + $0x20] sm:$0xf]
  %v326 = vld [vmem:[%s1 + $0x24] sm:$0xf]
  %v327 = vld [vmem:[%s1 + $0x28] sm:$0xf]
  %v328 = vld [vmem:[%s1 + $0x2c] sm:$0xf]
  %v329 = vld [vmem:[%s1 + $0x30] sm:$0xf]
  %v330 = vld [vmem:[%s1 + $0x34] sm:$0xf]
  %v331 = vld [vmem:[%s1 + $0x38] sm:$0xf]
  %v332 = vld [vmem:[%s1 + $0x3c] sm:$0xf]
  %v333 = vld [vmem:[%s1 + $0x40] sm:$0xf]
  %v334 = vld [vmem:[%s1 + $0x44] sm:$0xf]
  %v335 = vld [vmem:[%s1 + $0x48] sm:$0xf]
  %v336 = vld [vmem:[%s1 + $0x4c] sm:$0xf]
  %v337 = vld [vmem:[%s1 + $0x50] sm:$0xf]
  %v338 = vld [vmem:[%s1 + $0x54] sm:$0xf]
  %v339 = vld [vmem:[%s1 + $0x58] sm:$0xf]
  %v340 = vld [vmem:[%s1 + $0x5c] sm:$0xf]
  %v341 = vld [vmem:[%s1 + $0x60] sm:$0xf]
  %v342 = vld [vmem:[%s1 + $0x64] sm:$0xf]
  %v343 = vld [vmem:[%s1 + $0x68] sm:$0xf]
  %v344 = vld [vmem:[%s1 + $0x6c] sm:$0xf]
  %v345 = vld [vmem:[%s1 + $0x70] sm:$0xf]
  %v346 = vld [vmem:[%s1 + $0x74] sm:$0xf]
  %v347 = vld [vmem:[%s1 + $0x78] sm:$0xf]
  %v348 = vld [vmem:[%s1 + $0x7c] sm:$0xf]
  %v381 = vunpack.c.l.b16 %v317
  %v382 = vunpack.c.l.b16 %v318
  %v383 = vunpack.c.l.b16 %v319
  %v384 = vunpack.c.l.b16 %v320
  %v385 = vunpack.c.l.b16 %v321
  %v386 = vunpack.c.l.b16 %v322
  %v387 = vunpack.c.l.b16 %v323
  %v388 = vunpack.c.l.b16 %v324
  %v389 = vunpack.c.l.b16 %v325
  %v390 = vunpack.c.l.b16 %v326
  %v391 = vunpack.c.l.b16 %v327
  %v392 = vunpack.c.l.b16 %v328
  %v393 = vunpack.c.l.b16 %v329
  %v394 = vunpack.c.l.b16 %v330
  %v395 = vunpack.c.l.b16 %v331
  %v396 = vunpack.c.l.b16 %v332
  %v397 = vunpack.c.l.b16 %v333
  %v398 = vunpack.c.l.b16 %v334
  %v399 = vunpack.c.l.b16 %v335
  %v400 = vunpack.c.l.b16 %v336
  %v401 = vunpack.c.l.b16 %v337
  %v402 = vunpack.c.l.b16 %v338
  %v403 = vunpack.c.l.b16 %v339
  %v404 = vunpack.c.l.b16 %v340
  %v405 = vunpack.c.l.b16 %v341
  %v406 = vunpack.c.l.b16 %v342
  %v407 = vunpack.c.l.b16 %v343
  %v408 = vunpack.c.l.b16 %v344
  %v409 = vunpack.c.l.b16 %v345
  %v410 = vunpack.c.l.b16 %v346
  %v411 = vunpack.c.l.b16 %v347
  %v412 = vunpack.c.l.b16 %v348
  %v413 = vpack.c.b16 %v382, %v381
  %v414 = vpack.c.b16 %v384, %v383
  %v415 = vpack.c.b16 %v386, %v385
  %v416 = vpack.c.b16 %v388, %v387
  %v417 = vpack.c.b16 %v390, %v389
  %v418 = vpack.c.b16 %v392, %v391
  %v419 = vpack.c.b16 %v394, %v393
  %v420 = vpack.c.b16 %v396, %v395
  %v421 = vpack.c.b16 %v398, %v397
  %v422 = vpack.c.b16 %v400, %v399
  %v423 = vpack.c.b16 %v402, %v401
  %v424 = vpack.c.b16 %v404, %v403
  %v425 = vpack.c.b16 %v406, %v405
  %v426 = vpack.c.b16 %v408, %v407
  %v427 = vpack.c.b16 %v410, %v409
  %v428 = vpack.c.b16 %v412, %v411
  %445 = vmatpush.bf16.msra.mxu0 %v420
  %446 = vmatpush.bf16.msra.mxu0 %v419
  %447 = vmatpush.bf16.msra.mxu0 %v418
  %448 = vmatpush.bf16.msra.mxu0 %v417
  %449 = vmatpush.bf16.msra.mxu0 %v416
  %450 = vmatpush.bf16.msra.mxu0 %v415
  %451 = vmatpush.bf16.msra.mxu0 %v414
  %452 = vmatpush.bf16.msra.mxu0 %v413
  %453 = vmatmul.bf16.gmra.mxu0 %v301
  %v454 = vpop.f32.mrf.mxu0
  %v455 = vadd.f32 0.0, %v454
  %v456 = vpop.f32.mrf.mxu0
  %v457 = vadd.f32 0.0, %v456
  %458 = vmatmul.bf16.gmra.mxu0 %v303
  %v459 = vpop.f32.mrf.mxu0
  %v460 = vadd.f32 0.0, %v459
  %v461 = vpop.f32.mrf.mxu0
  %v462 = vadd.f32 0.0, %v461
  %463 = vmatmul.bf16.gmra.mxu0 %v305
  %v464 = vpop.f32.mrf.mxu0
  %v465 = vadd.f32 0.0, %v464
  %v466 = vpop.f32.mrf.mxu0
  %v467 = vadd.f32 0.0, %v466
  %468 = vmatmul.bf16.gmra.mxu0 %v307
  %v469 = vpop.f32.mrf.mxu0
  %v470 = vadd.f32 0.0, %v469
  %v471 = vpop.f32.mrf.mxu0
  %v472 = vadd.f32 0.0, %v471
  %473 = vmatmul.bf16.gmra.mxu0 %v309
  %v474 = vpop.f32.mrf.mxu0
  %v475 = vadd.f32 0.0, %v474
  %v476 = vpop.f32.mrf.mxu0
  %v477 = vadd.f32 0.0, %v476
  %478 = vmatmul.bf16.gmra.mxu0 %v311
  %v479 = vpop.f32.mrf.mxu0
  %v480 = vadd.f32 0.0, %v479
  %v481 = vpop.f32.mrf.mxu0
  %v482 = vadd.f32 0.0, %v481
  %483 = vmatmul.bf16.gmra.mxu0 %v313
  %v484 = vpop.f32.mrf.mxu0
  %v485 = vadd.f32 0.0, %v484
  %v486 = vpop.f32.mrf.mxu0
  %v487 = vadd.f32 0.0, %v486
  %488 = vmatmul.bf16.gmra.mxu0 %v315
  %v489 = vpop.f32.mrf.mxu0
  %v490 = vadd.f32 0.0, %v489
  %v491 = vpop.f32.mrf.mxu0
  %v492 = vadd.f32 0.0, %v491
  %493 = vdwg.mxu0
  %494 = vmatpush.bf16.msra.mxu0 %v428
  %495 = vmatpush.bf16.msra.mxu0 %v427
  %496 = vmatpush.bf16.msra.mxu0 %v426
  %497 = vmatpush.bf16.msra.mxu0 %v425
  %498 = vmatpush.bf16.msra.mxu0 %v424
  %499 = vmatpush.bf16.msra.mxu0 %v423
  %500 = vmatpush.bf16.msra.mxu0 %v422
  %501 = vmatpush.bf16.msra.mxu0 %v421
  %502 = vmatmul.bf16.gmra.mxu0 %v302
  %v503 = vpop.f32.mrf.mxu0
  %v504 = vadd.f32 %v455, %v503
  %v505 = vpop.f32.mrf.mxu0
  %v506 = vadd.f32 %v457, %v505
  %507 = vmatmul.bf16.gmra.mxu0 %v304
  %v508 = vpop.f32.mrf.mxu0
  %v509 = vadd.f32 %v460, %v508
  %v510 = vpop.f32.mrf.mxu0
  %v511 = vadd.f32 %v462, %v510
  %512 = vmatmul.bf16.gmra.mxu0 %v306
  %v513 = vpop.f32.mrf.mxu0
  %v514 = vadd.f32 %v465, %v513
  %v515 = vpop.f32.mrf.mxu0
  %v516 = vadd.f32 %v467, %v515
  %517 = vmatmul.bf16.gmra.mxu0 %v308
  %v518 = vpop.f32.mrf.mxu0
  %v519 = vadd.f32 %v470, %v518
  %v520 = vpop.f32.mrf.mxu0
  %v521 = vadd.f32 %v472, %v520
  %522 = vmatmul.bf16.gmra.mxu0 %v310
  %v523 = vpop.f32.mrf.mxu0
  %v524 = vadd.f32 %v475, %v523
  %v525 = vpop.f32.mrf.mxu0
  %v526 = vadd.f32 %v477, %v525
  %527 = vmatmul.bf16.gmra.mxu0 %v312
  %v528 = vpop.f32.mrf.mxu0
  %v529 = vadd.f32 %v480, %v528
  %v530 = vpop.f32.mrf.mxu0
  %v531 = vadd.f32 %v482, %v530
  %532 = vmatmul.bf16.gmra.mxu0 %v314
  %v533 = vpop.f32.mrf.mxu0
  %v534 = vadd.f32 %v485, %v533
  %v535 = vpop.f32.mrf.mxu0
  %v536 = vadd.f32 %v487, %v535
  %537 = vmatmul.bf16.gmra.mxu0 %v316
  %v538 = vpop.f32.mrf.mxu0
  %v539 = vadd.f32 %v490, %v538
  %v540 = vpop.f32.mrf.mxu0
  %v541 = vadd.f32 %v492, %v540
  %542 = vdwg.mxu0
  %v543 = vpack.c.bf16 %v504, %v504
  %v544 = vpack.c.bf16 %v506, %v506
  %v545 = vpack.c.bf16 %v509, %v509
  %v546 = vpack.c.bf16 %v511, %v511
  %v547 = vpack.c.bf16 %v514, %v514
  %v548 = vpack.c.bf16 %v516, %v516
  %v549 = vpack.c.bf16 %v519, %v519
  %v550 = vpack.c.bf16 %v521, %v521
  %v551 = vpack.c.bf16 %v524, %v524
  %v552 = vpack.c.bf16 %v526, %v526
  %v553 = vpack.c.bf16 %v529, %v529
  %v554 = vpack.c.bf16 %v531, %v531
  %v555 = vpack.c.bf16 %v534, %v534
  %v556 = vpack.c.bf16 %v536, %v536
  %v557 = vpack.c.bf16 %v539, %v539
  %v558 = vpack.c.bf16 %v541, %v541
  %559 = vst [vmem:[%s4] sm:$0xf] %v543
  %560 = vst [vmem:[%s4 + $0x4] sm:$0xf] %v544
  %561 = vst [vmem:[%s4 + $0x8] sm:$0xf] %v545
  %562 = vst [vmem:[%s4 + $0xc] sm:$0xf] %v546
  %563 = vst [vmem:[%s4 + $0x10] sm:$0xf] %v547
  %564 = vst [vmem:[%s4 + $0x14] sm:$0xf] %v548
  %565 = vst [vmem:[%s4 + $0x18] sm:$0xf] %v549
  %566 = vst [vmem:[%s4 + $0x1c] sm:$0xf] %v550
  %567 = vst [vmem:[%s4 + $0x20] sm:$0xf] %v551
  %568 = vst [vmem:[%s4 + $0x24] sm:$0xf] %v552
  %569 = vst [vmem:[%s4 + $0x28] sm:$0xf] %v553
  %570 = vst [vmem:[%s4 + $0x2c] sm:$0xf] %v554
  %571 = vst [vmem:[%s4 + $0x30] sm:$0xf] %v555
  %572 = vst [vmem:[%s4 + $0x34] sm:$0xf] %v556
  %573 = vst [vmem:[%s4 + $0x38] sm:$0xf] %v557
  %574 = vst [vmem:[%s4 + $0x3c] sm:$0xf] %v558
  // Predicated region
  $region18: #{cnn_model_forward.12} parent=0 // pred_check
    _
  $region19: #{cnn_model_forward.12} parent=0 // pred_check_branch
    %576 = sbr.rel (0) target = $region21
  $region20: #{cnn_model_forward.12} parent=0 // pred_region
    _
  $region21: #{cnn_model_forward.12} parent=0 // pred_fallthru
    _
  // Predicated region
  $region22: #{cnn_model_forward.12} parent=0 // pred_check
    _
  $region23: #{cnn_model_forward.12} parent=0 // pred_check_branch
    %578 = sbr.rel (0) target = $region25
  $region24: #{cnn_model_forward.12} parent=0 // pred_region
    _
  $region25: #{cnn_model_forward.12} parent=0 // pred_fallthru
    _

// kernel: cnn_model_forward.13
$region0: #{cnn_model_forward.13}
  #allocation0 [shape = 'u32[]', space=smem, size = 0x4, offset = 0x4, fixed_abs, tag = 'smem constant byte address 0x4 - core index']
  #allocation1 [shape = 'u32[72,128]{1,0:T(1,128)}', space=vmem, size = 0x9000, scoped, tag = 'internal scratch']
  %s0 = inlined_call_operand.vmem [shape: bf16[4,32,128], index: 0, kind: input, shape index: {}]
  %s1 = inlined_call_operand.vmem [shape: bf16[32,128], index: 1, kind: output, shape index: {}]
  %s2 = sld [smem:[#allocation0]]
  $region14: #{cnn_model_forward.13} parent=0
    _
  %s4 = ssub.s32 1, %s2
  %s5 = scalar_select 0, %s4, %s2
  // Predicated region
  $region2: #{cnn_model_forward.13} parent=0 // pred_check
    _
  $region3: #{cnn_model_forward.13} parent=0 // pred_check_branch
    %7 = sbr.rel (0) target = $region5
  $region4: #{cnn_model_forward.13} parent=0 // pred_region
    _
  $region5: #{cnn_model_forward.13} parent=0 // pred_fallthru
    _
  %v8 = vld [vmem:[%s0] sm:$0xf]
  %v9 = vld [vmem:[%s0 + $0x4] sm:$0xf]
  %v10 = vld [vmem:[%s0 + $0x8] sm:$0xf]
  %v11 = vld [vmem:[%s0 + $0xc] sm:$0xf]
  %v12 = vunpack.c.l.bf16 %v8
  %v13 = vunpack.c.l.bf16 %v9
  %v14 = vunpack.c.l.bf16 %v10
  %v15 = vunpack.c.l.bf16 %v11
  %s16 = scalar_lea.vmem %s0, 16
  %v17 = vld [vmem:[%s16] sm:$0xf]
  %v18 = vld [vmem:[%s16 + $0x4] sm:$0xf]
  %v19 = vld [vmem:[%s16 + $0x8] sm:$0xf]
  %v20 = vld [vmem:[%s16 + $0xc] sm:$0xf]
  %v21 = vunpack.c.l.bf16 %v17
  %v22 = vunpack.c.l.bf16 %v18
  %v23 = vunpack.c.l.bf16 %v19
  %v24 = vunpack.c.l.bf16 %v20
  %v25 = vadd.f32 %v12, %v21
  %v26 = vadd.f32 %v13, %v22
  %v27 = vadd.f32 %v14, %v23
  %v28 = vadd.f32 %v15, %v24
  %s29 = scalar_lea.vmem %s0, 32
  %v30 = vld [vmem:[%s29] sm:$0xf]
  %v31 = vld [vmem:[%s29 + $0x4] sm:$0xf]
  %v32 = vld [vmem:[%s29 + $0x8] sm:$0xf]
  %v33 = vld [vmem:[%s29 + $0xc] sm:$0xf]
  %v34 = vunpack.c.l.bf16 %v30
  %v35 = vunpack.c.l.bf16 %v31
  %v36 = vunpack.c.l.bf16 %v32
  %v37 = vunpack.c.l.bf16 %v33
  %v38 = vadd.f32 %v25, %v34
  %v39 = vadd.f32 %v26, %v35
  %v40 = vadd.f32 %v27, %v36
  %v41 = vadd.f32 %v28, %v37
  %s42 = scalar_lea.vmem %s0, 48
  %v43 = vld [vmem:[%s42] sm:$0xf]
  %v44 = vld [vmem:[%s42 + $0x4] sm:$0xf]
  %v45 = vld [vmem:[%s42 + $0x8] sm:$0xf]
  %v46 = vld [vmem:[%s42 + $0xc] sm:$0xf]
  %v47 = vunpack.c.l.bf16 %v43
  %v48 = vunpack.c.l.bf16 %v44
  %v49 = vunpack.c.l.bf16 %v45
  %v50 = vunpack.c.l.bf16 %v46
  %v51 = vadd.f32 %v38, %v47
  %v52 = vadd.f32 %v39, %v48
  %v53 = vadd.f32 %v40, %v49
  %v54 = vadd.f32 %v41, %v50
  %v55 = vmul.f32 %v51, 0.25
  %v56 = vmul.f32 %v52, 0.25
  %v57 = vmul.f32 %v53, 0.25
  %v58 = vmul.f32 %v54, 0.25
  %v59 = vpack.c.bf16 %v55, %v55
  %v60 = vpack.c.bf16 %v56, %v56
  %v61 = vpack.c.bf16 %v57, %v57
  %v62 = vpack.c.bf16 %v58, %v58
  %63 = vst [vmem:[%s1] sm:$0xf] %v59
  %64 = vst [vmem:[%s1 + $0x4] sm:$0xf] %v60
  %65 = vst [vmem:[%s1 + $0x8] sm:$0xf] %v61
  %66 = vst [vmem:[%s1 + $0xc] sm:$0xf] %v62
  // Predicated region
  $region6: #{cnn_model_forward.13} parent=0 // pred_check
    _
  $region7: #{cnn_model_forward.13} parent=0 // pred_check_branch
    %68 = sbr.rel (0) target = $region9
  $region8: #{cnn_model_forward.13} parent=0 // pred_region
    _
  $region9: #{cnn_model_forward.13} parent=0 // pred_fallthru
    _
  // Predicated region
  $region10: #{cnn_model_forward.13} parent=0 // pred_check
    _
  $region11: #{cnn_model_forward.13} parent=0 // pred_check_branch
    %70 = sbr.rel (0) target = $region13
  $region12: #{cnn_model_forward.13} parent=0 // pred_region
    _
  $region13: #{cnn_model_forward.13} parent=0 // pred_fallthru
    _

// kernel: closed_call.54
$region0: #{closed_call.54}
  #allocation0 [shape = 'u32[]', space=smem, size = 0x4, offset = 0x4, fixed_abs, tag = 'smem constant byte address 0x4 - core index']
  #allocation1 [shape = 'u32[72,128]{1,0:T(1,128)}', space=vmem, size = 0x9000, scoped, tag = 'internal scratch']
  %s0 = inlined_call_operand.vmem [shape: bf16[32,512], index: 0, kind: input, shape index: {}]
  %s1 = inlined_call_operand.vmem [shape: bf16[512,128], index: 1, kind: input, shape index: {}]
  %s2 = inlined_call_operand.vmem [shape: f32[1,512], index: 2, kind: input, shape index: {}]
  %s3 = inlined_call_operand.vmem [shape: f32[1,512], index: 3, kind: input, shape index: {}]
  %s4 = inlined_call_operand.vmem [shape: f32[1,128], index: 4, kind: input, shape index: {}]
  %s5 = inlined_call_operand.vmem [shape: f32[1,128], index: 5, kind: input, shape index: {}]
  %s6 = inlined_call_operand.vmem [shape: bf16[32,128], index: 6, kind: output, shape index: {}]
  %s7 = sld [smem:[#allocation0]]
  $region34: #{closed_call.54} parent=0
    _
  %s9 = ssub.s32 1, %s7
  %s10 = scalar_select 0, %s9, %s7
  // Predicated region
  $region2: #{closed_call.54} parent=0 // pred_check
    _
  $region3: #{closed_call.54} parent=0 // pred_check_branch
    %12 = sbr.rel (0) target = $region5
  $region4: #{closed_call.54} parent=0 // pred_region
    _
  $region5: #{closed_call.54} parent=0 // pred_fallthru
    _
  // Predicated region
  $region6: #{closed_call.54} parent=0 // pred_check
    _
  $region7: #{closed_call.54} parent=0 // pred_check_branch
    %14 = sbr.rel (0) target = $region9
  $region8: #{closed_call.54} parent=0 // pred_region
    _
  $region9: #{closed_call.54} parent=0 // pred_fallthru
    _
  // Predicated region
  $region10: #{closed_call.54} parent=0 // pred_check
    _
  $region11: #{closed_call.54} parent=0 // pred_check_branch
    %16 = sbr.rel (0) target = $region13
  $region12: #{closed_call.54} parent=0 // pred_region
    _
  $region13: #{closed_call.54} parent=0 // pred_fallthru
    _
  // Predicated region
  $region14: #{closed_call.54} parent=0 // pred_check
    _
  $region15: #{closed_call.54} parent=0 // pred_check_branch
    %18 = sbr.rel (0) target = $region17
  $region16: #{closed_call.54} parent=0 // pred_region
    _
  $region17: #{closed_call.54} parent=0 // pred_fallthru
    _
  // Predicated region
  $region18: #{closed_call.54} parent=0 // pred_check
    _
  $region19: #{closed_call.54} parent=0 // pred_check_branch
    %20 = sbr.rel (0) target = $region21
  $region20: #{closed_call.54} parent=0 // pred_region
    _
  $region21: #{closed_call.54} parent=0 // pred_fallthru
    _
  // Predicated region
  $region22: #{closed_call.54} parent=0 // pred_check
    _
  $region23: #{closed_call.54} parent=0 // pred_check_branch
    %22 = sbr.rel (0) target = $region25
  $region24: #{closed_call.54} parent=0 // pred_region
    _
  $region25: #{closed_call.54} parent=0 // pred_fallthru
    _
  %v23 = vld [vmem:[%s0] sm:$0xff]
  %v24 = vld [vmem:[%s0 + $0x8] sm:$0xff]
  %v25 = vld [vmem:[%s0 + $0x10] sm:$0xff]
  %v26 = vld [vmem:[%s0 + $0x18] sm:$0xff]
  %v27 = vld [vmem:[%s0 + $0x20] sm:$0xff]
  %v28 = vld [vmem:[%s0 + $0x28] sm:$0xff]
  %v29 = vld [vmem:[%s0 + $0x30] sm:$0xff]
  %v30 = vld [vmem:[%s0 + $0x38] sm:$0xff]
  %v31 = vld [vmem:[%s2] sm:$0xf]
  %v33 = vperm.slane %v31, 0
  %v34 = vperm.slane %v31, 1
  %v35 = vperm.slane %v31, 2
  %v36 = vperm.slane %v31, 3
  %v41 = vpack.c.bf16 %v34, %v33
  %v42 = vpack.c.bf16 %v36, %v35
  %v43 = vld [vmem:[%s3] sm:$0xf]
  %v45 = vperm.slane %v43, 0
  %v46 = vperm.slane %v43, 1
  %v47 = vperm.slane %v43, 2
  %v48 = vperm.slane %v43, 3
  %v53 = vpack.c.bf16 %v46, %v45
  %v54 = vpack.c.bf16 %v48, %v47
  %v57 = vunpack.c.l.b16 %v41
  %v58 = vunpack.c.h.b16 %v41
  %v59 = vunpack.c.l.b16 %v42
  %v60 = vunpack.c.h.b16 %v42
  %v61 = vpack.c.b16 %v57, %v57
  %v62 = vpack.c.b16 %v58, %v58
  %v63 = vpack.c.b16 %v59, %v59
  %v64 = vpack.c.b16 %v60, %v60
  %v66 = vpack.i.b16 %v61, %v61
  %v68 = vperm.slane %v66, 0
  %v70 = vpack.i.b16 %v62, %v62
  %v72 = vperm.slane %v70, 0
  %v74 = vpack.i.b16 %v63, %v63
  %v76 = vperm.slane %v74, 0
  %v78 = vpack.i.b16 %v64, %v64
  %v80 = vperm.slane %v78, 0
  %v81 = vunpack.c.l.bf16 %v23
  %v82 = vunpack.c.h.bf16 %v23
  %v83 = vunpack.c.l.bf16 %v24
  %v84 = vunpack.c.h.bf16 %v24
  %v85 = vunpack.c.l.bf16 %v25
  %v86 = vunpack.c.h.bf16 %v25
  %v87 = vunpack.c.l.bf16 %v26
  %v88 = vunpack.c.h.bf16 %v26
  %v89 = vunpack.c.l.bf16 %v27
  %v90 = vunpack.c.h.bf16 %v27
  %v91 = vunpack.c.l.bf16 %v28
  %v92 = vunpack.c.h.bf16 %v28
  %v93 = vunpack.c.l.bf16 %v29
  %v94 = vunpack.c.h.bf16 %v29
  %v95 = vunpack.c.l.bf16 %v30
  %v96 = vunpack.c.h.bf16 %v30
  %v97 = vunpack.c.l.bf16 %v68
  %v98 = vunpack.c.l.bf16 %v72
  %v99 = vunpack.c.l.bf16 %v76
  %v100 = vunpack.c.l.bf16 %v80
  %v101 = vmul.f32 %v81, %v97
  %v102 = vmul.f32 %v82, %v98
  %v103 = vmul.f32 %v83, %v99
  %v104 = vmul.f32 %v84, %v100
  %v105 = vmul.f32 %v85, %v97
  %v106 = vmul.f32 %v86, %v98
  %v107 = vmul.f32 %v87, %v99
  %v108 = vmul.f32 %v88, %v100
  %v109 = vmul.f32 %v89, %v97
  %v110 = vmul.f32 %v90, %v98
  %v111 = vmul.f32 %v91, %v99
  %v112 = vmul.f32 %v92, %v100
  %v113 = vmul.f32 %v93, %v97
  %v114 = vmul.f32 %v94, %v98
  %v115 = vmul.f32 %v95, %v99
  %v116 = vmul.f32 %v96, %v100
  %v117 = vpack.c.bf16 %v102, %v101
  %v118 = vpack.c.bf16 %v104, %v103
  %v119 = vpack.c.bf16 %v106, %v105
  %v120 = vpack.c.bf16 %v108, %v107
  %v121 = vpack.c.bf16 %v110, %v109
  %v122 = vpack.c.bf16 %v112, %v111
  %v123 = vpack.c.bf16 %v114, %v113
  %v124 = vpack.c.bf16 %v116, %v115
  %v127 = vunpack.c.l.b16 %v53
  %v128 = vunpack.c.h.b16 %v53
  %v129 = vunpack.c.l.b16 %v54
  %v130 = vunpack.c.h.b16 %v54
  %v131 = vpack.c.b16 %v127, %v127
  %v132 = vpack.c.b16 %v128, %v128
  %v133 = vpack.c.b16 %v129, %v129
  %v134 = vpack.c.b16 %v130, %v130
  %v136 = vpack.i.b16 %v131, %v131
  %v138 = vperm.slane %v136, 0
  %v140 = vpack.i.b16 %v132, %v132
  %v142 = vperm.slane %v140, 0
  %v144 = vpack.i.b16 %v133, %v133
  %v146 = vperm.slane %v144, 0
  %v148 = vpack.i.b16 %v134, %v134
  %v150 = vperm.slane %v148, 0
  %v151 = vunpack.c.l.bf16 %v117
  %v152 = vunpack.c.h.bf16 %v117
  %v153 = vunpack.c.l.bf16 %v118
  %v154 = vunpack.c.h.bf16 %v118
  %v155 = vunpack.c.l.bf16 %v119
  %v156 = vunpack.c.h.bf16 %v119
  %v157 = vunpack.c.l.bf16 %v120
  %v158 = vunpack.c.h.bf16 %v120
  %v159 = vunpack.c.l.bf16 %v121
  %v160 = vunpack.c.h.bf16 %v121
  %v161 = vunpack.c.l.bf16 %v122
  %v162 = vunpack.c.h.bf16 %v122
  %v163 = vunpack.c.l.bf16 %v123
  %v164 = vunpack.c.h.bf16 %v123
  %v165 = vunpack.c.l.bf16 %v124
  %v166 = vunpack.c.h.bf16 %v124
  %v167 = vunpack.c.l.bf16 %v138
  %v168 = vunpack.c.l.bf16 %v142
  %v169 = vunpack.c.l.bf16 %v146
  %v170 = vunpack.c.l.bf16 %v150
  %v171 = vadd.f32 %v151, %v167
  %v172 = vadd.f32 %v152, %v168
  %v173 = vadd.f32 %v153, %v169
  %v174 = vadd.f32 %v154, %v170
  %v175 = vadd.f32 %v155, %v167
  %v176 = vadd.f32 %v156, %v168
  %v177 = vadd.f32 %v157, %v169
  %v178 = vadd.f32 %v158, %v170
  %v179 = vadd.f32 %v159, %v167
  %v180 = vadd.f32 %v160, %v168
  %v181 = vadd.f32 %v161, %v169
  %v182 = vadd.f32 %v162, %v170
  %v183 = vadd.f32 %v163, %v167
  %v184 = vadd.f32 %v164, %v168
  %v185 = vadd.f32 %v165, %v169
  %v186 = vadd.f32 %v166, %v170
  %v187 = vpack.c.bf16 %v172, %v171
  %v188 = vpack.c.bf16 %v174, %v173
  %v189 = vpack.c.bf16 %v176, %v175
  %v190 = vpack.c.bf16 %v178, %v177
  %v191 = vpack.c.bf16 %v180, %v179
  %v192 = vpack.c.bf16 %v182, %v181
  %v193 = vpack.c.bf16 %v184, %v183
  %v194 = vpack.c.bf16 %v186, %v185
  %v195 = vunpack.c.l.bf16 %v187
  %v196 = vunpack.c.h.bf16 %v187
  %v197 = vunpack.c.l.bf16 %v188
  %v198 = vunpack.c.h.bf16 %v188
  %v199 = vunpack.c.l.bf16 %v189
  %v200 = vunpack.c.h.bf16 %v189
  %v201 = vunpack.c.l.bf16 %v190
  %v202 = vunpack.c.h.bf16 %v190
  %v203 = vunpack.c.l.bf16 %v191
  %v204 = vunpack.c.h.bf16 %v191
  %v205 = vunpack.c.l.bf16 %v192
  %v206 = vunpack.c.h.bf16 %v192
  %v207 = vunpack.c.l.bf16 %v193
  %v208 = vunpack.c.h.bf16 %v193
  %v209 = vunpack.c.l.bf16 %v194
  %v210 = vunpack.c.h.bf16 %v194
  %v211 = vmax.f32 %v195, 0.0
  %v212 = vmax.f32 %v196, 0.0
  %v213 = vmax.f32 %v197, 0.0
  %v214 = vmax.f32 %v198, 0.0
  %v215 = vmax.f32 %v199, 0.0
  %v216 = vmax.f32 %v200, 0.0
  %v217 = vmax.f32 %v201, 0.0
  %v218 = vmax.f32 %v202, 0.0
  %v219 = vmax.f32 %v203, 0.0
  %v220 = vmax.f32 %v204, 0.0
  %v221 = vmax.f32 %v205, 0.0
  %v222 = vmax.f32 %v206, 0.0
  %v223 = vmax.f32 %v207, 0.0
  %v224 = vmax.f32 %v208, 0.0
  %v225 = vmax.f32 %v209, 0.0
  %v226 = vmax.f32 %v210, 0.0
  %v227 = vpack.c.bf16 %v215, %v211
  %v228 = vpack.c.bf16 %v216, %v212
  %v229 = vpack.c.bf16 %v217, %v213
  %v230 = vpack.c.bf16 %v218, %v214
  %v231 = vpack.c.bf16 %v223, %v219
  %v232 = vpack.c.bf16 %v224, %v220
  %v233 = vpack.c.bf16 %v225, %v221
  %v234 = vpack.c.bf16 %v226, %v222
  %v235 = vld [vmem:[%s1] sm:$0xf]
  %v236 = vld [vmem:[%s1 + $0x4] sm:$0xf]
  %v237 = vld [vmem:[%s1 + $0x8] sm:$0xf]
  %v238 = vld [vmem:[%s1 + $0xc] sm:$0xf]
  %v239 = vld [vmem:[%s1 + $0x10] sm:$0xf]
  %v240 = vld [vmem:[%s1 + $0x14] sm:$0xf]
  %v241 = vld [vmem:[%s1 + $0x18] sm:$0xf]
  %v242 = vld [vmem:[%s1 + $0x1c] sm:$0xf]
  %v243 = vld [vmem:[%s1 + $0x20] sm:$0xf]
  %v244 = vld [vmem:[%s1 + $0x24] sm:$0xf]
  %v245 = vld [vmem:[%s1 + $0x28] sm:$0xf]
  %v246 = vld [vmem:[%s1 + $0x2c] sm:$0xf]
  %v247 = vld [vmem:[%s1 + $0x30] sm:$0xf]
  %v248 = vld [vmem:[%s1 + $0x34] sm:$0xf]
  %v249 = vld [vmem:[%s1 + $0x38] sm:$0xf]
  %v250 = vld [vmem:[%s1 + $0x3c] sm:$0xf]
  %v251 = vld [vmem:[%s1 + $0x40] sm:$0xf]
  %v252 = vld [vmem:[%s1 + $0x44] sm:$0xf]
  %v253 = vld [vmem:[%s1 + $0x48] sm:$0xf]
  %v254 = vld [vmem:[%s1 + $0x4c] sm:$0xf]
  %v255 = vld [vmem:[%s1 + $0x50] sm:$0xf]
  %v256 = vld [vmem:[%s1 + $0x54] sm:$0xf]
  %v257 = vld [vmem:[%s1 + $0x58] sm:$0xf]
  %v258 = vld [vmem:[%s1 + $0x5c] sm:$0xf]
  %v259 = vld [vmem:[%s1 + $0x60] sm:$0xf]
  %v260 = vld [vmem:[%s1 + $0x64] sm:$0xf]
  %v261 = vld [vmem:[%s1 + $0x68] sm:$0xf]
  %v262 = vld [vmem:[%s1 + $0x6c] sm:$0xf]
  %v263 = vld [vmem:[%s1 + $0x70] sm:$0xf]
  %v264 = vld [vmem:[%s1 + $0x74] sm:$0xf]
  %v265 = vld [vmem:[%s1 + $0x78] sm:$0xf]
  %v266 = vld [vmem:[%s1 + $0x7c] sm:$0xf]
  %v267 = vld [vmem:[%s1 + $0x80] sm:$0xf]
  %v268 = vld [vmem:[%s1 + $0x84] sm:$0xf]
  %v269 = vld [vmem:[%s1 + $0x88] sm:$0xf]
  %v270 = vld [vmem:[%s1 + $0x8c] sm:$0xf]
  %v271 = vld [vmem:[%s1 + $0x90] sm:$0xf]
  %v272 = vld [vmem:[%s1 + $0x94] sm:$0xf]
  %v273 = vld [vmem:[%s1 + $0x98] sm:$0xf]
  %v274 = vld [vmem:[%s1 + $0x9c] sm:$0xf]
  %v275 = vld [vmem:[%s1 + $0xa0] sm:$0xf]
  %v276 = vld [vmem:[%s1 + $0xa4] sm:$0xf]
  %v277 = vld [vmem:[%s1 + $0xa8] sm:$0xf]
  %v278 = vld [vmem:[%s1 + $0xac] sm:$0xf]
  %v279 = vld [vmem:[%s1 + $0xb0] sm:$0xf]
  %v280 = vld [vmem:[%s1 + $0xb4] sm:$0xf]
  %v281 = vld [vmem:[%s1 + $0xb8] sm:$0xf]
  %v282 = vld [vmem:[%s1 + $0xbc] sm:$0xf]
  %v283 = vld [vmem:[%s1 + $0xc0] sm:$0xf]
  %v284 = vld [vmem:[%s1 + $0xc4] sm:$0xf]
  %v285 = vld [vmem:[%s1 + $0xc8] sm:$0xf]
  %v286 = vld [vmem:[%s1 + $0xcc] sm:$0xf]
  %v287 = vld [vmem:[%s1 + $0xd0] sm:$0xf]
  %v288 = vld [vmem:[%s1 + $0xd4] sm:$0xf]
  %v289 = vld [vmem:[%s1 + $0xd8] sm:$0xf]
  %v290 = vld [vmem:[%s1 + $0xdc] sm:$0xf]
  %v291 = vld [vmem:[%s1 + $0xe0] sm:$0xf]
  %v292 = vld [vmem:[%s1 + $0xe4] sm:$0xf]
  %v293 = vld [vmem:[%s1 + $0xe8] sm:$0xf]
  %v294 = vld [vmem:[%s1 + $0xec] sm:$0xf]
  %v295 = vld [vmem:[%s1 + $0xf0] sm:$0xf]
  %v296 = vld [vmem:[%s1 + $0xf4] sm:$0xf]
  %v297 = vld [vmem:[%s1 + $0xf8] sm:$0xf]
  %v298 = vld [vmem:[%s1 + $0xfc] sm:$0xf]
  %v363 = vunpack.c.l.b16 %v235
  %v364 = vunpack.c.l.b16 %v236
  %v365 = vunpack.c.l.b16 %v237
  %v366 = vunpack.c.l.b16 %v238
  %v367 = vunpack.c.l.b16 %v239
  %v368 = vunpack.c.l.b16 %v240
  %v369 = vunpack.c.l.b16 %v241
  %v370 = vunpack.c.l.b16 %v242
  %v371 = vunpack.c.l.b16 %v243
  %v372 = vunpack.c.l.b16 %v244
  %v373 = vunpack.c.l.b16 %v245
  %v374 = vunpack.c.l.b16 %v246
  %v375 = vunpack.c.l.b16 %v247
  %v376 = vunpack.c.l.b16 %v248
  %v377 = vunpack.c.l.b16 %v249
  %v378 = vunpack.c.l.b16 %v250
  %v379 = vunpack.c.l.b16 %v251
  %v380 = vunpack.c.l.b16 %v252
  %v381 = vunpack.c.l.b16 %v253
  %v382 = vunpack.c.l.b16 %v254
  %v383 = vunpack.c.l.b16 %v255
  %v384 = vunpack.c.l.b16 %v256
  %v385 = vunpack.c.l.b16 %v257
  %v386 = vunpack.c.l.b16 %v258
  %v387 = vunpack.c.l.b16 %v259
  %v388 = vunpack.c.l.b16 %v260
  %v389 = vunpack.c.l.b16 %v261
  %v390 = vunpack.c.l.b16 %v262
  %v391 = vunpack.c.l.b16 %v263
  %v392 = vunpack.c.l.b16 %v264
  %v393 = vunpack.c.l.b16 %v265
  %v394 = vunpack.c.l.b16 %v266
  %v395 = vunpack.c.l.b16 %v267
  %v396 = vunpack.c.l.b16 %v268
  %v397 = vunpack.c.l.b16 %v269
  %v398 = vunpack.c.l.b16 %v270
  %v399 = vunpack.c.l.b16 %v271
  %v400 = vunpack.c.l.b16 %v272
  %v401 = vunpack.c.l.b16 %v273
  %v402 = vunpack.c.l.b16 %v274
  %v403 = vunpack.c.l.b16 %v275
  %v404 = vunpack.c.l.b16 %v276
  %v405 = vunpack.c.l.b16 %v277
  %v406 = vunpack.c.l.b16 %v278
  %v407 = vunpack.c.l.b16 %v279
  %v408 = vunpack.c.l.b16 %v280
  %v409 = vunpack.c.l.b16 %v281
  %v410 = vunpack.c.l.b16 %v282
  %v411 = vunpack.c.l.b16 %v283
  %v412 = vunpack.c.l.b16 %v284
  %v413 = vunpack.c.l.b16 %v285
  %v414 = vunpack.c.l.b16 %v286
  %v415 = vunpack.c.l.b16 %v287
  %v416 = vunpack.c.l.b16 %v288
  %v417 = vunpack.c.l.b16 %v289
  %v418 = vunpack.c.l.b16 %v290
  %v419 = vunpack.c.l.b16 %v291
  %v420 = vunpack.c.l.b16 %v292
  %v421 = vunpack.c.l.b16 %v293
  %v422 = vunpack.c.l.b16 %v294
  %v423 = vunpack.c.l.b16 %v295
  %v424 = vunpack.c.l.b16 %v296
  %v425 = vunpack.c.l.b16 %v297
  %v426 = vunpack.c.l.b16 %v298
  %v427 = vpack.c.b16 %v364, %v363
  %v428 = vpack.c.b16 %v366, %v365
  %v429 = vpack.c.b16 %v368, %v367
  %v430 = vpack.c.b16 %v370, %v369
  %v431 = vpack.c.b16 %v372, %v371
  %v432 = vpack.c.b16 %v374, %v373
  %v433 = vpack.c.b16 %v376, %v375
  %v434 = vpack.c.b16 %v378, %v377
  %v435 = vpack.c.b16 %v380, %v379
  %v436 = vpack.c.b16 %v382, %v381
  %v437 = vpack.c.b16 %v384, %v383
  %v438 = vpack.c.b16 %v386, %v385
  %v439 = vpack.c.b16 %v388, %v387
  %v440 = vpack.c.b16 %v390, %v389
  %v441 = vpack.c.b16 %v392, %v391
  %v442 = vpack.c.b16 %v394, %v393
  %v443 = vpack.c.b16 %v396, %v395
  %v444 = vpack.c.b16 %v398, %v397
  %v445 = vpack.c.b16 %v400, %v399
  %v446 = vpack.c.b16 %v402, %v401
  %v447 = vpack.c.b16 %v404, %v403
  %v448 = vpack.c.b16 %v406, %v405
  %v449 = vpack.c.b16 %v408, %v407
  %v450 = vpack.c.b16 %v410, %v409
  %v451 = vpack.c.b16 %v412, %v411
  %v452 = vpack.c.b16 %v414, %v413
  %v453 = vpack.c.b16 %v416, %v415
  %v454 = vpack.c.b16 %v418, %v417
  %v455 = vpack.c.b16 %v420, %v419
  %v456 = vpack.c.b16 %v422, %v421
  %v457 = vpack.c.b16 %v424, %v423
  %v458 = vpack.c.b16 %v426, %v425
  %491 = vmatpush.bf16.msra.mxu0 %v434
  %492 = vmatpush.bf16.msra.mxu0 %v433
  %493 = vmatpush.bf16.msra.mxu0 %v432
  %494 = vmatpush.bf16.msra.mxu0 %v431
  %495 = vmatpush.bf16.msra.mxu0 %v430
  %496 = vmatpush.bf16.msra.mxu0 %v429
  %497 = vmatpush.bf16.msra.mxu0 %v428
  %498 = vmatpush.bf16.msra.mxu0 %v427
  %499 = vmatmul.bf16.gmra.mxu0 %v227
  %v500 = vpop.f32.mrf.mxu0
  %v501 = vadd.f32 0.0, %v500
  %v502 = vpop.f32.mrf.mxu0
  %v503 = vadd.f32 0.0, %v502
  %504 = vmatmul.bf16.gmra.mxu0 %v231
  %v505 = vpop.f32.mrf.mxu0
  %v506 = vadd.f32 0.0, %v505
  %v507 = vpop.f32.mrf.mxu0
  %v508 = vadd.f32 0.0, %v507
  %509 = vdwg.mxu0
  %510 = vmatpush.bf16.msra.mxu0 %v442
  %511 = vmatpush.bf16.msra.mxu0 %v441
  %512 = vmatpush.bf16.msra.mxu0 %v440
  %513 = vmatpush.bf16.msra.mxu0 %v439
  %514 = vmatpush.bf16.msra.mxu0 %v438
  %515 = vmatpush.bf16.msra.mxu0 %v437
  %516 = vmatpush.bf16.msra.mxu0 %v436
  %517 = vmatpush.bf16.msra.mxu0 %v435
  %518 = vmatmul.bf16.gmra.mxu0 %v228
  %v519 = vpop.f32.mrf.mxu0
  %v520 = vadd.f32 %v501, %v519
  %v521 = vpop.f32.mrf.mxu0
  %v522 = vadd.f32 %v503, %v521
  %523 = vmatmul.bf16.gmra.mxu0 %v232
  %v524 = vpop.f32.mrf.mxu0
  %v525 = vadd.f32 %v506, %v524
  %v526 = vpop.f32.mrf.mxu0
  %v527 = vadd.f32 %v508, %v526
  %528 = vdwg.mxu0
  %529 = vmatpush.bf16.msra.mxu0 %v450
  %530 = vmatpush.bf16.msra.mxu0 %v449
  %531 = vmatpush.bf16.msra.mxu0 %v448
  %532 = vmatpush.bf16.msra.mxu0 %v447
  %533 = vmatpush.bf16.msra.mxu0 %v446
  %534 = vmatpush.bf16.msra.mxu0 %v445
  %535 = vmatpush.bf16.msra.mxu0 %v444
  %536 = vmatpush.bf16.msra.mxu0 %v443
  %537 = vmatmul.bf16.gmra.mxu0 %v229
  %v538 = vpop.f32.mrf.mxu0
  %v539 = vadd.f32 %v520, %v538
  %v540 = vpop.f32.mrf.mxu0
  %v541 = vadd.f32 %v522, %v540
  %542 = vmatmul.bf16.gmra.mxu0 %v233
  %v543 = vpop.f32.mrf.mxu0
  %v544 = vadd.f32 %v525, %v543
  %v545 = vpop.f32.mrf.mxu0
  %v546 = vadd.f32 %v527, %v545
  %547 = vdwg.mxu0
  %548 = vmatpush.bf16.msra.mxu0 %v458
  %549 = vmatpush.bf16.msra.mxu0 %v457
  %550 = vmatpush.bf16.msra.mxu0 %v456
  %551 = vmatpush.bf16.msra.mxu0 %v455
  %552 = vmatpush.bf16.msra.mxu0 %v454
  %553 = vmatpush.bf16.msra.mxu0 %v453
  %554 = vmatpush.bf16.msra.mxu0 %v452
  %555 = vmatpush.bf16.msra.mxu0 %v451
  %556 = vmatmul.bf16.gmra.mxu0 %v230
  %v557 = vpop.f32.mrf.mxu0
  %v558 = vadd.f32 %v539, %v557
  %v559 = vpop.f32.mrf.mxu0
  %v560 = vadd.f32 %v541, %v559
  %561 = vmatmul.bf16.gmra.mxu0 %v234
  %v562 = vpop.f32.mrf.mxu0
  %v563 = vadd.f32 %v544, %v562
  %v564 = vpop.f32.mrf.mxu0
  %v565 = vadd.f32 %v546, %v564
  %566 = vdwg.mxu0
  %v567 = vld [vmem:[%s4] sm:$0x1]
  %v569 = vperm.slane %v567, 0
  %v571 = vmul.f32 %v558, %v569
  %v572 = vmul.f32 %v560, %v569
  %v573 = vmul.f32 %v563, %v569
  %v574 = vmul.f32 %v565, %v569
  %v575 = vld [vmem:[%s5] sm:$0x1]
  %v577 = vperm.slane %v575, 0
  %v579 = vadd.f32 %v571, %v577
  %v580 = vadd.f32 %v572, %v577
  %v581 = vadd.f32 %v573, %v577
  %v582 = vadd.f32 %v574, %v577
  %v583 = vmax.f32 %v579, 0.0
  %v584 = vmax.f32 %v580, 0.0
  %v585 = vmax.f32 %v581, 0.0
  %v586 = vmax.f32 %v582, 0.0
  %v587 = vpack.c.bf16 %v583, %v583
  %v588 = vpack.c.bf16 %v584, %v584
  %v589 = vpack.c.bf16 %v585, %v585
  %v590 = vpack.c.bf16 %v586, %v586
  %591 = vst [vmem:[%s6] sm:$0xf] %v587
  %592 = vst [vmem:[%s6 + $0x4] sm:$0xf] %v588
  %593 = vst [vmem:[%s6 + $0x8] sm:$0xf] %v589
  %594 = vst [vmem:[%s6 + $0xc] sm:$0xf] %v590
  // Predicated region
  $region26: #{closed_call.54} parent=0 // pred_check
    _
  $region27: #{closed_call.54} parent=0 // pred_check_branch
    %596 = sbr.rel (0) target = $region29
  $region28: #{closed_call.54} parent=0 // pred_region
    _
  $region29: #{closed_call.54} parent=0 // pred_fallthru
    _
  // Predicated region
  $region30: #{closed_call.54} parent=0 // pred_check
    _
  $region31: #{closed_call.54} parent=0 // pred_check_branch
    %598 = sbr.rel (0) target = $region33
  $region32: #{closed_call.54} parent=0 // pred_region
    _
  $region33: #{closed_call.54} parent=0 // pred_fallthru
    _

// kernel: closed_call.55
$region0: #{closed_call.55}
  #allocation0 [shape = 'u32[]', space=smem, size = 0x4, offset = 0x4, fixed_abs, tag = 'smem constant byte address 0x4 - core index']
  #allocation1 [shape = 'u32[72,128]{1,0:T(1,128)}', space=vmem, size = 0x9000, scoped, tag = 'internal scratch']
  %s0 = inlined_call_operand.vmem [shape: bf16[32,1152], index: 0, kind: input, shape index: {}]
  %s1 = inlined_call_operand.vmem [shape: bf16[1152,128], index: 1, kind: input, shape index: {}]
  %s2 = inlined_call_operand.vmem [shape: bf16[32,128], index: 2, kind: output, shape index: {}]
  %s3 = sld [smem:[#allocation0]]
  $region18: #{closed_call.55} parent=0
    _
  %s5 = ssub.s32 1, %s3
  %s6 = scalar_select 0, %s5, %s3
  // Predicated region
  $region2: #{closed_call.55} parent=0 // pred_check
    _
  $region3: #{closed_call.55} parent=0 // pred_check_branch
    %8 = sbr.rel (0) target = $region5
  $region4: #{closed_call.55} parent=0 // pred_region
    _
  $region5: #{closed_call.55} parent=0 // pred_fallthru
    _
  // Predicated region
  $region6: #{closed_call.55} parent=0 // pred_check
    _
  $region7: #{closed_call.55} parent=0 // pred_check_branch
    %10 = sbr.rel (0) target = $region9
  $region8: #{closed_call.55} parent=0 // pred_region
    _
  $region9: #{closed_call.55} parent=0 // pred_fallthru
    _
  %v11 = vld [vmem:[%s0] sm:$0xff]
  %v12 = vld [vmem:[%s0 + $0x8] sm:$0xff]
  %v13 = vld [vmem:[%s0 + $0x10] sm:$0xff]
  %v14 = vld [vmem:[%s0 + $0x18] sm:$0xff]
  %v15 = vld [vmem:[%s0 + $0x20] sm:$0xf]
  %v16 = vld [vmem:[%s0 + $0x24] sm:$0xff]
  %v17 = vld [vmem:[%s0 + $0x2c] sm:$0xff]
  %v18 = vld [vmem:[%s0 + $0x34] sm:$0xff]
  %v19 = vld [vmem:[%s0 + $0x3c] sm:$0xff]
  %v20 = vld [vmem:[%s0 + $0x44] sm:$0xf]
  %v21 = vld [vmem:[%s0 + $0x48] sm:$0xff]
  %v22 = vld [vmem:[%s0 + $0x50] sm:$0xff]
  %v23 = vld [vmem:[%s0 + $0x58] sm:$0xff]
  %v24 = vld [vmem:[%s0 + $0x60] sm:$0xff]
  %v25 = vld [vmem:[%s0 + $0x68] sm:$0xf]
  %v26 = vld [vmem:[%s0 + $0x6c] sm:$0xff]
  %v27 = vld [vmem:[%s0 + $0x74] sm:$0xff]
  %v28 = vld [vmem:[%s0 + $0x7c] sm:$0xff]
  %v29 = vld [vmem:[%s0 + $0x84] sm:$0xff]
  %v30 = vld [vmem:[%s0 + $0x8c] sm:$0xf]
  %v31 = vld [vmem:[%s1] sm:$0xf]
  %v32 = vld [vmem:[%s1 + $0x4] sm:$0xf]
  %v33 = vld [vmem:[%s1 + $0x8] sm:$0xf]
  %v34 = vld [vmem:[%s1 + $0xc] sm:$0xf]
  %v35 = vld [vmem:[%s1 + $0x10] sm:$0xf]
  %v36 = vld [vmem:[%s1 + $0x14] sm:$0xf]
  %v37 = vld [vmem:[%s1 + $0x18] sm:$0xf]
  %v38 = vld [vmem:[%s1 + $0x1c] sm:$0xf]
  %v39 = vld [vmem:[%s1 + $0x20] sm:$0xf]
  %v40 = vld [vmem:[%s1 + $0x24] sm:$0xf]
  %v41 = vld [vmem:[%s1 + $0x28] sm:$0xf]
  %v42 = vld [vmem:[%s1 + $0x2c] sm:$0xf]
  %v43 = vld [vmem:[%s1 + $0x30] sm:$0xf]
  %v44 = vld [vmem:[%s1 + $0x34] sm:$0xf]
  %v45 = vld [vmem:[%s1 + $0x38] sm:$0xf]
  %v46 = vld [vmem:[%s1 + $0x3c] sm:$0xf]
  %v47 = vld [vmem:[%s1 + $0x40] sm:$0xf]
  %v48 = vld [vmem:[%s1 + $0x44] sm:$0xf]
  %v49 = vld [vmem:[%s1 + $0x48] sm:$0xf]
  %v50 = vld [vmem:[%s1 + $0x4c] sm:$0xf]
  %v51 = vld [vmem:[%s1 + $0x50] sm:$0xf]
  %v52 = vld [vmem:[%s1 + $0x54] sm:$0xf]
  %v53 = vld [vmem:[%s1 + $0x58] sm:$0xf]
  %v54 = vld [vmem:[%s1 + $0x5c] sm:$0xf]
  %v55 = vld [vmem:[%s1 + $0x60] sm:$0xf]
  %v56 = vld [vmem:[%s1 + $0x64] sm:$0xf]
  %v57 = vld [vmem:[%s1 + $0x68] sm:$0xf]
  %v58 = vld [vmem:[%s1 + $0x6c] sm:$0xf]
  %v59 = vld [vmem:[%s1 + $0x70] sm:$0xf]
  %v60 = vld [vmem:[%s1 + $0x74] sm:$0xf]
  %v61 = vld [vmem:[%s1 + $0x78] sm:$0xf]
  %v62 = vld [vmem:[%s1 + $0x7c] sm:$0xf]
  %v63 = vld [vmem:[%s1 + $0x80] sm:$0xf]
  %v64 = vld [vmem:[%s1 + $0x84] sm:$0xf]
  %v65 = vld [vmem:[%s1 + $0x88] sm:$0xf]
  %v66 = vld [vmem:[%s1 + $0x8c] sm:$0xf]
  %v67 = vld [vmem:[%s1 + $0x90] sm:$0xf]
  %v68 = vld [vmem:[%s1 + $0x94] sm:$0xf]
  %v69 = vld [vmem:[%s1 + $0x98] sm:$0xf]
  %v70 = vld [vmem:[%s1 + $0x9c] sm:$0xf]
  %v71 = vld [vmem:[%s1 + $0xa0] sm:$0xf]
  %v72 = vld [vmem:[%s1 + $0xa4] sm:$0xf]
  %v73 = vld [vmem:[%s1 + $0xa8] sm:$0xf]
  %v74 = vld [vmem:[%s1 + $0xac] sm:$0xf]
  %v75 = vld [vmem:[%s1 + $0xb0] sm:$0xf]
  %v76 = vld [vmem:[%s1 + $0xb4] sm:$0xf]
  %v77 = vld [vmem:[%s1 + $0xb8] sm:$0xf]
  %v78 = vld [vmem:[%s1 + $0xbc] sm:$0xf]
  %v79 = vld [vmem:[%s1 + $0xc0] sm:$0xf]
  %v80 = vld [vmem:[%s1 + $0xc4] sm:$0xf]
  %v81 = vld [vmem:[%s1 + $0xc8] sm:$0xf]
  %v82 = vld [vmem:[%s1 + $0xcc] sm:$0xf]
  %v83 = vld [vmem:[%s1 + $0xd0] sm:$0xf]
  %v84 = vld [vmem:[%s1 + $0xd4] sm:$0xf]
  %v85 = vld [vmem:[%s1 + $0xd8] sm:$0xf]
  %v86 = vld [vmem:[%s1 + $0xdc] sm:$0xf]
  %v87 = vld [vmem:[%s1 + $0xe0] sm:$0xf]
  %v88 = vld [vmem:[%s1 + $0xe4] sm:$0xf]
  %v89 = vld [vmem:[%s1 + $0xe8] sm:$0xf]
  %v90 = vld [vmem:[%s1 + $0xec] sm:$0xf]
  %v91 = vld [vmem:[%s1 + $0xf0] sm:$0xf]
  %v92 = vld [vmem:[%s1 + $0xf4] sm:$0xf]
  %v93 = vld [vmem:[%s1 + $0xf8] sm:$0xf]
  %v94 = vld [vmem:[%s1 + $0xfc] sm:$0xf]
  %v95 = vld [vmem:[%s1 + $0x100] sm:$0xf]
  %v96 = vld [vmem:[%s1 + $0x104] sm:$0xf]
  %v97 = vld [vmem:[%s1 + $0x108] sm:$0xf]
  %v98 = vld [vmem:[%s1 + $0x10c] sm:$0xf]
  %v99 = vld [vmem:[%s1 + $0x110] sm:$0xf]
  %v100 = vld [vmem:[%s1 + $0x114] sm:$0xf]
  %v101 = vld [vmem:[%s1 + $0x118] sm:$0xf]
  %v102 = vld [vmem:[%s1 + $0x11c] sm:$0xf]
  %v103 = vld [vmem:[%s1 + $0x120] sm:$0xf]
  %v104 = vld [vmem:[%s1 + $0x124] sm:$0xf]
  %v105 = vld [vmem:[%s1 + $0x128] sm:$0xf]
  %v106 = vld [vmem:[%s1 + $0x12c] sm:$0xf]
  %v107 = vld [vmem:[%s1 + $0x130] sm:$0xf]
  %v108 = vld [vmem:[%s1 + $0x134] sm:$0xf]
  %v109 = vld [vmem:[%s1 + $0x138] sm:$0xf]
  %v110 = vld [vmem:[%s1 + $0x13c] sm:$0xf]
  %v111 = vld [vmem:[%s1 + $0x140] sm:$0xf]
  %v112 = vld [vmem:[%s1 + $0x144] sm:$0xf]
  %v113 = vld [vmem:[%s1 + $0x148] sm:$0xf]
  %v114 = vld [vmem:[%s1 + $0x14c] sm:$0xf]
  %v115 = vld [vmem:[%s1 + $0x150] sm:$0xf]
  %v116 = vld [vmem:[%s1 + $0x154] sm:$0xf]
  %v117 = vld [vmem:[%s1 + $0x158] sm:$0xf]
  %v118 = vld [vmem:[%s1 + $0x15c] sm:$0xf]
  %v119 = vld [vmem:[%s1 + $0x160] sm:$0xf]
  %v120 = vld [vmem:[%s1 + $0x164] sm:$0xf]
  %v121 = vld [vmem:[%s1 + $0x168] sm:$0xf]
  %v122 = vld [vmem:[%s1 + $0x16c] sm:$0xf]
  %v123 = vld [vmem:[%s1 + $0x170] sm:$0xf]
  %v124 = vld [vmem:[%s1 + $0x174] sm:$0xf]
  %v125 = vld [vmem:[%s1 + $0x178] sm:$0xf]
  %v126 = vld [vmem:[%s1 + $0x17c] sm:$0xf]
  %v127 = vld [vmem:[%s1 + $0x180] sm:$0xf]
  %v128 = vld [vmem:[%s1 + $0x184] sm:$0xf]
  %v129 = vld [vmem:[%s1 + $0x188] sm:$0xf]
  %v130 = vld [vmem:[%s1 + $0x18c] sm:$0xf]
  %v131 = vld [vmem:[%s1 + $0x190] sm:$0xf]
  %v132 = vld [vmem:[%s1 + $0x194] sm:$0xf]
  %v133 = vld [vmem:[%s1 + $0x198] sm:$0xf]
  %v134 = vld [vmem:[%s1 + $0x19c] sm:$0xf]
  %v135 = vld [vmem:[%s1 + $0x1a0] sm:$0xf]
  %v136 = vld [vmem:[%s1 + $0x1a4] sm:$0xf]
  %v137 = vld [vmem:[%s1 + $0x1a8] sm:$0xf]
  %v138 = vld [vmem:[%s1 + $0x1ac] sm:$0xf]
  %v139 = vld [vmem:[%s1 + $0x1b0] sm:$0xf]
  %v140 = vld [vmem:[%s1 + $0x1b4] sm:$0xf]
  %v141 = vld [vmem:[%s1 + $0x1b8] sm:$0xf]
  %v142 = vld [vmem:[%s1 + $0x1bc] sm:$0xf]
  %v143 = vld [vmem:[%s1 + $0x1c0] sm:$0xf]
  %v144 = vld [vmem:[%s1 + $0x1c4] sm:$0xf]
  %v145 = vld [vmem:[%s1 + $0x1c8] sm:$0xf]
  %v146 = vld [vmem:[%s1 + $0x1cc] sm:$0xf]
  %v147 = vld [vmem:[%s1 + $0x1d0] sm:$0xf]
  %v148 = vld [vmem:[%s1 + $0x1d4] sm:$0xf]
  %v149 = vld [vmem:[%s1 + $0x1d8] sm:$0xf]
  %v150 = vld [vmem:[%s1 + $0x1dc] sm:$0xf]
  %v151 = vld [vmem:[%s1 + $0x1e0] sm:$0xf]
  %v152 = vld [vmem:[%s1 + $0x1e4] sm:$0xf]
  %v153 = vld [vmem:[%s1 + $0x1e8] sm:$0xf]
  %v154 = vld [vmem:[%s1 + $0x1ec] sm:$0xf]
  %v155 = vld [vmem:[%s1 + $0x1f0] sm:$0xf]
  %v156 = vld [vmem:[%s1 + $0x1f4] sm:$0xf]
  %v157 = vld [vmem:[%s1 + $0x1f8] sm:$0xf]
  %v158 = vld [vmem:[%s1 + $0x1fc] sm:$0xf]
  %v159 = vld [vmem:[%s1 + $0x200] sm:$0xf]
  %v160 = vld [vmem:[%s1 + $0x204] sm:$0xf]
  %v161 = vld [vmem:[%s1 + $0x208] sm:$0xf]
  %v162 = vld [vmem:[%s1 + $0x20c] sm:$0xf]
  %v163 = vld [vmem:[%s1 + $0x210] sm:$0xf]
  %v164 = vld [vmem:[%s1 + $0x214] sm:$0xf]
  %v165 = vld [vmem:[%s1 + $0x218] sm:$0xf]
  %v166 = vld [vmem:[%s1 + $0x21c] sm:$0xf]
  %v167 = vld [vmem:[%s1 + $0x220] sm:$0xf]
  %v168 = vld [vmem:[%s1 + $0x224] sm:$0xf]
  %v169 = vld [vmem:[%s1 + $0x228] sm:$0xf]
  %v170 = vld [vmem:[%s1 + $0x22c] sm:$0xf]
  %v171 = vld [vmem:[%s1 + $0x230] sm:$0xf]
  %v172 = vld [vmem:[%s1 + $0x234] sm:$0xf]
  %v173 = vld [vmem:[%s1 + $0x238] sm:$0xf]
  %v174 = vld [vmem:[%s1 + $0x23c] sm:$0xf]
  %v195 = vunpack.c.l.b16 %v11
  %v196 = vunpack.c.h.b16 %v11
  %v197 = vunpack.c.l.b16 %v12
  %v198 = vunpack.c.h.b16 %v12
  %v199 = vunpack.c.l.b16 %v13
  %v200 = vunpack.c.h.b16 %v13
  %v201 = vunpack.c.l.b16 %v14
  %v202 = vunpack.c.h.b16 %v14
  %v203 = vunpack.c.l.b16 %v15
  %v204 = vunpack.c.l.b16 %v16
  %v205 = vunpack.c.h.b16 %v16
  %v206 = vunpack.c.l.b16 %v17
  %v207 = vunpack.c.h.b16 %v17
  %v208 = vunpack.c.l.b16 %v18
  %v209 = vunpack.c.h.b16 %v18
  %v210 = vunpack.c.l.b16 %v19
  %v211 = vunpack.c.h.b16 %v19
  %v212 = vunpack.c.l.b16 %v20
  %v213 = vunpack.c.l.b16 %v21
  %v214 = vunpack.c.h.b16 %v21
  %v215 = vunpack.c.l.b16 %v22
  %v216 = vunpack.c.h.b16 %v22
  %v217 = vunpack.c.l.b16 %v23
  %v218 = vunpack.c.h.b16 %v23
  %v219 = vunpack.c.l.b16 %v24
  %v220 = vunpack.c.h.b16 %v24
  %v221 = vunpack.c.l.b16 %v25
  %v222 = vunpack.c.l.b16 %v26
  %v223 = vunpack.c.h.b16 %v26
  %v224 = vunpack.c.l.b16 %v27
  %v225 = vunpack.c.h.b16 %v27
  %v226 = vunpack.c.l.b16 %v28
  %v227 = vunpack.c.h.b16 %v28
  %v228 = vunpack.c.l.b16 %v29
  %v229 = vunpack.c.h.b16 %v29
  %v230 = vunpack.c.l.b16 %v30
  %v231 = vpack.c.b16 %v204, %v195
  %v232 = vpack.c.b16 %v205, %v196
  %v233 = vpack.c.b16 %v206, %v197
  %v234 = vpack.c.b16 %v207, %v198
  %v235 = vpack.c.b16 %v208, %v199
  %v236 = vpack.c.b16 %v209, %v200
  %v237 = vpack.c.b16 %v210, %v201
  %v238 = vpack.c.b16 %v211, %v202
  %v239 = vpack.c.b16 %v212, %v203
  %v240 = vpack.c.b16 %v222, %v213
  %v241 = vpack.c.b16 %v223, %v214
  %v242 = vpack.c.b16 %v224, %v215
  %v243 = vpack.c.b16 %v225, %v216
  %v244 = vpack.c.b16 %v226, %v217
  %v245 = vpack.c.b16 %v227, %v218
  %v246 = vpack.c.b16 %v228, %v219
  %v247 = vpack.c.b16 %v229, %v220
  %v248 = vpack.c.b16 %v230, %v221
  %v411 = vunpack.c.l.b16 %v31
  %v412 = vunpack.c.l.b16 %v32
  %v413 = vunpack.c.l.b16 %v33
  %v414 = vunpack.c.l.b16 %v34
  %v415 = vunpack.c.l.b16 %v35
  %v416 = vunpack.c.l.b16 %v36
  %v417 = vunpack.c.l.b16 %v37
  %v418 = vunpack.c.l.b16 %v38
  %v419 = vunpack.c.l.b16 %v39
  %v420 = vunpack.c.l.b16 %v40
  %v421 = vunpack.c.l.b16 %v41
  %v422 = vunpack.c.l.b16 %v42
  %v423 = vunpack.c.l.b16 %v43
  %v424 = vunpack.c.l.b16 %v44
  %v425 = vunpack.c.l.b16 %v45
  %v426 = vunpack.c.l.b16 %v46
  %v427 = vunpack.c.l.b16 %v47
  %v428 = vunpack.c.l.b16 %v48
  %v429 = vunpack.c.l.b16 %v49
  %v430 = vunpack.c.l.b16 %v50
  %v431 = vunpack.c.l.b16 %v51
  %v432 = vunpack.c.l.b16 %v52
  %v433 = vunpack.c.l.b16 %v53
  %v434 = vunpack.c.l.b16 %v54
  %v435 = vunpack.c.l.b16 %v55
  %v436 = vunpack.c.l.b16 %v56
  %v437 = vunpack.c.l.b16 %v57
  %v438 = vunpack.c.l.b16 %v58
  %v439 = vunpack.c.l.b16 %v59
  %v440 = vunpack.c.l.b16 %v60
  %v441 = vunpack.c.l.b16 %v61
  %v442 = vunpack.c.l.b16 %v62
  %v443 = vunpack.c.l.b16 %v63
  %v444 = vunpack.c.l.b16 %v64
  %v445 = vunpack.c.l.b16 %v65
  %v446 = vunpack.c.l.b16 %v66
  %v447 = vunpack.c.l.b16 %v67
  %v448 = vunpack.c.l.b16 %v68
  %v449 = vunpack.c.l.b16 %v69
  %v450 = vunpack.c.l.b16 %v70
  %v451 = vunpack.c.l.b16 %v71
  %v452 = vunpack.c.l.b16 %v72
  %v453 = vunpack.c.l.b16 %v73
  %v454 = vunpack.c.l.b16 %v74
  %v455 = vunpack.c.l.b16 %v75
  %v456 = vunpack.c.l.b16 %v76
  %v457 = vunpack.c.l.b16 %v77
  %v458 = vunpack.c.l.b16 %v78
  %v459 = vunpack.c.l.b16 %v79
  %v460 = vunpack.c.l.b16 %v80
  %v461 = vunpack.c.l.b16 %v81
  %v462 = vunpack.c.l.b16 %v82
  %v463 = vunpack.c.l.b16 %v83
  %v464 = vunpack.c.l.b16 %v84
  %v465 = vunpack.c.l.b16 %v85
  %v466 = vunpack.c.l.b16 %v86
  %v467 = vunpack.c.l.b16 %v87
  %v468 = vunpack.c.l.b16 %v88
  %v469 = vunpack.c.l.b16 %v89
  %v470 = vunpack.c.l.b16 %v90
  %v471 = vunpack.c.l.b16 %v91
  %v472 = vunpack.c.l.b16 %v92
  %v473 = vunpack.c.l.b16 %v93
  %v474 = vunpack.c.l.b16 %v94
  %v475 = vunpack.c.l.b16 %v95
  %v476 = vunpack.c.l.b16 %v96
  %v477 = vunpack.c.l.b16 %v97
  %v478 = vunpack.c.l.b16 %v98
  %v479 = vunpack.c.l.b16 %v99
  %v480 = vunpack.c.l.b16 %v100
  %v481 = vunpack.c.l.b16 %v101
  %v482 = vunpack.c.l.b16 %v102
  %v483 = vunpack.c.l.b16 %v103
  %v484 = vunpack.c.l.b16 %v104
  %v485 = vunpack.c.l.b16 %v105
  %v486 = vunpack.c.l.b16 %v106
  %v487 = vunpack.c.l.b16 %v107
  %v488 = vunpack.c.l.b16 %v108
  %v489 = vunpack.c.l.b16 %v109
  %v490 = vunpack.c.l.b16 %v110
  %v491 = vunpack.c.l.b16 %v111
  %v492 = vunpack.c.l.b16 %v112
  %v493 = vunpack.c.l.b16 %v113
  %v494 = vunpack.c.l.b16 %v114
  %v495 = vunpack.c.l.b16 %v115
  %v496 = vunpack.c.l.b16 %v116
  %v497 = vunpack.c.l.b16 %v117
  %v498 = vunpack.c.l.b16 %v118
  %v499 = vunpack.c.l.b16 %v119
  %v500 = vunpack.c.l.b16 %v120
  %v501 = vunpack.c.l.b16 %v121
  %v502 = vunpack.c.l.b16 %v122
  %v503 = vunpack.c.l.b16 %v123
  %v504 = vunpack.c.l.b16 %v124
  %v505 = vunpack.c.l.b16 %v125
  %v506 = vunpack.c.l.b16 %v126
  %v507 = vunpack.c.l.b16 %v127
  %v508 = vunpack.c.l.b16 %v128
  %v509 = vunpack.c.l.b16 %v129
  %v510 = vunpack.c.l.b16 %v130
  %v511 = vunpack.c.l.b16 %v131
  %v512 = vunpack.c.l.b16 %v132
  %v513 = vunpack.c.l.b16 %v133
  %v514 = vunpack.c.l.b16 %v134
  %v515 = vunpack.c.l.b16 %v135
  %v516 = vunpack.c.l.b16 %v136
  %v517 = vunpack.c.l.b16 %v137
  %v518 = vunpack.c.l.b16 %v138
  %v519 = vunpack.c.l.b16 %v139
  %v520 = vunpack.c.l.b16 %v140
  %v521 = vunpack.c.l.b16 %v141
  %v522 = vunpack.c.l.b16 %v142
  %v523 = vunpack.c.l.b16 %v143
  %v524 = vunpack.c.l.b16 %v144
  %v525 = vunpack.c.l.b16 %v145
  %v526 = vunpack.c.l.b16 %v146
  %v527 = vunpack.c.l.b16 %v147
  %v528 = vunpack.c.l.b16 %v148
  %v529 = vunpack.c.l.b16 %v149
  %v530 = vunpack.c.l.b16 %v150
  %v531 = vunpack.c.l.b16 %v151
  %v532 = vunpack.c.l.b16 %v152
  %v533 = vunpack.c.l.b16 %v153
  %v534 = vunpack.c.l.b16 %v154
  %v535 = vunpack.c.l.b16 %v155
  %v536 = vunpack.c.l.b16 %v156
  %v537 = vunpack.c.l.b16 %v157
  %v538 = vunpack.c.l.b16 %v158
  %v539 = vunpack.c.l.b16 %v159
  %v540 = vunpack.c.l.b16 %v160
  %v541 = vunpack.c.l.b16 %v161
  %v542 = vunpack.c.l.b16 %v162
  %v543 = vunpack.c.l.b16 %v163
  %v544 = vunpack.c.l.b16 %v164
  %v545 = vunpack.c.l.b16 %v165
  %v546 = vunpack.c.l.b16 %v166
  %v547 = vunpack.c.l.b16 %v167
  %v548 = vunpack.c.l.b16 %v168
  %v549 = vunpack.c.l.b16 %v169
  %v550 = vunpack.c.l.b16 %v170
  %v551 = vunpack.c.l.b16 %v171
  %v552 = vunpack.c.l.b16 %v172
  %v553 = vunpack.c.l.b16 %v173
  %v554 = vunpack.c.l.b16 %v174
  %v555 = vpack.c.b16 %v412, %v411
  %v556 = vpack.c.b16 %v414, %v413
  %v557 = vpack.c.b16 %v416, %v415
  %v558 = vpack.c.b16 %v418, %v417
  %v559 = vpack.c.b16 %v420, %v419
  %v560 = vpack.c.b16 %v422, %v421
  %v561 = vpack.c.b16 %v424, %v423
  %v562 = vpack.c.b16 %v426, %v425
  %v563 = vpack.c.b16 %v428, %v427
  %v564 = vpack.c.b16 %v430, %v429
  %v565 = vpack.c.b16 %v432, %v431
  %v566 = vpack.c.b16 %v434, %v433
  %v567 = vpack.c.b16 %v436, %v435
  %v568 = vpack.c.b16 %v438, %v437
  %v569 = vpack.c.b16 %v440, %v439
  %v570 = vpack.c.b16 %v442, %v441
  %v571 = vpack.c.b16 %v444, %v443
  %v572 = vpack.c.b16 %v446, %v445
  %v573 = vpack.c.b16 %v448, %v447
  %v574 = vpack.c.b16 %v450, %v449
  %v575 = vpack.c.b16 %v452, %v451
  %v576 = vpack.c.b16 %v454, %v453
  %v577 = vpack.c.b16 %v456, %v455
  %v578 = vpack.c.b16 %v458, %v457
  %v579 = vpack.c.b16 %v460, %v459
  %v580 = vpack.c.b16 %v462, %v461
  %v581 = vpack.c.b16 %v464, %v463
  %v582 = vpack.c.b16 %v466, %v465
  %v583 = vpack.c.b16 %v468, %v467
  %v584 = vpack.c.b16 %v470, %v469
  %v585 = vpack.c.b16 %v472, %v471
  %v586 = vpack.c.b16 %v474, %v473
  %v587 = vpack.c.b16 %v476, %v475
  %v588 = vpack.c.b16 %v478, %v477
  %v589 = vpack.c.b16 %v480, %v479
  %v590 = vpack.c.b16 %v482, %v481
  %v591 = vpack.c.b16 %v484, %v483
  %v592 = vpack.c.b16 %v486, %v485
  %v593 = vpack.c.b16 %v488, %v487
  %v594 = vpack.c.b16 %v490, %v489
  %v595 = vpack.c.b16 %v492, %v491
  %v596 = vpack.c.b16 %v494, %v493
  %v597 = vpack.c.b16 %v496, %v495
  %v598 = vpack.c.b16 %v498, %v497
  %v599 = vpack.c.b16 %v500, %v499
  %v600 = vpack.c.b16 %v502, %v501
  %v601 = vpack.c.b16 %v504, %v503
  %v602 = vpack.c.b16 %v506, %v505
  %v603 = vpack.c.b16 %v508, %v507
  %v604 = vpack.c.b16 %v510, %v509
  %v605 = vpack.c.b16 %v512, %v511
  %v606 = vpack.c.b16 %v514, %v513
  %v607 = vpack.c.b16 %v516, %v515
  %v608 = vpack.c.b16 %v518, %v517
  %v609 = vpack.c.b16 %v520, %v519
  %v610 = vpack.c.b16 %v522, %v521
  %v611 = vpack.c.b16 %v524, %v523
  %v612 = vpack.c.b16 %v526, %v525
  %v613 = vpack.c.b16 %v528, %v527
  %v614 = vpack.c.b16 %v530, %v529
  %v615 = vpack.c.b16 %v532, %v531
  %v616 = vpack.c.b16 %v534, %v533
  %v617 = vpack.c.b16 %v536, %v535
  %v618 = vpack.c.b16 %v538, %v537
  %v619 = vpack.c.b16 %v540, %v539
  %v620 = vpack.c.b16 %v542, %v541
  %v621 = vpack.c.b16 %v544, %v543
  %v622 = vpack.c.b16 %v546, %v545
  %v623 = vpack.c.b16 %v548, %v547
  %v624 = vpack.c.b16 %v550, %v549
  %v625 = vpack.c.b16 %v552, %v551
  %v626 = vpack.c.b16 %v554, %v553
  %699 = vmatpush.bf16.msra.mxu0 %v562
  %700 = vmatpush.bf16.msra.mxu0 %v561
  %701 = vmatpush.bf16.msra.mxu0 %v560
  %702 = vmatpush.bf16.msra.mxu0 %v559
  %703 = vmatpush.bf16.msra.mxu0 %v558
  %704 = vmatpush.bf16.msra.mxu0 %v557
  %705 = vmatpush.bf16.msra.mxu0 %v556
  %706 = vmatpush.bf16.msra.mxu0 %v555
  %707 = vmatmul.bf16.gmra.mxu0 %v231
  %v708 = vpop.f32.mrf.mxu0
  %v709 = vadd.f32 0.0, %v708
  %v710 = vpop.f32.mrf.mxu0
  %v711 = vadd.f32 0.0, %v710
  %712 = vmatmul.bf16.gmra.mxu0 %v240
  %v713 = vpop.f32.mrf.mxu0
  %v714 = vadd.f32 0.0, %v713
  %v715 = vpop.f32.mrf.mxu0
  %v716 = vadd.f32 0.0, %v715
  %717 = vdwg.mxu0
  %718 = vmatpush.bf16.msra.mxu0 %v570
  %719 = vmatpush.bf16.msra.mxu0 %v569
  %720 = vmatpush.bf16.msra.mxu0 %v568
  %721 = vmatpush.bf16.msra.mxu0 %v567
  %722 = vmatpush.bf16.msra.mxu0 %v566
  %723 = vmatpush.bf16.msra.mxu0 %v565
  %724 = vmatpush.bf16.msra.mxu0 %v564
  %725 = vmatpush.bf16.msra.mxu0 %v563
  %726 = vmatmul.bf16.gmra.mxu0 %v232
  %v727 = vpop.f32.mrf.mxu0
  %v728 = vadd.f32 %v709, %v727
  %v729 = vpop.f32.mrf.mxu0
  %v730 = vadd.f32 %v711, %v729
  %731 = vmatmul.bf16.gmra.mxu0 %v241
  %v732 = vpop.f32.mrf.mxu0
  %v733 = vadd.f32 %v714, %v732
  %v734 = vpop.f32.mrf.mxu0
  %v735 = vadd.f32 %v716, %v734
  %736 = vdwg.mxu0
  %737 = vmatpush.bf16.msra.mxu0 %v578
  %738 = vmatpush.bf16.msra.mxu0 %v577
  %739 = vmatpush.bf16.msra.mxu0 %v576
  %740 = vmatpush.bf16.msra.mxu0 %v575
  %741 = vmatpush.bf16.msra.mxu0 %v574
  %742 = vmatpush.bf16.msra.mxu0 %v573
  %743 = vmatpush.bf16.msra.mxu0 %v572
  %744 = vmatpush.bf16.msra.mxu0 %v571
  %745 = vmatmul.bf16.gmra.mxu0 %v233
  %v746 = vpop.f32.mrf.mxu0
  %v747 = vadd.f32 %v728, %v746
  %v748 = vpop.f32.mrf.mxu0
  %v749 = vadd.f32 %v730, %v748
  %750 = vmatmul.bf16.gmra.mxu0 %v242
  %v751 = vpop.f32.mrf.mxu0
  %v752 = vadd.f32 %v733, %v751
  %v753 = vpop.f32.mrf.mxu0
  %v754 = vadd.f32 %v735, %v753
  %755 = vdwg.mxu0
  %756 = vmatpush.bf16.msra.mxu0 %v586
  %757 = vmatpush.bf16.msra.mxu0 %v585
  %758 = vmatpush.bf16.msra.mxu0 %v584
  %759 = vmatpush.bf16.msra.mxu0 %v583
  %760 = vmatpush.bf16.msra.mxu0 %v582
  %761 = vmatpush.bf16.msra.mxu0 %v581
  %762 = vmatpush.bf16.msra.mxu0 %v580
  %763 = vmatpush.bf16.msra.mxu0 %v579
  %764 = vmatmul.bf16.gmra.mxu0 %v234
  %v765 = vpop.f32.mrf.mxu0
  %v766 = vadd.f32 %v747, %v765
  %v767 = vpop.f32.mrf.mxu0
  %v768 = vadd.f32 %v749, %v767
  %769 = vmatmul.bf16.gmra.mxu0 %v243
  %v770 = vpop.f32.mrf.mxu0
  %v771 = vadd.f32 %v752, %v770
  %v772 = vpop.f32.mrf.mxu0
  %v773 = vadd.f32 %v754, %v772
  %774 = vdwg.mxu0
  %775 = vmatpush.bf16.msra.mxu0 %v594
  %776 = vmatpush.bf16.msra.mxu0 %v593
  %777 = vmatpush.bf16.msra.mxu0 %v592
  %778 = vmatpush.bf16.msra.mxu0 %v591
  %779 = vmatpush.bf16.msra.mxu0 %v590
  %780 = vmatpush.bf16.msra.mxu0 %v589
  %781 = vmatpush.bf16.msra.mxu0 %v588
  %782 = vmatpush.bf16.msra.mxu0 %v587
  %783 = vmatmul.bf16.gmra.mxu0 %v235
  %v784 = vpop.f32.mrf.mxu0
  %v785 = vadd.f32 %v766, %v784
  %v786 = vpop.f32.mrf.mxu0
  %v787 = vadd.f32 %v768, %v786
  %788 = vmatmul.bf16.gmra.mxu0 %v244
  %v789 = vpop.f32.mrf.mxu0
  %v790 = vadd.f32 %v771, %v789
  %v791 = vpop.f32.mrf.mxu0
  %v792 = vadd.f32 %v773, %v791
  %793 = vdwg.mxu0
  %794 = vmatpush.bf16.msra.mxu0 %v602
  %795 = vmatpush.bf16.msra.mxu0 %v601
  %796 = vmatpush.bf16.msra.mxu0 %v600
  %797 = vmatpush.bf16.msra.mxu0 %v599
  %798 = vmatpush.bf16.msra.mxu0 %v598
  %799 = vmatpush.bf16.msra.mxu0 %v597
  %800 = vmatpush.bf16.msra.mxu0 %v596
  %801 = vmatpush.bf16.msra.mxu0 %v595
  %802 = vmatmul.bf16.gmra.mxu0 %v236
  %v803 = vpop.f32.mrf.mxu0
  %v804 = vadd.f32 %v785, %v803
  %v805 = vpop.f32.mrf.mxu0
  %v806 = vadd.f32 %v787, %v805
  %807 = vmatmul.bf16.gmra.mxu0 %v245
  %v808 = vpop.f32.mrf.mxu0
  %v809 = vadd.f32 %v790, %v808
  %v810 = vpop.f32.mrf.mxu0
  %v811 = vadd.f32 %v792, %v810
  %812 = vdwg.mxu0
  %813 = vmatpush.bf16.msra.mxu0 %v610
  %814 = vmatpush.bf16.msra.mxu0 %v609
  %815 = vmatpush.bf16.msra.mxu0 %v608
  %816 = vmatpush.bf16.msra.mxu0 %v607
  %817 = vmatpush.bf16.msra.mxu0 %v606
  %818 = vmatpush.bf16.msra.mxu0 %v605
  %819 = vmatpush.bf16.msra.mxu0 %v604
  %820 = vmatpush.bf16.msra.mxu0 %v603
  %821 = vmatmul.bf16.gmra.mxu0 %v237
  %v822 = vpop.f32.mrf.mxu0
  %v823 = vadd.f32 %v804, %v822
  %v824 = vpop.f32.mrf.mxu0
  %v825 = vadd.f32 %v806, %v824
  %826 = vmatmul.bf16.gmra.mxu0 %v246
  %v827 = vpop.f32.mrf.mxu0
  %v828 = vadd.f32 %v809, %v827
  %v829 = vpop.f32.mrf.mxu0
  %v830 = vadd.f32 %v811, %v829
  %831 = vdwg.mxu0
  %832 = vmatpush.bf16.msra.mxu0 %v618
  %833 = vmatpush.bf16.msra.mxu0 %v617
  %834 = vmatpush.bf16.msra.mxu0 %v616
  %835 = vmatpush.bf16.msra.mxu0 %v615
  %836 = vmatpush.bf16.msra.mxu0 %v614
  %837 = vmatpush.bf16.msra.mxu0 %v613
  %838 = vmatpush.bf16.msra.mxu0 %v612
  %839 = vmatpush.bf16.msra.mxu0 %v611
  %840 = vmatmul.bf16.gmra.mxu0 %v238
  %v841 = vpop.f32.mrf.mxu0
  %v842 = vadd.f32 %v823, %v841
  %v843 = vpop.f32.mrf.mxu0
  %v844 = vadd.f32 %v825, %v843
  %845 = vmatmul.bf16.gmra.mxu0 %v247
  %v846 = vpop.f32.mrf.mxu0
  %v847 = vadd.f32 %v828, %v846
  %v848 = vpop.f32.mrf.mxu0
  %v849 = vadd.f32 %v830, %v848
  %850 = vdwg.mxu0
  %851 = vmatpush.bf16.msra.mxu0 %v626
  %852 = vmatpush.bf16.msra.mxu0 %v625
  %853 = vmatpush.bf16.msra.mxu0 %v624
  %854 = vmatpush.bf16.msra.mxu0 %v623
  %855 = vmatpush.bf16.msra.mxu0 %v622
  %856 = vmatpush.bf16.msra.mxu0 %v621
  %857 = vmatpush.bf16.msra.mxu0 %v620
  %858 = vmatpush.bf16.msra.mxu0 %v619
  %859 = vmatmul.bf16.gmra.mxu0 %v239
  %v860 = vpop.f32.mrf.mxu0
  %v861 = vadd.f32 %v842, %v860
  %v862 = vpop.f32.mrf.mxu0
  %v863 = vadd.f32 %v844, %v862
  %864 = vmatmul.bf16.gmra.mxu0 %v248
  %v865 = vpop.f32.mrf.mxu0
  %v866 = vadd.f32 %v847, %v865
  %v867 = vpop.f32.mrf.mxu0
  %v868 = vadd.f32 %v849, %v867
  %869 = vdwg.mxu0
  %v870 = vpack.c.bf16 %v861, %v861
  %v871 = vpack.c.bf16 %v863, %v863
  %v872 = vpack.c.bf16 %v866, %v866
  %v873 = vpack.c.bf16 %v868, %v868
  %874 = vst [vmem:[%s2] sm:$0xf] %v870
  %875 = vst [vmem:[%s2 + $0x4] sm:$0xf] %v871
  %876 = vst [vmem:[%s2 + $0x8] sm:$0xf] %v872
  %877 = vst [vmem:[%s2 + $0xc] sm:$0xf] %v873
  // Predicated region
  $region10: #{closed_call.55} parent=0 // pred_check
    _
  $region11: #{closed_call.55} parent=0 // pred_check_branch
    %879 = sbr.rel (0) target = $region13
  $region12: #{closed_call.55} parent=0 // pred_region
    _
  $region13: #{closed_call.55} parent=0 // pred_fallthru
    _
  // Predicated region
  $region14: #{closed_call.55} parent=0 // pred_check
    _
  $region15: #{closed_call.55} parent=0 // pred_check_branch
    %881 = sbr.rel (0) target = $region17
  $region16: #{closed_call.55} parent=0 // pred_region
    _
  $region17: #{closed_call.55} parent=0 // pred_fallthru
    _

// kernel: cnn_model_forward.14
$region0: #{cnn_model_forward.14}
  #allocation0 [shape = 'u32[]', space=smem, size = 0x4, offset = 0x4, fixed_abs, tag = 'smem constant byte address 0x4 - core index']
  #allocation1 [shape = 'u32[72,128]{1,0:T(1,128)}', space=vmem, size = 0x9000, scoped, tag = 'internal scratch']
  %s0 = inlined_call_operand.vmem [shape: bf16[32,512], index: 0, kind: input, shape index: {}]
  %s1 = inlined_call_operand.vmem [shape: bf16[512,256], index: 1, kind: input, shape index: {}]
  %s2 = inlined_call_operand.vmem [shape: f32[1,512], index: 2, kind: input, shape index: {}]
  %s3 = inlined_call_operand.vmem [shape: f32[1,512], index: 3, kind: input, shape index: {}]
  %s4 = inlined_call_operand.vmem [shape: bf16[32,256], index: 4, kind: output, shape index: {}]
  %s5 = sld [smem:[#allocation0]]
  $region26: #{cnn_model_forward.14} parent=0
    _
  %s7 = ssub.s32 1, %s5
  %s8 = scalar_select 0, %s7, %s5
  // Predicated region
  $region2: #{cnn_model_forward.14} parent=0 // pred_check
    _
  $region3: #{cnn_model_forward.14} parent=0 // pred_check_branch
    %10 = sbr.rel (0) target = $region5
  $region4: #{cnn_model_forward.14} parent=0 // pred_region
    _
  $region5: #{cnn_model_forward.14} parent=0 // pred_fallthru
    _
  // Predicated region
  $region6: #{cnn_model_forward.14} parent=0 // pred_check
    _
  $region7: #{cnn_model_forward.14} parent=0 // pred_check_branch
    %12 = sbr.rel (0) target = $region9
  $region8: #{cnn_model_forward.14} parent=0 // pred_region
    _
  $region9: #{cnn_model_forward.14} parent=0 // pred_fallthru
    _
  // Predicated region
  $region10: #{cnn_model_forward.14} parent=0 // pred_check
    _
  $region11: #{cnn_model_forward.14} parent=0 // pred_check_branch
    %14 = sbr.rel (0) target = $region13
  $region12: #{cnn_model_forward.14} parent=0 // pred_region
    _
  $region13: #{cnn_model_forward.14} parent=0 // pred_fallthru
    _
  // Predicated region
  $region14: #{cnn_model_forward.14} parent=0 // pred_check
    _
  $region15: #{cnn_model_forward.14} parent=0 // pred_check_branch
    %16 = sbr.rel (0) target = $region17
  $region16: #{cnn_model_forward.14} parent=0 // pred_region
    _
  $region17: #{cnn_model_forward.14} parent=0 // pred_fallthru
    _
  %v17 = vld [vmem:[%s0] sm:$0xff]
  %v18 = vld [vmem:[%s0 + $0x8] sm:$0xff]
  %v19 = vld [vmem:[%s0 + $0x10] sm:$0xff]
  %v20 = vld [vmem:[%s0 + $0x18] sm:$0xff]
  %v21 = vld [vmem:[%s0 + $0x20] sm:$0xff]
  %v22 = vld [vmem:[%s0 + $0x28] sm:$0xff]
  %v23 = vld [vmem:[%s0 + $0x30] sm:$0xff]
  %v24 = vld [vmem:[%s0 + $0x38] sm:$0xff]
  %v25 = vld [vmem:[%s2] sm:$0xf]
  %v27 = vperm.slane %v25, 0
  %v28 = vperm.slane %v25, 1
  %v29 = vperm.slane %v25, 2
  %v30 = vperm.slane %v25, 3
  %v35 = vpack.c.bf16 %v28, %v27
  %v36 = vpack.c.bf16 %v30, %v29
  %v37 = vld [vmem:[%s3] sm:$0xf]
  %v39 = vperm.slane %v37, 0
  %v40 = vperm.slane %v37, 1
  %v41 = vperm.slane %v37, 2
  %v42 = vperm.slane %v37, 3
  %v47 = vpack.c.bf16 %v40, %v39
  %v48 = vpack.c.bf16 %v42, %v41
  %v51 = vunpack.c.l.b16 %v35
  %v52 = vunpack.c.h.b16 %v35
  %v53 = vunpack.c.l.b16 %v36
  %v54 = vunpack.c.h.b16 %v36
  %v55 = vpack.c.b16 %v51, %v51
  %v56 = vpack.c.b16 %v52, %v52
  %v57 = vpack.c.b16 %v53, %v53
  %v58 = vpack.c.b16 %v54, %v54
  %v60 = vpack.i.b16 %v55, %v55
  %v62 = vperm.slane %v60, 0
  %v64 = vpack.i.b16 %v56, %v56
  %v66 = vperm.slane %v64, 0
  %v68 = vpack.i.b16 %v57, %v57
  %v70 = vperm.slane %v68, 0
  %v72 = vpack.i.b16 %v58, %v58
  %v74 = vperm.slane %v72, 0
  %v75 = vunpack.c.l.bf16 %v17
  %v76 = vunpack.c.h.bf16 %v17
  %v77 = vunpack.c.l.bf16 %v18
  %v78 = vunpack.c.h.bf16 %v18
  %v79 = vunpack.c.l.bf16 %v19
  %v80 = vunpack.c.h.bf16 %v19
  %v81 = vunpack.c.l.bf16 %v20
  %v82 = vunpack.c.h.bf16 %v20
  %v83 = vunpack.c.l.bf16 %v21
  %v84 = vunpack.c.h.bf16 %v21
  %v85 = vunpack.c.l.bf16 %v22
  %v86 = vunpack.c.h.bf16 %v22
  %v87 = vunpack.c.l.bf16 %v23
  %v88 = vunpack.c.h.bf16 %v23
  %v89 = vunpack.c.l.bf16 %v24
  %v90 = vunpack.c.h.bf16 %v24
  %v91 = vunpack.c.l.bf16 %v62
  %v92 = vunpack.c.l.bf16 %v66
  %v93 = vunpack.c.l.bf16 %v70
  %v94 = vunpack.c.l.bf16 %v74
  %v95 = vmul.f32 %v75, %v91
  %v96 = vmul.f32 %v76, %v92
  %v97 = vmul.f32 %v77, %v93
  %v98 = vmul.f32 %v78, %v94
  %v99 = vmul.f32 %v79, %v91
  %v100 = vmul.f32 %v80, %v92
  %v101 = vmul.f32 %v81, %v93
  %v102 = vmul.f32 %v82, %v94
  %v103 = vmul.f32 %v83, %v91
  %v104 = vmul.f32 %v84, %v92
  %v105 = vmul.f32 %v85, %v93
  %v106 = vmul.f32 %v86, %v94
  %v107 = vmul.f32 %v87, %v91
  %v108 = vmul.f32 %v88, %v92
  %v109 = vmul.f32 %v89, %v93
  %v110 = vmul.f32 %v90, %v94
  %v111 = vpack.c.bf16 %v96, %v95
  %v112 = vpack.c.bf16 %v98, %v97
  %v113 = vpack.c.bf16 %v100, %v99
  %v114 = vpack.c.bf16 %v102, %v101
  %v115 = vpack.c.bf16 %v104, %v103
  %v116 = vpack.c.bf16 %v106, %v105
  %v117 = vpack.c.bf16 %v108, %v107
  %v118 = vpack.c.bf16 %v110, %v109
  %v121 = vunpack.c.l.b16 %v47
  %v122 = vunpack.c.h.b16 %v47
  %v123 = vunpack.c.l.b16 %v48
  %v124 = vunpack.c.h.b16 %v48
  %v125 = vpack.c.b16 %v121, %v121
  %v126 = vpack.c.b16 %v122, %v122
  %v127 = vpack.c.b16 %v123, %v123
  %v128 = vpack.c.b16 %v124, %v124
  %v130 = vpack.i.b16 %v125, %v125
  %v132 = vperm.slane %v130, 0
  %v134 = vpack.i.b16 %v126, %v126
  %v136 = vperm.slane %v134, 0
  %v138 = vpack.i.b16 %v127, %v127
  %v140 = vperm.slane %v138, 0
  %v142 = vpack.i.b16 %v128, %v128
  %v144 = vperm.slane %v142, 0
  %v145 = vunpack.c.l.bf16 %v111
  %v146 = vunpack.c.h.bf16 %v111
  %v147 = vunpack.c.l.bf16 %v112
  %v148 = vunpack.c.h.bf16 %v112
  %v149 = vunpack.c.l.bf16 %v113
  %v150 = vunpack.c.h.bf16 %v113
  %v151 = vunpack.c.l.bf16 %v114
  %v152 = vunpack.c.h.bf16 %v114
  %v153 = vunpack.c.l.bf16 %v115
  %v154 = vunpack.c.h.bf16 %v115
  %v155 = vunpack.c.l.bf16 %v116
  %v156 = vunpack.c.h.bf16 %v116
  %v157 = vunpack.c.l.bf16 %v117
  %v158 = vunpack.c.h.bf16 %v117
  %v159 = vunpack.c.l.bf16 %v118
  %v160 = vunpack.c.h.bf16 %v118
  %v161 = vunpack.c.l.bf16 %v132
  %v162 = vunpack.c.l.bf16 %v136
  %v163 = vunpack.c.l.bf16 %v140
  %v164 = vunpack.c.l.bf16 %v144
  %v165 = vadd.f32 %v145, %v161
  %v166 = vadd.f32 %v146, %v162
  %v167 = vadd.f32 %v147, %v163
  %v168 = vadd.f32 %v148, %v164
  %v169 = vadd.f32 %v149, %v161
  %v170 = vadd.f32 %v150, %v162
  %v171 = vadd.f32 %v151, %v163
  %v172 = vadd.f32 %v152, %v164
  %v173 = vadd.f32 %v153, %v161
  %v174 = vadd.f32 %v154, %v162
  %v175 = vadd.f32 %v155, %v163
  %v176 = vadd.f32 %v156, %v164
  %v177 = vadd.f32 %v157, %v161
  %v178 = vadd.f32 %v158, %v162
  %v179 = vadd.f32 %v159, %v163
  %v180 = vadd.f32 %v160, %v164
  %v181 = vpack.c.bf16 %v166, %v165
  %v182 = vpack.c.bf16 %v168, %v167
  %v183 = vpack.c.bf16 %v170, %v169
  %v184 = vpack.c.bf16 %v172, %v171
  %v185 = vpack.c.bf16 %v174, %v173
  %v186 = vpack.c.bf16 %v176, %v175
  %v187 = vpack.c.bf16 %v178, %v177
  %v188 = vpack.c.bf16 %v180, %v179
  %v189 = vunpack.c.l.bf16 %v181
  %v190 = vunpack.c.h.bf16 %v181
  %v191 = vunpack.c.l.bf16 %v182
  %v192 = vunpack.c.h.bf16 %v182
  %v193 = vunpack.c.l.bf16 %v183
  %v194 = vunpack.c.h.bf16 %v183
  %v195 = vunpack.c.l.bf16 %v184
  %v196 = vunpack.c.h.bf16 %v184
  %v197 = vunpack.c.l.bf16 %v185
  %v198 = vunpack.c.h.bf16 %v185
  %v199 = vunpack.c.l.bf16 %v186
  %v200 = vunpack.c.h.bf16 %v186
  %v201 = vunpack.c.l.bf16 %v187
  %v202 = vunpack.c.h.bf16 %v187
  %v203 = vunpack.c.l.bf16 %v188
  %v204 = vunpack.c.h.bf16 %v188
  %v205 = vmax.f32 %v189, 0.0
  %v206 = vmax.f32 %v190, 0.0
  %v207 = vmax.f32 %v191, 0.0
  %v208 = vmax.f32 %v192, 0.0
  %v209 = vmax.f32 %v193, 0.0
  %v210 = vmax.f32 %v194, 0.0
  %v211 = vmax.f32 %v195, 0.0
  %v212 = vmax.f32 %v196, 0.0
  %v213 = vmax.f32 %v197, 0.0
  %v214 = vmax.f32 %v198, 0.0
  %v215 = vmax.f32 %v199, 0.0
  %v216 = vmax.f32 %v200, 0.0
  %v217 = vmax.f32 %v201, 0.0
  %v218 = vmax.f32 %v202, 0.0
  %v219 = vmax.f32 %v203, 0.0
  %v220 = vmax.f32 %v204, 0.0
  %v221 = vpack.c.bf16 %v209, %v205
  %v222 = vpack.c.bf16 %v210, %v206
  %v223 = vpack.c.bf16 %v211, %v207
  %v224 = vpack.c.bf16 %v212, %v208
  %v225 = vpack.c.bf16 %v217, %v213
  %v226 = vpack.c.bf16 %v218, %v214
  %v227 = vpack.c.bf16 %v219, %v215
  %v228 = vpack.c.bf16 %v220, %v216
  %v229 = vld [vmem:[%s1] sm:$0xff]
  %v230 = vld [vmem:[%s1 + $0x8] sm:$0xff]
  %v231 = vld [vmem:[%s1 + $0x10] sm:$0xff]
  %v232 = vld [vmem:[%s1 + $0x18] sm:$0xff]
  %v233 = vld [vmem:[%s1 + $0x20] sm:$0xff]
  %v234 = vld [vmem:[%s1 + $0x28] sm:$0xff]
  %v235 = vld [vmem:[%s1 + $0x30] sm:$0xff]
  %v236 = vld [vmem:[%s1 + $0x38] sm:$0xff]
  %v237 = vld [vmem:[%s1 + $0x40] sm:$0xff]
  %v238 = vld [vmem:[%s1 + $0x48] sm:$0xff]
  %v239 = vld [vmem:[%s1 + $0x50] sm:$0xff]
  %v240 = vld [vmem:[%s1 + $0x58] sm:$0xff]
  %v241 = vld [vmem:[%s1 + $0x60] sm:$0xff]
  %v242 = vld [vmem:[%s1 + $0x68] sm:$0xff]
  %v243 = vld [vmem:[%s1 + $0x70] sm:$0xff]
  %v244 = vld [vmem:[%s1 + $0x78] sm:$0xff]
  %v245 = vld [vmem:[%s1 + $0x80] sm:$0xff]
  %v246 = vld [vmem:[%s1 + $0x88] sm:$0xff]
  %v247 = vld [vmem:[%s1 + $0x90] sm:$0xff]
  %v248 = vld [vmem:[%s1 + $0x98] sm:$0xff]
  %v249 = vld [vmem:[%s1 + $0xa0] sm:$0xff]
  %v250 = vld [vmem:[%s1 + $0xa8] sm:$0xff]
  %v251 = vld [vmem:[%s1 + $0xb0] sm:$0xff]
  %v252 = vld [vmem:[%s1 + $0xb8] sm:$0xff]
  %v253 = vld [vmem:[%s1 + $0xc0] sm:$0xff]
  %v254 = vld [vmem:[%s1 + $0xc8] sm:$0xff]
  %v255 = vld [vmem:[%s1 + $0xd0] sm:$0xff]
  %v256 = vld [vmem:[%s1 + $0xd8] sm:$0xff]
  %v257 = vld [vmem:[%s1 + $0xe0] sm:$0xff]
  %v258 = vld [vmem:[%s1 + $0xe8] sm:$0xff]
  %v259 = vld [vmem:[%s1 + $0xf0] sm:$0xff]
  %v260 = vld [vmem:[%s1 + $0xf8] sm:$0xff]
  %v261 = vld [vmem:[%s1 + $0x100] sm:$0xff]
  %v262 = vld [vmem:[%s1 + $0x108] sm:$0xff]
  %v263 = vld [vmem:[%s1 + $0x110] sm:$0xff]
  %v264 = vld [vmem:[%s1 + $0x118] sm:$0xff]
  %v265 = vld [vmem:[%s1 + $0x120] sm:$0xff]
  %v266 = vld [vmem:[%s1 + $0x128] sm:$0xff]
  %v267 = vld [vmem:[%s1 + $0x130] sm:$0xff]
  %v268 = vld [vmem:[%s1 + $0x138] sm:$0xff]
  %v269 = vld [vmem:[%s1 + $0x140] sm:$0xff]
  %v270 = vld [vmem:[%s1 + $0x148] sm:$0xff]
  %v271 = vld [vmem:[%s1 + $0x150] sm:$0xff]
  %v272 = vld [vmem:[%s1 + $0x158] sm:$0xff]
  %v273 = vld [vmem:[%s1 + $0x160] sm:$0xff]
  %v274 = vld [vmem:[%s1 + $0x168] sm:$0xff]
  %v275 = vld [vmem:[%s1 + $0x170] sm:$0xff]
  %v276 = vld [vmem:[%s1 + $0x178] sm:$0xff]
  %v277 = vld [vmem:[%s1 + $0x180] sm:$0xff]
  %v278 = vld [vmem:[%s1 + $0x188] sm:$0xff]
  %v279 = vld [vmem:[%s1 + $0x190] sm:$0xff]
  %v280 = vld [vmem:[%s1 + $0x198] sm:$0xff]
  %v281 = vld [vmem:[%s1 + $0x1a0] sm:$0xff]
  %v282 = vld [vmem:[%s1 + $0x1a8] sm:$0xff]
  %v283 = vld [vmem:[%s1 + $0x1b0] sm:$0xff]
  %v284 = vld [vmem:[%s1 + $0x1b8] sm:$0xff]
  %v285 = vld [vmem:[%s1 + $0x1c0] sm:$0xff]
  %v286 = vld [vmem:[%s1 + $0x1c8] sm:$0xff]
  %v287 = vld [vmem:[%s1 + $0x1d0] sm:$0xff]
  %v288 = vld [vmem:[%s1 + $0x1d8] sm:$0xff]
  %v289 = vld [vmem:[%s1 + $0x1e0] sm:$0xff]
  %v290 = vld [vmem:[%s1 + $0x1e8] sm:$0xff]
  %v291 = vld [vmem:[%s1 + $0x1f0] sm:$0xff]
  %v292 = vld [vmem:[%s1 + $0x1f8] sm:$0xff]
  %v357 = vunpack.c.l.b16 %v229
  %v358 = vunpack.c.h.b16 %v229
  %v359 = vunpack.c.l.b16 %v230
  %v360 = vunpack.c.h.b16 %v230
  %v361 = vunpack.c.l.b16 %v231
  %v362 = vunpack.c.h.b16 %v231
  %v363 = vunpack.c.l.b16 %v232
  %v364 = vunpack.c.h.b16 %v232
  %v365 = vunpack.c.l.b16 %v233
  %v366 = vunpack.c.h.b16 %v233
  %v367 = vunpack.c.l.b16 %v234
  %v368 = vunpack.c.h.b16 %v234
  %v369 = vunpack.c.l.b16 %v235
  %v370 = vunpack.c.h.b16 %v235
  %v371 = vunpack.c.l.b16 %v236
  %v372 = vunpack.c.h.b16 %v236
  %v373 = vunpack.c.l.b16 %v237
  %v374 = vunpack.c.h.b16 %v237
  %v375 = vunpack.c.l.b16 %v238
  %v376 = vunpack.c.h.b16 %v238
  %v377 = vunpack.c.l.b16 %v239
  %v378 = vunpack.c.h.b16 %v239
  %v379 = vunpack.c.l.b16 %v240
  %v380 = vunpack.c.h.b16 %v240
  %v381 = vunpack.c.l.b16 %v241
  %v382 = vunpack.c.h.b16 %v241
  %v383 = vunpack.c.l.b16 %v242
  %v384 = vunpack.c.h.b16 %v242
  %v385 = vunpack.c.l.b16 %v243
  %v386 = vunpack.c.h.b16 %v243
  %v387 = vunpack.c.l.b16 %v244
  %v388 = vunpack.c.h.b16 %v244
  %v389 = vunpack.c.l.b16 %v245
  %v390 = vunpack.c.h.b16 %v245
  %v391 = vunpack.c.l.b16 %v246
  %v392 = vunpack.c.h.b16 %v246
  %v393 = vunpack.c.l.b16 %v247
  %v394 = vunpack.c.h.b16 %v247
  %v395 = vunpack.c.l.b16 %v248
  %v396 = vunpack.c.h.b16 %v248
  %v397 = vunpack.c.l.b16 %v249
  %v398 = vunpack.c.h.b16 %v249
  %v399 = vunpack.c.l.b16 %v250
  %v400 = vunpack.c.h.b16 %v250
  %v401 = vunpack.c.l.b16 %v251
  %v402 = vunpack.c.h.b16 %v251
  %v403 = vunpack.c.l.b16 %v252
  %v404 = vunpack.c.h.b16 %v252
  %v405 = vunpack.c.l.b16 %v253
  %v406 = vunpack.c.h.b16 %v253
  %v407 = vunpack.c.l.b16 %v254
  %v408 = vunpack.c.h.b16 %v254
  %v409 = vunpack.c.l.b16 %v255
  %v410 = vunpack.c.h.b16 %v255
  %v411 = vunpack.c.l.b16 %v256
  %v412 = vunpack.c.h.b16 %v256
  %v413 = vunpack.c.l.b16 %v257
  %v414 = vunpack.c.h.b16 %v257
  %v415 = vunpack.c.l.b16 %v258
  %v416 = vunpack.c.h.b16 %v258
  %v417 = vunpack.c.l.b16 %v259
  %v418 = vunpack.c.h.b16 %v259
  %v419 = vunpack.c.l.b16 %v260
  %v420 = vunpack.c.h.b16 %v260
  %v421 = vunpack.c.l.b16 %v261
  %v422 = vunpack.c.h.b16 %v261
  %v423 = vunpack.c.l.b16 %v262
  %v424 = vunpack.c.h.b16 %v262
  %v425 = vunpack.c.l.b16 %v263
  %v426 = vunpack.c.h.b16 %v263
  %v427 = vunpack.c.l.b16 %v264
  %v428 = vunpack.c.h.b16 %v264
  %v429 = vunpack.c.l.b16 %v265
  %v430 = vunpack.c.h.b16 %v265
  %v431 = vunpack.c.l.b16 %v266
  %v432 = vunpack.c.h.b16 %v266
  %v433 = vunpack.c.l.b16 %v267
  %v434 = vunpack.c.h.b16 %v267
  %v435 = vunpack.c.l.b16 %v268
  %v436 = vunpack.c.h.b16 %v268
  %v437 = vunpack.c.l.b16 %v269
  %v438 = vunpack.c.h.b16 %v269
  %v439 = vunpack.c.l.b16 %v270
  %v440 = vunpack.c.h.b16 %v270
  %v441 = vunpack.c.l.b16 %v271
  %v442 = vunpack.c.h.b16 %v271
  %v443 = vunpack.c.l.b16 %v272
  %v444 = vunpack.c.h.b16 %v272
  %v445 = vunpack.c.l.b16 %v273
  %v446 = vunpack.c.h.b16 %v273
  %v447 = vunpack.c.l.b16 %v274
  %v448 = vunpack.c.h.b16 %v274
  %v449 = vunpack.c.l.b16 %v275
  %v450 = vunpack.c.h.b16 %v275
  %v451 = vunpack.c.l.b16 %v276
  %v452 = vunpack.c.h.b16 %v276
  %v453 = vunpack.c.l.b16 %v277
  %v454 = vunpack.c.h.b16 %v277
  %v455 = vunpack.c.l.b16 %v278
  %v456 = vunpack.c.h.b16 %v278
  %v457 = vunpack.c.l.b16 %v279
  %v458 = vunpack.c.h.b16 %v279
  %v459 = vunpack.c.l.b16 %v280
  %v460 = vunpack.c.h.b16 %v280
  %v461 = vunpack.c.l.b16 %v281
  %v462 = vunpack.c.h.b16 %v281
  %v463 = vunpack.c.l.b16 %v282
  %v464 = vunpack.c.h.b16 %v282
  %v465 = vunpack.c.l.b16 %v283
  %v466 = vunpack.c.h.b16 %v283
  %v467 = vunpack.c.l.b16 %v284
  %v468 = vunpack.c.h.b16 %v284
  %v469 = vunpack.c.l.b16 %v285
  %v470 = vunpack.c.h.b16 %v285
  %v471 = vunpack.c.l.b16 %v286
  %v472 = vunpack.c.h.b16 %v286
  %v473 = vunpack.c.l.b16 %v287
  %v474 = vunpack.c.h.b16 %v287
  %v475 = vunpack.c.l.b16 %v288
  %v476 = vunpack.c.h.b16 %v288
  %v477 = vunpack.c.l.b16 %v289
  %v478 = vunpack.c.h.b16 %v289
  %v479 = vunpack.c.l.b16 %v290
  %v480 = vunpack.c.h.b16 %v290
  %v481 = vunpack.c.l.b16 %v291
  %v482 = vunpack.c.h.b16 %v291
  %v483 = vunpack.c.l.b16 %v292
  %v484 = vunpack.c.h.b16 %v292
  %v485 = vpack.c.b16 %v359, %v357
  %v486 = vpack.c.b16 %v360, %v358
  %v487 = vpack.c.b16 %v363, %v361
  %v488 = vpack.c.b16 %v364, %v362
  %v489 = vpack.c.b16 %v367, %v365
  %v490 = vpack.c.b16 %v368, %v366
  %v491 = vpack.c.b16 %v371, %v369
  %v492 = vpack.c.b16 %v372, %v370
  %v493 = vpack.c.b16 %v375, %v373
  %v494 = vpack.c.b16 %v376, %v374
  %v495 = vpack.c.b16 %v379, %v377
  %v496 = vpack.c.b16 %v380, %v378
  %v497 = vpack.c.b16 %v383, %v381
  %v498 = vpack.c.b16 %v384, %v382
  %v499 = vpack.c.b16 %v387, %v385
  %v500 = vpack.c.b16 %v388, %v386
  %v501 = vpack.c.b16 %v391, %v389
  %v502 = vpack.c.b16 %v392, %v390
  %v503 = vpack.c.b16 %v395, %v393
  %v504 = vpack.c.b16 %v396, %v394
  %v505 = vpack.c.b16 %v399, %v397
  %v506 = vpack.c.b16 %v400, %v398
  %v507 = vpack.c.b16 %v403, %v401
  %v508 = vpack.c.b16 %v404, %v402
  %v509 = vpack.c.b16 %v407, %v405
  %v510 = vpack.c.b16 %v408, %v406
  %v511 = vpack.c.b16 %v411, %v409
  %v512 = vpack.c.b16 %v412, %v410
  %v513 = vpack.c.b16 %v415, %v413
  %v514 = vpack.c.b16 %v416, %v414
  %v515 = vpack.c.b16 %v419, %v417
  %v516 = vpack.c.b16 %v420, %v418
  %v517 = vpack.c.b16 %v423, %v421
  %v518 = vpack.c.b16 %v424, %v422
  %v519 = vpack.c.b16 %v427, %v425
  %v520 = vpack.c.b16 %v428, %v426
  %v521 = vpack.c.b16 %v431, %v429
  %v522 = vpack.c.b16 %v432, %v430
  %v523 = vpack.c.b16 %v435, %v433
  %v524 = vpack.c.b16 %v436, %v434
  %v525 = vpack.c.b16 %v439, %v437
  %v526 = vpack.c.b16 %v440, %v438
  %v527 = vpack.c.b16 %v443, %v441
  %v528 = vpack.c.b16 %v444, %v442
  %v529 = vpack.c.b16 %v447, %v445
  %v530 = vpack.c.b16 %v448, %v446
  %v531 = vpack.c.b16 %v451, %v449
  %v532 = vpack.c.b16 %v452, %v450
  %v533 = vpack.c.b16 %v455, %v453
  %v534 = vpack.c.b16 %v456, %v454
  %v535 = vpack.c.b16 %v459, %v457
  %v536 = vpack.c.b16 %v460, %v458
  %v537 = vpack.c.b16 %v463, %v461
  %v538 = vpack.c.b16 %v464, %v462
  %v539 = vpack.c.b16 %v467, %v465
  %v540 = vpack.c.b16 %v468, %v466
  %v541 = vpack.c.b16 %v471, %v469
  %v542 = vpack.c.b16 %v472, %v470
  %v543 = vpack.c.b16 %v475, %v473
  %v544 = vpack.c.b16 %v476, %v474
  %v545 = vpack.c.b16 %v479, %v477
  %v546 = vpack.c.b16 %v480, %v478
  %v547 = vpack.c.b16 %v483, %v481
  %v548 = vpack.c.b16 %v484, %v482
  %613 = vmatpush.bf16.msra.mxu0 %v499
  %614 = vmatpush.bf16.msra.mxu0 %v497
  %615 = vmatpush.bf16.msra.mxu0 %v495
  %616 = vmatpush.bf16.msra.mxu0 %v493
  %617 = vmatpush.bf16.msra.mxu0 %v491
  %618 = vmatpush.bf16.msra.mxu0 %v489
  %619 = vmatpush.bf16.msra.mxu0 %v487
  %620 = vmatpush.bf16.msra.mxu0 %v485
  %621 = vmatmul.bf16.gmra.mxu0 %v221
  %v622 = vpop.f32.mrf.mxu0
  %v623 = vadd.f32 0.0, %v622
  %v624 = vpop.f32.mrf.mxu0
  %v625 = vadd.f32 0.0, %v624
  %626 = vmatmul.bf16.gmra.mxu0 %v225
  %v627 = vpop.f32.mrf.mxu0
  %v628 = vadd.f32 0.0, %v627
  %v629 = vpop.f32.mrf.mxu0
  %v630 = vadd.f32 0.0, %v629
  %631 = vdwg.mxu0
  %632 = vmatpush.bf16.msra.mxu0 %v515
  %633 = vmatpush.bf16.msra.mxu0 %v513
  %634 = vmatpush.bf16.msra.mxu0 %v511
  %635 = vmatpush.bf16.msra.mxu0 %v509
  %636 = vmatpush.bf16.msra.mxu0 %v507
  %637 = vmatpush.bf16.msra.mxu0 %v505
  %638 = vmatpush.bf16.msra.mxu0 %v503
  %639 = vmatpush.bf16.msra.mxu0 %v501
  %640 = vmatmul.bf16.gmra.mxu0 %v222
  %v641 = vpop.f32.mrf.mxu0
  %v642 = vadd.f32 %v623, %v641
  %v643 = vpop.f32.mrf.mxu0
  %v644 = vadd.f32 %v625, %v643
  %645 = vmatmul.bf16.gmra.mxu0 %v226
  %v646 = vpop.f32.mrf.mxu0
  %v647 = vadd.f32 %v628, %v646
  %v648 = vpop.f32.mrf.mxu0
  %v649 = vadd.f32 %v630, %v648
  %650 = vdwg.mxu0
  %651 = vmatpush.bf16.msra.mxu0 %v531
  %652 = vmatpush.bf16.msra.mxu0 %v529
  %653 = vmatpush.bf16.msra.mxu0 %v527
  %654 = vmatpush.bf16.msra.mxu0 %v525
  %655 = vmatpush.bf16.msra.mxu0 %v523
  %656 = vmatpush.bf16.msra.mxu0 %v521
  %657 = vmatpush.bf16.msra.mxu0 %v519
  %658 = vmatpush.bf16.msra.mxu0 %v517
  %659 = vmatmul.bf16.gmra.mxu0 %v223
  %v660 = vpop.f32.mrf.mxu0
  %v661 = vadd.f32 %v642, %v660
  %v662 = vpop.f32.mrf.mxu0
  %v663 = vadd.f32 %v644, %v662
  %664 = vmatmul.bf16.gmra.mxu0 %v227
  %v665 = vpop.f32.mrf.mxu0
  %v666 = vadd.f32 %v647, %v665
  %v667 = vpop.f32.mrf.mxu0
  %v668 = vadd.f32 %v649, %v667
  %669 = vdwg.mxu0
  %670 = vmatpush.bf16.msra.mxu0 %v547
  %671 = vmatpush.bf16.msra.mxu0 %v545
  %672 = vmatpush.bf16.msra.mxu0 %v543
  %673 = vmatpush.bf16.msra.mxu0 %v541
  %674 = vmatpush.bf16.msra.mxu0 %v539
  %675 = vmatpush.bf16.msra.mxu0 %v537
  %676 = vmatpush.bf16.msra.mxu0 %v535
  %677 = vmatpush.bf16.msra.mxu0 %v533
  %678 = vmatmul.bf16.gmra.mxu0 %v224
  %v679 = vpop.f32.mrf.mxu0
  %v680 = vadd.f32 %v661, %v679
  %v681 = vpop.f32.mrf.mxu0
  %v682 = vadd.f32 %v663, %v681
  %683 = vmatmul.bf16.gmra.mxu0 %v228
  %v684 = vpop.f32.mrf.mxu0
  %v685 = vadd.f32 %v666, %v684
  %v686 = vpop.f32.mrf.mxu0
  %v687 = vadd.f32 %v668, %v686
  %688 = vdwg.mxu0
  %689 = vmatpush.bf16.msra.mxu0 %v500
  %690 = vmatpush.bf16.msra.mxu0 %v498
  %691 = vmatpush.bf16.msra.mxu0 %v496
  %692 = vmatpush.bf16.msra.mxu0 %v494
  %693 = vmatpush.bf16.msra.mxu0 %v492
  %694 = vmatpush.bf16.msra.mxu0 %v490
  %695 = vmatpush.bf16.msra.mxu0 %v488
  %696 = vmatpush.bf16.msra.mxu0 %v486
  %697 = vmatmul.bf16.gmra.mxu0 %v221
  %v698 = vpop.f32.mrf.mxu0
  %v699 = vadd.f32 0.0, %v698
  %v700 = vpop.f32.mrf.mxu0
  %v701 = vadd.f32 0.0, %v700
  %702 = vmatmul.bf16.gmra.mxu0 %v225
  %v703 = vpop.f32.mrf.mxu0
  %v704 = vadd.f32 0.0, %v703
  %v705 = vpop.f32.mrf.mxu0
  %v706 = vadd.f32 0.0, %v705
  %707 = vdwg.mxu0
  %708 = vmatpush.bf16.msra.mxu0 %v516
  %709 = vmatpush.bf16.msra.mxu0 %v514
  %710 = vmatpush.bf16.msra.mxu0 %v512
  %711 = vmatpush.bf16.msra.mxu0 %v510
  %712 = vmatpush.bf16.msra.mxu0 %v508
  %713 = vmatpush.bf16.msra.mxu0 %v506
  %714 = vmatpush.bf16.msra.mxu0 %v504
  %715 = vmatpush.bf16.msra.mxu0 %v502
  %716 = vmatmul.bf16.gmra.mxu0 %v222
  %v717 = vpop.f32.mrf.mxu0
  %v718 = vadd.f32 %v699, %v717
  %v719 = vpop.f32.mrf.mxu0
  %v720 = vadd.f32 %v701, %v719
  %721 = vmatmul.bf16.gmra.mxu0 %v226
  %v722 = vpop.f32.mrf.mxu0
  %v723 = vadd.f32 %v704, %v722
  %v724 = vpop.f32.mrf.mxu0
  %v725 = vadd.f32 %v706, %v724
  %726 = vdwg.mxu0
  %727 = vmatpush.bf16.msra.mxu0 %v532
  %728 = vmatpush.bf16.msra.mxu0 %v530
  %729 = vmatpush.bf16.msra.mxu0 %v528
  %730 = vmatpush.bf16.msra.mxu0 %v526
  %731 = vmatpush.bf16.msra.mxu0 %v524
  %732 = vmatpush.bf16.msra.mxu0 %v522
  %733 = vmatpush.bf16.msra.mxu0 %v520
  %734 = vmatpush.bf16.msra.mxu0 %v518
  %735 = vmatmul.bf16.gmra.mxu0 %v223
  %v736 = vpop.f32.mrf.mxu0
  %v737 = vadd.f32 %v718, %v736
  %v738 = vpop.f32.mrf.mxu0
  %v739 = vadd.f32 %v720, %v738
  %740 = vmatmul.bf16.gmra.mxu0 %v227
  %v741 = vpop.f32.mrf.mxu0
  %v742 = vadd.f32 %v723, %v741
  %v743 = vpop.f32.mrf.mxu0
  %v744 = vadd.f32 %v725, %v743
  %745 = vdwg.mxu0
  %746 = vmatpush.bf16.msra.mxu0 %v548
  %747 = vmatpush.bf16.msra.mxu0 %v546
  %748 = vmatpush.bf16.msra.mxu0 %v544
  %749 = vmatpush.bf16.msra.mxu0 %v542
  %750 = vmatpush.bf16.msra.mxu0 %v540
  %751 = vmatpush.bf16.msra.mxu0 %v538
  %752 = vmatpush.bf16.msra.mxu0 %v536
  %753 = vmatpush.bf16.msra.mxu0 %v534
  %754 = vmatmul.bf16.gmra.mxu0 %v224
  %v755 = vpop.f32.mrf.mxu0
  %v756 = vadd.f32 %v737, %v755
  %v757 = vpop.f32.mrf.mxu0
  %v758 = vadd.f32 %v739, %v757
  %759 = vmatmul.bf16.gmra.mxu0 %v228
  %v760 = vpop.f32.mrf.mxu0
  %v761 = vadd.f32 %v742, %v760
  %v762 = vpop.f32.mrf.mxu0
  %v763 = vadd.f32 %v744, %v762
  %764 = vdwg.mxu0
  %v765 = vpack.c.bf16 %v756, %v680
  %v766 = vpack.c.bf16 %v758, %v682
  %v767 = vpack.c.bf16 %v761, %v685
  %v768 = vpack.c.bf16 %v763, %v687
  %769 = vst [vmem:[%s4] sm:$0xff] %v765
  %770 = vst [vmem:[%s4 + $0x8] sm:$0xff] %v766
  %771 = vst [vmem:[%s4 + $0x10] sm:$0xff] %v767
  %772 = vst [vmem:[%s4 + $0x18] sm:$0xff] %v768
  // Predicated region
  $region18: #{cnn_model_forward.14} parent=0 // pred_check
    _
  $region19: #{cnn_model_forward.14} parent=0 // pred_check_branch
    %774 = sbr.rel (0) target = $region21
  $region20: #{cnn_model_forward.14} parent=0 // pred_region
    _
  $region21: #{cnn_model_forward.14} parent=0 // pred_fallthru
    _
  // Predicated region
  $region22: #{cnn_model_forward.14} parent=0 // pred_check
    _
  $region23: #{cnn_model_forward.14} parent=0 // pred_check_branch
    %776 = sbr.rel (0) target = $region25
  $region24: #{cnn_model_forward.14} parent=0 // pred_region
    _
  $region25: #{cnn_model_forward.14} parent=0 // pred_fallthru
    _

// kernel: cnn_model_forward.15
$region0: #{cnn_model_forward.15}
  #allocation0 [shape = 'u32[]', space=smem, size = 0x4, offset = 0x4, fixed_abs, tag = 'smem constant byte address 0x4 - core index']
  #allocation1 [shape = 'u32[72,128]{1,0:T(1,128)}', space=vmem, size = 0x9000, scoped, tag = 'internal scratch']
  %s0 = inlined_call_operand.vmem [shape: bf16[4,16,256], index: 0, kind: input, shape index: {}]
  %s1 = inlined_call_operand.vmem [shape: bf16[16,256], index: 1, kind: output, shape index: {}]
  %s2 = sld [smem:[#allocation0]]
  $region14: #{cnn_model_forward.15} parent=0
    _
  %s4 = ssub.s32 1, %s2
  %s5 = scalar_select 0, %s4, %s2
  // Predicated region
  $region2: #{cnn_model_forward.15} parent=0 // pred_check
    _
  $region3: #{cnn_model_forward.15} parent=0 // pred_check_branch
    %7 = sbr.rel (0) target = $region5
  $region4: #{cnn_model_forward.15} parent=0 // pred_region
    _
  $region5: #{cnn_model_forward.15} parent=0 // pred_fallthru
    _
  %v8 = vld [vmem:[%s0] sm:$0xff]
  %v9 = vld [vmem:[%s0 + $0x8] sm:$0xff]
  %v10 = vunpack.c.l.bf16 %v8
  %v11 = vunpack.c.h.bf16 %v8
  %v12 = vunpack.c.l.bf16 %v9
  %v13 = vunpack.c.h.bf16 %v9
  %s14 = scalar_lea.vmem %s0, 16
  %v15 = vld [vmem:[%s14] sm:$0xff]
  %v16 = vld [vmem:[%s14 + $0x8] sm:$0xff]
  %v17 = vunpack.c.l.bf16 %v15
  %v18 = vunpack.c.h.bf16 %v15
  %v19 = vunpack.c.l.bf16 %v16
  %v20 = vunpack.c.h.bf16 %v16
  %v21 = vadd.f32 %v10, %v17
  %v22 = vadd.f32 %v11, %v18
  %v23 = vadd.f32 %v12, %v19
  %v24 = vadd.f32 %v13, %v20
  %s25 = scalar_lea.vmem %s0, 32
  %v26 = vld [vmem:[%s25] sm:$0xff]
  %v27 = vld [vmem:[%s25 + $0x8] sm:$0xff]
  %v28 = vunpack.c.l.bf16 %v26
  %v29 = vunpack.c.h.bf16 %v26
  %v30 = vunpack.c.l.bf16 %v27
  %v31 = vunpack.c.h.bf16 %v27
  %v32 = vadd.f32 %v21, %v28
  %v33 = vadd.f32 %v22, %v29
  %v34 = vadd.f32 %v23, %v30
  %v35 = vadd.f32 %v24, %v31
  %s36 = scalar_lea.vmem %s0, 48
  %v37 = vld [vmem:[%s36] sm:$0xff]
  %v38 = vld [vmem:[%s36 + $0x8] sm:$0xff]
  %v39 = vunpack.c.l.bf16 %v37
  %v40 = vunpack.c.h.bf16 %v37
  %v41 = vunpack.c.l.bf16 %v38
  %v42 = vunpack.c.h.bf16 %v38
  %v43 = vadd.f32 %v32, %v39
  %v44 = vadd.f32 %v33, %v40
  %v45 = vadd.f32 %v34, %v41
  %v46 = vadd.f32 %v35, %v42
  %v47 = vmul.f32 %v43, 0.25
  %v48 = vmul.f32 %v44, 0.25
  %v49 = vmul.f32 %v45, 0.25
  %v50 = vmul.f32 %v46, 0.25
  %v51 = vpack.c.bf16 %v48, %v47
  %v52 = vpack.c.bf16 %v50, %v49
  %53 = vst [vmem:[%s1] sm:$0xff] %v51
  %54 = vst [vmem:[%s1 + $0x8] sm:$0xff] %v52
  // Predicated region
  $region6: #{cnn_model_forward.15} parent=0 // pred_check
    _
  $region7: #{cnn_model_forward.15} parent=0 // pred_check_branch
    %56 = sbr.rel (0) target = $region9
  $region8: #{cnn_model_forward.15} parent=0 // pred_region
    _
  $region9: #{cnn_model_forward.15} parent=0 // pred_fallthru
    _
  // Predicated region
  $region10: #{cnn_model_forward.15} parent=0 // pred_check
    _
  $region11: #{cnn_model_forward.15} parent=0 // pred_check_branch
    %58 = sbr.rel (0) target = $region13
  $region12: #{cnn_model_forward.15} parent=0 // pred_region
    _
  $region13: #{cnn_model_forward.15} parent=0 // pred_fallthru
    _

// kernel: closed_call.56
$region0: #{closed_call.56}
  #allocation0 [shape = 'u32[]', space=smem, size = 0x4, offset = 0x4, fixed_abs, tag = 'smem constant byte address 0x4 - core index']
  #allocation1 [shape = 'u32[72,128]{1,0:T(1,128)}', space=vmem, size = 0x9000, scoped, tag = 'internal scratch']
  %s0 = inlined_call_operand.vmem [shape: bf16[16,1024], index: 0, kind: input, shape index: {}]
  %s1 = inlined_call_operand.vmem [shape: bf16[1024,128], index: 1, kind: input, shape index: {}]
  %s2 = inlined_call_operand.vmem [shape: f32[1,1024], index: 2, kind: input, shape index: {}]
  %s3 = inlined_call_operand.vmem [shape: f32[1,1024], index: 3, kind: input, shape index: {}]
  %s4 = inlined_call_operand.vmem [shape: f32[1,128], index: 4, kind: input, shape index: {}]
  %s5 = inlined_call_operand.vmem [shape: f32[1,128], index: 5, kind: input, shape index: {}]
  %s6 = inlined_call_operand.vmem [shape: bf16[16,128], index: 6, kind: output, shape index: {}]
  %s7 = sld [smem:[#allocation0]]
  $region34: #{closed_call.56} parent=0
    _
  %s9 = ssub.s32 1, %s7
  %s10 = scalar_select 0, %s9, %s7
  // Predicated region
  $region2: #{closed_call.56} parent=0 // pred_check
    _
  $region3: #{closed_call.56} parent=0 // pred_check_branch
    %12 = sbr.rel (0) target = $region5
  $region4: #{closed_call.56} parent=0 // pred_region
    _
  $region5: #{closed_call.56} parent=0 // pred_fallthru
    _
  // Predicated region
  $region6: #{closed_call.56} parent=0 // pred_check
    _
  $region7: #{closed_call.56} parent=0 // pred_check_branch
    %14 = sbr.rel (0) target = $region9
  $region8: #{closed_call.56} parent=0 // pred_region
    _
  $region9: #{closed_call.56} parent=0 // pred_fallthru
    _
  // Predicated region
  $region10: #{closed_call.56} parent=0 // pred_check
    _
  $region11: #{closed_call.56} parent=0 // pred_check_branch
    %16 = sbr.rel (0) target = $region13
  $region12: #{closed_call.56} parent=0 // pred_region
    _
  $region13: #{closed_call.56} parent=0 // pred_fallthru
    _
  // Predicated region
  $region14: #{closed_call.56} parent=0 // pred_check
    _
  $region15: #{closed_call.56} parent=0 // pred_check_branch
    %18 = sbr.rel (0) target = $region17
  $region16: #{closed_call.56} parent=0 // pred_region
    _
  $region17: #{closed_call.56} parent=0 // pred_fallthru
    _
  // Predicated region
  $region18: #{closed_call.56} parent=0 // pred_check
    _
  $region19: #{closed_call.56} parent=0 // pred_check_branch
    %20 = sbr.rel (0) target = $region21
  $region20: #{closed_call.56} parent=0 // pred_region
    _
  $region21: #{closed_call.56} parent=0 // pred_fallthru
    _
  // Predicated region
  $region22: #{closed_call.56} parent=0 // pred_check
    _
  $region23: #{closed_call.56} parent=0 // pred_check_branch
    %22 = sbr.rel (0) target = $region25
  $region24: #{closed_call.56} parent=0 // pred_region
    _
  $region25: #{closed_call.56} parent=0 // pred_fallthru
    _
  %v23 = vld [vmem:[%s0] sm:$0xff]
  %v24 = vld [vmem:[%s0 + $0x8] sm:$0xff]
  %v25 = vld [vmem:[%s0 + $0x10] sm:$0xff]
  %v26 = vld [vmem:[%s0 + $0x18] sm:$0xff]
  %v27 = vld [vmem:[%s0 + $0x20] sm:$0xff]
  %v28 = vld [vmem:[%s0 + $0x28] sm:$0xff]
  %v29 = vld [vmem:[%s0 + $0x30] sm:$0xff]
  %v30 = vld [vmem:[%s0 + $0x38] sm:$0xff]
  %v31 = vld [vmem:[%s2] sm:$0xff]
  %v33 = vperm.slane %v31, 0
  %v34 = vperm.slane %v31, 1
  %v35 = vperm.slane %v31, 2
  %v36 = vperm.slane %v31, 3
  %v37 = vperm.slane %v31, 4
  %v38 = vperm.slane %v31, 5
  %v39 = vperm.slane %v31, 6
  %v40 = vperm.slane %v31, 7
  %v49 = vpack.c.bf16 %v34, %v33
  %v50 = vpack.c.bf16 %v36, %v35
  %v51 = vpack.c.bf16 %v38, %v37
  %v52 = vpack.c.bf16 %v40, %v39
  %v53 = vld [vmem:[%s3] sm:$0xff]
  %v55 = vperm.slane %v53, 0
  %v56 = vperm.slane %v53, 1
  %v57 = vperm.slane %v53, 2
  %v58 = vperm.slane %v53, 3
  %v59 = vperm.slane %v53, 4
  %v60 = vperm.slane %v53, 5
  %v61 = vperm.slane %v53, 6
  %v62 = vperm.slane %v53, 7
  %v71 = vpack.c.bf16 %v56, %v55
  %v72 = vpack.c.bf16 %v58, %v57
  %v73 = vpack.c.bf16 %v60, %v59
  %v74 = vpack.c.bf16 %v62, %v61
  %v79 = vunpack.c.l.b16 %v49
  %v80 = vunpack.c.h.b16 %v49
  %v81 = vunpack.c.l.b16 %v50
  %v82 = vunpack.c.h.b16 %v50
  %v83 = vunpack.c.l.b16 %v51
  %v84 = vunpack.c.h.b16 %v51
  %v85 = vunpack.c.l.b16 %v52
  %v86 = vunpack.c.h.b16 %v52
  %v87 = vpack.c.b16 %v79, %v79
  %v88 = vpack.c.b16 %v80, %v80
  %v89 = vpack.c.b16 %v81, %v81
  %v90 = vpack.c.b16 %v82, %v82
  %v91 = vpack.c.b16 %v83, %v83
  %v92 = vpack.c.b16 %v84, %v84
  %v93 = vpack.c.b16 %v85, %v85
  %v94 = vpack.c.b16 %v86, %v86
  %v96 = vpack.i.b16 %v87, %v87
  %v98 = vperm.slane %v96, 0
  %v100 = vpack.i.b16 %v88, %v88
  %v102 = vperm.slane %v100, 0
  %v104 = vpack.i.b16 %v89, %v89
  %v106 = vperm.slane %v104, 0
  %v108 = vpack.i.b16 %v90, %v90
  %v110 = vperm.slane %v108, 0
  %v112 = vpack.i.b16 %v91, %v91
  %v114 = vperm.slane %v112, 0
  %v116 = vpack.i.b16 %v92, %v92
  %v118 = vperm.slane %v116, 0
  %v120 = vpack.i.b16 %v93, %v93
  %v122 = vperm.slane %v120, 0
  %v124 = vpack.i.b16 %v94, %v94
  %v126 = vperm.slane %v124, 0
  %v127 = vunpack.c.l.bf16 %v23
  %v128 = vunpack.c.h.bf16 %v23
  %v129 = vunpack.c.l.bf16 %v24
  %v130 = vunpack.c.h.bf16 %v24
  %v131 = vunpack.c.l.bf16 %v25
  %v132 = vunpack.c.h.bf16 %v25
  %v133 = vunpack.c.l.bf16 %v26
  %v134 = vunpack.c.h.bf16 %v26
  %v135 = vunpack.c.l.bf16 %v27
  %v136 = vunpack.c.h.bf16 %v27
  %v137 = vunpack.c.l.bf16 %v28
  %v138 = vunpack.c.h.bf16 %v28
  %v139 = vunpack.c.l.bf16 %v29
  %v140 = vunpack.c.h.bf16 %v29
  %v141 = vunpack.c.l.bf16 %v30
  %v142 = vunpack.c.h.bf16 %v30
  %v143 = vunpack.c.l.bf16 %v98
  %v144 = vunpack.c.l.bf16 %v102
  %v145 = vunpack.c.l.bf16 %v106
  %v146 = vunpack.c.l.bf16 %v110
  %v147 = vunpack.c.l.bf16 %v114
  %v148 = vunpack.c.l.bf16 %v118
  %v149 = vunpack.c.l.bf16 %v122
  %v150 = vunpack.c.l.bf16 %v126
  %v151 = vmul.f32 %v127, %v143
  %v152 = vmul.f32 %v128, %v144
  %v153 = vmul.f32 %v129, %v145
  %v154 = vmul.f32 %v130, %v146
  %v155 = vmul.f32 %v131, %v147
  %v156 = vmul.f32 %v132, %v148
  %v157 = vmul.f32 %v133, %v149
  %v158 = vmul.f32 %v134, %v150
  %v159 = vmul.f32 %v135, %v143
  %v160 = vmul.f32 %v136, %v144
  %v161 = vmul.f32 %v137, %v145
  %v162 = vmul.f32 %v138, %v146
  %v163 = vmul.f32 %v139, %v147
  %v164 = vmul.f32 %v140, %v148
  %v165 = vmul.f32 %v141, %v149
  %v166 = vmul.f32 %v142, %v150
  %v167 = vpack.c.bf16 %v152, %v151
  %v168 = vpack.c.bf16 %v154, %v153
  %v169 = vpack.c.bf16 %v156, %v155
  %v170 = vpack.c.bf16 %v158, %v157
  %v171 = vpack.c.bf16 %v160, %v159
  %v172 = vpack.c.bf16 %v162, %v161
  %v173 = vpack.c.bf16 %v164, %v163
  %v174 = vpack.c.bf16 %v166, %v165
  %v179 = vunpack.c.l.b16 %v71
  %v180 = vunpack.c.h.b16 %v71
  %v181 = vunpack.c.l.b16 %v72
  %v182 = vunpack.c.h.b16 %v72
  %v183 = vunpack.c.l.b16 %v73
  %v184 = vunpack.c.h.b16 %v73
  %v185 = vunpack.c.l.b16 %v74
  %v186 = vunpack.c.h.b16 %v74
  %v187 = vpack.c.b16 %v179, %v179
  %v188 = vpack.c.b16 %v180, %v180
  %v189 = vpack.c.b16 %v181, %v181
  %v190 = vpack.c.b16 %v182, %v182
  %v191 = vpack.c.b16 %v183, %v183
  %v192 = vpack.c.b16 %v184, %v184
  %v193 = vpack.c.b16 %v185, %v185
  %v194 = vpack.c.b16 %v186, %v186
  %v196 = vpack.i.b16 %v187, %v187
  %v198 = vperm.slane %v196, 0
  %v200 = vpack.i.b16 %v188, %v188
  %v202 = vperm.slane %v200, 0
  %v204 = vpack.i.b16 %v189, %v189
  %v206 = vperm.slane %v204, 0
  %v208 = vpack.i.b16 %v190, %v190
  %v210 = vperm.slane %v208, 0
  %v212 = vpack.i.b16 %v191, %v191
  %v214 = vperm.slane %v212, 0
  %v216 = vpack.i.b16 %v192, %v192
  %v218 = vperm.slane %v216, 0
  %v220 = vpack.i.b16 %v193, %v193
  %v222 = vperm.slane %v220, 0
  %v224 = vpack.i.b16 %v194, %v194
  %v226 = vperm.slane %v224, 0
  %v227 = vunpack.c.l.bf16 %v167
  %v228 = vunpack.c.h.bf16 %v167
  %v229 = vunpack.c.l.bf16 %v168
  %v230 = vunpack.c.h.bf16 %v168
  %v231 = vunpack.c.l.bf16 %v169
  %v232 = vunpack.c.h.bf16 %v169
  %v233 = vunpack.c.l.bf16 %v170
  %v234 = vunpack.c.h.bf16 %v170
  %v235 = vunpack.c.l.bf16 %v171
  %v236 = vunpack.c.h.bf16 %v171
  %v237 = vunpack.c.l.bf16 %v172
  %v238 = vunpack.c.h.bf16 %v172
  %v239 = vunpack.c.l.bf16 %v173
  %v240 = vunpack.c.h.bf16 %v173
  %v241 = vunpack.c.l.bf16 %v174
  %v242 = vunpack.c.h.bf16 %v174
  %v243 = vunpack.c.l.bf16 %v198
  %v244 = vunpack.c.l.bf16 %v202
  %v245 = vunpack.c.l.bf16 %v206
  %v246 = vunpack.c.l.bf16 %v210
  %v247 = vunpack.c.l.bf16 %v214
  %v248 = vunpack.c.l.bf16 %v218
  %v249 = vunpack.c.l.bf16 %v222
  %v250 = vunpack.c.l.bf16 %v226
  %v251 = vadd.f32 %v227, %v243
  %v252 = vadd.f32 %v228, %v244
  %v253 = vadd.f32 %v229, %v245
  %v254 = vadd.f32 %v230, %v246
  %v255 = vadd.f32 %v231, %v247
  %v256 = vadd.f32 %v232, %v248
  %v257 = vadd.f32 %v233, %v249
  %v258 = vadd.f32 %v234, %v250
  %v259 = vadd.f32 %v235, %v243
  %v260 = vadd.f32 %v236, %v244
  %v261 = vadd.f32 %v237, %v245
  %v262 = vadd.f32 %v238, %v246
  %v263 = vadd.f32 %v239, %v247
  %v264 = vadd.f32 %v240, %v248
  %v265 = vadd.f32 %v241, %v249
  %v266 = vadd.f32 %v242, %v250
  %v267 = vpack.c.bf16 %v252, %v251
  %v268 = vpack.c.bf16 %v254, %v253
  %v269 = vpack.c.bf16 %v256, %v255
  %v270 = vpack.c.bf16 %v258, %v257
  %v271 = vpack.c.bf16 %v260, %v259
  %v272 = vpack.c.bf16 %v262, %v261
  %v273 = vpack.c.bf16 %v264, %v263
  %v274 = vpack.c.bf16 %v266, %v265
  %v275 = vunpack.c.l.bf16 %v267
  %v276 = vunpack.c.h.bf16 %v267
  %v277 = vunpack.c.l.bf16 %v268
  %v278 = vunpack.c.h.bf16 %v268
  %v279 = vunpack.c.l.bf16 %v269
  %v280 = vunpack.c.h.bf16 %v269
  %v281 = vunpack.c.l.bf16 %v270
  %v282 = vunpack.c.h.bf16 %v270
  %v283 = vunpack.c.l.bf16 %v271
  %v284 = vunpack.c.h.bf16 %v271
  %v285 = vunpack.c.l.bf16 %v272
  %v286 = vunpack.c.h.bf16 %v272
  %v287 = vunpack.c.l.bf16 %v273
  %v288 = vunpack.c.h.bf16 %v273
  %v289 = vunpack.c.l.bf16 %v274
  %v290 = vunpack.c.h.bf16 %v274
  %v291 = vmax.f32 %v275, 0.0
  %v292 = vmax.f32 %v276, 0.0
  %v293 = vmax.f32 %v277, 0.0
  %v294 = vmax.f32 %v278, 0.0
  %v295 = vmax.f32 %v279, 0.0
  %v296 = vmax.f32 %v280, 0.0
  %v297 = vmax.f32 %v281, 0.0
  %v298 = vmax.f32 %v282, 0.0
  %v299 = vmax.f32 %v283, 0.0
  %v300 = vmax.f32 %v284, 0.0
  %v301 = vmax.f32 %v285, 0.0
  %v302 = vmax.f32 %v286, 0.0
  %v303 = vmax.f32 %v287, 0.0
  %v304 = vmax.f32 %v288, 0.0
  %v305 = vmax.f32 %v289, 0.0
  %v306 = vmax.f32 %v290, 0.0
  %v307 = vpack.c.bf16 %v299, %v291
  %v308 = vpack.c.bf16 %v300, %v292
  %v309 = vpack.c.bf16 %v301, %v293
  %v310 = vpack.c.bf16 %v302, %v294
  %v311 = vpack.c.bf16 %v303, %v295
  %v312 = vpack.c.bf16 %v304, %v296
  %v313 = vpack.c.bf16 %v305, %v297
  %v314 = vpack.c.bf16 %v306, %v298
  %v315 = vld [vmem:[%s1] sm:$0xf]
  %v316 = vld [vmem:[%s1 + $0x4] sm:$0xf]
  %v317 = vld [vmem:[%s1 + $0x8] sm:$0xf]
  %v318 = vld [vmem:[%s1 + $0xc] sm:$0xf]
  %v319 = vld [vmem:[%s1 + $0x10] sm:$0xf]
  %v320 = vld [vmem:[%s1 + $0x14] sm:$0xf]
  %v321 = vld [vmem:[%s1 + $0x18] sm:$0xf]
  %v322 = vld [vmem:[%s1 + $0x1c] sm:$0xf]
  %v323 = vld [vmem:[%s1 + $0x20] sm:$0xf]
  %v324 = vld [vmem:[%s1 + $0x24] sm:$0xf]
  %v325 = vld [vmem:[%s1 + $0x28] sm:$0xf]
  %v326 = vld [vmem:[%s1 + $0x2c] sm:$0xf]
  %v327 = vld [vmem:[%s1 + $0x30] sm:$0xf]
  %v328 = vld [vmem:[%s1 + $0x34] sm:$0xf]
  %v329 = vld [vmem:[%s1 + $0x38] sm:$0xf]
  %v330 = vld [vmem:[%s1 + $0x3c] sm:$0xf]
  %v331 = vld [vmem:[%s1 + $0x40] sm:$0xf]
  %v332 = vld [vmem:[%s1 + $0x44] sm:$0xf]
  %v333 = vld [vmem:[%s1 + $0x48] sm:$0xf]
  %v334 = vld [vmem:[%s1 + $0x4c] sm:$0xf]
  %v335 = vld [vmem:[%s1 + $0x50] sm:$0xf]
  %v336 = vld [vmem:[%s1 + $0x54] sm:$0xf]
  %v337 = vld [vmem:[%s1 + $0x58] sm:$0xf]
  %v338 = vld [vmem:[%s1 + $0x5c] sm:$0xf]
  %v339 = vld [vmem:[%s1 + $0x60] sm:$0xf]
  %v340 = vld [vmem:[%s1 + $0x64] sm:$0xf]
  %v341 = vld [vmem:[%s1 + $0x68] sm:$0xf]
  %v342 = vld [vmem:[%s1 + $0x6c] sm:$0xf]
  %v343 = vld [vmem:[%s1 + $0x70] sm:$0xf]
  %v344 = vld [vmem:[%s1 + $0x74] sm:$0xf]
  %v345 = vld [vmem:[%s1 + $0x78] sm:$0xf]
  %v346 = vld [vmem:[%s1 + $0x7c] sm:$0xf]
  %v347 = vld [vmem:[%s1 + $0x80] sm:$0xf]
  %v348 = vld [vmem:[%s1 + $0x84] sm:$0xf]
  %v349 = vld [vmem:[%s1 + $0x88] sm:$0xf]
  %v350 = vld [vmem:[%s1 + $0x8c] sm:$0xf]
  %v351 = vld [vmem:[%s1 + $0x90] sm:$0xf]
  %v352 = vld [vmem:[%s1 + $0x94] sm:$0xf]
  %v353 = vld [vmem:[%s1 + $0x98] sm:$0xf]
  %v354 = vld [vmem:[%s1 + $0x9c] sm:$0xf]
  %v355 = vld [vmem:[%s1 + $0xa0] sm:$0xf]
  %v356 = vld [vmem:[%s1 + $0xa4] sm:$0xf]
  %v357 = vld [vmem:[%s1 + $0xa8] sm:$0xf]
  %v358 = vld [vmem:[%s1 + $0xac] sm:$0xf]
  %v359 = vld [vmem:[%s1 + $0xb0] sm:$0xf]
  %v360 = vld [vmem:[%s1 + $0xb4] sm:$0xf]
  %v361 = vld [vmem:[%s1 + $0xb8] sm:$0xf]
  %v362 = vld [vmem:[%s1 + $0xbc] sm:$0xf]
  %v363 = vld [vmem:[%s1 + $0xc0] sm:$0xf]
  %v364 = vld [vmem:[%s1 + $0xc4] sm:$0xf]
  %v365 = vld [vmem:[%s1 + $0xc8] sm:$0xf]
  %v366 = vld [vmem:[%s1 + $0xcc] sm:$0xf]
  %v367 = vld [vmem:[%s1 + $0xd0] sm:$0xf]
  %v368 = vld [vmem:[%s1 + $0xd4] sm:$0xf]
  %v369 = vld [vmem:[%s1 + $0xd8] sm:$0xf]
  %v370 = vld [vmem:[%s1 + $0xdc] sm:$0xf]
  %v371 = vld [vmem:[%s1 + $0xe0] sm:$0xf]
  %v372 = vld [vmem:[%s1 + $0xe4] sm:$0xf]
  %v373 = vld [vmem:[%s1 + $0xe8] sm:$0xf]
  %v374 = vld [vmem:[%s1 + $0xec] sm:$0xf]
  %v375 = vld [vmem:[%s1 + $0xf0] sm:$0xf]
  %v376 = vld [vmem:[%s1 + $0xf4] sm:$0xf]
  %v377 = vld [vmem:[%s1 + $0xf8] sm:$0xf]
  %v378 = vld [vmem:[%s1 + $0xfc] sm:$0xf]
  %v379 = vld [vmem:[%s1 + $0x100] sm:$0xf]
  %v380 = vld [vmem:[%s1 + $0x104] sm:$0xf]
  %v381 = vld [vmem:[%s1 + $0x108] sm:$0xf]
  %v382 = vld [vmem:[%s1 + $0x10c] sm:$0xf]
  %v383 = vld [vmem:[%s1 + $0x110] sm:$0xf]
  %v384 = vld [vmem:[%s1 + $0x114] sm:$0xf]
  %v385 = vld [vmem:[%s1 + $0x118] sm:$0xf]
  %v386 = vld [vmem:[%s1 + $0x11c] sm:$0xf]
  %v387 = vld [vmem:[%s1 + $0x120] sm:$0xf]
  %v388 = vld [vmem:[%s1 + $0x124] sm:$0xf]
  %v389 = vld [vmem:[%s1 + $0x128] sm:$0xf]
  %v390 = vld [vmem:[%s1 + $0x12c] sm:$0xf]
  %v391 = vld [vmem:[%s1 + $0x130] sm:$0xf]
  %v392 = vld [vmem:[%s1 + $0x134] sm:$0xf]
  %v393 = vld [vmem:[%s1 + $0x138] sm:$0xf]
  %v394 = vld [vmem:[%s1 + $0x13c] sm:$0xf]
  %v395 = vld [vmem:[%s1 + $0x140] sm:$0xf]
  %v396 = vld [vmem:[%s1 + $0x144] sm:$0xf]
  %v397 = vld [vmem:[%s1 + $0x148] sm:$0xf]
  %v398 = vld [vmem:[%s1 + $0x14c] sm:$0xf]
  %v399 = vld [vmem:[%s1 + $0x150] sm:$0xf]
  %v400 = vld [vmem:[%s1 + $0x154] sm:$0xf]
  %v401 = vld [vmem:[%s1 + $0x158] sm:$0xf]
  %v402 = vld [vmem:[%s1 + $0x15c] sm:$0xf]
  %v403 = vld [vmem:[%s1 + $0x160] sm:$0xf]
  %v404 = vld [vmem:[%s1 + $0x164] sm:$0xf]
  %v405 = vld [vmem:[%s1 + $0x168] sm:$0xf]
  %v406 = vld [vmem:[%s1 + $0x16c] sm:$0xf]
  %v407 = vld [vmem:[%s1 + $0x170] sm:$0xf]
  %v408 = vld [vmem:[%s1 + $0x174] sm:$0xf]
  %v409 = vld [vmem:[%s1 + $0x178] sm:$0xf]
  %v410 = vld [vmem:[%s1 + $0x17c] sm:$0xf]
  %v411 = vld [vmem:[%s1 + $0x180] sm:$0xf]
  %v412 = vld [vmem:[%s1 + $0x184] sm:$0xf]
  %v413 = vld [vmem:[%s1 + $0x188] sm:$0xf]
  %v414 = vld [vmem:[%s1 + $0x18c] sm:$0xf]
  %v415 = vld [vmem:[%s1 + $0x190] sm:$0xf]
  %v416 = vld [vmem:[%s1 + $0x194] sm:$0xf]
  %v417 = vld [vmem:[%s1 + $0x198] sm:$0xf]
  %v418 = vld [vmem:[%s1 + $0x19c] sm:$0xf]
  %v419 = vld [vmem:[%s1 + $0x1a0] sm:$0xf]
  %v420 = vld [vmem:[%s1 + $0x1a4] sm:$0xf]
  %v421 = vld [vmem:[%s1 + $0x1a8] sm:$0xf]
  %v422 = vld [vmem:[%s1 + $0x1ac] sm:$0xf]
  %v423 = vld [vmem:[%s1 + $0x1b0] sm:$0xf]
  %v424 = vld [vmem:[%s1 + $0x1b4] sm:$0xf]
  %v425 = vld [vmem:[%s1 + $0x1b8] sm:$0xf]
  %v426 = vld [vmem:[%s1 + $0x1bc] sm:$0xf]
  %v427 = vld [vmem:[%s1 + $0x1c0] sm:$0xf]
  %v428 = vld [vmem:[%s1 + $0x1c4] sm:$0xf]
  %v429 = vld [vmem:[%s1 + $0x1c8] sm:$0xf]
  %v430 = vld [vmem:[%s1 + $0x1cc] sm:$0xf]
  %v431 = vld [vmem:[%s1 + $0x1d0] sm:$0xf]
  %v432 = vld [vmem:[%s1 + $0x1d4] sm:$0xf]
  %v433 = vld [vmem:[%s1 + $0x1d8] sm:$0xf]
  %v434 = vld [vmem:[%s1 + $0x1dc] sm:$0xf]
  %v435 = vld [vmem:[%s1 + $0x1e0] sm:$0xf]
  %v436 = vld [vmem:[%s1 + $0x1e4] sm:$0xf]
  %v437 = vld [vmem:[%s1 + $0x1e8] sm:$0xf]
  %v438 = vld [vmem:[%s1 + $0x1ec] sm:$0xf]
  %v439 = vld [vmem:[%s1 + $0x1f0] sm:$0xf]
  %v440 = vld [vmem:[%s1 + $0x1f4] sm:$0xf]
  %v441 = vld [vmem:[%s1 + $0x1f8] sm:$0xf]
  %v442 = vld [vmem:[%s1 + $0x1fc] sm:$0xf]
  %v571 = vunpack.c.l.b16 %v315
  %v572 = vunpack.c.l.b16 %v316
  %v573 = vunpack.c.l.b16 %v317
  %v574 = vunpack.c.l.b16 %v318
  %v575 = vunpack.c.l.b16 %v319
  %v576 = vunpack.c.l.b16 %v320
  %v577 = vunpack.c.l.b16 %v321
  %v578 = vunpack.c.l.b16 %v322
  %v579 = vunpack.c.l.b16 %v323
  %v580 = vunpack.c.l.b16 %v324
  %v581 = vunpack.c.l.b16 %v325
  %v582 = vunpack.c.l.b16 %v326
  %v583 = vunpack.c.l.b16 %v327
  %v584 = vunpack.c.l.b16 %v328
  %v585 = vunpack.c.l.b16 %v329
  %v586 = vunpack.c.l.b16 %v330
  %v587 = vunpack.c.l.b16 %v331
  %v588 = vunpack.c.l.b16 %v332
  %v589 = vunpack.c.l.b16 %v333
  %v590 = vunpack.c.l.b16 %v334
  %v591 = vunpack.c.l.b16 %v335
  %v592 = vunpack.c.l.b16 %v336
  %v593 = vunpack.c.l.b16 %v337
  %v594 = vunpack.c.l.b16 %v338
  %v595 = vunpack.c.l.b16 %v339
  %v596 = vunpack.c.l.b16 %v340
  %v597 = vunpack.c.l.b16 %v341
  %v598 = vunpack.c.l.b16 %v342
  %v599 = vunpack.c.l.b16 %v343
  %v600 = vunpack.c.l.b16 %v344
  %v601 = vunpack.c.l.b16 %v345
  %v602 = vunpack.c.l.b16 %v346
  %v603 = vunpack.c.l.b16 %v347
  %v604 = vunpack.c.l.b16 %v348
  %v605 = vunpack.c.l.b16 %v349
  %v606 = vunpack.c.l.b16 %v350
  %v607 = vunpack.c.l.b16 %v351
  %v608 = vunpack.c.l.b16 %v352
  %v609 = vunpack.c.l.b16 %v353
  %v610 = vunpack.c.l.b16 %v354
  %v611 = vunpack.c.l.b16 %v355
  %v612 = vunpack.c.l.b16 %v356
  %v613 = vunpack.c.l.b16 %v357
  %v614 = vunpack.c.l.b16 %v358
  %v615 = vunpack.c.l.b16 %v359
  %v616 = vunpack.c.l.b16 %v360
  %v617 = vunpack.c.l.b16 %v361
  %v618 = vunpack.c.l.b16 %v362
  %v619 = vunpack.c.l.b16 %v363
  %v620 = vunpack.c.l.b16 %v364
  %v621 = vunpack.c.l.b16 %v365
  %v622 = vunpack.c.l.b16 %v366
  %v623 = vunpack.c.l.b16 %v367
  %v624 = vunpack.c.l.b16 %v368
  %v625 = vunpack.c.l.b16 %v369
  %v626 = vunpack.c.l.b16 %v370
  %v627 = vunpack.c.l.b16 %v371
  %v628 = vunpack.c.l.b16 %v372
  %v629 = vunpack.c.l.b16 %v373
  %v630 = vunpack.c.l.b16 %v374
  %v631 = vunpack.c.l.b16 %v375
  %v632 = vunpack.c.l.b16 %v376
  %v633 = vunpack.c.l.b16 %v377
  %v634 = vunpack.c.l.b16 %v378
  %v635 = vunpack.c.l.b16 %v379
  %v636 = vunpack.c.l.b16 %v380
  %v637 = vunpack.c.l.b16 %v381
  %v638 = vunpack.c.l.b16 %v382
  %v639 = vunpack.c.l.b16 %v383
  %v640 = vunpack.c.l.b16 %v384
  %v641 = vunpack.c.l.b16 %v385
  %v642 = vunpack.c.l.b16 %v386
  %v643 = vunpack.c.l.b16 %v387
  %v644 = vunpack.c.l.b16 %v388
  %v645 = vunpack.c.l.b16 %v389
  %v646 = vunpack.c.l.b16 %v390
  %v647 = vunpack.c.l.b16 %v391
  %v648 = vunpack.c.l.b16 %v392
  %v649 = vunpack.c.l.b16 %v393
  %v650 = vunpack.c.l.b16 %v394
  %v651 = vunpack.c.l.b16 %v395
  %v652 = vunpack.c.l.b16 %v396
  %v653 = vunpack.c.l.b16 %v397
  %v654 = vunpack.c.l.b16 %v398
  %v655 = vunpack.c.l.b16 %v399
  %v656 = vunpack.c.l.b16 %v400
  %v657 = vunpack.c.l.b16 %v401
  %v658 = vunpack.c.l.b16 %v402
  %v659 = vunpack.c.l.b16 %v403
  %v660 = vunpack.c.l.b16 %v404
  %v661 = vunpack.c.l.b16 %v405
  %v662 = vunpack.c.l.b16 %v406
  %v663 = vunpack.c.l.b16 %v407
  %v664 = vunpack.c.l.b16 %v408
  %v665 = vunpack.c.l.b16 %v409
  %v666 = vunpack.c.l.b16 %v410
  %v667 = vunpack.c.l.b16 %v411
  %v668 = vunpack.c.l.b16 %v412
  %v669 = vunpack.c.l.b16 %v413
  %v670 = vunpack.c.l.b16 %v414
  %v671 = vunpack.c.l.b16 %v415
  %v672 = vunpack.c.l.b16 %v416
  %v673 = vunpack.c.l.b16 %v417
  %v674 = vunpack.c.l.b16 %v418
  %v675 = vunpack.c.l.b16 %v419
  %v676 = vunpack.c.l.b16 %v420
  %v677 = vunpack.c.l.b16 %v421
  %v678 = vunpack.c.l.b16 %v422
  %v679 = vunpack.c.l.b16 %v423
  %v680 = vunpack.c.l.b16 %v424
  %v681 = vunpack.c.l.b16 %v425
  %v682 = vunpack.c.l.b16 %v426
  %v683 = vunpack.c.l.b16 %v427
  %v684 = vunpack.c.l.b16 %v428
  %v685 = vunpack.c.l.b16 %v429
  %v686 = vunpack.c.l.b16 %v430
  %v687 = vunpack.c.l.b16 %v431
  %v688 = vunpack.c.l.b16 %v432
  %v689 = vunpack.c.l.b16 %v433
  %v690 = vunpack.c.l.b16 %v434
  %v691 = vunpack.c.l.b16 %v435
  %v692 = vunpack.c.l.b16 %v436
  %v693 = vunpack.c.l.b16 %v437
  %v694 = vunpack.c.l.b16 %v438
  %v695 = vunpack.c.l.b16 %v439
  %v696 = vunpack.c.l.b16 %v440
  %v697 = vunpack.c.l.b16 %v441
  %v698 = vunpack.c.l.b16 %v442
  %v699 = vpack.c.b16 %v572, %v571
  %v700 = vpack.c.b16 %v574, %v573
  %v701 = vpack.c.b16 %v576, %v575
  %v702 = vpack.c.b16 %v578, %v577
  %v703 = vpack.c.b16 %v580, %v579
  %v704 = vpack.c.b16 %v582, %v581
  %v705 = vpack.c.b16 %v584, %v583
  %v706 = vpack.c.b16 %v586, %v585
  %v707 = vpack.c.b16 %v588, %v587
  %v708 = vpack.c.b16 %v590, %v589
  %v709 = vpack.c.b16 %v592, %v591
  %v710 = vpack.c.b16 %v594, %v593
  %v711 = vpack.c.b16 %v596, %v595
  %v712 = vpack.c.b16 %v598, %v597
  %v713 = vpack.c.b16 %v600, %v599
  %v714 = vpack.c.b16 %v602, %v601
  %v715 = vpack.c.b16 %v604, %v603
  %v716 = vpack.c.b16 %v606, %v605
  %v717 = vpack.c.b16 %v608, %v607
  %v718 = vpack.c.b16 %v610, %v609
  %v719 = vpack.c.b16 %v612, %v611
  %v720 = vpack.c.b16 %v614, %v613
  %v721 = vpack.c.b16 %v616, %v615
  %v722 = vpack.c.b16 %v618, %v617
  %v723 = vpack.c.b16 %v620, %v619
  %v724 = vpack.c.b16 %v622, %v621
  %v725 = vpack.c.b16 %v624, %v623
  %v726 = vpack.c.b16 %v626, %v625
  %v727 = vpack.c.b16 %v628, %v627
  %v728 = vpack.c.b16 %v630, %v629
  %v729 = vpack.c.b16 %v632, %v631
  %v730 = vpack.c.b16 %v634, %v633
  %v731 = vpack.c.b16 %v636, %v635
  %v732 = vpack.c.b16 %v638, %v637
  %v733 = vpack.c.b16 %v640, %v639
  %v734 = vpack.c.b16 %v642, %v641
  %v735 = vpack.c.b16 %v644, %v643
  %v736 = vpack.c.b16 %v646, %v645
  %v737 = vpack.c.b16 %v648, %v647
  %v738 = vpack.c.b16 %v650, %v649
  %v739 = vpack.c.b16 %v652, %v651
  %v740 = vpack.c.b16 %v654, %v653
  %v741 = vpack.c.b16 %v656, %v655
  %v742 = vpack.c.b16 %v658, %v657
  %v743 = vpack.c.b16 %v660, %v659
  %v744 = vpack.c.b16 %v662, %v661
  %v745 = vpack.c.b16 %v664, %v663
  %v746 = vpack.c.b16 %v666, %v665
  %v747 = vpack.c.b16 %v668, %v667
  %v748 = vpack.c.b16 %v670, %v669
  %v749 = vpack.c.b16 %v672, %v671
  %v750 = vpack.c.b16 %v674, %v673
  %v751 = vpack.c.b16 %v676, %v675
  %v752 = vpack.c.b16 %v678, %v677
  %v753 = vpack.c.b16 %v680, %v679
  %v754 = vpack.c.b16 %v682, %v681
  %v755 = vpack.c.b16 %v684, %v683
  %v756 = vpack.c.b16 %v686, %v685
  %v757 = vpack.c.b16 %v688, %v687
  %v758 = vpack.c.b16 %v690, %v689
  %v759 = vpack.c.b16 %v692, %v691
  %v760 = vpack.c.b16 %v694, %v693
  %v761 = vpack.c.b16 %v696, %v695
  %v762 = vpack.c.b16 %v698, %v697
  %827 = vmatpush.bf16.msra.mxu0 %v706
  %828 = vmatpush.bf16.msra.mxu0 %v705
  %829 = vmatpush.bf16.msra.mxu0 %v704
  %830 = vmatpush.bf16.msra.mxu0 %v703
  %831 = vmatpush.bf16.msra.mxu0 %v702
  %832 = vmatpush.bf16.msra.mxu0 %v701
  %833 = vmatpush.bf16.msra.mxu0 %v700
  %834 = vmatpush.bf16.msra.mxu0 %v699
  %835 = vmatmul.bf16.gmra.mxu0 %v307
  %v836 = vpop.f32.mrf.mxu0
  %v837 = vadd.f32 0.0, %v836
  %v838 = vpop.f32.mrf.mxu0
  %v839 = vadd.f32 0.0, %v838
  %840 = vdwg.mxu0
  %841 = vmatpush.bf16.msra.mxu0 %v714
  %842 = vmatpush.bf16.msra.mxu0 %v713
  %843 = vmatpush.bf16.msra.mxu0 %v712
  %844 = vmatpush.bf16.msra.mxu0 %v711
  %845 = vmatpush.bf16.msra.mxu0 %v710
  %846 = vmatpush.bf16.msra.mxu0 %v709
  %847 = vmatpush.bf16.msra.mxu0 %v708
  %848 = vmatpush.bf16.msra.mxu0 %v707
  %849 = vmatmul.bf16.gmra.mxu0 %v308
  %v850 = vpop.f32.mrf.mxu0
  %v851 = vadd.f32 %v837, %v850
  %v852 = vpop.f32.mrf.mxu0
  %v853 = vadd.f32 %v839, %v852
  %854 = vdwg.mxu0
  %855 = vmatpush.bf16.msra.mxu0 %v722
  %856 = vmatpush.bf16.msra.mxu0 %v721
  %857 = vmatpush.bf16.msra.mxu0 %v720
  %858 = vmatpush.bf16.msra.mxu0 %v719
  %859 = vmatpush.bf16.msra.mxu0 %v718
  %860 = vmatpush.bf16.msra.mxu0 %v717
  %861 = vmatpush.bf16.msra.mxu0 %v716
  %862 = vmatpush.bf16.msra.mxu0 %v715
  %863 = vmatmul.bf16.gmra.mxu0 %v309
  %v864 = vpop.f32.mrf.mxu0
  %v865 = vadd.f32 %v851, %v864
  %v866 = vpop.f32.mrf.mxu0
  %v867 = vadd.f32 %v853, %v866
  %868 = vdwg.mxu0
  %869 = vmatpush.bf16.msra.mxu0 %v730
  %870 = vmatpush.bf16.msra.mxu0 %v729
  %871 = vmatpush.bf16.msra.mxu0 %v728
  %872 = vmatpush.bf16.msra.mxu0 %v727
  %873 = vmatpush.bf16.msra.mxu0 %v726
  %874 = vmatpush.bf16.msra.mxu0 %v725
  %875 = vmatpush.bf16.msra.mxu0 %v724
  %876 = vmatpush.bf16.msra.mxu0 %v723
  %877 = vmatmul.bf16.gmra.mxu0 %v310
  %v878 = vpop.f32.mrf.mxu0
  %v879 = vadd.f32 %v865, %v878
  %v880 = vpop.f32.mrf.mxu0
  %v881 = vadd.f32 %v867, %v880
  %882 = vdwg.mxu0
  %883 = vmatpush.bf16.msra.mxu0 %v738
  %884 = vmatpush.bf16.msra.mxu0 %v737
  %885 = vmatpush.bf16.msra.mxu0 %v736
  %886 = vmatpush.bf16.msra.mxu0 %v735
  %887 = vmatpush.bf16.msra.mxu0 %v734
  %888 = vmatpush.bf16.msra.mxu0 %v733
  %889 = vmatpush.bf16.msra.mxu0 %v732
  %890 = vmatpush.bf16.msra.mxu0 %v731
  %891 = vmatmul.bf16.gmra.mxu0 %v311
  %v892 = vpop.f32.mrf.mxu0
  %v893 = vadd.f32 %v879, %v892
  %v894 = vpop.f32.mrf.mxu0
  %v895 = vadd.f32 %v881, %v894
  %896 = vdwg.mxu0
  %897 = vmatpush.bf16.msra.mxu0 %v746
  %898 = vmatpush.bf16.msra.mxu0 %v745
  %899 = vmatpush.bf16.msra.mxu0 %v744
  %900 = vmatpush.bf16.msra.mxu0 %v743
  %901 = vmatpush.bf16.msra.mxu0 %v742
  %902 = vmatpush.bf16.msra.mxu0 %v741
  %903 = vmatpush.bf16.msra.mxu0 %v740
  %904 = vmatpush.bf16.msra.mxu0 %v739
  %905 = vmatmul.bf16.gmra.mxu0 %v312
  %v906 = vpop.f32.mrf.mxu0
  %v907 = vadd.f32 %v893, %v906
  %v908 = vpop.f32.mrf.mxu0
  %v909 = vadd.f32 %v895, %v908
  %910 = vdwg.mxu0
  %911 = vmatpush.bf16.msra.mxu0 %v754
  %912 = vmatpush.bf16.msra.mxu0 %v753
  %913 = vmatpush.bf16.msra.mxu0 %v752
  %914 = vmatpush.bf16.msra.mxu0 %v751
  %915 = vmatpush.bf16.msra.mxu0 %v750
  %916 = vmatpush.bf16.msra.mxu0 %v749
  %917 = vmatpush.bf16.msra.mxu0 %v748
  %918 = vmatpush.bf16.msra.mxu0 %v747
  %919 = vmatmul.bf16.gmra.mxu0 %v313
  %v920 = vpop.f32.mrf.mxu0
  %v921 = vadd.f32 %v907, %v920
  %v922 = vpop.f32.mrf.mxu0
  %v923 = vadd.f32 %v909, %v922
  %924 = vdwg.mxu0
  %925 = vmatpush.bf16.msra.mxu0 %v762
  %926 = vmatpush.bf16.msra.mxu0 %v761
  %927 = vmatpush.bf16.msra.mxu0 %v760
  %928 = vmatpush.bf16.msra.mxu0 %v759
  %929 = vmatpush.bf16.msra.mxu0 %v758
  %930 = vmatpush.bf16.msra.mxu0 %v757
  %931 = vmatpush.bf16.msra.mxu0 %v756
  %932 = vmatpush.bf16.msra.mxu0 %v755
  %933 = vmatmul.bf16.gmra.mxu0 %v314
  %v934 = vpop.f32.mrf.mxu0
  %v935 = vadd.f32 %v921, %v934
  %v936 = vpop.f32.mrf.mxu0
  %v937 = vadd.f32 %v923, %v936
  %938 = vdwg.mxu0
  %v939 = vld [vmem:[%s4] sm:$0x1]
  %v941 = vperm.slane %v939, 0
  %v943 = vmul.f32 %v935, %v941
  %v944 = vmul.f32 %v937, %v941
  %v945 = vld [vmem:[%s5] sm:$0x1]
  %v947 = vperm.slane %v945, 0
  %v949 = vadd.f32 %v943, %v947
  %v950 = vadd.f32 %v944, %v947
  %v951 = vmax.f32 %v949, 0.0
  %v952 = vmax.f32 %v950, 0.0
  %v953 = vpack.c.bf16 %v951, %v951
  %v954 = vpack.c.bf16 %v952, %v952
  %955 = vst [vmem:[%s6] sm:$0xf] %v953
  %956 = vst [vmem:[%s6 + $0x4] sm:$0xf] %v954
  // Predicated region
  $region26: #{closed_call.56} parent=0 // pred_check
    _
  $region27: #{closed_call.56} parent=0 // pred_check_branch
    %958 = sbr.rel (0) target = $region29
  $region28: #{closed_call.56} parent=0 // pred_region
    _
  $region29: #{closed_call.56} parent=0 // pred_fallthru
    _
  // Predicated region
  $region30: #{closed_call.56} parent=0 // pred_check
    _
  $region31: #{closed_call.56} parent=0 // pred_check_branch
    %960 = sbr.rel (0) target = $region33
  $region32: #{closed_call.56} parent=0 // pred_region
    _
  $region33: #{closed_call.56} parent=0 // pred_fallthru
    _

// kernel: closed_call.57
$region0: #{closed_call.57}
  #allocation0 [shape = 'u32[]', space=smem, size = 0x4, offset = 0x4, fixed_abs, tag = 'smem constant byte address 0x4 - core index']
  #allocation1 [shape = 'u32[72,128]{1,0:T(1,128)}', space=vmem, size = 0x9000, scoped, tag = 'internal scratch']
  %s0 = inlined_call_operand.vmem [shape: bf16[16,1152], index: 0, kind: input, shape index: {}]
  %s1 = inlined_call_operand.vmem [shape: bf16[1152,128], index: 1, kind: input, shape index: {}]
  %s2 = inlined_call_operand.vmem [shape: bf16[16,128], index: 2, kind: output, shape index: {}]
  %s3 = sld [smem:[#allocation0]]
  $region18: #{closed_call.57} parent=0
    _
  %s5 = ssub.s32 1, %s3
  %s6 = scalar_select 0, %s5, %s3
  // Predicated region
  $region2: #{closed_call.57} parent=0 // pred_check
    _
  $region3: #{closed_call.57} parent=0 // pred_check_branch
    %8 = sbr.rel (0) target = $region5
  $region4: #{closed_call.57} parent=0 // pred_region
    _
  $region5: #{closed_call.57} parent=0 // pred_fallthru
    _
  // Predicated region
  $region6: #{closed_call.57} parent=0 // pred_check
    _
  $region7: #{closed_call.57} parent=0 // pred_check_branch
    %10 = sbr.rel (0) target = $region9
  $region8: #{closed_call.57} parent=0 // pred_region
    _
  $region9: #{closed_call.57} parent=0 // pred_fallthru
    _
  %v11 = vld [vmem:[%s0] sm:$0xff]
  %v12 = vld [vmem:[%s0 + $0x8] sm:$0xff]
  %v13 = vld [vmem:[%s0 + $0x10] sm:$0xff]
  %v14 = vld [vmem:[%s0 + $0x18] sm:$0xff]
  %v15 = vld [vmem:[%s0 + $0x20] sm:$0xf]
  %v16 = vld [vmem:[%s0 + $0x24] sm:$0xff]
  %v17 = vld [vmem:[%s0 + $0x2c] sm:$0xff]
  %v18 = vld [vmem:[%s0 + $0x34] sm:$0xff]
  %v19 = vld [vmem:[%s0 + $0x3c] sm:$0xff]
  %v20 = vld [vmem:[%s0 + $0x44] sm:$0xf]
  %v21 = vld [vmem:[%s1] sm:$0xf]
  %v22 = vld [vmem:[%s1 + $0x4] sm:$0xf]
  %v23 = vld [vmem:[%s1 + $0x8] sm:$0xf]
  %v24 = vld [vmem:[%s1 + $0xc] sm:$0xf]
  %v25 = vld [vmem:[%s1 + $0x10] sm:$0xf]
  %v26 = vld [vmem:[%s1 + $0x14] sm:$0xf]
  %v27 = vld [vmem:[%s1 + $0x18] sm:$0xf]
  %v28 = vld [vmem:[%s1 + $0x1c] sm:$0xf]
  %v29 = vld [vmem:[%s1 + $0x20] sm:$0xf]
  %v30 = vld [vmem:[%s1 + $0x24] sm:$0xf]
  %v31 = vld [vmem:[%s1 + $0x28] sm:$0xf]
  %v32 = vld [vmem:[%s1 + $0x2c] sm:$0xf]
  %v33 = vld [vmem:[%s1 + $0x30] sm:$0xf]
  %v34 = vld [vmem:[%s1 + $0x34] sm:$0xf]
  %v35 = vld [vmem:[%s1 + $0x38] sm:$0xf]
  %v36 = vld [vmem:[%s1 + $0x3c] sm:$0xf]
  %v37 = vld [vmem:[%s1 + $0x40] sm:$0xf]
  %v38 = vld [vmem:[%s1 + $0x44] sm:$0xf]
  %v39 = vld [vmem:[%s1 + $0x48] sm:$0xf]
  %v40 = vld [vmem:[%s1 + $0x4c] sm:$0xf]
  %v41 = vld [vmem:[%s1 + $0x50] sm:$0xf]
  %v42 = vld [vmem:[%s1 + $0x54] sm:$0xf]
  %v43 = vld [vmem:[%s1 + $0x58] sm:$0xf]
  %v44 = vld [vmem:[%s1 + $0x5c] sm:$0xf]
  %v45 = vld [vmem:[%s1 + $0x60] sm:$0xf]
  %v46 = vld [vmem:[%s1 + $0x64] sm:$0xf]
  %v47 = vld [vmem:[%s1 + $0x68] sm:$0xf]
  %v48 = vld [vmem:[%s1 + $0x6c] sm:$0xf]
  %v49 = vld [vmem:[%s1 + $0x70] sm:$0xf]
  %v50 = vld [vmem:[%s1 + $0x74] sm:$0xf]
  %v51 = vld [vmem:[%s1 + $0x78] sm:$0xf]
  %v52 = vld [vmem:[%s1 + $0x7c] sm:$0xf]
  %v53 = vld [vmem:[%s1 + $0x80] sm:$0xf]
  %v54 = vld [vmem:[%s1 + $0x84] sm:$0xf]
  %v55 = vld [vmem:[%s1 + $0x88] sm:$0xf]
  %v56 = vld [vmem:[%s1 + $0x8c] sm:$0xf]
  %v57 = vld [vmem:[%s1 + $0x90] sm:$0xf]
  %v58 = vld [vmem:[%s1 + $0x94] sm:$0xf]
  %v59 = vld [vmem:[%s1 + $0x98] sm:$0xf]
  %v60 = vld [vmem:[%s1 + $0x9c] sm:$0xf]
  %v61 = vld [vmem:[%s1 + $0xa0] sm:$0xf]
  %v62 = vld [vmem:[%s1 + $0xa4] sm:$0xf]
  %v63 = vld [vmem:[%s1 + $0xa8] sm:$0xf]
  %v64 = vld [vmem:[%s1 + $0xac] sm:$0xf]
  %v65 = vld [vmem:[%s1 + $0xb0] sm:$0xf]
  %v66 = vld [vmem:[%s1 + $0xb4] sm:$0xf]
  %v67 = vld [vmem:[%s1 + $0xb8] sm:$0xf]
  %v68 = vld [vmem:[%s1 + $0xbc] sm:$0xf]
  %v69 = vld [vmem:[%s1 + $0xc0] sm:$0xf]
  %v70 = vld [vmem:[%s1 + $0xc4] sm:$0xf]
  %v71 = vld [vmem:[%s1 + $0xc8] sm:$0xf]
  %v72 = vld [vmem:[%s1 + $0xcc] sm:$0xf]
  %v73 = vld [vmem:[%s1 + $0xd0] sm:$0xf]
  %v74 = vld [vmem:[%s1 + $0xd4] sm:$0xf]
  %v75 = vld [vmem:[%s1 + $0xd8] sm:$0xf]
  %v76 = vld [vmem:[%s1 + $0xdc] sm:$0xf]
  %v77 = vld [vmem:[%s1 + $0xe0] sm:$0xf]
  %v78 = vld [vmem:[%s1 + $0xe4] sm:$0xf]
  %v79 = vld [vmem:[%s1 + $0xe8] sm:$0xf]
  %v80 = vld [vmem:[%s1 + $0xec] sm:$0xf]
  %v81 = vld [vmem:[%s1 + $0xf0] sm:$0xf]
  %v82 = vld [vmem:[%s1 + $0xf4] sm:$0xf]
  %v83 = vld [vmem:[%s1 + $0xf8] sm:$0xf]
  %v84 = vld [vmem:[%s1 + $0xfc] sm:$0xf]
  %v85 = vld [vmem:[%s1 + $0x100] sm:$0xf]
  %v86 = vld [vmem:[%s1 + $0x104] sm:$0xf]
  %v87 = vld [vmem:[%s1 + $0x108] sm:$0xf]
  %v88 = vld [vmem:[%s1 + $0x10c] sm:$0xf]
  %v89 = vld [vmem:[%s1 + $0x110] sm:$0xf]
  %v90 = vld [vmem:[%s1 + $0x114] sm:$0xf]
  %v91 = vld [vmem:[%s1 + $0x118] sm:$0xf]
  %v92 = vld [vmem:[%s1 + $0x11c] sm:$0xf]
  %v93 = vld [vmem:[%s1 + $0x120] sm:$0xf]
  %v94 = vld [vmem:[%s1 + $0x124] sm:$0xf]
  %v95 = vld [vmem:[%s1 + $0x128] sm:$0xf]
  %v96 = vld [vmem:[%s1 + $0x12c] sm:$0xf]
  %v97 = vld [vmem:[%s1 + $0x130] sm:$0xf]
  %v98 = vld [vmem:[%s1 + $0x134] sm:$0xf]
  %v99 = vld [vmem:[%s1 + $0x138] sm:$0xf]
  %v100 = vld [vmem:[%s1 + $0x13c] sm:$0xf]
  %v101 = vld [vmem:[%s1 + $0x140] sm:$0xf]
  %v102 = vld [vmem:[%s1 + $0x144] sm:$0xf]
  %v103 = vld [vmem:[%s1 + $0x148] sm:$0xf]
  %v104 = vld [vmem:[%s1 + $0x14c] sm:$0xf]
  %v105 = vld [vmem:[%s1 + $0x150] sm:$0xf]
  %v106 = vld [vmem:[%s1 + $0x154] sm:$0xf]
  %v107 = vld [vmem:[%s1 + $0x158] sm:$0xf]
  %v108 = vld [vmem:[%s1 + $0x15c] sm:$0xf]
  %v109 = vld [vmem:[%s1 + $0x160] sm:$0xf]
  %v110 = vld [vmem:[%s1 + $0x164] sm:$0xf]
  %v111 = vld [vmem:[%s1 + $0x168] sm:$0xf]
  %v112 = vld [vmem:[%s1 + $0x16c] sm:$0xf]
  %v113 = vld [vmem:[%s1 + $0x170] sm:$0xf]
  %v114 = vld [vmem:[%s1 + $0x174] sm:$0xf]
  %v115 = vld [vmem:[%s1 + $0x178] sm:$0xf]
  %v116 = vld [vmem:[%s1 + $0x17c] sm:$0xf]
  %v117 = vld [vmem:[%s1 + $0x180] sm:$0xf]
  %v118 = vld [vmem:[%s1 + $0x184] sm:$0xf]
  %v119 = vld [vmem:[%s1 + $0x188] sm:$0xf]
  %v120 = vld [vmem:[%s1 + $0x18c] sm:$0xf]
  %v121 = vld [vmem:[%s1 + $0x190] sm:$0xf]
  %v122 = vld [vmem:[%s1 + $0x194] sm:$0xf]
  %v123 = vld [vmem:[%s1 + $0x198] sm:$0xf]
  %v124 = vld [vmem:[%s1 + $0x19c] sm:$0xf]
  %v125 = vld [vmem:[%s1 + $0x1a0] sm:$0xf]
  %v126 = vld [vmem:[%s1 + $0x1a4] sm:$0xf]
  %v127 = vld [vmem:[%s1 + $0x1a8] sm:$0xf]
  %v128 = vld [vmem:[%s1 + $0x1ac] sm:$0xf]
  %v129 = vld [vmem:[%s1 + $0x1b0] sm:$0xf]
  %v130 = vld [vmem:[%s1 + $0x1b4] sm:$0xf]
  %v131 = vld [vmem:[%s1 + $0x1b8] sm:$0xf]
  %v132 = vld [vmem:[%s1 + $0x1bc] sm:$0xf]
  %v133 = vld [vmem:[%s1 + $0x1c0] sm:$0xf]
  %v134 = vld [vmem:[%s1 + $0x1c4] sm:$0xf]
  %v135 = vld [vmem:[%s1 + $0x1c8] sm:$0xf]
  %v136 = vld [vmem:[%s1 + $0x1cc] sm:$0xf]
  %v137 = vld [vmem:[%s1 + $0x1d0] sm:$0xf]
  %v138 = vld [vmem:[%s1 + $0x1d4] sm:$0xf]
  %v139 = vld [vmem:[%s1 + $0x1d8] sm:$0xf]
  %v140 = vld [vmem:[%s1 + $0x1dc] sm:$0xf]
  %v141 = vld [vmem:[%s1 + $0x1e0] sm:$0xf]
  %v142 = vld [vmem:[%s1 + $0x1e4] sm:$0xf]
  %v143 = vld [vmem:[%s1 + $0x1e8] sm:$0xf]
  %v144 = vld [vmem:[%s1 + $0x1ec] sm:$0xf]
  %v145 = vld [vmem:[%s1 + $0x1f0] sm:$0xf]
  %v146 = vld [vmem:[%s1 + $0x1f4] sm:$0xf]
  %v147 = vld [vmem:[%s1 + $0x1f8] sm:$0xf]
  %v148 = vld [vmem:[%s1 + $0x1fc] sm:$0xf]
  %v149 = vld [vmem:[%s1 + $0x200] sm:$0xf]
  %v150 = vld [vmem:[%s1 + $0x204] sm:$0xf]
  %v151 = vld [vmem:[%s1 + $0x208] sm:$0xf]
  %v152 = vld [vmem:[%s1 + $0x20c] sm:$0xf]
  %v153 = vld [vmem:[%s1 + $0x210] sm:$0xf]
  %v154 = vld [vmem:[%s1 + $0x214] sm:$0xf]
  %v155 = vld [vmem:[%s1 + $0x218] sm:$0xf]
  %v156 = vld [vmem:[%s1 + $0x21c] sm:$0xf]
  %v157 = vld [vmem:[%s1 + $0x220] sm:$0xf]
  %v158 = vld [vmem:[%s1 + $0x224] sm:$0xf]
  %v159 = vld [vmem:[%s1 + $0x228] sm:$0xf]
  %v160 = vld [vmem:[%s1 + $0x22c] sm:$0xf]
  %v161 = vld [vmem:[%s1 + $0x230] sm:$0xf]
  %v162 = vld [vmem:[%s1 + $0x234] sm:$0xf]
  %v163 = vld [vmem:[%s1 + $0x238] sm:$0xf]
  %v164 = vld [vmem:[%s1 + $0x23c] sm:$0xf]
  %v175 = vunpack.c.l.b16 %v11
  %v176 = vunpack.c.h.b16 %v11
  %v177 = vunpack.c.l.b16 %v12
  %v178 = vunpack.c.h.b16 %v12
  %v179 = vunpack.c.l.b16 %v13
  %v180 = vunpack.c.h.b16 %v13
  %v181 = vunpack.c.l.b16 %v14
  %v182 = vunpack.c.h.b16 %v14
  %v183 = vunpack.c.l.b16 %v15
  %v184 = vunpack.c.l.b16 %v16
  %v185 = vunpack.c.h.b16 %v16
  %v186 = vunpack.c.l.b16 %v17
  %v187 = vunpack.c.h.b16 %v17
  %v188 = vunpack.c.l.b16 %v18
  %v189 = vunpack.c.h.b16 %v18
  %v190 = vunpack.c.l.b16 %v19
  %v191 = vunpack.c.h.b16 %v19
  %v192 = vunpack.c.l.b16 %v20
  %v193 = vpack.c.b16 %v184, %v175
  %v194 = vpack.c.b16 %v185, %v176
  %v195 = vpack.c.b16 %v186, %v177
  %v196 = vpack.c.b16 %v187, %v178
  %v197 = vpack.c.b16 %v188, %v179
  %v198 = vpack.c.b16 %v189, %v180
  %v199 = vpack.c.b16 %v190, %v181
  %v200 = vpack.c.b16 %v191, %v182
  %v201 = vpack.c.b16 %v192, %v183
  %v355 = vunpack.c.l.b16 %v21
  %v356 = vunpack.c.l.b16 %v22
  %v357 = vunpack.c.l.b16 %v23
  %v358 = vunpack.c.l.b16 %v24
  %v359 = vunpack.c.l.b16 %v25
  %v360 = vunpack.c.l.b16 %v26
  %v361 = vunpack.c.l.b16 %v27
  %v362 = vunpack.c.l.b16 %v28
  %v363 = vunpack.c.l.b16 %v29
  %v364 = vunpack.c.l.b16 %v30
  %v365 = vunpack.c.l.b16 %v31
  %v366 = vunpack.c.l.b16 %v32
  %v367 = vunpack.c.l.b16 %v33
  %v368 = vunpack.c.l.b16 %v34
  %v369 = vunpack.c.l.b16 %v35
  %v370 = vunpack.c.l.b16 %v36
  %v371 = vunpack.c.l.b16 %v37
  %v372 = vunpack.c.l.b16 %v38
  %v373 = vunpack.c.l.b16 %v39
  %v374 = vunpack.c.l.b16 %v40
  %v375 = vunpack.c.l.b16 %v41
  %v376 = vunpack.c.l.b16 %v42
  %v377 = vunpack.c.l.b16 %v43
  %v378 = vunpack.c.l.b16 %v44
  %v379 = vunpack.c.l.b16 %v45
  %v380 = vunpack.c.l.b16 %v46
  %v381 = vunpack.c.l.b16 %v47
  %v382 = vunpack.c.l.b16 %v48
  %v383 = vunpack.c.l.b16 %v49
  %v384 = vunpack.c.l.b16 %v50
  %v385 = vunpack.c.l.b16 %v51
  %v386 = vunpack.c.l.b16 %v52
  %v387 = vunpack.c.l.b16 %v53
  %v388 = vunpack.c.l.b16 %v54
  %v389 = vunpack.c.l.b16 %v55
  %v390 = vunpack.c.l.b16 %v56
  %v391 = vunpack.c.l.b16 %v57
  %v392 = vunpack.c.l.b16 %v58
  %v393 = vunpack.c.l.b16 %v59
  %v394 = vunpack.c.l.b16 %v60
  %v395 = vunpack.c.l.b16 %v61
  %v396 = vunpack.c.l.b16 %v62
  %v397 = vunpack.c.l.b16 %v63
  %v398 = vunpack.c.l.b16 %v64
  %v399 = vunpack.c.l.b16 %v65
  %v400 = vunpack.c.l.b16 %v66
  %v401 = vunpack.c.l.b16 %v67
  %v402 = vunpack.c.l.b16 %v68
  %v403 = vunpack.c.l.b16 %v69
  %v404 = vunpack.c.l.b16 %v70
  %v405 = vunpack.c.l.b16 %v71
  %v406 = vunpack.c.l.b16 %v72
  %v407 = vunpack.c.l.b16 %v73
  %v408 = vunpack.c.l.b16 %v74
  %v409 = vunpack.c.l.b16 %v75
  %v410 = vunpack.c.l.b16 %v76
  %v411 = vunpack.c.l.b16 %v77
  %v412 = vunpack.c.l.b16 %v78
  %v413 = vunpack.c.l.b16 %v79
  %v414 = vunpack.c.l.b16 %v80
  %v415 = vunpack.c.l.b16 %v81
  %v416 = vunpack.c.l.b16 %v82
  %v417 = vunpack.c.l.b16 %v83
  %v418 = vunpack.c.l.b16 %v84
  %v419 = vunpack.c.l.b16 %v85
  %v420 = vunpack.c.l.b16 %v86
  %v421 = vunpack.c.l.b16 %v87
  %v422 = vunpack.c.l.b16 %v88
  %v423 = vunpack.c.l.b16 %v89
  %v424 = vunpack.c.l.b16 %v90
  %v425 = vunpack.c.l.b16 %v91
  %v426 = vunpack.c.l.b16 %v92
  %v427 = vunpack.c.l.b16 %v93
  %v428 = vunpack.c.l.b16 %v94
  %v429 = vunpack.c.l.b16 %v95
  %v430 = vunpack.c.l.b16 %v96
  %v431 = vunpack.c.l.b16 %v97
  %v432 = vunpack.c.l.b16 %v98
  %v433 = vunpack.c.l.b16 %v99
  %v434 = vunpack.c.l.b16 %v100
  %v435 = vunpack.c.l.b16 %v101
  %v436 = vunpack.c.l.b16 %v102
  %v437 = vunpack.c.l.b16 %v103
  %v438 = vunpack.c.l.b16 %v104
  %v439 = vunpack.c.l.b16 %v105
  %v440 = vunpack.c.l.b16 %v106
  %v441 = vunpack.c.l.b16 %v107
  %v442 = vunpack.c.l.b16 %v108
  %v443 = vunpack.c.l.b16 %v109
  %v444 = vunpack.c.l.b16 %v110
  %v445 = vunpack.c.l.b16 %v111
  %v446 = vunpack.c.l.b16 %v112
  %v447 = vunpack.c.l.b16 %v113
  %v448 = vunpack.c.l.b16 %v114
  %v449 = vunpack.c.l.b16 %v115
  %v450 = vunpack.c.l.b16 %v116
  %v451 = vunpack.c.l.b16 %v117
  %v452 = vunpack.c.l.b16 %v118
  %v453 = vunpack.c.l.b16 %v119
  %v454 = vunpack.c.l.b16 %v120
  %v455 = vunpack.c.l.b16 %v121
  %v456 = vunpack.c.l.b16 %v122
  %v457 = vunpack.c.l.b16 %v123
  %v458 = vunpack.c.l.b16 %v124
  %v459 = vunpack.c.l.b16 %v125
  %v460 = vunpack.c.l.b16 %v126
  %v461 = vunpack.c.l.b16 %v127
  %v462 = vunpack.c.l.b16 %v128
  %v463 = vunpack.c.l.b16 %v129
  %v464 = vunpack.c.l.b16 %v130
  %v465 = vunpack.c.l.b16 %v131
  %v466 = vunpack.c.l.b16 %v132
  %v467 = vunpack.c.l.b16 %v133
  %v468 = vunpack.c.l.b16 %v134
  %v469 = vunpack.c.l.b16 %v135
  %v470 = vunpack.c.l.b16 %v136
  %v471 = vunpack.c.l.b16 %v137
  %v472 = vunpack.c.l.b16 %v138
  %v473 = vunpack.c.l.b16 %v139
  %v474 = vunpack.c.l.b16 %v140
  %v475 = vunpack.c.l.b16 %v141
  %v476 = vunpack.c.l.b16 %v142
  %v477 = vunpack.c.l.b16 %v143
  %v478 = vunpack.c.l.b16 %v144
  %v479 = vunpack.c.l.b16 %v145
  %v480 = vunpack.c.l.b16 %v146
  %v481 = vunpack.c.l.b16 %v147
  %v482 = vunpack.c.l.b16 %v148
  %v483 = vunpack.c.l.b16 %v149
  %v484 = vunpack.c.l.b16 %v150
  %v485 = vunpack.c.l.b16 %v151
  %v486 = vunpack.c.l.b16 %v152
  %v487 = vunpack.c.l.b16 %v153
  %v488 = vunpack.c.l.b16 %v154
  %v489 = vunpack.c.l.b16 %v155
  %v490 = vunpack.c.l.b16 %v156
  %v491 = vunpack.c.l.b16 %v157
  %v492 = vunpack.c.l.b16 %v158
  %v493 = vunpack.c.l.b16 %v159
  %v494 = vunpack.c.l.b16 %v160
  %v495 = vunpack.c.l.b16 %v161
  %v496 = vunpack.c.l.b16 %v162
  %v497 = vunpack.c.l.b16 %v163
  %v498 = vunpack.c.l.b16 %v164
  %v499 = vpack.c.b16 %v356, %v355
  %v500 = vpack.c.b16 %v358, %v357
  %v501 = vpack.c.b16 %v360, %v359
  %v502 = vpack.c.b16 %v362, %v361
  %v503 = vpack.c.b16 %v364, %v363
  %v504 = vpack.c.b16 %v366, %v365
  %v505 = vpack.c.b16 %v368, %v367
  %v506 = vpack.c.b16 %v370, %v369
  %v507 = vpack.c.b16 %v372, %v371
  %v508 = vpack.c.b16 %v374, %v373
  %v509 = vpack.c.b16 %v376, %v375
  %v510 = vpack.c.b16 %v378, %v377
  %v511 = vpack.c.b16 %v380, %v379
  %v512 = vpack.c.b16 %v382, %v381
  %v513 = vpack.c.b16 %v384, %v383
  %v514 = vpack.c.b16 %v386, %v385
  %v515 = vpack.c.b16 %v388, %v387
  %v516 = vpack.c.b16 %v390, %v389
  %v517 = vpack.c.b16 %v392, %v391
  %v518 = vpack.c.b16 %v394, %v393
  %v519 = vpack.c.b16 %v396, %v395
  %v520 = vpack.c.b16 %v398, %v397
  %v521 = vpack.c.b16 %v400, %v399
  %v522 = vpack.c.b16 %v402, %v401
  %v523 = vpack.c.b16 %v404, %v403
  %v524 = vpack.c.b16 %v406, %v405
  %v525 = vpack.c.b16 %v408, %v407
  %v526 = vpack.c.b16 %v410, %v409
  %v527 = vpack.c.b16 %v412, %v411
  %v528 = vpack.c.b16 %v414, %v413
  %v529 = vpack.c.b16 %v416, %v415
  %v530 = vpack.c.b16 %v418, %v417
  %v531 = vpack.c.b16 %v420, %v419
  %v532 = vpack.c.b16 %v422, %v421
  %v533 = vpack.c.b16 %v424, %v423
  %v534 = vpack.c.b16 %v426, %v425
  %v535 = vpack.c.b16 %v428, %v427
  %v536 = vpack.c.b16 %v430, %v429
  %v537 = vpack.c.b16 %v432, %v431
  %v538 = vpack.c.b16 %v434, %v433
  %v539 = vpack.c.b16 %v436, %v435
  %v540 = vpack.c.b16 %v438, %v437
  %v541 = vpack.c.b16 %v440, %v439
  %v542 = vpack.c.b16 %v442, %v441
  %v543 = vpack.c.b16 %v444, %v443
  %v544 = vpack.c.b16 %v446, %v445
  %v545 = vpack.c.b16 %v448, %v447
  %v546 = vpack.c.b16 %v450, %v449
  %v547 = vpack.c.b16 %v452, %v451
  %v548 = vpack.c.b16 %v454, %v453
  %v549 = vpack.c.b16 %v456, %v455
  %v550 = vpack.c.b16 %v458, %v457
  %v551 = vpack.c.b16 %v460, %v459
  %v552 = vpack.c.b16 %v462, %v461
  %v553 = vpack.c.b16 %v464, %v463
  %v554 = vpack.c.b16 %v466, %v465
  %v555 = vpack.c.b16 %v468, %v467
  %v556 = vpack.c.b16 %v470, %v469
  %v557 = vpack.c.b16 %v472, %v471
  %v558 = vpack.c.b16 %v474, %v473
  %v559 = vpack.c.b16 %v476, %v475
  %v560 = vpack.c.b16 %v478, %v477
  %v561 = vpack.c.b16 %v480, %v479
  %v562 = vpack.c.b16 %v482, %v481
  %v563 = vpack.c.b16 %v484, %v483
  %v564 = vpack.c.b16 %v486, %v485
  %v565 = vpack.c.b16 %v488, %v487
  %v566 = vpack.c.b16 %v490, %v489
  %v567 = vpack.c.b16 %v492, %v491
  %v568 = vpack.c.b16 %v494, %v493
  %v569 = vpack.c.b16 %v496, %v495
  %v570 = vpack.c.b16 %v498, %v497
  %643 = vmatpush.bf16.msra.mxu0 %v506
  %644 = vmatpush.bf16.msra.mxu0 %v505
  %645 = vmatpush.bf16.msra.mxu0 %v504
  %646 = vmatpush.bf16.msra.mxu0 %v503
  %647 = vmatpush.bf16.msra.mxu0 %v502
  %648 = vmatpush.bf16.msra.mxu0 %v501
  %649 = vmatpush.bf16.msra.mxu0 %v500
  %650 = vmatpush.bf16.msra.mxu0 %v499
  %651 = vmatmul.bf16.gmra.mxu0 %v193
  %v652 = vpop.f32.mrf.mxu0
  %v653 = vadd.f32 0.0, %v652
  %v654 = vpop.f32.mrf.mxu0
  %v655 = vadd.f32 0.0, %v654
  %656 = vdwg.mxu0
  %657 = vmatpush.bf16.msra.mxu0 %v514
  %658 = vmatpush.bf16.msra.mxu0 %v513
  %659 = vmatpush.bf16.msra.mxu0 %v512
  %660 = vmatpush.bf16.msra.mxu0 %v511
  %661 = vmatpush.bf16.msra.mxu0 %v510
  %662 = vmatpush.bf16.msra.mxu0 %v509
  %663 = vmatpush.bf16.msra.mxu0 %v508
  %664 = vmatpush.bf16.msra.mxu0 %v507
  %665 = vmatmul.bf16.gmra.mxu0 %v194
  %v666 = vpop.f32.mrf.mxu0
  %v667 = vadd.f32 %v653, %v666
  %v668 = vpop.f32.mrf.mxu0
  %v669 = vadd.f32 %v655, %v668
  %670 = vdwg.mxu0
  %671 = vmatpush.bf16.msra.mxu0 %v522
  %672 = vmatpush.bf16.msra.mxu0 %v521
  %673 = vmatpush.bf16.msra.mxu0 %v520
  %674 = vmatpush.bf16.msra.mxu0 %v519
  %675 = vmatpush.bf16.msra.mxu0 %v518
  %676 = vmatpush.bf16.msra.mxu0 %v517
  %677 = vmatpush.bf16.msra.mxu0 %v516
  %678 = vmatpush.bf16.msra.mxu0 %v515
  %679 = vmatmul.bf16.gmra.mxu0 %v195
  %v680 = vpop.f32.mrf.mxu0
  %v681 = vadd.f32 %v667, %v680
  %v682 = vpop.f32.mrf.mxu0
  %v683 = vadd.f32 %v669, %v682
  %684 = vdwg.mxu0
  %685 = vmatpush.bf16.msra.mxu0 %v530
  %686 = vmatpush.bf16.msra.mxu0 %v529
  %687 = vmatpush.bf16.msra.mxu0 %v528
  %688 = vmatpush.bf16.msra.mxu0 %v527
  %689 = vmatpush.bf16.msra.mxu0 %v526
  %690 = vmatpush.bf16.msra.mxu0 %v525
  %691 = vmatpush.bf16.msra.mxu0 %v524
  %692 = vmatpush.bf16.msra.mxu0 %v523
  %693 = vmatmul.bf16.gmra.mxu0 %v196
  %v694 = vpop.f32.mrf.mxu0
  %v695 = vadd.f32 %v681, %v694
  %v696 = vpop.f32.mrf.mxu0
  %v697 = vadd.f32 %v683, %v696
  %698 = vdwg.mxu0
  %699 = vmatpush.bf16.msra.mxu0 %v538
  %700 = vmatpush.bf16.msra.mxu0 %v537
  %701 = vmatpush.bf16.msra.mxu0 %v536
  %702 = vmatpush.bf16.msra.mxu0 %v535
  %703 = vmatpush.bf16.msra.mxu0 %v534
  %704 = vmatpush.bf16.msra.mxu0 %v533
  %705 = vmatpush.bf16.msra.mxu0 %v532
  %706 = vmatpush.bf16.msra.mxu0 %v531
  %707 = vmatmul.bf16.gmra.mxu0 %v197
  %v708 = vpop.f32.mrf.mxu0
  %v709 = vadd.f32 %v695, %v708
  %v710 = vpop.f32.mrf.mxu0
  %v711 = vadd.f32 %v697, %v710
  %712 = vdwg.mxu0
  %713 = vmatpush.bf16.msra.mxu0 %v546
  %714 = vmatpush.bf16.msra.mxu0 %v545
  %715 = vmatpush.bf16.msra.mxu0 %v544
  %716 = vmatpush.bf16.msra.mxu0 %v543
  %717 = vmatpush.bf16.msra.mxu0 %v542
  %718 = vmatpush.bf16.msra.mxu0 %v541
  %719 = vmatpush.bf16.msra.mxu0 %v540
  %720 = vmatpush.bf16.msra.mxu0 %v539
  %721 = vmatmul.bf16.gmra.mxu0 %v198
  %v722 = vpop.f32.mrf.mxu0
  %v723 = vadd.f32 %v709, %v722
  %v724 = vpop.f32.mrf.mxu0
  %v725 = vadd.f32 %v711, %v724
  %726 = vdwg.mxu0
  %727 = vmatpush.bf16.msra.mxu0 %v554
  %728 = vmatpush.bf16.msra.mxu0 %v553
  %729 = vmatpush.bf16.msra.mxu0 %v552
  %730 = vmatpush.bf16.msra.mxu0 %v551
  %731 = vmatpush.bf16.msra.mxu0 %v550
  %732 = vmatpush.bf16.msra.mxu0 %v549
  %733 = vmatpush.bf16.msra.mxu0 %v548
  %734 = vmatpush.bf16.msra.mxu0 %v547
  %735 = vmatmul.bf16.gmra.mxu0 %v199
  %v736 = vpop.f32.mrf.mxu0
  %v737 = vadd.f32 %v723, %v736
  %v738 = vpop.f32.mrf.mxu0
  %v739 = vadd.f32 %v725, %v738
  %740 = vdwg.mxu0
  %741 = vmatpush.bf16.msra.mxu0 %v562
  %742 = vmatpush.bf16.msra.mxu0 %v561
  %743 = vmatpush.bf16.msra.mxu0 %v560
  %744 = vmatpush.bf16.msra.mxu0 %v559
  %745 = vmatpush.bf16.msra.mxu0 %v558
  %746 = vmatpush.bf16.msra.mxu0 %v557
  %747 = vmatpush.bf16.msra.mxu0 %v556
  %748 = vmatpush.bf16.msra.mxu0 %v555
  %749 = vmatmul.bf16.gmra.mxu0 %v200
  %v750 = vpop.f32.mrf.mxu0
  %v751 = vadd.f32 %v737, %v750
  %v752 = vpop.f32.mrf.mxu0
  %v753 = vadd.f32 %v739, %v752
  %754 = vdwg.mxu0
  %755 = vmatpush.bf16.msra.mxu0 %v570
  %756 = vmatpush.bf16.msra.mxu0 %v569
  %757 = vmatpush.bf16.msra.mxu0 %v568
  %758 = vmatpush.bf16.msra.mxu0 %v567
  %759 = vmatpush.bf16.msra.mxu0 %v566
  %760 = vmatpush.bf16.msra.mxu0 %v565
  %761 = vmatpush.bf16.msra.mxu0 %v564
  %762 = vmatpush.bf16.msra.mxu0 %v563
  %763 = vmatmul.bf16.gmra.mxu0 %v201
  %v764 = vpop.f32.mrf.mxu0
  %v765 = vadd.f32 %v751, %v764
  %v766 = vpop.f32.mrf.mxu0
  %v767 = vadd.f32 %v753, %v766
  %768 = vdwg.mxu0
  %v769 = vpack.c.bf16 %v765, %v765
  %v770 = vpack.c.bf16 %v767, %v767
  %771 = vst [vmem:[%s2] sm:$0xf] %v769
  %772 = vst [vmem:[%s2 + $0x4] sm:$0xf] %v770
  // Predicated region
  $region10: #{closed_call.57} parent=0 // pred_check
    _
  $region11: #{closed_call.57} parent=0 // pred_check_branch
    %774 = sbr.rel (0) target = $region13
  $region12: #{closed_call.57} parent=0 // pred_region
    _
  $region13: #{closed_call.57} parent=0 // pred_fallthru
    _
  // Predicated region
  $region14: #{closed_call.57} parent=0 // pred_check
    _
  $region15: #{closed_call.57} parent=0 // pred_check_branch
    %776 = sbr.rel (0) target = $region17
  $region16: #{closed_call.57} parent=0 // pred_region
    _
  $region17: #{closed_call.57} parent=0 // pred_fallthru
    _

// kernel: cnn_model_forward.17
$region0: #{cnn_model_forward.17}
  #allocation0 [shape = 'u32[]', space=smem, size = 0x4, offset = 0x4, fixed_abs, tag = 'smem constant byte address 0x4 - core index']
  #allocation1 [shape = 'u32[72,128]{1,0:T(1,128)}', space=vmem, size = 0x9000, scoped, tag = 'internal scratch']
  %s0 = inlined_call_operand.vmem [shape: bf16[4,16,512], index: 0, kind: input, shape index: {}]
  %s1 = inlined_call_operand.vmem [shape: bf16[16,512], index: 1, kind: output, shape index: {}]
  %s2 = sld [smem:[#allocation0]]
  $region14: #{cnn_model_forward.17} parent=0
    _
  %s4 = ssub.s32 1, %s2
  %s5 = scalar_select 0, %s4, %s2
  // Predicated region
  $region2: #{cnn_model_forward.17} parent=0 // pred_check
    _
  $region3: #{cnn_model_forward.17} parent=0 // pred_check_branch
    %7 = sbr.rel (0) target = $region5
  $region4: #{cnn_model_forward.17} parent=0 // pred_region
    _
  $region5: #{cnn_model_forward.17} parent=0 // pred_fallthru
    _
  %v8 = vld [vmem:[%s0] sm:$0xff]
  %v9 = vld [vmem:[%s0 + $0x8] sm:$0xff]
  %v10 = vld [vmem:[%s0 + $0x10] sm:$0xff]
  %v11 = vld [vmem:[%s0 + $0x18] sm:$0xff]
  %v12 = vunpack.c.l.bf16 %v8
  %v13 = vunpack.c.h.bf16 %v8
  %v14 = vunpack.c.l.bf16 %v9
  %v15 = vunpack.c.h.bf16 %v9
  %v16 = vunpack.c.l.bf16 %v10
  %v17 = vunpack.c.h.bf16 %v10
  %v18 = vunpack.c.l.bf16 %v11
  %v19 = vunpack.c.h.bf16 %v11
  %s20 = scalar_lea.vmem %s0, 32
  %v21 = vld [vmem:[%s20] sm:$0xff]
  %v22 = vld [vmem:[%s20 + $0x8] sm:$0xff]
  %v23 = vld [vmem:[%s20 + $0x10] sm:$0xff]
  %v24 = vld [vmem:[%s20 + $0x18] sm:$0xff]
  %v25 = vunpack.c.l.bf16 %v21
  %v26 = vunpack.c.h.bf16 %v21
  %v27 = vunpack.c.l.bf16 %v22
  %v28 = vunpack.c.h.bf16 %v22
  %v29 = vunpack.c.l.bf16 %v23
  %v30 = vunpack.c.h.bf16 %v23
  %v31 = vunpack.c.l.bf16 %v24
  %v32 = vunpack.c.h.bf16 %v24
  %v33 = vadd.f32 %v12, %v25
  %v34 = vadd.f32 %v13, %v26
  %v35 = vadd.f32 %v14, %v27
  %v36 = vadd.f32 %v15, %v28
  %v37 = vadd.f32 %v16, %v29
  %v38 = vadd.f32 %v17, %v30
  %v39 = vadd.f32 %v18, %v31
  %v40 = vadd.f32 %v19, %v32
  %s41 = scalar_lea.vmem %s0, 64
  %v42 = vld [vmem:[%s41] sm:$0xff]
  %v43 = vld [vmem:[%s41 + $0x8] sm:$0xff]
  %v44 = vld [vmem:[%s41 + $0x10] sm:$0xff]
  %v45 = vld [vmem:[%s41 + $0x18] sm:$0xff]
  %v46 = vunpack.c.l.bf16 %v42
  %v47 = vunpack.c.h.bf16 %v42
  %v48 = vunpack.c.l.bf16 %v43
  %v49 = vunpack.c.h.bf16 %v43
  %v50 = vunpack.c.l.bf16 %v44
  %v51 = vunpack.c.h.bf16 %v44
  %v52 = vunpack.c.l.bf16 %v45
  %v53 = vunpack.c.h.bf16 %v45
  %v54 = vadd.f32 %v33, %v46
  %v55 = vadd.f32 %v34, %v47
  %v56 = vadd.f32 %v35, %v48
  %v57 = vadd.f32 %v36, %v49
  %v58 = vadd.f32 %v37, %v50
  %v59 = vadd.f32 %v38, %v51
  %v60 = vadd.f32 %v39, %v52
  %v61 = vadd.f32 %v40, %v53
  %s62 = scalar_lea.vmem %s0, 96
  %v63 = vld [vmem:[%s62] sm:$0xff]
  %v64 = vld [vmem:[%s62 + $0x8] sm:$0xff]
  %v65 = vld [vmem:[%s62 + $0x10] sm:$0xff]
  %v66 = vld [vmem:[%s62 + $0x18] sm:$0xff]
  %v67 = vunpack.c.l.bf16 %v63
  %v68 = vunpack.c.h.bf16 %v63
  %v69 = vunpack.c.l.bf16 %v64
  %v70 = vunpack.c.h.bf16 %v64
  %v71 = vunpack.c.l.bf16 %v65
  %v72 = vunpack.c.h.bf16 %v65
  %v73 = vunpack.c.l.bf16 %v66
  %v74 = vunpack.c.h.bf16 %v66
  %v75 = vadd.f32 %v54, %v67
  %v76 = vadd.f32 %v55, %v68
  %v77 = vadd.f32 %v56, %v69
  %v78 = vadd.f32 %v57, %v70
  %v79 = vadd.f32 %v58, %v71
  %v80 = vadd.f32 %v59, %v72
  %v81 = vadd.f32 %v60, %v73
  %v82 = vadd.f32 %v61, %v74
  %v83 = vmul.f32 %v75, 0.25
  %v84 = vmul.f32 %v76, 0.25
  %v85 = vmul.f32 %v77, 0.25
  %v86 = vmul.f32 %v78, 0.25
  %v87 = vmul.f32 %v79, 0.25
  %v88 = vmul.f32 %v80, 0.25
  %v89 = vmul.f32 %v81, 0.25
  %v90 = vmul.f32 %v82, 0.25
  %v91 = vpack.c.bf16 %v84, %v83
  %v92 = vpack.c.bf16 %v86, %v85
  %v93 = vpack.c.bf16 %v88, %v87
  %v94 = vpack.c.bf16 %v90, %v89
  %95 = vst [vmem:[%s1] sm:$0xff] %v91
  %96 = vst [vmem:[%s1 + $0x8] sm:$0xff] %v92
  %97 = vst [vmem:[%s1 + $0x10] sm:$0xff] %v93
  %98 = vst [vmem:[%s1 + $0x18] sm:$0xff] %v94
  // Predicated region
  $region6: #{cnn_model_forward.17} parent=0 // pred_check
    _
  $region7: #{cnn_model_forward.17} parent=0 // pred_check_branch
    %100 = sbr.rel (0) target = $region9
  $region8: #{cnn_model_forward.17} parent=0 // pred_region
    _
  $region9: #{cnn_model_forward.17} parent=0 // pred_fallthru
    _
  // Predicated region
  $region10: #{cnn_model_forward.17} parent=0 // pred_check
    _
  $region11: #{cnn_model_forward.17} parent=0 // pred_check_branch
    %102 = sbr.rel (0) target = $region13
  $region12: #{cnn_model_forward.17} parent=0 // pred_region
    _
  $region13: #{cnn_model_forward.17} parent=0 // pred_fallthru
    _

// kernel: cnn_model_forward.19
$region0: #{cnn_model_forward.19}
  #allocation0 [shape = 'u32[]', space=smem, size = 0x4, offset = 0x4, fixed_abs, tag = 'smem constant byte address 0x4 - core index']
  #allocation1 [shape = 'u32[72,128]{1,0:T(1,128)}', space=vmem, size = 0x9000, scoped, tag = 'internal scratch']
  %s0 = inlined_call_operand.vmem [shape: bf16[16,1024], index: 0, kind: input, shape index: {}]
  %s1 = inlined_call_operand.vmem [shape: bf16[1024,128], index: 1, kind: input, shape index: {}]
  %s2 = inlined_call_operand.vmem [shape: f32[1,128], index: 2, kind: input, shape index: {}]
  %s3 = inlined_call_operand.vmem [shape: f32[1,128], index: 3, kind: input, shape index: {}]
  %s4 = inlined_call_operand.vmem [shape: f32[16,128], index: 4, kind: output, shape index: {}]
  %s5 = sld [smem:[#allocation0]]
  $region26: #{cnn_model_forward.19} parent=0
    _
  %s7 = ssub.s32 1, %s5
  %s8 = scalar_select 0, %s7, %s5
  // Predicated region
  $region2: #{cnn_model_forward.19} parent=0 // pred_check
    _
  $region3: #{cnn_model_forward.19} parent=0 // pred_check_branch
    %10 = sbr.rel (0) target = $region5
  $region4: #{cnn_model_forward.19} parent=0 // pred_region
    _
  $region5: #{cnn_model_forward.19} parent=0 // pred_fallthru
    _
  // Predicated region
  $region6: #{cnn_model_forward.19} parent=0 // pred_check
    _
  $region7: #{cnn_model_forward.19} parent=0 // pred_check_branch
    %12 = sbr.rel (0) target = $region9
  $region8: #{cnn_model_forward.19} parent=0 // pred_region
    _
  $region9: #{cnn_model_forward.19} parent=0 // pred_fallthru
    _
  // Predicated region
  $region10: #{cnn_model_forward.19} parent=0 // pred_check
    _
  $region11: #{cnn_model_forward.19} parent=0 // pred_check_branch
    %14 = sbr.rel (0) target = $region13
  $region12: #{cnn_model_forward.19} parent=0 // pred_region
    _
  $region13: #{cnn_model_forward.19} parent=0 // pred_fallthru
    _
  // Predicated region
  $region14: #{cnn_model_forward.19} parent=0 // pred_check
    _
  $region15: #{cnn_model_forward.19} parent=0 // pred_check_branch
    %16 = sbr.rel (0) target = $region17
  $region16: #{cnn_model_forward.19} parent=0 // pred_region
    _
  $region17: #{cnn_model_forward.19} parent=0 // pred_fallthru
    _
  %v17 = vld [vmem:[%s0] sm:$0xff]
  %v18 = vld [vmem:[%s0 + $0x8] sm:$0xff]
  %v19 = vld [vmem:[%s0 + $0x10] sm:$0xff]
  %v20 = vld [vmem:[%s0 + $0x18] sm:$0xff]
  %v21 = vld [vmem:[%s0 + $0x20] sm:$0xff]
  %v22 = vld [vmem:[%s0 + $0x28] sm:$0xff]
  %v23 = vld [vmem:[%s0 + $0x30] sm:$0xff]
  %v24 = vld [vmem:[%s0 + $0x38] sm:$0xff]
  %v25 = vld [vmem:[%s1] sm:$0xf]
  %v26 = vld [vmem:[%s1 + $0x4] sm:$0xf]
  %v27 = vld [vmem:[%s1 + $0x8] sm:$0xf]
  %v28 = vld [vmem:[%s1 + $0xc] sm:$0xf]
  %v29 = vld [vmem:[%s1 + $0x10] sm:$0xf]
  %v30 = vld [vmem:[%s1 + $0x14] sm:$0xf]
  %v31 = vld [vmem:[%s1 + $0x18] sm:$0xf]
  %v32 = vld [vmem:[%s1 + $0x1c] sm:$0xf]
  %v33 = vld [vmem:[%s1 + $0x20] sm:$0xf]
  %v34 = vld [vmem:[%s1 + $0x24] sm:$0xf]
  %v35 = vld [vmem:[%s1 + $0x28] sm:$0xf]
  %v36 = vld [vmem:[%s1 + $0x2c] sm:$0xf]
  %v37 = vld [vmem:[%s1 + $0x30] sm:$0xf]
  %v38 = vld [vmem:[%s1 + $0x34] sm:$0xf]
  %v39 = vld [vmem:[%s1 + $0x38] sm:$0xf]
  %v40 = vld [vmem:[%s1 + $0x3c] sm:$0xf]
  %v41 = vld [vmem:[%s1 + $0x40] sm:$0xf]
  %v42 = vld [vmem:[%s1 + $0x44] sm:$0xf]
  %v43 = vld [vmem:[%s1 + $0x48] sm:$0xf]
  %v44 = vld [vmem:[%s1 + $0x4c] sm:$0xf]
  %v45 = vld [vmem:[%s1 + $0x50] sm:$0xf]
  %v46 = vld [vmem:[%s1 + $0x54] sm:$0xf]
  %v47 = vld [vmem:[%s1 + $0x58] sm:$0xf]
  %v48 = vld [vmem:[%s1 + $0x5c] sm:$0xf]
  %v49 = vld [vmem:[%s1 + $0x60] sm:$0xf]
  %v50 = vld [vmem:[%s1 + $0x64] sm:$0xf]
  %v51 = vld [vmem:[%s1 + $0x68] sm:$0xf]
  %v52 = vld [vmem:[%s1 + $0x6c] sm:$0xf]
  %v53 = vld [vmem:[%s1 + $0x70] sm:$0xf]
  %v54 = vld [vmem:[%s1 + $0x74] sm:$0xf]
  %v55 = vld [vmem:[%s1 + $0x78] sm:$0xf]
  %v56 = vld [vmem:[%s1 + $0x7c] sm:$0xf]
  %v57 = vld [vmem:[%s1 + $0x80] sm:$0xf]
  %v58 = vld [vmem:[%s1 + $0x84] sm:$0xf]
  %v59 = vld [vmem:[%s1 + $0x88] sm:$0xf]
  %v60 = vld [vmem:[%s1 + $0x8c] sm:$0xf]
  %v61 = vld [vmem:[%s1 + $0x90] sm:$0xf]
  %v62 = vld [vmem:[%s1 + $0x94] sm:$0xf]
  %v63 = vld [vmem:[%s1 + $0x98] sm:$0xf]
  %v64 = vld [vmem:[%s1 + $0x9c] sm:$0xf]
  %v65 = vld [vmem:[%s1 + $0xa0] sm:$0xf]
  %v66 = vld [vmem:[%s1 + $0xa4] sm:$0xf]
  %v67 = vld [vmem:[%s1 + $0xa8] sm:$0xf]
  %v68 = vld [vmem:[%s1 + $0xac] sm:$0xf]
  %v69 = vld [vmem:[%s1 + $0xb0] sm:$0xf]
  %v70 = vld [vmem:[%s1 + $0xb4] sm:$0xf]
  %v71 = vld [vmem:[%s1 + $0xb8] sm:$0xf]
  %v72 = vld [vmem:[%s1 + $0xbc] sm:$0xf]
  %v73 = vld [vmem:[%s1 + $0xc0] sm:$0xf]
  %v74 = vld [vmem:[%s1 + $0xc4] sm:$0xf]
  %v75 = vld [vmem:[%s1 + $0xc8] sm:$0xf]
  %v76 = vld [vmem:[%s1 + $0xcc] sm:$0xf]
  %v77 = vld [vmem:[%s1 + $0xd0] sm:$0xf]
  %v78 = vld [vmem:[%s1 + $0xd4] sm:$0xf]
  %v79 = vld [vmem:[%s1 + $0xd8] sm:$0xf]
  %v80 = vld [vmem:[%s1 + $0xdc] sm:$0xf]
  %v81 = vld [vmem:[%s1 + $0xe0] sm:$0xf]
  %v82 = vld [vmem:[%s1 + $0xe4] sm:$0xf]
  %v83 = vld [vmem:[%s1 + $0xe8] sm:$0xf]
  %v84 = vld [vmem:[%s1 + $0xec] sm:$0xf]
  %v85 = vld [vmem:[%s1 + $0xf0] sm:$0xf]
  %v86 = vld [vmem:[%s1 + $0xf4] sm:$0xf]
  %v87 = vld [vmem:[%s1 + $0xf8] sm:$0xf]
  %v88 = vld [vmem:[%s1 + $0xfc] sm:$0xf]
  %v89 = vld [vmem:[%s1 + $0x100] sm:$0xf]
  %v90 = vld [vmem:[%s1 + $0x104] sm:$0xf]
  %v91 = vld [vmem:[%s1 + $0x108] sm:$0xf]
  %v92 = vld [vmem:[%s1 + $0x10c] sm:$0xf]
  %v93 = vld [vmem:[%s1 + $0x110] sm:$0xf]
  %v94 = vld [vmem:[%s1 + $0x114] sm:$0xf]
  %v95 = vld [vmem:[%s1 + $0x118] sm:$0xf]
  %v96 = vld [vmem:[%s1 + $0x11c] sm:$0xf]
  %v97 = vld [vmem:[%s1 + $0x120] sm:$0xf]
  %v98 = vld [vmem:[%s1 + $0x124] sm:$0xf]
  %v99 = vld [vmem:[%s1 + $0x128] sm:$0xf]
  %v100 = vld [vmem:[%s1 + $0x12c] sm:$0xf]
  %v101 = vld [vmem:[%s1 + $0x130] sm:$0xf]
  %v102 = vld [vmem:[%s1 + $0x134] sm:$0xf]
  %v103 = vld [vmem:[%s1 + $0x138] sm:$0xf]
  %v104 = vld [vmem:[%s1 + $0x13c] sm:$0xf]
  %v105 = vld [vmem:[%s1 + $0x140] sm:$0xf]
  %v106 = vld [vmem:[%s1 + $0x144] sm:$0xf]
  %v107 = vld [vmem:[%s1 + $0x148] sm:$0xf]
  %v108 = vld [vmem:[%s1 + $0x14c] sm:$0xf]
  %v109 = vld [vmem:[%s1 + $0x150] sm:$0xf]
  %v110 = vld [vmem:[%s1 + $0x154] sm:$0xf]
  %v111 = vld [vmem:[%s1 + $0x158] sm:$0xf]
  %v112 = vld [vmem:[%s1 + $0x15c] sm:$0xf]
  %v113 = vld [vmem:[%s1 + $0x160] sm:$0xf]
  %v114 = vld [vmem:[%s1 + $0x164] sm:$0xf]
  %v115 = vld [vmem:[%s1 + $0x168] sm:$0xf]
  %v116 = vld [vmem:[%s1 + $0x16c] sm:$0xf]
  %v117 = vld [vmem:[%s1 + $0x170] sm:$0xf]
  %v118 = vld [vmem:[%s1 + $0x174] sm:$0xf]
  %v119 = vld [vmem:[%s1 + $0x178] sm:$0xf]
  %v120 = vld [vmem:[%s1 + $0x17c] sm:$0xf]
  %v121 = vld [vmem:[%s1 + $0x180] sm:$0xf]
  %v122 = vld [vmem:[%s1 + $0x184] sm:$0xf]
  %v123 = vld [vmem:[%s1 + $0x188] sm:$0xf]
  %v124 = vld [vmem:[%s1 + $0x18c] sm:$0xf]
  %v125 = vld [vmem:[%s1 + $0x190] sm:$0xf]
  %v126 = vld [vmem:[%s1 + $0x194] sm:$0xf]
  %v127 = vld [vmem:[%s1 + $0x198] sm:$0xf]
  %v128 = vld [vmem:[%s1 + $0x19c] sm:$0xf]
  %v129 = vld [vmem:[%s1 + $0x1a0] sm:$0xf]
  %v130 = vld [vmem:[%s1 + $0x1a4] sm:$0xf]
  %v131 = vld [vmem:[%s1 + $0x1a8] sm:$0xf]
  %v132 = vld [vmem:[%s1 + $0x1ac] sm:$0xf]
  %v133 = vld [vmem:[%s1 + $0x1b0] sm:$0xf]
  %v134 = vld [vmem:[%s1 + $0x1b4] sm:$0xf]
  %v135 = vld [vmem:[%s1 + $0x1b8] sm:$0xf]
  %v136 = vld [vmem:[%s1 + $0x1bc] sm:$0xf]
  %v137 = vld [vmem:[%s1 + $0x1c0] sm:$0xf]
  %v138 = vld [vmem:[%s1 + $0x1c4] sm:$0xf]
  %v139 = vld [vmem:[%s1 + $0x1c8] sm:$0xf]
  %v140 = vld [vmem:[%s1 + $0x1cc] sm:$0xf]
  %v141 = vld [vmem:[%s1 + $0x1d0] sm:$0xf]
  %v142 = vld [vmem:[%s1 + $0x1d4] sm:$0xf]
  %v143 = vld [vmem:[%s1 + $0x1d8] sm:$0xf]
  %v144 = vld [vmem:[%s1 + $0x1dc] sm:$0xf]
  %v145 = vld [vmem:[%s1 + $0x1e0] sm:$0xf]
  %v146 = vld [vmem:[%s1 + $0x1e4] sm:$0xf]
  %v147 = vld [vmem:[%s1 + $0x1e8] sm:$0xf]
  %v148 = vld [vmem:[%s1 + $0x1ec] sm:$0xf]
  %v149 = vld [vmem:[%s1 + $0x1f0] sm:$0xf]
  %v150 = vld [vmem:[%s1 + $0x1f4] sm:$0xf]
  %v151 = vld [vmem:[%s1 + $0x1f8] sm:$0xf]
  %v152 = vld [vmem:[%s1 + $0x1fc] sm:$0xf]
  %v161 = vunpack.c.l.b16 %v17
  %v162 = vunpack.c.h.b16 %v17
  %v163 = vunpack.c.l.b16 %v18
  %v164 = vunpack.c.h.b16 %v18
  %v165 = vunpack.c.l.b16 %v19
  %v166 = vunpack.c.h.b16 %v19
  %v167 = vunpack.c.l.b16 %v20
  %v168 = vunpack.c.h.b16 %v20
  %v169 = vunpack.c.l.b16 %v21
  %v170 = vunpack.c.h.b16 %v21
  %v171 = vunpack.c.l.b16 %v22
  %v172 = vunpack.c.h.b16 %v22
  %v173 = vunpack.c.l.b16 %v23
  %v174 = vunpack.c.h.b16 %v23
  %v175 = vunpack.c.l.b16 %v24
  %v176 = vunpack.c.h.b16 %v24
  %v177 = vpack.c.b16 %v169, %v161
  %v178 = vpack.c.b16 %v170, %v162
  %v179 = vpack.c.b16 %v171, %v163
  %v180 = vpack.c.b16 %v172, %v164
  %v181 = vpack.c.b16 %v173, %v165
  %v182 = vpack.c.b16 %v174, %v166
  %v183 = vpack.c.b16 %v175, %v167
  %v184 = vpack.c.b16 %v176, %v168
  %v321 = vunpack.c.l.b16 %v25
  %v322 = vunpack.c.l.b16 %v26
  %v323 = vunpack.c.l.b16 %v27
  %v324 = vunpack.c.l.b16 %v28
  %v325 = vunpack.c.l.b16 %v29
  %v326 = vunpack.c.l.b16 %v30
  %v327 = vunpack.c.l.b16 %v31
  %v328 = vunpack.c.l.b16 %v32
  %v329 = vunpack.c.l.b16 %v33
  %v330 = vunpack.c.l.b16 %v34
  %v331 = vunpack.c.l.b16 %v35
  %v332 = vunpack.c.l.b16 %v36
  %v333 = vunpack.c.l.b16 %v37
  %v334 = vunpack.c.l.b16 %v38
  %v335 = vunpack.c.l.b16 %v39
  %v336 = vunpack.c.l.b16 %v40
  %v337 = vunpack.c.l.b16 %v41
  %v338 = vunpack.c.l.b16 %v42
  %v339 = vunpack.c.l.b16 %v43
  %v340 = vunpack.c.l.b16 %v44
  %v341 = vunpack.c.l.b16 %v45
  %v342 = vunpack.c.l.b16 %v46
  %v343 = vunpack.c.l.b16 %v47
  %v344 = vunpack.c.l.b16 %v48
  %v345 = vunpack.c.l.b16 %v49
  %v346 = vunpack.c.l.b16 %v50
  %v347 = vunpack.c.l.b16 %v51
  %v348 = vunpack.c.l.b16 %v52
  %v349 = vunpack.c.l.b16 %v53
  %v350 = vunpack.c.l.b16 %v54
  %v351 = vunpack.c.l.b16 %v55
  %v352 = vunpack.c.l.b16 %v56
  %v353 = vunpack.c.l.b16 %v57
  %v354 = vunpack.c.l.b16 %v58
  %v355 = vunpack.c.l.b16 %v59
  %v356 = vunpack.c.l.b16 %v60
  %v357 = vunpack.c.l.b16 %v61
  %v358 = vunpack.c.l.b16 %v62
  %v359 = vunpack.c.l.b16 %v63
  %v360 = vunpack.c.l.b16 %v64
  %v361 = vunpack.c.l.b16 %v65
  %v362 = vunpack.c.l.b16 %v66
  %v363 = vunpack.c.l.b16 %v67
  %v364 = vunpack.c.l.b16 %v68
  %v365 = vunpack.c.l.b16 %v69
  %v366 = vunpack.c.l.b16 %v70
  %v367 = vunpack.c.l.b16 %v71
  %v368 = vunpack.c.l.b16 %v72
  %v369 = vunpack.c.l.b16 %v73
  %v370 = vunpack.c.l.b16 %v74
  %v371 = vunpack.c.l.b16 %v75
  %v372 = vunpack.c.l.b16 %v76
  %v373 = vunpack.c.l.b16 %v77
  %v374 = vunpack.c.l.b16 %v78
  %v375 = vunpack.c.l.b16 %v79
  %v376 = vunpack.c.l.b16 %v80
  %v377 = vunpack.c.l.b16 %v81
  %v378 = vunpack.c.l.b16 %v82
  %v379 = vunpack.c.l.b16 %v83
  %v380 = vunpack.c.l.b16 %v84
  %v381 = vunpack.c.l.b16 %v85
  %v382 = vunpack.c.l.b16 %v86
  %v383 = vunpack.c.l.b16 %v87
  %v384 = vunpack.c.l.b16 %v88
  %v385 = vunpack.c.l.b16 %v89
  %v386 = vunpack.c.l.b16 %v90
  %v387 = vunpack.c.l.b16 %v91
  %v388 = vunpack.c.l.b16 %v92
  %v389 = vunpack.c.l.b16 %v93
  %v390 = vunpack.c.l.b16 %v94
  %v391 = vunpack.c.l.b16 %v95
  %v392 = vunpack.c.l.b16 %v96
  %v393 = vunpack.c.l.b16 %v97
  %v394 = vunpack.c.l.b16 %v98
  %v395 = vunpack.c.l.b16 %v99
  %v396 = vunpack.c.l.b16 %v100
  %v397 = vunpack.c.l.b16 %v101
  %v398 = vunpack.c.l.b16 %v102
  %v399 = vunpack.c.l.b16 %v103
  %v400 = vunpack.c.l.b16 %v104
  %v401 = vunpack.c.l.b16 %v105
  %v402 = vunpack.c.l.b16 %v106
  %v403 = vunpack.c.l.b16 %v107
  %v404 = vunpack.c.l.b16 %v108
  %v405 = vunpack.c.l.b16 %v109
  %v406 = vunpack.c.l.b16 %v110
  %v407 = vunpack.c.l.b16 %v111
  %v408 = vunpack.c.l.b16 %v112
  %v409 = vunpack.c.l.b16 %v113
  %v410 = vunpack.c.l.b16 %v114
  %v411 = vunpack.c.l.b16 %v115
  %v412 = vunpack.c.l.b16 %v116
  %v413 = vunpack.c.l.b16 %v117
  %v414 = vunpack.c.l.b16 %v118
  %v415 = vunpack.c.l.b16 %v119
  %v416 = vunpack.c.l.b16 %v120
  %v417 = vunpack.c.l.b16 %v121
  %v418 = vunpack.c.l.b16 %v122
  %v419 = vunpack.c.l.b16 %v123
  %v420 = vunpack.c.l.b16 %v124
  %v421 = vunpack.c.l.b16 %v125
  %v422 = vunpack.c.l.b16 %v126
  %v423 = vunpack.c.l.b16 %v127
  %v424 = vunpack.c.l.b16 %v128
  %v425 = vunpack.c.l.b16 %v129
  %v426 = vunpack.c.l.b16 %v130
  %v427 = vunpack.c.l.b16 %v131
  %v428 = vunpack.c.l.b16 %v132
  %v429 = vunpack.c.l.b16 %v133
  %v430 = vunpack.c.l.b16 %v134
  %v431 = vunpack.c.l.b16 %v135
  %v432 = vunpack.c.l.b16 %v136
  %v433 = vunpack.c.l.b16 %v137
  %v434 = vunpack.c.l.b16 %v138
  %v435 = vunpack.c.l.b16 %v139
  %v436 = vunpack.c.l.b16 %v140
  %v437 = vunpack.c.l.b16 %v141
  %v438 = vunpack.c.l.b16 %v142
  %v439 = vunpack.c.l.b16 %v143
  %v440 = vunpack.c.l.b16 %v144
  %v441 = vunpack.c.l.b16 %v145
  %v442 = vunpack.c.l.b16 %v146
  %v443 = vunpack.c.l.b16 %v147
  %v444 = vunpack.c.l.b16 %v148
  %v445 = vunpack.c.l.b16 %v149
  %v446 = vunpack.c.l.b16 %v150
  %v447 = vunpack.c.l.b16 %v151
  %v448 = vunpack.c.l.b16 %v152
  %v449 = vpack.c.b16 %v322, %v321
  %v450 = vpack.c.b16 %v324, %v323
  %v451 = vpack.c.b16 %v326, %v325
  %v452 = vpack.c.b16 %v328, %v327
  %v453 = vpack.c.b16 %v330, %v329
  %v454 = vpack.c.b16 %v332, %v331
  %v455 = vpack.c.b16 %v334, %v333
  %v456 = vpack.c.b16 %v336, %v335
  %v457 = vpack.c.b16 %v338, %v337
  %v458 = vpack.c.b16 %v340, %v339
  %v459 = vpack.c.b16 %v342, %v341
  %v460 = vpack.c.b16 %v344, %v343
  %v461 = vpack.c.b16 %v346, %v345
  %v462 = vpack.c.b16 %v348, %v347
  %v463 = vpack.c.b16 %v350, %v349
  %v464 = vpack.c.b16 %v352, %v351
  %v465 = vpack.c.b16 %v354, %v353
  %v466 = vpack.c.b16 %v356, %v355
  %v467 = vpack.c.b16 %v358, %v357
  %v468 = vpack.c.b16 %v360, %v359
  %v469 = vpack.c.b16 %v362, %v361
  %v470 = vpack.c.b16 %v364, %v363
  %v471 = vpack.c.b16 %v366, %v365
  %v472 = vpack.c.b16 %v368, %v367
  %v473 = vpack.c.b16 %v370, %v369
  %v474 = vpack.c.b16 %v372, %v371
  %v475 = vpack.c.b16 %v374, %v373
  %v476 = vpack.c.b16 %v376, %v375
  %v477 = vpack.c.b16 %v378, %v377
  %v478 = vpack.c.b16 %v380, %v379
  %v479 = vpack.c.b16 %v382, %v381
  %v480 = vpack.c.b16 %v384, %v383
  %v481 = vpack.c.b16 %v386, %v385
  %v482 = vpack.c.b16 %v388, %v387
  %v483 = vpack.c.b16 %v390, %v389
  %v484 = vpack.c.b16 %v392, %v391
  %v485 = vpack.c.b16 %v394, %v393
  %v486 = vpack.c.b16 %v396, %v395
  %v487 = vpack.c.b16 %v398, %v397
  %v488 = vpack.c.b16 %v400, %v399
  %v489 = vpack.c.b16 %v402, %v401
  %v490 = vpack.c.b16 %v404, %v403
  %v491 = vpack.c.b16 %v406, %v405
  %v492 = vpack.c.b16 %v408, %v407
  %v493 = vpack.c.b16 %v410, %v409
  %v494 = vpack.c.b16 %v412, %v411
  %v495 = vpack.c.b16 %v414, %v413
  %v496 = vpack.c.b16 %v416, %v415
  %v497 = vpack.c.b16 %v418, %v417
  %v498 = vpack.c.b16 %v420, %v419
  %v499 = vpack.c.b16 %v422, %v421
  %v500 = vpack.c.b16 %v424, %v423
  %v501 = vpack.c.b16 %v426, %v425
  %v502 = vpack.c.b16 %v428, %v427
  %v503 = vpack.c.b16 %v430, %v429
  %v504 = vpack.c.b16 %v432, %v431
  %v505 = vpack.c.b16 %v434, %v433
  %v506 = vpack.c.b16 %v436, %v435
  %v507 = vpack.c.b16 %v438, %v437
  %v508 = vpack.c.b16 %v440, %v439
  %v509 = vpack.c.b16 %v442, %v441
  %v510 = vpack.c.b16 %v444, %v443
  %v511 = vpack.c.b16 %v446, %v445
  %v512 = vpack.c.b16 %v448, %v447
  %577 = vmatpush.bf16.msra.mxu0 %v456
  %578 = vmatpush.bf16.msra.mxu0 %v455
  %579 = vmatpush.bf16.msra.mxu0 %v454
  %580 = vmatpush.bf16.msra.mxu0 %v453
  %581 = vmatpush.bf16.msra.mxu0 %v452
  %582 = vmatpush.bf16.msra.mxu0 %v451
  %583 = vmatpush.bf16.msra.mxu0 %v450
  %584 = vmatpush.bf16.msra.mxu0 %v449
  %585 = vmatmul.bf16.gmra.mxu0 %v177
  %v586 = vpop.f32.mrf.mxu0
  %v587 = vadd.f32 0.0, %v586
  %v588 = vpop.f32.mrf.mxu0
  %v589 = vadd.f32 0.0, %v588
  %590 = vdwg.mxu0
  %591 = vmatpush.bf16.msra.mxu0 %v464
  %592 = vmatpush.bf16.msra.mxu0 %v463
  %593 = vmatpush.bf16.msra.mxu0 %v462
  %594 = vmatpush.bf16.msra.mxu0 %v461
  %595 = vmatpush.bf16.msra.mxu0 %v460
  %596 = vmatpush.bf16.msra.mxu0 %v459
  %597 = vmatpush.bf16.msra.mxu0 %v458
  %598 = vmatpush.bf16.msra.mxu0 %v457
  %599 = vmatmul.bf16.gmra.mxu0 %v178
  %v600 = vpop.f32.mrf.mxu0
  %v601 = vadd.f32 %v587, %v600
  %v602 = vpop.f32.mrf.mxu0
  %v603 = vadd.f32 %v589, %v602
  %604 = vdwg.mxu0
  %605 = vmatpush.bf16.msra.mxu0 %v472
  %606 = vmatpush.bf16.msra.mxu0 %v471
  %607 = vmatpush.bf16.msra.mxu0 %v470
  %608 = vmatpush.bf16.msra.mxu0 %v469
  %609 = vmatpush.bf16.msra.mxu0 %v468
  %610 = vmatpush.bf16.msra.mxu0 %v467
  %611 = vmatpush.bf16.msra.mxu0 %v466
  %612 = vmatpush.bf16.msra.mxu0 %v465
  %613 = vmatmul.bf16.gmra.mxu0 %v179
  %v614 = vpop.f32.mrf.mxu0
  %v615 = vadd.f32 %v601, %v614
  %v616 = vpop.f32.mrf.mxu0
  %v617 = vadd.f32 %v603, %v616
  %618 = vdwg.mxu0
  %619 = vmatpush.bf16.msra.mxu0 %v480
  %620 = vmatpush.bf16.msra.mxu0 %v479
  %621 = vmatpush.bf16.msra.mxu0 %v478
  %622 = vmatpush.bf16.msra.mxu0 %v477
  %623 = vmatpush.bf16.msra.mxu0 %v476
  %624 = vmatpush.bf16.msra.mxu0 %v475
  %625 = vmatpush.bf16.msra.mxu0 %v474
  %626 = vmatpush.bf16.msra.mxu0 %v473
  %627 = vmatmul.bf16.gmra.mxu0 %v180
  %v628 = vpop.f32.mrf.mxu0
  %v629 = vadd.f32 %v615, %v628
  %v630 = vpop.f32.mrf.mxu0
  %v631 = vadd.f32 %v617, %v630
  %632 = vdwg.mxu0
  %633 = vmatpush.bf16.msra.mxu0 %v488
  %634 = vmatpush.bf16.msra.mxu0 %v487
  %635 = vmatpush.bf16.msra.mxu0 %v486
  %636 = vmatpush.bf16.msra.mxu0 %v485
  %637 = vmatpush.bf16.msra.mxu0 %v484
  %638 = vmatpush.bf16.msra.mxu0 %v483
  %639 = vmatpush.bf16.msra.mxu0 %v482
  %640 = vmatpush.bf16.msra.mxu0 %v481
  %641 = vmatmul.bf16.gmra.mxu0 %v181
  %v642 = vpop.f32.mrf.mxu0
  %v643 = vadd.f32 %v629, %v642
  %v644 = vpop.f32.mrf.mxu0
  %v645 = vadd.f32 %v631, %v644
  %646 = vdwg.mxu0
  %647 = vmatpush.bf16.msra.mxu0 %v496
  %648 = vmatpush.bf16.msra.mxu0 %v495
  %649 = vmatpush.bf16.msra.mxu0 %v494
  %650 = vmatpush.bf16.msra.mxu0 %v493
  %651 = vmatpush.bf16.msra.mxu0 %v492
  %652 = vmatpush.bf16.msra.mxu0 %v491
  %653 = vmatpush.bf16.msra.mxu0 %v490
  %654 = vmatpush.bf16.msra.mxu0 %v489
  %655 = vmatmul.bf16.gmra.mxu0 %v182
  %v656 = vpop.f32.mrf.mxu0
  %v657 = vadd.f32 %v643, %v656
  %v658 = vpop.f32.mrf.mxu0
  %v659 = vadd.f32 %v645, %v658
  %660 = vdwg.mxu0
  %661 = vmatpush.bf16.msra.mxu0 %v504
  %662 = vmatpush.bf16.msra.mxu0 %v503
  %663 = vmatpush.bf16.msra.mxu0 %v502
  %664 = vmatpush.bf16.msra.mxu0 %v501
  %665 = vmatpush.bf16.msra.mxu0 %v500
  %666 = vmatpush.bf16.msra.mxu0 %v499
  %667 = vmatpush.bf16.msra.mxu0 %v498
  %668 = vmatpush.bf16.msra.mxu0 %v497
  %669 = vmatmul.bf16.gmra.mxu0 %v183
  %v670 = vpop.f32.mrf.mxu0
  %v671 = vadd.f32 %v657, %v670
  %v672 = vpop.f32.mrf.mxu0
  %v673 = vadd.f32 %v659, %v672
  %674 = vdwg.mxu0
  %675 = vmatpush.bf16.msra.mxu0 %v512
  %676 = vmatpush.bf16.msra.mxu0 %v511
  %677 = vmatpush.bf16.msra.mxu0 %v510
  %678 = vmatpush.bf16.msra.mxu0 %v509
  %679 = vmatpush.bf16.msra.mxu0 %v508
  %680 = vmatpush.bf16.msra.mxu0 %v507
  %681 = vmatpush.bf16.msra.mxu0 %v506
  %682 = vmatpush.bf16.msra.mxu0 %v505
  %683 = vmatmul.bf16.gmra.mxu0 %v184
  %v684 = vpop.f32.mrf.mxu0
  %v685 = vadd.f32 %v671, %v684
  %v686 = vpop.f32.mrf.mxu0
  %v687 = vadd.f32 %v673, %v686
  %688 = vdwg.mxu0
  %v689 = vld [vmem:[%s2] sm:$0x1]
  %v691 = vperm.slane %v689, 0
  %v693 = vmul.f32 %v685, %v691
  %v694 = vmul.f32 %v687, %v691
  %v695 = vld [vmem:[%s3] sm:$0x1]
  %v697 = vperm.slane %v695, 0
  %v699 = vadd.f32 %v693, %v697
  %v700 = vadd.f32 %v694, %v697
  %701 = vst [vmem:[%s4] sm:$0xff] %v699
  %702 = vst [vmem:[%s4 + $0x8] sm:$0xff] %v700
  // Predicated region
  $region18: #{cnn_model_forward.19} parent=0 // pred_check
    _
  $region19: #{cnn_model_forward.19} parent=0 // pred_check_branch
    %704 = sbr.rel (0) target = $region21
  $region20: #{cnn_model_forward.19} parent=0 // pred_region
    _
  $region21: #{cnn_model_forward.19} parent=0 // pred_fallthru
    _
  // Predicated region
  $region22: #{cnn_model_forward.19} parent=0 // pred_check
    _
  $region23: #{cnn_model_forward.19} parent=0 // pred_check_branch
    %706 = sbr.rel (0) target = $region25
  $region24: #{cnn_model_forward.19} parent=0 // pred_region
    _
  $region25: #{cnn_model_forward.19} parent=0 // pred_fallthru
    _

// kernel: cnn_model_forward.18
$region0: #{cnn_model_forward.18}
  #allocation0 [shape = 'u32[]', space=smem, size = 0x4, offset = 0x4, fixed_abs, tag = 'smem constant byte address 0x4 - core index']
  #allocation1 [shape = 'u32[72,128]{1,0:T(1,128)}', space=vmem, size = 0x9000, scoped, tag = 'internal scratch']
  %s0 = inlined_call_operand.vmem [shape: bf16[1,16,1024], index: 0, kind: input, shape index: {}]
  %s1 = inlined_call_operand.vmem [shape: f32[1,1024], index: 1, kind: input, shape index: {}]
  %s2 = inlined_call_operand.vmem [shape: f32[1,1024], index: 2, kind: input, shape index: {}]
  %s3 = inlined_call_operand.vmem [shape: bf16[16,1024], index: 3, kind: output, shape index: {}]
  %s4 = sld [smem:[#allocation0]]
  $region87: #{cnn_model_forward.18} parent=0
    _
  %s6 = ssub.s32 1, %s4
  %s7 = scalar_select 0, %s6, %s4
  $region1: #{cnn_model_forward.18} parent=0
    #allocation2 [shape = 'u8[32768]{0}', space=vmem, size = 0x8000, scoped, tag = 'input window, operand 0']
    #allocation3 [shape = 'u8[32768]{0}', space=vmem, size = 0x8000, scoped, tag = 'output window, operand 0']
    loop: start=0, step=1, limit=4
    $region2: #{cnn_model_forward.18} parent=1 // loop_pre_header
      _
    $region3: #{cnn_model_forward.18} parent=1 // loop_header
      %s9 = sphi 0, %s13
      %p10 = scmp.ge.s32.totalorder %s9, 4
      %s16 = sphi 0, %s28
      %s17 = sphi 0, %s24
      %s18 = sphi 0, %s16
      %s19 = sphi 0, %s17
      %s20 = sphi 0, %s18
      %s21 = sphi 0, %s19
      %s33 = sphi 0, %s35
      %s36 = sphi 0, %s33
      %s37 = sphi 0, %s36
      %s53 = sphi 0, %s37
      %s59 = sphi 0, %s61
      %s62 = sphi 0, %s59
      %s63 = sphi 0, %s62
      %s79 = sphi 0, %s63
      %s85 = sphi 0, %s87
      %s88 = sphi 0, %s85
      %s89 = sphi 0, %s88
      %s105 = sphi 0, %s89
      %s113 = sphi 0, %s115
      %s116 = sphi 0, %s113
      %s117 = sphi 0, %s116
      %s133 = sphi 0, %s117
    $region4: #{cnn_model_forward.18} parent=1 // loop_header_branch
      %12 = sbr.rel (%p10) target = $region8
    $region5: #{cnn_model_forward.18} parent=1 // loop_body
      %s14 = ssub.s32 %s9, 1
      %s15 = ssub.s32 %s9, 2
      %s22 = sadd.s32 1, %s17
      %p23 = scmp.ge.s32.totalorder %s22, 2
      %s24 = scalar_select %p23, 0, %s22
      %s25 = sadd.s32 1, %s16
      %s26 = scalar_select %p23, %s25, %s16
      %p27 = scmp.ge.s32.totalorder %s26, 1
      %s28 = scalar_select %p27, 0, %s26
      %s29 = ssub.s32 %s16, %s28
      %s30 = ssub.s32 %s17, %s24
      %s31 = sor.u32 %s29, %s30
      %p32 = scmp.eq.s32.totalorder %s31, 0
      %s34 = sadd.s32 %s33, 1
      %s35 = scalar_select %p32, %s33, %s34
      %p38 = pneg %p32
      %p39 = scmp.eq.s32.totalorder %s9, 1
      %p40 = por %p38, %p39
      %p41 = scmp.ne.s32.totalorder %s33, %s36
      %p42 = scmp.eq.s32.totalorder %s9, 0
      %p43 = por %p41, %p42
      %p44 = scmp.ne.s32.totalorder %s33, %s36
      %p45 = scmp.eq.s32.totalorder %s14, 1
      %p46 = por %p44, %p45
      %p47 = scmp.ne.s32.totalorder %s36, %s37
      %p48 = scmp.eq.s32.totalorder %s14, 0
      %p49 = por %p47, %p48
      %p50 = scmp.ne.s32.totalorder %s36, %s37
      %p51 = scmp.eq.s32.totalorder %s15, 1
      %p52 = por %p50, %p51
      %p54 = scmp.ne.s32.totalorder %s37, %s53
      %p55 = scmp.eq.s32.totalorder %s15, 0
      %p56 = por %p54, %p55
      %s57 = ssub.s32 %s17, %s24
      %p58 = scmp.eq.s32.totalorder %s57, 0
      %s60 = sadd.s32 %s59, 1
      %s61 = scalar_select %p58, %s59, %s60
      %p64 = pneg %p58
      %p65 = scmp.eq.s32.totalorder %s9, 1
      %p66 = por %p64, %p65
      %p67 = scmp.ne.s32.totalorder %s59, %s62
      %p68 = scmp.eq.s32.totalorder %s9, 0
      %p69 = por %p67, %p68
      %p70 = scmp.ne.s32.totalorder %s59, %s62
      %p71 = scmp.eq.s32.totalorder %s14, 1
      %p72 = por %p70, %p71
      %p73 = scmp.ne.s32.totalorder %s62, %s63
      %p74 = scmp.eq.s32.totalorder %s14, 0
      %p75 = por %p73, %p74
      %p76 = scmp.ne.s32.totalorder %s62, %s63
      %p77 = scmp.eq.s32.totalorder %s15, 1
      %p78 = por %p76, %p77
      %p80 = scmp.ne.s32.totalorder %s63, %s79
      %p81 = scmp.eq.s32.totalorder %s15, 0
      %p82 = por %p80, %p81
      %s83 = ssub.s32 %s17, %s24
      %p84 = scmp.eq.s32.totalorder %s83, 0
      %s86 = sadd.s32 %s85, 1
      %s87 = scalar_select %p84, %s85, %s86
      %p90 = pneg %p84
      %p91 = scmp.eq.s32.totalorder %s9, 1
      %p92 = por %p90, %p91
      %p93 = scmp.ne.s32.totalorder %s85, %s88
      %p94 = scmp.eq.s32.totalorder %s9, 0
      %p95 = por %p93, %p94
      %p96 = scmp.ne.s32.totalorder %s85, %s88
      %p97 = scmp.eq.s32.totalorder %s14, 1
      %p98 = por %p96, %p97
      %p99 = scmp.ne.s32.totalorder %s88, %s89
      %p100 = scmp.eq.s32.totalorder %s14, 0
      %p101 = por %p99, %p100
      %p102 = scmp.ne.s32.totalorder %s88, %s89
      %p103 = scmp.eq.s32.totalorder %s15, 1
      %p104 = por %p102, %p103
      %p106 = scmp.ne.s32.totalorder %s89, %s105
      %p107 = scmp.eq.s32.totalorder %s15, 0
      %p108 = por %p106, %p107
      %s109 = ssub.s32 %s16, %s28
      %s110 = ssub.s32 %s17, %s24
      %s111 = sor.u32 %s109, %s110
      %p112 = scmp.eq.s32.totalorder %s111, 0
      %s114 = sadd.s32 %s113, 1
      %s115 = scalar_select %p112, %s113, %s114
      %p118 = pneg %p112
      %p119 = scmp.eq.s32.totalorder %s9, 1
      %p120 = por %p118, %p119
      %p121 = scmp.ne.s32.totalorder %s113, %s116
      %p122 = scmp.eq.s32.totalorder %s9, 0
      %p123 = por %p121, %p122
      %p124 = scmp.ne.s32.totalorder %s113, %s116
      %p125 = scmp.eq.s32.totalorder %s14, 1
      %p126 = por %p124, %p125
      %p127 = scmp.ne.s32.totalorder %s116, %s117
      %p128 = scmp.eq.s32.totalorder %s14, 0
      %p129 = por %p127, %p128
      %p130 = scmp.ne.s32.totalorder %s116, %s117
      %p131 = scmp.eq.s32.totalorder %s15, 1
      %p132 = por %p130, %p131
      %p134 = scmp.ne.s32.totalorder %s117, %s133
      %p135 = scmp.eq.s32.totalorder %s15, 0
      %p136 = por %p134, %p135
      %p137 = scmp.le.s32.totalorder 1, %s9
      %p138 = scmp.lt.s32.totalorder %s9, 3
      %p139 = pnand %p137, %p138
      %p140 = pneg %p139
      // Predicated region
      $region9: #{cnn_model_forward.18} parent=5 // pred_check
        _
      $region10: #{cnn_model_forward.18} parent=5 // pred_check_branch
        %142 = sbr.rel (%p139) target = $region12
      $region11: #{cnn_model_forward.18} parent=5 // pred_region
        %s143 = ssub.s32 %s9, 1
      $region12: #{cnn_model_forward.18} parent=5 // pred_fallthru
        _
      %p144 = scmp.lt.s32.totalorder %s9, 2
      // Predicated region
      $region13: #{cnn_model_forward.18} parent=5 // pred_check
        %p145 = pneg %p144
      $region14: #{cnn_model_forward.18} parent=5 // pred_check_branch
        %147 = sbr.rel (%p145) target = $region16
      $region15: #{cnn_model_forward.18} parent=5 // pred_region
        // Predicated region
        $region17: #{cnn_model_forward.18} parent=15 // pred_check
          %p148 = pneg %p43
        $region18: #{cnn_model_forward.18} parent=15 // pred_check_branch
          %150 = sbr.rel (%p148) target = $region20
        $region19: #{cnn_model_forward.18} parent=15 // pred_region
          %s151 = sand.u32 %s33, 1
          %s152 = sand.u32 %s33, 1
          %s153 = smul.addr %s152, 32
          %s154 = scalar_lea.vmem [#allocation2], %s153
          %s155 = smul.u32 2, %s16
          %s156 = smul.u32 4, %s17
          %s157 = smul.addr %s155, 8
          %s158 = sadd.s32 %s156, %s157
          %s159 = smul.addr %s158, 4
          %s160 = scalar_lea.vmem %s0, %s159
          // Predicated region
          $region21: #{cnn_model_forward.18} parent=19 // pred_check
            _
          $region22: #{cnn_model_forward.18} parent=19 // pred_check_branch
            %162 = sbr.rel (0) target = $region24
          $region23: #{cnn_model_forward.18} parent=19 // pred_region
            // Predicated region
            $region25: #{cnn_model_forward.18} parent=23 // pred_check
              _
            $region26: #{cnn_model_forward.18} parent=23 // pred_check_branch
              %164 = sbr.rel (0) target = $region28
            $region27: #{cnn_model_forward.18} parent=23 // pred_region
              loop: start=0, step=1, limit=1
              $region29: #{cnn_model_forward.18} parent=27 // loop_pre_header
                _
              $region30: #{cnn_model_forward.18} parent=27 // loop_header
                %s166 = sphi 0, %s170
                %p167 = scmp.ge.s32.totalorder %s166, 1
                %s171 = sphi %s160, %s160
                %s172 = sphi %s154, %s154
              $region31: #{cnn_model_forward.18} parent=27 // loop_header_branch
                %169 = sbr.rel (%p167) target = $region35
              $region32: #{cnn_model_forward.18} parent=27 // loop_body
                %v173 = vld [vmem:[%s171] sm:$0xff]
                %174 = vst [vmem:[%s172] sm:$0xff] %v173
                %v175 = vld [vmem:[%s171 + $0x8] sm:$0xff]
                %176 = vst [vmem:[%s172 + $0x8] sm:$0xff] %v175
                %v177 = vld [vmem:[%s171 + $0x20] sm:$0xff]
                %178 = vst [vmem:[%s172 + $0x10] sm:$0xff] %v177
                %v179 = vld [vmem:[%s171 + $0x28] sm:$0xff]
                %180 = vst [vmem:[%s172 + $0x18] sm:$0xff] %v179
              $region33: #{cnn_model_forward.18} parent=27 // loop_footer
                %s170 = sadd.s32 1, %s166
              $region34: #{cnn_model_forward.18} parent=27 // loop_footer_branch
                %165 = sbr.rel target = $region30
              $region35: #{cnn_model_forward.18} parent=27 // loop_exit
                _
            $region28: #{cnn_model_forward.18} parent=23 // pred_fallthru
              _
            // Predicated region
            $region36: #{cnn_model_forward.18} parent=23 // pred_check
              _
            $region37: #{cnn_model_forward.18} parent=23 // pred_check_branch
              %182 = sbr.rel target = $region39
            $region38: #{cnn_model_forward.18} parent=23 // pred_region
              _
            $region39: #{cnn_model_forward.18} parent=23 // pred_fallthru
              _
          $region24: #{cnn_model_forward.18} parent=19 // pred_fallthru
            _
          %183 = vnop
        $region20: #{cnn_model_forward.18} parent=15 // pred_fallthru
          _
        // Predicated region
        $region40: #{cnn_model_forward.18} parent=15 // pred_check
          %p184 = pneg %p69
        $region41: #{cnn_model_forward.18} parent=15 // pred_check_branch
          %186 = sbr.rel (%p184) target = $region43
        $region42: #{cnn_model_forward.18} parent=15 // pred_region
          %s187 = smul.u32 4, %s17
          %p188 = scmp.lt.s32.totalorder %s187, 7
          %s189 = scalar_select %p188, %s187, 7
          %s190 = scalar_lea.vmem %s1, %s189
          %s191 = smul.u32 4, %s17
        $region43: #{cnn_model_forward.18} parent=15 // pred_fallthru
          _
        // Predicated region
        $region44: #{cnn_model_forward.18} parent=15 // pred_check
          %p192 = pneg %p95
        $region45: #{cnn_model_forward.18} parent=15 // pred_check_branch
          %194 = sbr.rel (%p192) target = $region47
        $region46: #{cnn_model_forward.18} parent=15 // pred_region
          %s195 = smul.u32 4, %s17
          %p196 = scmp.lt.s32.totalorder %s195, 7
          %s197 = scalar_select %p196, %s195, 7
          %s198 = scalar_lea.vmem %s2, %s197
          %s199 = smul.u32 4, %s17
        $region47: #{cnn_model_forward.18} parent=15 // pred_fallthru
          _
      $region16: #{cnn_model_forward.18} parent=5 // pred_fallthru
        _
      %p200 = scmp.le.s32.totalorder 1, %s9
      %p201 = scmp.lt.s32.totalorder %s9, 3
      %p202 = pnand %p200, %p201
      %p203 = pneg %p202
      // Predicated region
      $region48: #{cnn_model_forward.18} parent=5 // pred_check
        _
      $region49: #{cnn_model_forward.18} parent=5 // pred_check_branch
        %205 = sbr.rel (%p202) target = $region51
      $region50: #{cnn_model_forward.18} parent=5 // pred_region
        %s206 = ssub.s32 %s9, 1
        %s207 = sand.u32 %s36, 1
        %s208 = sand.u32 %s36, 1
        %s209 = smul.addr %s208, 32
        %s210 = scalar_lea.vmem [#allocation2], %s209
        // Predicated region
        $region52: #{cnn_model_forward.18} parent=50 // pred_check
          %p211 = pneg %p49
        $region53: #{cnn_model_forward.18} parent=50 // pred_check_branch
          %213 = sbr.rel (%p211) target = $region55
        $region54: #{cnn_model_forward.18} parent=50 // pred_region
          _
        $region55: #{cnn_model_forward.18} parent=50 // pred_fallthru
          _
        %s214 = sand.u32 %s36, 1
        %s215 = sand.u32 %s36, 1
        %s216 = smul.addr %s215, 32
        %s217 = scalar_lea.vmem [#allocation2], %s216
        %p218 = pneg %p49
        %p219 = pneg %p46
        %s220 = smul.u32 4, %s19
        %p221 = scmp.lt.s32.totalorder %s220, 7
        %s222 = scalar_select %p221, %s220, 7
        %s223 = scalar_lea.vmem %s1, %s222
        %p224 = pneg %p75
        %p225 = pneg %p72
        %s226 = smul.u32 4, %s19
        %p227 = scmp.lt.s32.totalorder %s226, 7
        %s228 = scalar_select %p227, %s226, 7
        %s229 = scalar_lea.vmem %s2, %s228
        %p230 = pneg %p101
        %p231 = pneg %p98
        %p232 = pneg %p129
        %p233 = pneg %p126
        %s234 = sand.u32 %s116, 1
        %s235 = sand.u32 %s116, 1
        %s236 = smul.addr %s235, 32
        %s237 = scalar_lea.vmem [#allocation3], %s236
        %s238 = smul.u32 2, %s18
        %s239 = smul.u32 4, %s19
        %s240 = smul.u32 4, %s19
        %p241 = scmp.lt.s32.totalorder %s240, 7
        %s242 = scalar_select %p241, %s240, 7
        %s243 = scalar_lea.vmem %s1, %s242
        %s244 = smul.u32 4, %s19
        %s245 = smul.u32 4, %s19
        %p246 = scmp.lt.s32.totalorder %s245, 7
        %s247 = scalar_select %p246, %s245, 7
        %s248 = scalar_lea.vmem %s2, %s247
        %s249 = smul.u32 4, %s19
        %s250 = smul.u32 2, %s18
        %s251 = smul.u32 4, %s19
        %v252 = vld [vmem:[%s243] sm:$0xf]
        %v253 = vld [vmem:[%s248] sm:$0xf]
        %v254 = vld [vmem:[%s210] sm:$0xff]
        %v255 = vld [vmem:[%s210 + $0x8] sm:$0xff]
        %v256 = vld [vmem:[%s210 + $0x10] sm:$0xff]
        %v257 = vld [vmem:[%s210 + $0x18] sm:$0xff]
        %v258 = vunpack.c.l.bf16 %v254
        %v259 = vunpack.c.h.bf16 %v254
        %v260 = vunpack.c.l.bf16 %v255
        %v261 = vunpack.c.h.bf16 %v255
        %v262 = vunpack.c.l.bf16 %v256
        %v263 = vunpack.c.h.bf16 %v256
        %v264 = vunpack.c.l.bf16 %v257
        %v265 = vunpack.c.h.bf16 %v257
        %v267 = vperm.slane %v252, 0
        %v268 = vperm.slane %v252, 1
        %v269 = vperm.slane %v252, 2
        %v270 = vperm.slane %v252, 3
        %v275 = vmul.f32 %v258, %v267
        %v276 = vmul.f32 %v259, %v268
        %v277 = vmul.f32 %v260, %v269
        %v278 = vmul.f32 %v261, %v270
        %v279 = vmul.f32 %v262, %v267
        %v280 = vmul.f32 %v263, %v268
        %v281 = vmul.f32 %v264, %v269
        %v282 = vmul.f32 %v265, %v270
        %v284 = vperm.slane %v253, 0
        %v285 = vperm.slane %v253, 1
        %v286 = vperm.slane %v253, 2
        %v287 = vperm.slane %v253, 3
        %v292 = vadd.f32 %v275, %v284
        %v293 = vadd.f32 %v276, %v285
        %v294 = vadd.f32 %v277, %v286
        %v295 = vadd.f32 %v278, %v287
        %v296 = vadd.f32 %v279, %v284
        %v297 = vadd.f32 %v280, %v285
        %v298 = vadd.f32 %v281, %v286
        %v299 = vadd.f32 %v282, %v287
        %v300 = vmax.f32 %v292, 0.0
        %v301 = vmax.f32 %v293, 0.0
        %v302 = vmax.f32 %v294, 0.0
        %v303 = vmax.f32 %v295, 0.0
        %v304 = vmax.f32 %v296, 0.0
        %v305 = vmax.f32 %v297, 0.0
        %v306 = vmax.f32 %v298, 0.0
        %v307 = vmax.f32 %v299, 0.0
        %v308 = vpack.c.bf16 %v301, %v300
        %v309 = vpack.c.bf16 %v303, %v302
        %v310 = vpack.c.bf16 %v305, %v304
        %v311 = vpack.c.bf16 %v307, %v306
        %312 = vst [vmem:[%s237] sm:$0xff] %v308
        %313 = vst [vmem:[%s237 + $0x8] sm:$0xff] %v309
        %314 = vst [vmem:[%s237 + $0x10] sm:$0xff] %v310
        %315 = vst [vmem:[%s237 + $0x18] sm:$0xff] %v311
        %s316 = sand.u32 %s116, 1
        %s317 = sand.u32 %s116, 1
        %s318 = smul.addr %s317, 32
        %s319 = scalar_lea.vmem [#allocation3], %s318
        // Predicated region
        $region56: #{cnn_model_forward.18} parent=50 // pred_check
          %p320 = pneg %p126
        $region57: #{cnn_model_forward.18} parent=50 // pred_check_branch
          %322 = sbr.rel (%p320) target = $region59
        $region58: #{cnn_model_forward.18} parent=50 // pred_region
          %s323 = smul.u32 2, %s18
          %s324 = smul.u32 4, %s19
          %s325 = smul.addr %s323, 8
          %s326 = sadd.s32 %s324, %s325
          %s327 = smul.addr %s326, 4
          %s328 = scalar_lea.vmem %s3, %s327
          // Predicated region
          $region60: #{cnn_model_forward.18} parent=58 // pred_check
            _
          $region61: #{cnn_model_forward.18} parent=58 // pred_check_branch
            %330 = sbr.rel (0) target = $region63
          $region62: #{cnn_model_forward.18} parent=58 // pred_region
            // Predicated region
            $region64: #{cnn_model_forward.18} parent=62 // pred_check
              _
            $region65: #{cnn_model_forward.18} parent=62 // pred_check_branch
              %332 = sbr.rel (0) target = $region67
            $region66: #{cnn_model_forward.18} parent=62 // pred_region
              loop: start=0, step=1, limit=1
              $region68: #{cnn_model_forward.18} parent=66 // loop_pre_header
                _
              $region69: #{cnn_model_forward.18} parent=66 // loop_header
                %s334 = sphi 0, %s338
                %p335 = scmp.ge.s32.totalorder %s334, 1
                %s339 = sphi %s319, %s319
                %s340 = sphi %s328, %s328
              $region70: #{cnn_model_forward.18} parent=66 // loop_header_branch
                %337 = sbr.rel (%p335) target = $region74
              $region71: #{cnn_model_forward.18} parent=66 // loop_body
                %v341 = vld [vmem:[%s339] sm:$0xff]
                %342 = vst [vmem:[%s340] sm:$0xff] %v341
                %v343 = vld [vmem:[%s339 + $0x8] sm:$0xff]
                %344 = vst [vmem:[%s340 + $0x8] sm:$0xff] %v343
                %v345 = vld [vmem:[%s339 + $0x10] sm:$0xff]
                %346 = vst [vmem:[%s340 + $0x20] sm:$0xff] %v345
                %v347 = vld [vmem:[%s339 + $0x18] sm:$0xff]
                %348 = vst [vmem:[%s340 + $0x28] sm:$0xff] %v347
              $region72: #{cnn_model_forward.18} parent=66 // loop_footer
                %s338 = sadd.s32 1, %s334
              $region73: #{cnn_model_forward.18} parent=66 // loop_footer_branch
                %333 = sbr.rel target = $region69
              $region74: #{cnn_model_forward.18} parent=66 // loop_exit
                _
            $region67: #{cnn_model_forward.18} parent=62 // pred_fallthru
              _
            // Predicated region
            $region75: #{cnn_model_forward.18} parent=62 // pred_check
              _
            $region76: #{cnn_model_forward.18} parent=62 // pred_check_branch
              %350 = sbr.rel target = $region78
            $region77: #{cnn_model_forward.18} parent=62 // pred_region
              _
            $region78: #{cnn_model_forward.18} parent=62 // pred_fallthru
              _
          $region63: #{cnn_model_forward.18} parent=58 // pred_fallthru
            _
          %351 = vnop
        $region59: #{cnn_model_forward.18} parent=50 // pred_fallthru
          _
      $region51: #{cnn_model_forward.18} parent=5 // pred_fallthru
        _
      %p352 = scmp.le.s32.totalorder 2, %s9
      // Predicated region
      $region79: #{cnn_model_forward.18} parent=5 // pred_check
        %p353 = pneg %p352
      $region80: #{cnn_model_forward.18} parent=5 // pred_check_branch
        %355 = sbr.rel (%p353) target = $region82
      $region81: #{cnn_model_forward.18} parent=5 // pred_region
        %s356 = ssub.s32 %s9, 2
        // Predicated region
        $region83: #{cnn_model_forward.18} parent=81 // pred_check
          %p357 = pneg %p132
        $region84: #{cnn_model_forward.18} parent=81 // pred_check_branch
          %359 = sbr.rel (%p357) target = $region86
        $region85: #{cnn_model_forward.18} parent=81 // pred_region
          %s360 = sand.u32 %s117, 1
          %s361 = sand.u32 %s117, 1
          %s362 = smul.addr %s361, 32
          %s363 = scalar_lea.vmem [#allocation3], %s362
        $region86: #{cnn_model_forward.18} parent=81 // pred_fallthru
          _
      $region82: #{cnn_model_forward.18} parent=5 // pred_fallthru
        _
    $region6: #{cnn_model_forward.18} parent=1 // loop_footer
      %s13 = sadd.s32 1, %s9
    $region7: #{cnn_model_forward.18} parent=1 // loop_footer_branch
      %8 = sbr.rel target = $region3
    $region8: #{cnn_model_forward.18} parent=1 // loop_exit
      _

// kernel: cnn_model_forward.16
$region0: #{cnn_model_forward.16}
  #allocation0 [shape = 'u32[]', space=smem, size = 0x4, offset = 0x4, fixed_abs, tag = 'smem constant byte address 0x4 - core index']
  #allocation1 [shape = 'u32[72,128]{1,0:T(1,128)}', space=vmem, size = 0x9000, scoped, tag = 'internal scratch']
  %s0 = inlined_call_operand.vmem [shape: bf16[16,1024], index: 0, kind: input, shape index: {}]
  %s1 = inlined_call_operand.vmem [shape: bf16[1024,512], index: 1, kind: input, shape index: {}]
  %s2 = inlined_call_operand.vmem [shape: f32[1,1024], index: 2, kind: input, shape index: {}]
  %s3 = inlined_call_operand.vmem [shape: f32[1,1024], index: 3, kind: input, shape index: {}]
  %s4 = inlined_call_operand.vmem [shape: bf16[16,512], index: 4, kind: output, shape index: {}]
  %s5 = sld [smem:[#allocation0]]
  $region26: #{cnn_model_forward.16} parent=0
    _
  %s7 = ssub.s32 1, %s5
  %s8 = scalar_select 0, %s7, %s5
  // Predicated region
  $region2: #{cnn_model_forward.16} parent=0 // pred_check
    _
  $region3: #{cnn_model_forward.16} parent=0 // pred_check_branch
    %10 = sbr.rel (0) target = $region5
  $region4: #{cnn_model_forward.16} parent=0 // pred_region
    _
  $region5: #{cnn_model_forward.16} parent=0 // pred_fallthru
    _
  // Predicated region
  $region6: #{cnn_model_forward.16} parent=0 // pred_check
    _
  $region7: #{cnn_model_forward.16} parent=0 // pred_check_branch
    %12 = sbr.rel (0) target = $region9
  $region8: #{cnn_model_forward.16} parent=0 // pred_region
    _
  $region9: #{cnn_model_forward.16} parent=0 // pred_fallthru
    _
  // Predicated region
  $region10: #{cnn_model_forward.16} parent=0 // pred_check
    _
  $region11: #{cnn_model_forward.16} parent=0 // pred_check_branch
    %14 = sbr.rel (0) target = $region13
  $region12: #{cnn_model_forward.16} parent=0 // pred_region
    _
  $region13: #{cnn_model_forward.16} parent=0 // pred_fallthru
    _
  // Predicated region
  $region14: #{cnn_model_forward.16} parent=0 // pred_check
    _
  $region15: #{cnn_model_forward.16} parent=0 // pred_check_branch
    %16 = sbr.rel (0) target = $region17
  $region16: #{cnn_model_forward.16} parent=0 // pred_region
    _
  $region17: #{cnn_model_forward.16} parent=0 // pred_fallthru
    _
  %v17 = vld [vmem:[%s0] sm:$0xff]
  %v18 = vld [vmem:[%s0 + $0x8] sm:$0xff]
  %v19 = vld [vmem:[%s0 + $0x10] sm:$0xff]
  %v20 = vld [vmem:[%s0 + $0x18] sm:$0xff]
  %v21 = vld [vmem:[%s0 + $0x20] sm:$0xff]
  %v22 = vld [vmem:[%s0 + $0x28] sm:$0xff]
  %v23 = vld [vmem:[%s0 + $0x30] sm:$0xff]
  %v24 = vld [vmem:[%s0 + $0x38] sm:$0xff]
  %v25 = vld [vmem:[%s2] sm:$0xff]
  %v27 = vperm.slane %v25, 0
  %v28 = vperm.slane %v25, 1
  %v29 = vperm.slane %v25, 2
  %v30 = vperm.slane %v25, 3
  %v31 = vperm.slane %v25, 4
  %v32 = vperm.slane %v25, 5
  %v33 = vperm.slane %v25, 6
  %v34 = vperm.slane %v25, 7
  %v43 = vpack.c.bf16 %v28, %v27
  %v44 = vpack.c.bf16 %v30, %v29
  %v45 = vpack.c.bf16 %v32, %v31
  %v46 = vpack.c.bf16 %v34, %v33
  %v47 = vld [vmem:[%s3] sm:$0xff]
  %v49 = vperm.slane %v47, 0
  %v50 = vperm.slane %v47, 1
  %v51 = vperm.slane %v47, 2
  %v52 = vperm.slane %v47, 3
  %v53 = vperm.slane %v47, 4
  %v54 = vperm.slane %v47, 5
  %v55 = vperm.slane %v47, 6
  %v56 = vperm.slane %v47, 7
  %v65 = vpack.c.bf16 %v50, %v49
  %v66 = vpack.c.bf16 %v52, %v51
  %v67 = vpack.c.bf16 %v54, %v53
  %v68 = vpack.c.bf16 %v56, %v55
  %v73 = vunpack.c.l.b16 %v43
  %v74 = vunpack.c.h.b16 %v43
  %v75 = vunpack.c.l.b16 %v44
  %v76 = vunpack.c.h.b16 %v44
  %v77 = vunpack.c.l.b16 %v45
  %v78 = vunpack.c.h.b16 %v45
  %v79 = vunpack.c.l.b16 %v46
  %v80 = vunpack.c.h.b16 %v46
  %v81 = vpack.c.b16 %v73, %v73
  %v82 = vpack.c.b16 %v74, %v74
  %v83 = vpack.c.b16 %v75, %v75
  %v84 = vpack.c.b16 %v76, %v76
  %v85 = vpack.c.b16 %v77, %v77
  %v86 = vpack.c.b16 %v78, %v78
  %v87 = vpack.c.b16 %v79, %v79
  %v88 = vpack.c.b16 %v80, %v80
  %v90 = vpack.i.b16 %v81, %v81
  %v92 = vperm.slane %v90, 0
  %v94 = vpack.i.b16 %v82, %v82
  %v96 = vperm.slane %v94, 0
  %v98 = vpack.i.b16 %v83, %v83
  %v100 = vperm.slane %v98, 0
  %v102 = vpack.i.b16 %v84, %v84
  %v104 = vperm.slane %v102, 0
  %v106 = vpack.i.b16 %v85, %v85
  %v108 = vperm.slane %v106, 0
  %v110 = vpack.i.b16 %v86, %v86
  %v112 = vperm.slane %v110, 0
  %v114 = vpack.i.b16 %v87, %v87
  %v116 = vperm.slane %v114, 0
  %v118 = vpack.i.b16 %v88, %v88
  %v120 = vperm.slane %v118, 0
  %v121 = vunpack.c.l.bf16 %v17
  %v122 = vunpack.c.h.bf16 %v17
  %v123 = vunpack.c.l.bf16 %v18
  %v124 = vunpack.c.h.bf16 %v18
  %v125 = vunpack.c.l.bf16 %v19
  %v126 = vunpack.c.h.bf16 %v19
  %v127 = vunpack.c.l.bf16 %v20
  %v128 = vunpack.c.h.bf16 %v20
  %v129 = vunpack.c.l.bf16 %v21
  %v130 = vunpack.c.h.bf16 %v21
  %v131 = vunpack.c.l.bf16 %v22
  %v132 = vunpack.c.h.bf16 %v22
  %v133 = vunpack.c.l.bf16 %v23
  %v134 = vunpack.c.h.bf16 %v23
  %v135 = vunpack.c.l.bf16 %v24
  %v136 = vunpack.c.h.bf16 %v24
  %v137 = vunpack.c.l.bf16 %v92
  %v138 = vunpack.c.l.bf16 %v96
  %v139 = vunpack.c.l.bf16 %v100
  %v140 = vunpack.c.l.bf16 %v104
  %v141 = vunpack.c.l.bf16 %v108
  %v142 = vunpack.c.l.bf16 %v112
  %v143 = vunpack.c.l.bf16 %v116
  %v144 = vunpack.c.l.bf16 %v120
  %v145 = vmul.f32 %v121, %v137
  %v146 = vmul.f32 %v122, %v138
  %v147 = vmul.f32 %v123, %v139
  %v148 = vmul.f32 %v124, %v140
  %v149 = vmul.f32 %v125, %v141
  %v150 = vmul.f32 %v126, %v142
  %v151 = vmul.f32 %v127, %v143
  %v152 = vmul.f32 %v128, %v144
  %v153 = vmul.f32 %v129, %v137
  %v154 = vmul.f32 %v130, %v138
  %v155 = vmul.f32 %v131, %v139
  %v156 = vmul.f32 %v132, %v140
  %v157 = vmul.f32 %v133, %v141
  %v158 = vmul.f32 %v134, %v142
  %v159 = vmul.f32 %v135, %v143
  %v160 = vmul.f32 %v136, %v144
  %v161 = vpack.c.bf16 %v146, %v145
  %v162 = vpack.c.bf16 %v148, %v147
  %v163 = vpack.c.bf16 %v150, %v149
  %v164 = vpack.c.bf16 %v152, %v151
  %v165 = vpack.c.bf16 %v154, %v153
  %v166 = vpack.c.bf16 %v156, %v155
  %v167 = vpack.c.bf16 %v158, %v157
  %v168 = vpack.c.bf16 %v160, %v159
  %v173 = vunpack.c.l.b16 %v65
  %v174 = vunpack.c.h.b16 %v65
  %v175 = vunpack.c.l.b16 %v66
  %v176 = vunpack.c.h.b16 %v66
  %v177 = vunpack.c.l.b16 %v67
  %v178 = vunpack.c.h.b16 %v67
  %v179 = vunpack.c.l.b16 %v68
  %v180 = vunpack.c.h.b16 %v68
  %v181 = vpack.c.b16 %v173, %v173
  %v182 = vpack.c.b16 %v174, %v174
  %v183 = vpack.c.b16 %v175, %v175
  %v184 = vpack.c.b16 %v176, %v176
  %v185 = vpack.c.b16 %v177, %v177
  %v186 = vpack.c.b16 %v178, %v178
  %v187 = vpack.c.b16 %v179, %v179
  %v188 = vpack.c.b16 %v180, %v180
  %v190 = vpack.i.b16 %v181, %v181
  %v192 = vperm.slane %v190, 0
  %v194 = vpack.i.b16 %v182, %v182
  %v196 = vperm.slane %v194, 0
  %v198 = vpack.i.b16 %v183, %v183
  %v200 = vperm.slane %v198, 0
  %v202 = vpack.i.b16 %v184, %v184
  %v204 = vperm.slane %v202, 0
  %v206 = vpack.i.b16 %v185, %v185
  %v208 = vperm.slane %v206, 0
  %v210 = vpack.i.b16 %v186, %v186
  %v212 = vperm.slane %v210, 0
  %v214 = vpack.i.b16 %v187, %v187
  %v216 = vperm.slane %v214, 0
  %v218 = vpack.i.b16 %v188, %v188
  %v220 = vperm.slane %v218, 0
  %v221 = vunpack.c.l.bf16 %v161
  %v222 = vunpack.c.h.bf16 %v161
  %v223 = vunpack.c.l.bf16 %v162
  %v224 = vunpack.c.h.bf16 %v162
  %v225 = vunpack.c.l.bf16 %v163
  %v226 = vunpack.c.h.bf16 %v163
  %v227 = vunpack.c.l.bf16 %v164
  %v228 = vunpack.c.h.bf16 %v164
  %v229 = vunpack.c.l.bf16 %v165
  %v230 = vunpack.c.h.bf16 %v165
  %v231 = vunpack.c.l.bf16 %v166
  %v232 = vunpack.c.h.bf16 %v166
  %v233 = vunpack.c.l.bf16 %v167
  %v234 = vunpack.c.h.bf16 %v167
  %v235 = vunpack.c.l.bf16 %v168
  %v236 = vunpack.c.h.bf16 %v168
  %v237 = vunpack.c.l.bf16 %v192
  %v238 = vunpack.c.l.bf16 %v196
  %v239 = vunpack.c.l.bf16 %v200
  %v240 = vunpack.c.l.bf16 %v204
  %v241 = vunpack.c.l.bf16 %v208
  %v242 = vunpack.c.l.bf16 %v212
  %v243 = vunpack.c.l.bf16 %v216
  %v244 = vunpack.c.l.bf16 %v220
  %v245 = vadd.f32 %v221, %v237
  %v246 = vadd.f32 %v222, %v238
  %v247 = vadd.f32 %v223, %v239
  %v248 = vadd.f32 %v224, %v240
  %v249 = vadd.f32 %v225, %v241
  %v250 = vadd.f32 %v226, %v242
  %v251 = vadd.f32 %v227, %v243
  %v252 = vadd.f32 %v228, %v244
  %v253 = vadd.f32 %v229, %v237
  %v254 = vadd.f32 %v230, %v238
  %v255 = vadd.f32 %v231, %v239
  %v256 = vadd.f32 %v232, %v240
  %v257 = vadd.f32 %v233, %v241
  %v258 = vadd.f32 %v234, %v242
  %v259 = vadd.f32 %v235, %v243
  %v260 = vadd.f32 %v236, %v244
  %v261 = vpack.c.bf16 %v246, %v245
  %v262 = vpack.c.bf16 %v248, %v247
  %v263 = vpack.c.bf16 %v250, %v249
  %v264 = vpack.c.bf16 %v252, %v251
  %v265 = vpack.c.bf16 %v254, %v253
  %v266 = vpack.c.bf16 %v256, %v255
  %v267 = vpack.c.bf16 %v258, %v257
  %v268 = vpack.c.bf16 %v260, %v259
  %v269 = vunpack.c.l.bf16 %v261
  %v270 = vunpack.c.h.bf16 %v261
  %v271 = vunpack.c.l.bf16 %v262
  %v272 = vunpack.c.h.bf16 %v262
  %v273 = vunpack.c.l.bf16 %v263
  %v274 = vunpack.c.h.bf16 %v263
  %v275 = vunpack.c.l.bf16 %v264
  %v276 = vunpack.c.h.bf16 %v264
  %v277 = vunpack.c.l.bf16 %v265
  %v278 = vunpack.c.h.bf16 %v265
  %v279 = vunpack.c.l.bf16 %v266
  %v280 = vunpack.c.h.bf16 %v266
  %v281 = vunpack.c.l.bf16 %v267
  %v282 = vunpack.c.h.bf16 %v267
  %v283 = vunpack.c.l.bf16 %v268
  %v284 = vunpack.c.h.bf16 %v268
  %v285 = vmax.f32 %v269, 0.0
  %v286 = vmax.f32 %v270, 0.0
  %v287 = vmax.f32 %v271, 0.0
  %v288 = vmax.f32 %v272, 0.0
  %v289 = vmax.f32 %v273, 0.0
  %v290 = vmax.f32 %v274, 0.0
  %v291 = vmax.f32 %v275, 0.0
  %v292 = vmax.f32 %v276, 0.0
  %v293 = vmax.f32 %v277, 0.0
  %v294 = vmax.f32 %v278, 0.0
  %v295 = vmax.f32 %v279, 0.0
  %v296 = vmax.f32 %v280, 0.0
  %v297 = vmax.f32 %v281, 0.0
  %v298 = vmax.f32 %v282, 0.0
  %v299 = vmax.f32 %v283, 0.0
  %v300 = vmax.f32 %v284, 0.0
  %v301 = vpack.c.bf16 %v293, %v285
  %v302 = vpack.c.bf16 %v294, %v286
  %v303 = vpack.c.bf16 %v295, %v287
  %v304 = vpack.c.bf16 %v296, %v288
  %v305 = vpack.c.bf16 %v297, %v289
  %v306 = vpack.c.bf16 %v298, %v290
  %v307 = vpack.c.bf16 %v299, %v291
  %v308 = vpack.c.bf16 %v300, %v292
  %v309 = vld [vmem:[%s1] sm:$0xff]
  %v310 = vld [vmem:[%s1 + $0x8] sm:$0xff]
  %v311 = vld [vmem:[%s1 + $0x10] sm:$0xff]
  %v312 = vld [vmem:[%s1 + $0x18] sm:$0xff]
  %v313 = vld [vmem:[%s1 + $0x20] sm:$0xff]
  %v314 = vld [vmem:[%s1 + $0x28] sm:$0xff]
  %v315 = vld [vmem:[%s1 + $0x30] sm:$0xff]
  %v316 = vld [vmem:[%s1 + $0x38] sm:$0xff]
  %v317 = vld [vmem:[%s1 + $0x40] sm:$0xff]
  %v318 = vld [vmem:[%s1 + $0x48] sm:$0xff]
  %v319 = vld [vmem:[%s1 + $0x50] sm:$0xff]
  %v320 = vld [vmem:[%s1 + $0x58] sm:$0xff]
  %v321 = vld [vmem:[%s1 + $0x60] sm:$0xff]
  %v322 = vld [vmem:[%s1 + $0x68] sm:$0xff]
  %v323 = vld [vmem:[%s1 + $0x70] sm:$0xff]
  %v324 = vld [vmem:[%s1 + $0x78] sm:$0xff]
  %v325 = vld [vmem:[%s1 + $0x80] sm:$0xff]
  %v326 = vld [vmem:[%s1 + $0x88] sm:$0xff]
  %v327 = vld [vmem:[%s1 + $0x90] sm:$0xff]
  %v328 = vld [vmem:[%s1 + $0x98] sm:$0xff]
  %v329 = vld [vmem:[%s1 + $0xa0] sm:$0xff]
  %v330 = vld [vmem:[%s1 + $0xa8] sm:$0xff]
  %v331 = vld [vmem:[%s1 + $0xb0] sm:$0xff]
  %v332 = vld [vmem:[%s1 + $0xb8] sm:$0xff]
  %v333 = vld [vmem:[%s1 + $0xc0] sm:$0xff]
  %v334 = vld [vmem:[%s1 + $0xc8] sm:$0xff]
  %v335 = vld [vmem:[%s1 + $0xd0] sm:$0xff]
  %v336 = vld [vmem:[%s1 + $0xd8] sm:$0xff]
  %v337 = vld [vmem:[%s1 + $0xe0] sm:$0xff]
  %v338 = vld [vmem:[%s1 + $0xe8] sm:$0xff]
  %v339 = vld [vmem:[%s1 + $0xf0] sm:$0xff]
  %v340 = vld [vmem:[%s1 + $0xf8] sm:$0xff]
  %v341 = vld [vmem:[%s1 + $0x100] sm:$0xff]
  %v342 = vld [vmem:[%s1 + $0x108] sm:$0xff]
  %v343 = vld [vmem:[%s1 + $0x110] sm:$0xff]
  %v344 = vld [vmem:[%s1 + $0x118] sm:$0xff]
  %v345 = vld [vmem:[%s1 + $0x120] sm:$0xff]
  %v346 = vld [vmem:[%s1 + $0x128] sm:$0xff]
  %v347 = vld [vmem:[%s1 + $0x130] sm:$0xff]
  %v348 = vld [vmem:[%s1 + $0x138] sm:$0xff]
  %v349 = vld [vmem:[%s1 + $0x140] sm:$0xff]
  %v350 = vld [vmem:[%s1 + $0x148] sm:$0xff]
  %v351 = vld [vmem:[%s1 + $0x150] sm:$0xff]
  %v352 = vld [vmem:[%s1 + $0x158] sm:$0xff]
  %v353 = vld [vmem:[%s1 + $0x160] sm:$0xff]
  %v354 = vld [vmem:[%s1 + $0x168] sm:$0xff]
  %v355 = vld [vmem:[%s1 + $0x170] sm:$0xff]
  %v356 = vld [vmem:[%s1 + $0x178] sm:$0xff]
  %v357 = vld [vmem:[%s1 + $0x180] sm:$0xff]
  %v358 = vld [vmem:[%s1 + $0x188] sm:$0xff]
  %v359 = vld [vmem:[%s1 + $0x190] sm:$0xff]
  %v360 = vld [vmem:[%s1 + $0x198] sm:$0xff]
  %v361 = vld [vmem:[%s1 + $0x1a0] sm:$0xff]
  %v362 = vld [vmem:[%s1 + $0x1a8] sm:$0xff]
  %v363 = vld [vmem:[%s1 + $0x1b0] sm:$0xff]
  %v364 = vld [vmem:[%s1 + $0x1b8] sm:$0xff]
  %v365 = vld [vmem:[%s1 + $0x1c0] sm:$0xff]
  %v366 = vld [vmem:[%s1 + $0x1c8] sm:$0xff]
  %v367 = vld [vmem:[%s1 + $0x1d0] sm:$0xff]
  %v368 = vld [vmem:[%s1 + $0x1d8] sm:$0xff]
  %v369 = vld [vmem:[%s1 + $0x1e0] sm:$0xff]
  %v370 = vld [vmem:[%s1 + $0x1e8] sm:$0xff]
  %v371 = vld [vmem:[%s1 + $0x1f0] sm:$0xff]
  %v372 = vld [vmem:[%s1 + $0x1f8] sm:$0xff]
  %v373 = vld [vmem:[%s1 + $0x200] sm:$0xff]
  %v374 = vld [vmem:[%s1 + $0x208] sm:$0xff]
  %v375 = vld [vmem:[%s1 + $0x210] sm:$0xff]
  %v376 = vld [vmem:[%s1 + $0x218] sm:$0xff]
  %v377 = vld [vmem:[%s1 + $0x220] sm:$0xff]
  %v378 = vld [vmem:[%s1 + $0x228] sm:$0xff]
  %v379 = vld [vmem:[%s1 + $0x230] sm:$0xff]
  %v380 = vld [vmem:[%s1 + $0x238] sm:$0xff]
  %v381 = vld [vmem:[%s1 + $0x240] sm:$0xff]
  %v382 = vld [vmem:[%s1 + $0x248] sm:$0xff]
  %v383 = vld [vmem:[%s1 + $0x250] sm:$0xff]
  %v384 = vld [vmem:[%s1 + $0x258] sm:$0xff]
  %v385 = vld [vmem:[%s1 + $0x260] sm:$0xff]
  %v386 = vld [vmem:[%s1 + $0x268] sm:$0xff]
  %v387 = vld [vmem:[%s1 + $0x270] sm:$0xff]
  %v388 = vld [vmem:[%s1 + $0x278] sm:$0xff]
  %v389 = vld [vmem:[%s1 + $0x280] sm:$0xff]
  %v390 = vld [vmem:[%s1 + $0x288] sm:$0xff]
  %v391 = vld [vmem:[%s1 + $0x290] sm:$0xff]
  %v392 = vld [vmem:[%s1 + $0x298] sm:$0xff]
  %v393 = vld [vmem:[%s1 + $0x2a0] sm:$0xff]
  %v394 = vld [vmem:[%s1 + $0x2a8] sm:$0xff]
  %v395 = vld [vmem:[%s1 + $0x2b0] sm:$0xff]
  %v396 = vld [vmem:[%s1 + $0x2b8] sm:$0xff]
  %v397 = vld [vmem:[%s1 + $0x2c0] sm:$0xff]
  %v398 = vld [vmem:[%s1 + $0x2c8] sm:$0xff]
  %v399 = vld [vmem:[%s1 + $0x2d0] sm:$0xff]
  %v400 = vld [vmem:[%s1 + $0x2d8] sm:$0xff]
  %v401 = vld [vmem:[%s1 + $0x2e0] sm:$0xff]
  %v402 = vld [vmem:[%s1 + $0x2e8] sm:$0xff]
  %v403 = vld [vmem:[%s1 + $0x2f0] sm:$0xff]
  %v404 = vld [vmem:[%s1 + $0x2f8] sm:$0xff]
  %v405 = vld [vmem:[%s1 + $0x300] sm:$0xff]
  %v406 = vld [vmem:[%s1 + $0x308] sm:$0xff]
  %v407 = vld [vmem:[%s1 + $0x310] sm:$0xff]
  %v408 = vld [vmem:[%s1 + $0x318] sm:$0xff]
  %v409 = vld [vmem:[%s1 + $0x320] sm:$0xff]
  %v410 = vld [vmem:[%s1 + $0x328] sm:$0xff]
  %v411 = vld [vmem:[%s1 + $0x330] sm:$0xff]
  %v412 = vld [vmem:[%s1 + $0x338] sm:$0xff]
  %v413 = vld [vmem:[%s1 + $0x340] sm:$0xff]
  %v414 = vld [vmem:[%s1 + $0x348] sm:$0xff]
  %v415 = vld [vmem:[%s1 + $0x350] sm:$0xff]
  %v416 = vld [vmem:[%s1 + $0x358] sm:$0xff]
  %v417 = vld [vmem:[%s1 + $0x360] sm:$0xff]
  %v418 = vld [vmem:[%s1 + $0x368] sm:$0xff]
  %v419 = vld [vmem:[%s1 + $0x370] sm:$0xff]
  %v420 = vld [vmem:[%s1 + $0x378] sm:$0xff]
  %v421 = vld [vmem:[%s1 + $0x380] sm:$0xff]
  %v422 = vld [vmem:[%s1 + $0x388] sm:$0xff]
  %v423 = vld [vmem:[%s1 + $0x390] sm:$0xff]
  %v424 = vld [vmem:[%s1 + $0x398] sm:$0xff]
  %v425 = vld [vmem:[%s1 + $0x3a0] sm:$0xff]
  %v426 = vld [vmem:[%s1 + $0x3a8] sm:$0xff]
  %v427 = vld [vmem:[%s1 + $0x3b0] sm:$0xff]
  %v428 = vld [vmem:[%s1 + $0x3b8] sm:$0xff]
  %v429 = vld [vmem:[%s1 + $0x3c0] sm:$0xff]
  %v430 = vld [vmem:[%s1 + $0x3c8] sm:$0xff]
  %v431 = vld [vmem:[%s1 + $0x3d0] sm:$0xff]
  %v432 = vld [vmem:[%s1 + $0x3d8] sm:$0xff]
  %v433 = vld [vmem:[%s1 + $0x3e0] sm:$0xff]
  %v434 = vld [vmem:[%s1 + $0x3e8] sm:$0xff]
  %v435 = vld [vmem:[%s1 + $0x3f0] sm:$0xff]
  %v436 = vld [vmem:[%s1 + $0x3f8] sm:$0xff]
  %v437 = vld [vmem:[%s1 + $0x400] sm:$0xff]
  %v438 = vld [vmem:[%s1 + $0x408] sm:$0xff]
  %v439 = vld [vmem:[%s1 + $0x410] sm:$0xff]
  %v440 = vld [vmem:[%s1 + $0x418] sm:$0xff]
  %v441 = vld [vmem:[%s1 + $0x420] sm:$0xff]
  %v442 = vld [vmem:[%s1 + $0x428] sm:$0xff]
  %v443 = vld [vmem:[%s1 + $0x430] sm:$0xff]
  %v444 = vld [vmem:[%s1 + $0x438] sm:$0xff]
  %v445 = vld [vmem:[%s1 + $0x440] sm:$0xff]
  %v446 = vld [vmem:[%s1 + $0x448] sm:$0xff]
  %v447 = vld [vmem:[%s1 + $0x450] sm:$0xff]
  %v448 = vld [vmem:[%s1 + $0x458] sm:$0xff]
  %v449 = vld [vmem:[%s1 + $0x460] sm:$0xff]
  %v450 = vld [vmem:[%s1 + $0x468] sm:$0xff]
  %v451 = vld [vmem:[%s1 + $0x470] sm:$0xff]
  %v452 = vld [vmem:[%s1 + $0x478] sm:$0xff]
  %v453 = vld [vmem:[%s1 + $0x480] sm:$0xff]
  %v454 = vld [vmem:[%s1 + $0x488] sm:$0xff]
  %v455 = vld [vmem:[%s1 + $0x490] sm:$0xff]
  %v456 = vld [vmem:[%s1 + $0x498] sm:$0xff]
  %v457 = vld [vmem:[%s1 + $0x4a0] sm:$0xff]
  %v458 = vld [vmem:[%s1 + $0x4a8] sm:$0xff]
  %v459 = vld [vmem:[%s1 + $0x4b0] sm:$0xff]
  %v460 = vld [vmem:[%s1 + $0x4b8] sm:$0xff]
  %v461 = vld [vmem:[%s1 + $0x4c0] sm:$0xff]
  %v462 = vld [vmem:[%s1 + $0x4c8] sm:$0xff]
  %v463 = vld [vmem:[%s1 + $0x4d0] sm:$0xff]
  %v464 = vld [vmem:[%s1 + $0x4d8] sm:$0xff]
  %v465 = vld [vmem:[%s1 + $0x4e0] sm:$0xff]
  %v466 = vld [vmem:[%s1 + $0x4e8] sm:$0xff]
  %v467 = vld [vmem:[%s1 + $0x4f0] sm:$0xff]
  %v468 = vld [vmem:[%s1 + $0x4f8] sm:$0xff]
  %v469 = vld [vmem:[%s1 + $0x500] sm:$0xff]
  %v470 = vld [vmem:[%s1 + $0x508] sm:$0xff]
  %v471 = vld [vmem:[%s1 + $0x510] sm:$0xff]
  %v472 = vld [vmem:[%s1 + $0x518] sm:$0xff]
  %v473 = vld [vmem:[%s1 + $0x520] sm:$0xff]
  %v474 = vld [vmem:[%s1 + $0x528] sm:$0xff]
  %v475 = vld [vmem:[%s1 + $0x530] sm:$0xff]
  %v476 = vld [vmem:[%s1 + $0x538] sm:$0xff]
  %v477 = vld [vmem:[%s1 + $0x540] sm:$0xff]
  %v478 = vld [vmem:[%s1 + $0x548] sm:$0xff]
  %v479 = vld [vmem:[%s1 + $0x550] sm:$0xff]
  %v480 = vld [vmem:[%s1 + $0x558] sm:$0xff]
  %v481 = vld [vmem:[%s1 + $0x560] sm:$0xff]
  %v482 = vld [vmem:[%s1 + $0x568] sm:$0xff]
  %v483 = vld [vmem:[%s1 + $0x570] sm:$0xff]
  %v484 = vld [vmem:[%s1 + $0x578] sm:$0xff]
  %v485 = vld [vmem:[%s1 + $0x580] sm:$0xff]
  %v486 = vld [vmem:[%s1 + $0x588] sm:$0xff]
  %v487 = vld [vmem:[%s1 + $0x590] sm:$0xff]
  %v488 = vld [vmem:[%s1 + $0x598] sm:$0xff]
  %v489 = vld [vmem:[%s1 + $0x5a0] sm:$0xff]
  %v490 = vld [vmem:[%s1 + $0x5a8] sm:$0xff]
  %v491 = vld [vmem:[%s1 + $0x5b0] sm:$0xff]
  %v492 = vld [vmem:[%s1 + $0x5b8] sm:$0xff]
  %v493 = vld [vmem:[%s1 + $0x5c0] sm:$0xff]
  %v494 = vld [vmem:[%s1 + $0x5c8] sm:$0xff]
  %v495 = vld [vmem:[%s1 + $0x5d0] sm:$0xff]
  %v496 = vld [vmem:[%s1 + $0x5d8] sm:$0xff]
  %v497 = vld [vmem:[%s1 + $0x5e0] sm:$0xff]
  %v498 = vld [vmem:[%s1 + $0x5e8] sm:$0xff]
  %v499 = vld [vmem:[%s1 + $0x5f0] sm:$0xff]
  %v500 = vld [vmem:[%s1 + $0x5f8] sm:$0xff]
  %v501 = vld [vmem:[%s1 + $0x600] sm:$0xff]
  %v502 = vld [vmem:[%s1 + $0x608] sm:$0xff]
  %v503 = vld [vmem:[%s1 + $0x610] sm:$0xff]
  %v504 = vld [vmem:[%s1 + $0x618] sm:$0xff]
  %v505 = vld [vmem:[%s1 + $0x620] sm:$0xff]
  %v506 = vld [vmem:[%s1 + $0x628] sm:$0xff]
  %v507 = vld [vmem:[%s1 + $0x630] sm:$0xff]
  %v508 = vld [vmem:[%s1 + $0x638] sm:$0xff]
  %v509 = vld [vmem:[%s1 + $0x640] sm:$0xff]
  %v510 = vld [vmem:[%s1 + $0x648] sm:$0xff]
  %v511 = vld [vmem:[%s1 + $0x650] sm:$0xff]
  %v512 = vld [vmem:[%s1 + $0x658] sm:$0xff]
  %v513 = vld [vmem:[%s1 + $0x660] sm:$0xff]
  %v514 = vld [vmem:[%s1 + $0x668] sm:$0xff]
  %v515 = vld [vmem:[%s1 + $0x670] sm:$0xff]
  %v516 = vld [vmem:[%s1 + $0x678] sm:$0xff]
  %v517 = vld [vmem:[%s1 + $0x680] sm:$0xff]
  %v518 = vld [vmem:[%s1 + $0x688] sm:$0xff]
  %v519 = vld [vmem:[%s1 + $0x690] sm:$0xff]
  %v520 = vld [vmem:[%s1 + $0x698] sm:$0xff]
  %v521 = vld [vmem:[%s1 + $0x6a0] sm:$0xff]
  %v522 = vld [vmem:[%s1 + $0x6a8] sm:$0xff]
  %v523 = vld [vmem:[%s1 + $0x6b0] sm:$0xff]
  %v524 = vld [vmem:[%s1 + $0x6b8] sm:$0xff]
  %v525 = vld [vmem:[%s1 + $0x6c0] sm:$0xff]
  %v526 = vld [vmem:[%s1 + $0x6c8] sm:$0xff]
  %v527 = vld [vmem:[%s1 + $0x6d0] sm:$0xff]
  %v528 = vld [vmem:[%s1 + $0x6d8] sm:$0xff]
  %v529 = vld [vmem:[%s1 + $0x6e0] sm:$0xff]
  %v530 = vld [vmem:[%s1 + $0x6e8] sm:$0xff]
  %v531 = vld [vmem:[%s1 + $0x6f0] sm:$0xff]
  %v532 = vld [vmem:[%s1 + $0x6f8] sm:$0xff]
  %v533 = vld [vmem:[%s1 + $0x700] sm:$0xff]
  %v534 = vld [vmem:[%s1 + $0x708] sm:$0xff]
  %v535 = vld [vmem:[%s1 + $0x710] sm:$0xff]
  %v536 = vld [vmem:[%s1 + $0x718] sm:$0xff]
  %v537 = vld [vmem:[%s1 + $0x720] sm:$0xff]
  %v538 = vld [vmem:[%s1 + $0x728] sm:$0xff]
  %v539 = vld [vmem:[%s1 + $0x730] sm:$0xff]
  %v540 = vld [vmem:[%s1 + $0x738] sm:$0xff]
  %v541 = vld [vmem:[%s1 + $0x740] sm:$0xff]
  %v542 = vld [vmem:[%s1 + $0x748] sm:$0xff]
  %v543 = vld [vmem:[%s1 + $0x750] sm:$0xff]
  %v544 = vld [vmem:[%s1 + $0x758] sm:$0xff]
  %v545 = vld [vmem:[%s1 + $0x760] sm:$0xff]
  %v546 = vld [vmem:[%s1 + $0x768] sm:$0xff]
  %v547 = vld [vmem:[%s1 + $0x770] sm:$0xff]
  %v548 = vld [vmem:[%s1 + $0x778] sm:$0xff]
  %v549 = vld [vmem:[%s1 + $0x780] sm:$0xff]
  %v550 = vld [vmem:[%s1 + $0x788] sm:$0xff]
  %v551 = vld [vmem:[%s1 + $0x790] sm:$0xff]
  %v552 = vld [vmem:[%s1 + $0x798] sm:$0xff]
  %v553 = vld [vmem:[%s1 + $0x7a0] sm:$0xff]
  %v554 = vld [vmem:[%s1 + $0x7a8] sm:$0xff]
  %v555 = vld [vmem:[%s1 + $0x7b0] sm:$0xff]
  %v556 = vld [vmem:[%s1 + $0x7b8] sm:$0xff]
  %v557 = vld [vmem:[%s1 + $0x7c0] sm:$0xff]
  %v558 = vld [vmem:[%s1 + $0x7c8] sm:$0xff]
  %v559 = vld [vmem:[%s1 + $0x7d0] sm:$0xff]
  %v560 = vld [vmem:[%s1 + $0x7d8] sm:$0xff]
  %v561 = vld [vmem:[%s1 + $0x7e0] sm:$0xff]
  %v562 = vld [vmem:[%s1 + $0x7e8] sm:$0xff]
  %v563 = vld [vmem:[%s1 + $0x7f0] sm:$0xff]
  %v564 = vld [vmem:[%s1 + $0x7f8] sm:$0xff]
  %v821 = vunpack.c.l.b16 %v309
  %v822 = vunpack.c.h.b16 %v309
  %v823 = vunpack.c.l.b16 %v310
  %v824 = vunpack.c.h.b16 %v310
  %v825 = vunpack.c.l.b16 %v311
  %v826 = vunpack.c.h.b16 %v311
  %v827 = vunpack.c.l.b16 %v312
  %v828 = vunpack.c.h.b16 %v312
  %v829 = vunpack.c.l.b16 %v313
  %v830 = vunpack.c.h.b16 %v313
  %v831 = vunpack.c.l.b16 %v314
  %v832 = vunpack.c.h.b16 %v314
  %v833 = vunpack.c.l.b16 %v315
  %v834 = vunpack.c.h.b16 %v315
  %v835 = vunpack.c.l.b16 %v316
  %v836 = vunpack.c.h.b16 %v316
  %v837 = vunpack.c.l.b16 %v317
  %v838 = vunpack.c.h.b16 %v317
  %v839 = vunpack.c.l.b16 %v318
  %v840 = vunpack.c.h.b16 %v318
  %v841 = vunpack.c.l.b16 %v319
  %v842 = vunpack.c.h.b16 %v319
  %v843 = vunpack.c.l.b16 %v320
  %v844 = vunpack.c.h.b16 %v320
  %v845 = vunpack.c.l.b16 %v321
  %v846 = vunpack.c.h.b16 %v321
  %v847 = vunpack.c.l.b16 %v322
  %v848 = vunpack.c.h.b16 %v322
  %v849 = vunpack.c.l.b16 %v323
  %v850 = vunpack.c.h.b16 %v323
  %v851 = vunpack.c.l.b16 %v324
  %v852 = vunpack.c.h.b16 %v324
  %v853 = vunpack.c.l.b16 %v325
  %v854 = vunpack.c.h.b16 %v325
  %v855 = vunpack.c.l.b16 %v326
  %v856 = vunpack.c.h.b16 %v326
  %v857 = vunpack.c.l.b16 %v327
  %v858 = vunpack.c.h.b16 %v327
  %v859 = vunpack.c.l.b16 %v328
  %v860 = vunpack.c.h.b16 %v328
  %v861 = vunpack.c.l.b16 %v329
  %v862 = vunpack.c.h.b16 %v329
  %v863 = vunpack.c.l.b16 %v330
  %v864 = vunpack.c.h.b16 %v330
  %v865 = vunpack.c.l.b16 %v331
  %v866 = vunpack.c.h.b16 %v331
  %v867 = vunpack.c.l.b16 %v332
  %v868 = vunpack.c.h.b16 %v332
  %v869 = vunpack.c.l.b16 %v333
  %v870 = vunpack.c.h.b16 %v333
  %v871 = vunpack.c.l.b16 %v334
  %v872 = vunpack.c.h.b16 %v334
  %v873 = vunpack.c.l.b16 %v335
  %v874 = vunpack.c.h.b16 %v335
  %v875 = vunpack.c.l.b16 %v336
  %v876 = vunpack.c.h.b16 %v336
  %v877 = vunpack.c.l.b16 %v337
  %v878 = vunpack.c.h.b16 %v337
  %v879 = vunpack.c.l.b16 %v338
  %v880 = vunpack.c.h.b16 %v338
  %v881 = vunpack.c.l.b16 %v339
  %v882 = vunpack.c.h.b16 %v339
  %v883 = vunpack.c.l.b16 %v340
  %v884 = vunpack.c.h.b16 %v340
  %v885 = vunpack.c.l.b16 %v341
  %v886 = vunpack.c.h.b16 %v341
  %v887 = vunpack.c.l.b16 %v342
  %v888 = vunpack.c.h.b16 %v342
  %v889 = vunpack.c.l.b16 %v343
  %v890 = vunpack.c.h.b16 %v343
  %v891 = vunpack.c.l.b16 %v344
  %v892 = vunpack.c.h.b16 %v344
  %v893 = vunpack.c.l.b16 %v345
  %v894 = vunpack.c.h.b16 %v345
  %v895 = vunpack.c.l.b16 %v346
  %v896 = vunpack.c.h.b16 %v346
  %v897 = vunpack.c.l.b16 %v347
  %v898 = vunpack.c.h.b16 %v347
  %v899 = vunpack.c.l.b16 %v348
  %v900 = vunpack.c.h.b16 %v348
  %v901 = vunpack.c.l.b16 %v349
  %v902 = vunpack.c.h.b16 %v349
  %v903 = vunpack.c.l.b16 %v350
  %v904 = vunpack.c.h.b16 %v350
  %v905 = vunpack.c.l.b16 %v351
  %v906 = vunpack.c.h.b16 %v351
  %v907 = vunpack.c.l.b16 %v352
  %v908 = vunpack.c.h.b16 %v352
  %v909 = vunpack.c.l.b16 %v353
  %v910 = vunpack.c.h.b16 %v353
  %v911 = vunpack.c.l.b16 %v354
  %v912 = vunpack.c.h.b16 %v354
  %v913 = vunpack.c.l.b16 %v355
  %v914 = vunpack.c.h.b16 %v355
  %v915 = vunpack.c.l.b16 %v356
  %v916 = vunpack.c.h.b16 %v356
  %v917 = vunpack.c.l.b16 %v357
  %v918 = vunpack.c.h.b16 %v357
  %v919 = vunpack.c.l.b16 %v358
  %v920 = vunpack.c.h.b16 %v358
  %v921 = vunpack.c.l.b16 %v359
  %v922 = vunpack.c.h.b16 %v359
  %v923 = vunpack.c.l.b16 %v360
  %v924 = vunpack.c.h.b16 %v360
  %v925 = vunpack.c.l.b16 %v361
  %v926 = vunpack.c.h.b16 %v361
  %v927 = vunpack.c.l.b16 %v362
  %v928 = vunpack.c.h.b16 %v362
  %v929 = vunpack.c.l.b16 %v363
  %v930 = vunpack.c.h.b16 %v363
  %v931 = vunpack.c.l.b16 %v364
  %v932 = vunpack.c.h.b16 %v364
  %v933 = vunpack.c.l.b16 %v365
  %v934 = vunpack.c.h.b16 %v365
  %v935 = vunpack.c.l.b16 %v366
  %v936 = vunpack.c.h.b16 %v366
  %v937 = vunpack.c.l.b16 %v367
  %v938 = vunpack.c.h.b16 %v367
  %v939 = vunpack.c.l.b16 %v368
  %v940 = vunpack.c.h.b16 %v368
  %v941 = vunpack.c.l.b16 %v369
  %v942 = vunpack.c.h.b16 %v369
  %v943 = vunpack.c.l.b16 %v370
  %v944 = vunpack.c.h.b16 %v370
  %v945 = vunpack.c.l.b16 %v371
  %v946 = vunpack.c.h.b16 %v371
  %v947 = vunpack.c.l.b16 %v372
  %v948 = vunpack.c.h.b16 %v372
  %v949 = vunpack.c.l.b16 %v373
  %v950 = vunpack.c.h.b16 %v373
  %v951 = vunpack.c.l.b16 %v374
  %v952 = vunpack.c.h.b16 %v374
  %v953 = vunpack.c.l.b16 %v375
  %v954 = vunpack.c.h.b16 %v375
  %v955 = vunpack.c.l.b16 %v376
  %v956 = vunpack.c.h.b16 %v376
  %v957 = vunpack.c.l.b16 %v377
  %v958 = vunpack.c.h.b16 %v377
  %v959 = vunpack.c.l.b16 %v378
  %v960 = vunpack.c.h.b16 %v378
  %v961 = vunpack.c.l.b16 %v379
  %v962 = vunpack.c.h.b16 %v379
  %v963 = vunpack.c.l.b16 %v380
  %v964 = vunpack.c.h.b16 %v380
  %v965 = vunpack.c.l.b16 %v381
  %v966 = vunpack.c.h.b16 %v381
  %v967 = vunpack.c.l.b16 %v382
  %v968 = vunpack.c.h.b16 %v382
  %v969 = vunpack.c.l.b16 %v383
  %v970 = vunpack.c.h.b16 %v383
  %v971 = vunpack.c.l.b16 %v384
  %v972 = vunpack.c.h.b16 %v384
  %v973 = vunpack.c.l.b16 %v385
  %v974 = vunpack.c.h.b16 %v385
  %v975 = vunpack.c.l.b16 %v386
  %v976 = vunpack.c.h.b16 %v386
  %v977 = vunpack.c.l.b16 %v387
  %v978 = vunpack.c.h.b16 %v387
  %v979 = vunpack.c.l.b16 %v388
  %v980 = vunpack.c.h.b16 %v388
  %v981 = vunpack.c.l.b16 %v389
  %v982 = vunpack.c.h.b16 %v389
  %v983 = vunpack.c.l.b16 %v390
  %v984 = vunpack.c.h.b16 %v390
  %v985 = vunpack.c.l.b16 %v391
  %v986 = vunpack.c.h.b16 %v391
  %v987 = vunpack.c.l.b16 %v392
  %v988 = vunpack.c.h.b16 %v392
  %v989 = vunpack.c.l.b16 %v393
  %v990 = vunpack.c.h.b16 %v393
  %v991 = vunpack.c.l.b16 %v394
  %v992 = vunpack.c.h.b16 %v394
  %v993 = vunpack.c.l.b16 %v395
  %v994 = vunpack.c.h.b16 %v395
  %v995 = vunpack.c.l.b16 %v396
  %v996 = vunpack.c.h.b16 %v396
  %v997 = vunpack.c.l.b16 %v397
  %v998 = vunpack.c.h.b16 %v397
  %v999 = vunpack.c.l.b16 %v398
  %v1000 = vunpack.c.h.b16 %v398
  %v1001 = vunpack.c.l.b16 %v399
  %v1002 = vunpack.c.h.b16 %v399
  %v1003 = vunpack.c.l.b16 %v400
  %v1004 = vunpack.c.h.b16 %v400
  %v1005 = vunpack.c.l.b16 %v401
  %v1006 = vunpack.c.h.b16 %v401
  %v1007 = vunpack.c.l.b16 %v402
  %v1008 = vunpack.c.h.b16 %v402
  %v1009 = vunpack.c.l.b16 %v403
  %v1010 = vunpack.c.h.b16 %v403
  %v1011 = vunpack.c.l.b16 %v404
  %v1012 = vunpack.c.h.b16 %v404
  %v1013 = vunpack.c.l.b16 %v405
  %v1014 = vunpack.c.h.b16 %v405
  %v1015 = vunpack.c.l.b16 %v406
  %v1016 = vunpack.c.h.b16 %v406
  %v1017 = vunpack.c.l.b16 %v407
  %v1018 = vunpack.c.h.b16 %v407
  %v1019 = vunpack.c.l.b16 %v408
  %v1020 = vunpack.c.h.b16 %v408
  %v1021 = vunpack.c.l.b16 %v409
  %v1022 = vunpack.c.h.b16 %v409
  %v1023 = vunpack.c.l.b16 %v410
  %v1024 = vunpack.c.h.b16 %v410
  %v1025 = vunpack.c.l.b16 %v411
  %v1026 = vunpack.c.h.b16 %v411
  %v1027 = vunpack.c.l.b16 %v412
  %v1028 = vunpack.c.h.b16 %v412
  %v1029 = vunpack.c.l.b16 %v413
  %v1030 = vunpack.c.h.b16 %v413
  %v1031 = vunpack.c.l.b16 %v414
  %v1032 = vunpack.c.h.b16 %v414
  %v1033 = vunpack.c.l.b16 %v415
  %v1034 = vunpack.c.h.b16 %v415
  %v1035 = vunpack.c.l.b16 %v416
  %v1036 = vunpack.c.h.b16 %v416
  %v1037 = vunpack.c.l.b16 %v417
  %v1038 = vunpack.c.h.b16 %v417
  %v1039 = vunpack.c.l.b16 %v418
  %v1040 = vunpack.c.h.b16 %v418
  %v1041 = vunpack.c.l.b16 %v419
  %v1042 = vunpack.c.h.b16 %v419
  %v1043 = vunpack.c.l.b16 %v420
  %v1044 = vunpack.c.h.b16 %v420
  %v1045 = vunpack.c.l.b16 %v421
  %v1046 = vunpack.c.h.b16 %v421
  %v1047 = vunpack.c.l.b16 %v422
  %v1048 = vunpack.c.h.b16 %v422
  %v1049 = vunpack.c.l.b16 %v423
  %v1050 = vunpack.c.h.b16 %v423
  %v1051 = vunpack.c.l.b16 %v424
  %v1052 = vunpack.c.h.b16 %v424
  %v1053 = vunpack.c.l.b16 %v425
  %v1054 = vunpack.c.h.b16 %v425
  %v1055 = vunpack.c.l.b16 %v426
  %v1056 = vunpack.c.h.b16 %v426
  %v1057 = vunpack.c.l.b16 %v427
  %v1058 = vunpack.c.h.b16 %v427
  %v1059 = vunpack.c.l.b16 %v428
  %v1060 = vunpack.c.h.b16 %v428
  %v1061 = vunpack.c.l.b16 %v429
  %v1062 = vunpack.c.h.b16 %v429
  %v1063 = vunpack.c.l.b16 %v430
  %v1064 = vunpack.c.h.b16 %v430
  %v1065 = vunpack.c.l.b16 %v431
  %v1066 = vunpack.c.h.b16 %v431
  %v1067 = vunpack.c.l.b16 %v432
  %v1068 = vunpack.c.h.b16 %v432
  %v1069 = vunpack.c.l.b16 %v433
  %v1070 = vunpack.c.h.b16 %v433
  %v1071 = vunpack.c.l.b16 %v434
  %v1072 = vunpack.c.h.b16 %v434
  %v1073 = vunpack.c.l.b16 %v435
  %v1074 = vunpack.c.h.b16 %v435
  %v1075 = vunpack.c.l.b16 %v436
  %v1076 = vunpack.c.h.b16 %v436
  %v1077 = vunpack.c.l.b16 %v437
  %v1078 = vunpack.c.h.b16 %v437
  %v1079 = vunpack.c.l.b16 %v438
  %v1080 = vunpack.c.h.b16 %v438
  %v1081 = vunpack.c.l.b16 %v439
  %v1082 = vunpack.c.h.b16 %v439
  %v1083 = vunpack.c.l.b16 %v440
  %v1084 = vunpack.c.h.b16 %v440
  %v1085 = vunpack.c.l.b16 %v441
  %v1086 = vunpack.c.h.b16 %v441
  %v1087 = vunpack.c.l.b16 %v442
  %v1088 = vunpack.c.h.b16 %v442
  %v1089 = vunpack.c.l.b16 %v443
  %v1090 = vunpack.c.h.b16 %v443
  %v1091 = vunpack.c.l.b16 %v444
  %v1092 = vunpack.c.h.b16 %v444
  %v1093 = vunpack.c.l.b16 %v445
  %v1094 = vunpack.c.h.b16 %v445
  %v1095 = vunpack.c.l.b16 %v446
  %v1096 = vunpack.c.h.b16 %v446
  %v1097 = vunpack.c.l.b16 %v447
  %v1098 = vunpack.c.h.b16 %v447
  %v1099 = vunpack.c.l.b16 %v448
  %v1100 = vunpack.c.h.b16 %v448
  %v1101 = vunpack.c.l.b16 %v449
  %v1102 = vunpack.c.h.b16 %v449
  %v1103 = vunpack.c.l.b16 %v450
  %v1104 = vunpack.c.h.b16 %v450
  %v1105 = vunpack.c.l.b16 %v451
  %v1106 = vunpack.c.h.b16 %v451
  %v1107 = vunpack.c.l.b16 %v452
  %v1108 = vunpack.c.h.b16 %v452
  %v1109 = vunpack.c.l.b16 %v453
  %v1110 = vunpack.c.h.b16 %v453
  %v1111 = vunpack.c.l.b16 %v454
  %v1112 = vunpack.c.h.b16 %v454
  %v1113 = vunpack.c.l.b16 %v455
  %v1114 = vunpack.c.h.b16 %v455
  %v1115 = vunpack.c.l.b16 %v456
  %v1116 = vunpack.c.h.b16 %v456
  %v1117 = vunpack.c.l.b16 %v457
  %v1118 = vunpack.c.h.b16 %v457
  %v1119 = vunpack.c.l.b16 %v458
  %v1120 = vunpack.c.h.b16 %v458
  %v1121 = vunpack.c.l.b16 %v459
  %v1122 = vunpack.c.h.b16 %v459
  %v1123 = vunpack.c.l.b16 %v460
  %v1124 = vunpack.c.h.b16 %v460
  %v1125 = vunpack.c.l.b16 %v461
  %v1126 = vunpack.c.h.b16 %v461
  %v1127 = vunpack.c.l.b16 %v462
  %v1128 = vunpack.c.h.b16 %v462
  %v1129 = vunpack.c.l.b16 %v463
  %v1130 = vunpack.c.h.b16 %v463
  %v1131 = vunpack.c.l.b16 %v464
  %v1132 = vunpack.c.h.b16 %v464
  %v1133 = vunpack.c.l.b16 %v465
  %v1134 = vunpack.c.h.b16 %v465
  %v1135 = vunpack.c.l.b16 %v466
  %v1136 = vunpack.c.h.b16 %v466
  %v1137 = vunpack.c.l.b16 %v467
  %v1138 = vunpack.c.h.b16 %v467
  %v1139 = vunpack.c.l.b16 %v468
  %v1140 = vunpack.c.h.b16 %v468
  %v1141 = vunpack.c.l.b16 %v469
  %v1142 = vunpack.c.h.b16 %v469
  %v1143 = vunpack.c.l.b16 %v470
  %v1144 = vunpack.c.h.b16 %v470
  %v1145 = vunpack.c.l.b16 %v471
  %v1146 = vunpack.c.h.b16 %v471
  %v1147 = vunpack.c.l.b16 %v472
  %v1148 = vunpack.c.h.b16 %v472
  %v1149 = vunpack.c.l.b16 %v473
  %v1150 = vunpack.c.h.b16 %v473
  %v1151 = vunpack.c.l.b16 %v474
  %v1152 = vunpack.c.h.b16 %v474
  %v1153 = vunpack.c.l.b16 %v475
  %v1154 = vunpack.c.h.b16 %v475
  %v1155 = vunpack.c.l.b16 %v476
  %v1156 = vunpack.c.h.b16 %v476
  %v1157 = vunpack.c.l.b16 %v477
  %v1158 = vunpack.c.h.b16 %v477
  %v1159 = vunpack.c.l.b16 %v478
  %v1160 = vunpack.c.h.b16 %v478
  %v1161 = vunpack.c.l.b16 %v479
  %v1162 = vunpack.c.h.b16 %v479
  %v1163 = vunpack.c.l.b16 %v480
  %v1164 = vunpack.c.h.b16 %v480
  %v1165 = vunpack.c.l.b16 %v481
  %v1166 = vunpack.c.h.b16 %v481
  %v1167 = vunpack.c.l.b16 %v482
  %v1168 = vunpack.c.h.b16 %v482
  %v1169 = vunpack.c.l.b16 %v483
  %v1170 = vunpack.c.h.b16 %v483
  %v1171 = vunpack.c.l.b16 %v484
  %v1172 = vunpack.c.h.b16 %v484
  %v1173 = vunpack.c.l.b16 %v485
  %v1174 = vunpack.c.h.b16 %v485
  %v1175 = vunpack.c.l.b16 %v486
  %v1176 = vunpack.c.h.b16 %v486
  %v1177 = vunpack.c.l.b16 %v487
  %v1178 = vunpack.c.h.b16 %v487
  %v1179 = vunpack.c.l.b16 %v488
  %v1180 = vunpack.c.h.b16 %v488
  %v1181 = vunpack.c.l.b16 %v489
  %v1182 = vunpack.c.h.b16 %v489
  %v1183 = vunpack.c.l.b16 %v490
  %v1184 = vunpack.c.h.b16 %v490
  %v1185 = vunpack.c.l.b16 %v491
  %v1186 = vunpack.c.h.b16 %v491
  %v1187 = vunpack.c.l.b16 %v492
  %v1188 = vunpack.c.h.b16 %v492
  %v1189 = vunpack.c.l.b16 %v493
  %v1190 = vunpack.c.h.b16 %v493
  %v1191 = vunpack.c.l.b16 %v494
  %v1192 = vunpack.c.h.b16 %v494
  %v1193 = vunpack.c.l.b16 %v495
  %v1194 = vunpack.c.h.b16 %v495
  %v1195 = vunpack.c.l.b16 %v496
  %v1196 = vunpack.c.h.b16 %v496
  %v1197 = vunpack.c.l.b16 %v497
  %v1198 = vunpack.c.h.b16 %v497
  %v1199 = vunpack.c.l.b16 %v498
  %v1200 = vunpack.c.h.b16 %v498
  %v1201 = vunpack.c.l.b16 %v499
  %v1202 = vunpack.c.h.b16 %v499
  %v1203 = vunpack.c.l.b16 %v500
  %v1204 = vunpack.c.h.b16 %v500
  %v1205 = vunpack.c.l.b16 %v501
  %v1206 = vunpack.c.h.b16 %v501
  %v1207 = vunpack.c.l.b16 %v502
  %v1208 = vunpack.c.h.b16 %v502
  %v1209 = vunpack.c.l.b16 %v503
  %v1210 = vunpack.c.h.b16 %v503
  %v1211 = vunpack.c.l.b16 %v504
  %v1212 = vunpack.c.h.b16 %v504
  %v1213 = vunpack.c.l.b16 %v505
  %v1214 = vunpack.c.h.b16 %v505
  %v1215 = vunpack.c.l.b16 %v506
  %v1216 = vunpack.c.h.b16 %v506
  %v1217 = vunpack.c.l.b16 %v507
  %v1218 = vunpack.c.h.b16 %v507
  %v1219 = vunpack.c.l.b16 %v508
  %v1220 = vunpack.c.h.b16 %v508
  %v1221 = vunpack.c.l.b16 %v509
  %v1222 = vunpack.c.h.b16 %v509
  %v1223 = vunpack.c.l.b16 %v510
  %v1224 = vunpack.c.h.b16 %v510
  %v1225 = vunpack.c.l.b16 %v511
  %v1226 = vunpack.c.h.b16 %v511
  %v1227 = vunpack.c.l.b16 %v512
  %v1228 = vunpack.c.h.b16 %v512
  %v1229 = vunpack.c.l.b16 %v513
  %v1230 = vunpack.c.h.b16 %v513
  %v1231 = vunpack.c.l.b16 %v514
  %v1232 = vunpack.c.h.b16 %v514
  %v1233 = vunpack.c.l.b16 %v515
  %v1234 = vunpack.c.h.b16 %v515
  %v1235 = vunpack.c.l.b16 %v516
  %v1236 = vunpack.c.h.b16 %v516
  %v1237 = vunpack.c.l.b16 %v517
  %v1238 = vunpack.c.h.b16 %v517
  %v1239 = vunpack.c.l.b16 %v518
  %v1240 = vunpack.c.h.b16 %v518
  %v1241 = vunpack.c.l.b16 %v519
  %v1242 = vunpack.c.h.b16 %v519
  %v1243 = vunpack.c.l.b16 %v520
  %v1244 = vunpack.c.h.b16 %v520
  %v1245 = vunpack.c.l.b16 %v521
  %v1246 = vunpack.c.h.b16 %v521
  %v1247 = vunpack.c.l.b16 %v522
  %v1248 = vunpack.c.h.b16 %v522
  %v1249 = vunpack.c.l.b16 %v523
  %v1250 = vunpack.c.h.b16 %v523
  %v1251 = vunpack.c.l.b16 %v524
  %v1252 = vunpack.c.h.b16 %v524
  %v1253 = vunpack.c.l.b16 %v525
  %v1254 = vunpack.c.h.b16 %v525
  %v1255 = vunpack.c.l.b16 %v526
  %v1256 = vunpack.c.h.b16 %v526
  %v1257 = vunpack.c.l.b16 %v527
  %v1258 = vunpack.c.h.b16 %v527
  %v1259 = vunpack.c.l.b16 %v528
  %v1260 = vunpack.c.h.b16 %v528
  %v1261 = vunpack.c.l.b16 %v529
  %v1262 = vunpack.c.h.b16 %v529
  %v1263 = vunpack.c.l.b16 %v530
  %v1264 = vunpack.c.h.b16 %v530
  %v1265 = vunpack.c.l.b16 %v531
  %v1266 = vunpack.c.h.b16 %v531
  %v1267 = vunpack.c.l.b16 %v532
  %v1268 = vunpack.c.h.b16 %v532
  %v1269 = vunpack.c.l.b16 %v533
  %v1270 = vunpack.c.h.b16 %v533
  %v1271 = vunpack.c.l.b16 %v534
  %v1272 = vunpack.c.h.b16 %v534
  %v1273 = vunpack.c.l.b16 %v535
  %v1274 = vunpack.c.h.b16 %v535
  %v1275 = vunpack.c.l.b16 %v536
  %v1276 = vunpack.c.h.b16 %v536
  %v1277 = vunpack.c.l.b16 %v537
  %v1278 = vunpack.c.h.b16 %v537
  %v1279 = vunpack.c.l.b16 %v538
  %v1280 = vunpack.c.h.b16 %v538
  %v1281 = vunpack.c.l.b16 %v539
  %v1282 = vunpack.c.h.b16 %v539
  %v1283 = vunpack.c.l.b16 %v540
  %v1284 = vunpack.c.h.b16 %v540
  %v1285 = vunpack.c.l.b16 %v541
  %v1286 = vunpack.c.h.b16 %v541
  %v1287 = vunpack.c.l.b16 %v542
  %v1288 = vunpack.c.h.b16 %v542
  %v1289 = vunpack.c.l.b16 %v543
  %v1290 = vunpack.c.h.b16 %v543
  %v1291 = vunpack.c.l.b16 %v544
  %v1292 = vunpack.c.h.b16 %v544
  %v1293 = vunpack.c.l.b16 %v545
  %v1294 = vunpack.c.h.b16 %v545
  %v1295 = vunpack.c.l.b16 %v546
  %v1296 = vunpack.c.h.b16 %v546
  %v1297 = vunpack.c.l.b16 %v547
  %v1298 = vunpack.c.h.b16 %v547
  %v1299 = vunpack.c.l.b16 %v548
  %v1300 = vunpack.c.h.b16 %v548
  %v1301 = vunpack.c.l.b16 %v549
  %v1302 = vunpack.c.h.b16 %v549
  %v1303 = vunpack.c.l.b16 %v550
  %v1304 = vunpack.c.h.b16 %v550
  %v1305 = vunpack.c.l.b16 %v551
  %v1306 = vunpack.c.h.b16 %v551
  %v1307 = vunpack.c.l.b16 %v552
  %v1308 = vunpack.c.h.b16 %v552
  %v1309 = vunpack.c.l.b16 %v553
  %v1310 = vunpack.c.h.b16 %v553
  %v1311 = vunpack.c.l.b16 %v554
  %v1312 = vunpack.c.h.b16 %v554
  %v1313 = vunpack.c.l.b16 %v555
  %v1314 = vunpack.c.h.b16 %v555
  %v1315 = vunpack.c.l.b16 %v556
  %v1316 = vunpack.c.h.b16 %v556
  %v1317 = vunpack.c.l.b16 %v557
  %v1318 = vunpack.c.h.b16 %v557
  %v1319 = vunpack.c.l.b16 %v558
  %v1320 = vunpack.c.h.b16 %v558
  %v1321 = vunpack.c.l.b16 %v559
  %v1322 = vunpack.c.h.b16 %v559
  %v1323 = vunpack.c.l.b16 %v560
  %v1324 = vunpack.c.h.b16 %v560
  %v1325 = vunpack.c.l.b16 %v561
  %v1326 = vunpack.c.h.b16 %v561
  %v1327 = vunpack.c.l.b16 %v562
  %v1328 = vunpack.c.h.b16 %v562
  %v1329 = vunpack.c.l.b16 %v563
  %v1330 = vunpack.c.h.b16 %v563
  %v1331 = vunpack.c.l.b16 %v564
  %v1332 = vunpack.c.h.b16 %v564
  %v1333 = vpack.c.b16 %v825, %v821
  %v1334 = vpack.c.b16 %v826, %v822
  %v1335 = vpack.c.b16 %v827, %v823
  %v1336 = vpack.c.b16 %v828, %v824
  %v1337 = vpack.c.b16 %v833, %v829
  %v1338 = vpack.c.b16 %v834, %v830
  %v1339 = vpack.c.b16 %v835, %v831
  %v1340 = vpack.c.b16 %v836, %v832
  %v1341 = vpack.c.b16 %v841, %v837
  %v1342 = vpack.c.b16 %v842, %v838
  %v1343 = vpack.c.b16 %v843, %v839
  %v1344 = vpack.c.b16 %v844, %v840
  %v1345 = vpack.c.b16 %v849, %v845
  %v1346 = vpack.c.b16 %v850, %v846
  %v1347 = vpack.c.b16 %v851, %v847
  %v1348 = vpack.c.b16 %v852, %v848
  %v1349 = vpack.c.b16 %v857, %v853
  %v1350 = vpack.c.b16 %v858, %v854
  %v1351 = vpack.c.b16 %v859, %v855
  %v1352 = vpack.c.b16 %v860, %v856
  %v1353 = vpack.c.b16 %v865, %v861
  %v1354 = vpack.c.b16 %v866, %v862
  %v1355 = vpack.c.b16 %v867, %v863
  %v1356 = vpack.c.b16 %v868, %v864
  %v1357 = vpack.c.b16 %v873, %v869
  %v1358 = vpack.c.b16 %v874, %v870
  %v1359 = vpack.c.b16 %v875, %v871
  %v1360 = vpack.c.b16 %v876, %v872
  %v1361 = vpack.c.b16 %v881, %v877
  %v1362 = vpack.c.b16 %v882, %v878
  %v1363 = vpack.c.b16 %v883, %v879
  %v1364 = vpack.c.b16 %v884, %v880
  %v1365 = vpack.c.b16 %v889, %v885
  %v1366 = vpack.c.b16 %v890, %v886
  %v1367 = vpack.c.b16 %v891, %v887
  %v1368 = vpack.c.b16 %v892, %v888
  %v1369 = vpack.c.b16 %v897, %v893
  %v1370 = vpack.c.b16 %v898, %v894
  %v1371 = vpack.c.b16 %v899, %v895
  %v1372 = vpack.c.b16 %v900, %v896
  %v1373 = vpack.c.b16 %v905, %v901
  %v1374 = vpack.c.b16 %v906, %v902
  %v1375 = vpack.c.b16 %v907, %v903
  %v1376 = vpack.c.b16 %v908, %v904
  %v1377 = vpack.c.b16 %v913, %v909
  %v1378 = vpack.c.b16 %v914, %v910
  %v1379 = vpack.c.b16 %v915, %v911
  %v1380 = vpack.c.b16 %v916, %v912
  %v1381 = vpack.c.b16 %v921, %v917
  %v1382 = vpack.c.b16 %v922, %v918
  %v1383 = vpack.c.b16 %v923, %v919
  %v1384 = vpack.c.b16 %v924, %v920
  %v1385 = vpack.c.b16 %v929, %v925
  %v1386 = vpack.c.b16 %v930, %v926
  %v1387 = vpack.c.b16 %v931, %v927
  %v1388 = vpack.c.b16 %v932, %v928
  %v1389 = vpack.c.b16 %v937, %v933
  %v1390 = vpack.c.b16 %v938, %v934
  %v1391 = vpack.c.b16 %v939, %v935
  %v1392 = vpack.c.b16 %v940, %v936
  %v1393 = vpack.c.b16 %v945, %v941
  %v1394 = vpack.c.b16 %v946, %v942
  %v1395 = vpack.c.b16 %v947, %v943
  %v1396 = vpack.c.b16 %v948, %v944
  %v1397 = vpack.c.b16 %v953, %v949
  %v1398 = vpack.c.b16 %v954, %v950
  %v1399 = vpack.c.b16 %v955, %v951
  %v1400 = vpack.c.b16 %v956, %v952
  %v1401 = vpack.c.b16 %v961, %v957
  %v1402 = vpack.c.b16 %v962, %v958
  %v1403 = vpack.c.b16 %v963, %v959
  %v1404 = vpack.c.b16 %v964, %v960
  %v1405 = vpack.c.b16 %v969, %v965
  %v1406 = vpack.c.b16 %v970, %v966
  %v1407 = vpack.c.b16 %v971, %v967
  %v1408 = vpack.c.b16 %v972, %v968
  %v1409 = vpack.c.b16 %v977, %v973
  %v1410 = vpack.c.b16 %v978, %v974
  %v1411 = vpack.c.b16 %v979, %v975
  %v1412 = vpack.c.b16 %v980, %v976
  %v1413 = vpack.c.b16 %v985, %v981
  %v1414 = vpack.c.b16 %v986, %v982
  %v1415 = vpack.c.b16 %v987, %v983
  %v1416 = vpack.c.b16 %v988, %v984
  %v1417 = vpack.c.b16 %v993, %v989
  %v1418 = vpack.c.b16 %v994, %v990
  %v1419 = vpack.c.b16 %v995, %v991
  %v1420 = vpack.c.b16 %v996, %v992
  %v1421 = vpack.c.b16 %v1001, %v997
  %v1422 = vpack.c.b16 %v1002, %v998
  %v1423 = vpack.c.b16 %v1003, %v999
  %v1424 = vpack.c.b16 %v1004, %v1000
  %v1425 = vpack.c.b16 %v1009, %v1005
  %v1426 = vpack.c.b16 %v1010, %v1006
  %v1427 = vpack.c.b16 %v1011, %v1007
  %v1428 = vpack.c.b16 %v1012, %v1008
  %v1429 = vpack.c.b16 %v1017, %v1013
  %v1430 = vpack.c.b16 %v1018, %v1014
  %v1431 = vpack.c.b16 %v1019, %v1015
  %v1432 = vpack.c.b16 %v1020, %v1016
  %v1433 = vpack.c.b16 %v1025, %v1021
  %v1434 = vpack.c.b16 %v1026, %v1022
  %v1435 = vpack.c.b16 %v1027, %v1023
  %v1436 = vpack.c.b16 %v1028, %v1024
  %v1437 = vpack.c.b16 %v1033, %v1029
  %v1438 = vpack.c.b16 %v1034, %v1030
  %v1439 = vpack.c.b16 %v1035, %v1031
  %v1440 = vpack.c.b16 %v1036, %v1032
  %v1441 = vpack.c.b16 %v1041, %v1037
  %v1442 = vpack.c.b16 %v1042, %v1038
  %v1443 = vpack.c.b16 %v1043, %v1039
  %v1444 = vpack.c.b16 %v1044, %v1040
  %v1445 = vpack.c.b16 %v1049, %v1045
  %v1446 = vpack.c.b16 %v1050, %v1046
  %v1447 = vpack.c.b16 %v1051, %v1047
  %v1448 = vpack.c.b16 %v1052, %v1048
  %v1449 = vpack.c.b16 %v1057, %v1053
  %v1450 = vpack.c.b16 %v1058, %v1054
  %v1451 = vpack.c.b16 %v1059, %v1055
  %v1452 = vpack.c.b16 %v1060, %v1056
  %v1453 = vpack.c.b16 %v1065, %v1061
  %v1454 = vpack.c.b16 %v1066, %v1062
  %v1455 = vpack.c.b16 %v1067, %v1063
  %v1456 = vpack.c.b16 %v1068, %v1064
  %v1457 = vpack.c.b16 %v1073, %v1069
  %v1458 = vpack.c.b16 %v1074, %v1070
  %v1459 = vpack.c.b16 %v1075, %v1071
  %v1460 = vpack.c.b16 %v1076, %v1072
  %v1461 = vpack.c.b16 %v1081, %v1077
  %v1462 = vpack.c.b16 %v1082, %v1078
  %v1463 = vpack.c.b16 %v1083, %v1079
  %v1464 = vpack.c.b16 %v1084, %v1080
  %v1465 = vpack.c.b16 %v1089, %v1085
  %v1466 = vpack.c.b16 %v1090, %v1086
  %v1467 = vpack.c.b16 %v1091, %v1087
  %v1468 = vpack.c.b16 %v1092, %v1088
  %v1469 = vpack.c.b16 %v1097, %v1093
  %v1470 = vpack.c.b16 %v1098, %v1094
  %v1471 = vpack.c.b16 %v1099, %v1095
  %v1472 = vpack.c.b16 %v1100, %v1096
  %v1473 = vpack.c.b16 %v1105, %v1101
  %v1474 = vpack.c.b16 %v1106, %v1102
  %v1475 = vpack.c.b16 %v1107, %v1103
  %v1476 = vpack.c.b16 %v1108, %v1104
  %v1477 = vpack.c.b16 %v1113, %v1109
  %v1478 = vpack.c.b16 %v1114, %v1110
  %v1479 = vpack.c.b16 %v1115, %v1111
  %v1480 = vpack.c.b16 %v1116, %v1112
  %v1481 = vpack.c.b16 %v1121, %v1117
  %v1482 = vpack.c.b16 %v1122, %v1118
  %v1483 = vpack.c.b16 %v1123, %v1119
  %v1484 = vpack.c.b16 %v1124, %v1120
  %v1485 = vpack.c.b16 %v1129, %v1125
  %v1486 = vpack.c.b16 %v1130, %v1126
  %v1487 = vpack.c.b16 %v1131, %v1127
  %v1488 = vpack.c.b16 %v1132, %v1128
  %v1489 = vpack.c.b16 %v1137, %v1133
  %v1490 = vpack.c.b16 %v1138, %v1134
  %v1491 = vpack.c.b16 %v1139, %v1135
  %v1492 = vpack.c.b16 %v1140, %v1136
  %v1493 = vpack.c.b16 %v1145, %v1141
  %v1494 = vpack.c.b16 %v1146, %v1142
  %v1495 = vpack.c.b16 %v1147, %v1143
  %v1496 = vpack.c.b16 %v1148, %v1144
  %v1497 = vpack.c.b16 %v1153, %v1149
  %v1498 = vpack.c.b16 %v1154, %v1150
  %v1499 = vpack.c.b16 %v1155, %v1151
  %v1500 = vpack.c.b16 %v1156, %v1152
  %v1501 = vpack.c.b16 %v1161, %v1157
  %v1502 = vpack.c.b16 %v1162, %v1158
  %v1503 = vpack.c.b16 %v1163, %v1159
  %v1504 = vpack.c.b16 %v1164, %v1160
  %v1505 = vpack.c.b16 %v1169, %v1165
  %v1506 = vpack.c.b16 %v1170, %v1166
  %v1507 = vpack.c.b16 %v1171, %v1167
  %v1508 = vpack.c.b16 %v1172, %v1168
  %v1509 = vpack.c.b16 %v1177, %v1173
  %v1510 = vpack.c.b16 %v1178, %v1174
  %v1511 = vpack.c.b16 %v1179, %v1175
  %v1512 = vpack.c.b16 %v1180, %v1176
  %v1513 = vpack.c.b16 %v1185, %v1181
  %v1514 = vpack.c.b16 %v1186, %v1182
  %v1515 = vpack.c.b16 %v1187, %v1183
  %v1516 = vpack.c.b16 %v1188, %v1184
  %v1517 = vpack.c.b16 %v1193, %v1189
  %v1518 = vpack.c.b16 %v1194, %v1190
  %v1519 = vpack.c.b16 %v1195, %v1191
  %v1520 = vpack.c.b16 %v1196, %v1192
  %v1521 = vpack.c.b16 %v1201, %v1197
  %v1522 = vpack.c.b16 %v1202, %v1198
  %v1523 = vpack.c.b16 %v1203, %v1199
  %v1524 = vpack.c.b16 %v1204, %v1200
  %v1525 = vpack.c.b16 %v1209, %v1205
  %v1526 = vpack.c.b16 %v1210, %v1206
  %v1527 = vpack.c.b16 %v1211, %v1207
  %v1528 = vpack.c.b16 %v1212, %v1208
  %v1529 = vpack.c.b16 %v1217, %v1213
  %v1530 = vpack.c.b16 %v1218, %v1214
  %v1531 = vpack.c.b16 %v1219, %v1215
  %v1532 = vpack.c.b16 %v1220, %v1216
  %v1533 = vpack.c.b16 %v1225, %v1221
  %v1534 = vpack.c.b16 %v1226, %v1222
  %v1535 = vpack.c.b16 %v1227, %v1223
  %v1536 = vpack.c.b16 %v1228, %v1224
  %v1537 = vpack.c.b16 %v1233, %v1229
  %v1538 = vpack.c.b16 %v1234, %v1230
  %v1539 = vpack.c.b16 %v1235, %v1231
  %v1540 = vpack.c.b16 %v1236, %v1232
  %v1541 = vpack.c.b16 %v1241, %v1237
  %v1542 = vpack.c.b16 %v1242, %v1238
  %v1543 = vpack.c.b16 %v1243, %v1239
  %v1544 = vpack.c.b16 %v1244, %v1240
  %v1545 = vpack.c.b16 %v1249, %v1245
  %v1546 = vpack.c.b16 %v1250, %v1246
  %v1547 = vpack.c.b16 %v1251, %v1247
  %v1548 = vpack.c.b16 %v1252, %v1248
  %v1549 = vpack.c.b16 %v1257, %v1253
  %v1550 = vpack.c.b16 %v1258, %v1254
  %v1551 = vpack.c.b16 %v1259, %v1255
  %v1552 = vpack.c.b16 %v1260, %v1256
  %v1553 = vpack.c.b16 %v1265, %v1261
  %v1554 = vpack.c.b16 %v1266, %v1262
  %v1555 = vpack.c.b16 %v1267, %v1263
  %v1556 = vpack.c.b16 %v1268, %v1264
  %v1557 = vpack.c.b16 %v1273, %v1269
  %v1558 = vpack.c.b16 %v1274, %v1270
  %v1559 = vpack.c.b16 %v1275, %v1271
  %v1560 = vpack.c.b16 %v1276, %v1272
  %v1561 = vpack.c.b16 %v1281, %v1277
  %v1562 = vpack.c.b16 %v1282, %v1278
  %v1563 = vpack.c.b16 %v1283, %v1279
  %v1564 = vpack.c.b16 %v1284, %v1280
  %v1565 = vpack.c.b16 %v1289, %v1285
  %v1566 = vpack.c.b16 %v1290, %v1286
  %v1567 = vpack.c.b16 %v1291, %v1287
  %v1568 = vpack.c.b16 %v1292, %v1288
  %v1569 = vpack.c.b16 %v1297, %v1293
  %v1570 = vpack.c.b16 %v1298, %v1294
  %v1571 = vpack.c.b16 %v1299, %v1295
  %v1572 = vpack.c.b16 %v1300, %v1296
  %v1573 = vpack.c.b16 %v1305, %v1301
  %v1574 = vpack.c.b16 %v1306, %v1302
  %v1575 = vpack.c.b16 %v1307, %v1303
  %v1576 = vpack.c.b16 %v1308, %v1304
  %v1577 = vpack.c.b16 %v1313, %v1309
  %v1578 = vpack.c.b16 %v1314, %v1310
  %v1579 = vpack.c.b16 %v1315, %v1311
  %v1580 = vpack.c.b16 %v1316, %v1312
  %v1581 = vpack.c.b16 %v1321, %v1317
  %v1582 = vpack.c.b16 %v1322, %v1318
  %v1583 = vpack.c.b16 %v1323, %v1319
  %v1584 = vpack.c.b16 %v1324, %v1320
  %v1585 = vpack.c.b16 %v1329, %v1325
  %v1586 = vpack.c.b16 %v1330, %v1326
  %v1587 = vpack.c.b16 %v1331, %v1327
  %v1588 = vpack.c.b16 %v1332, %v1328
  %1845 = vmatpush.bf16.msra.mxu0 %v1361
  %1846 = vmatpush.bf16.msra.mxu0 %v1357
  %1847 = vmatpush.bf16.msra.mxu0 %v1353
  %1848 = vmatpush.bf16.msra.mxu0 %v1349
  %1849 = vmatpush.bf16.msra.mxu0 %v1345
  %1850 = vmatpush.bf16.msra.mxu0 %v1341
  %1851 = vmatpush.bf16.msra.mxu0 %v1337
  %1852 = vmatpush.bf16.msra.mxu0 %v1333
  %1853 = vmatmul.bf16.gmra.mxu0 %v301
  %v1854 = vpop.f32.mrf.mxu0
  %v1855 = vadd.f32 0.0, %v1854
  %v1856 = vpop.f32.mrf.mxu0
  %v1857 = vadd.f32 0.0, %v1856
  %1858 = vdwg.mxu0
  %1859 = vmatpush.bf16.msra.mxu0 %v1393
  %1860 = vmatpush.bf16.msra.mxu0 %v1389
  %1861 = vmatpush.bf16.msra.mxu0 %v1385
  %1862 = vmatpush.bf16.msra.mxu0 %v1381
  %1863 = vmatpush.bf16.msra.mxu0 %v1377
  %1864 = vmatpush.bf16.msra.mxu0 %v1373
  %1865 = vmatpush.bf16.msra.mxu0 %v1369
  %1866 = vmatpush.bf16.msra.mxu0 %v1365
  %1867 = vmatmul.bf16.gmra.mxu0 %v302
  %v1868 = vpop.f32.mrf.mxu0
  %v1869 = vadd.f32 %v1855, %v1868
  %v1870 = vpop.f32.mrf.mxu0
  %v1871 = vadd.f32 %v1857, %v1870
  %1872 = vdwg.mxu0
  %1873 = vmatpush.bf16.msra.mxu0 %v1425
  %1874 = vmatpush.bf16.msra.mxu0 %v1421
  %1875 = vmatpush.bf16.msra.mxu0 %v1417
  %1876 = vmatpush.bf16.msra.mxu0 %v1413
  %1877 = vmatpush.bf16.msra.mxu0 %v1409
  %1878 = vmatpush.bf16.msra.mxu0 %v1405
  %1879 = vmatpush.bf16.msra.mxu0 %v1401
  %1880 = vmatpush.bf16.msra.mxu0 %v1397
  %1881 = vmatmul.bf16.gmra.mxu0 %v303
  %v1882 = vpop.f32.mrf.mxu0
  %v1883 = vadd.f32 %v1869, %v1882
  %v1884 = vpop.f32.mrf.mxu0
  %v1885 = vadd.f32 %v1871, %v1884
  %1886 = vdwg.mxu0
  %1887 = vmatpush.bf16.msra.mxu0 %v1457
  %1888 = vmatpush.bf16.msra.mxu0 %v1453
  %1889 = vmatpush.bf16.msra.mxu0 %v1449
  %1890 = vmatpush.bf16.msra.mxu0 %v1445
  %1891 = vmatpush.bf16.msra.mxu0 %v1441
  %1892 = vmatpush.bf16.msra.mxu0 %v1437
  %1893 = vmatpush.bf16.msra.mxu0 %v1433
  %1894 = vmatpush.bf16.msra.mxu0 %v1429
  %1895 = vmatmul.bf16.gmra.mxu0 %v304
  %v1896 = vpop.f32.mrf.mxu0
  %v1897 = vadd.f32 %v1883, %v1896
  %v1898 = vpop.f32.mrf.mxu0
  %v1899 = vadd.f32 %v1885, %v1898
  %1900 = vdwg.mxu0
  %1901 = vmatpush.bf16.msra.mxu0 %v1489
  %1902 = vmatpush.bf16.msra.mxu0 %v1485
  %1903 = vmatpush.bf16.msra.mxu0 %v1481
  %1904 = vmatpush.bf16.msra.mxu0 %v1477
  %1905 = vmatpush.bf16.msra.mxu0 %v1473
  %1906 = vmatpush.bf16.msra.mxu0 %v1469
  %1907 = vmatpush.bf16.msra.mxu0 %v1465
  %1908 = vmatpush.bf16.msra.mxu0 %v1461
  %1909 = vmatmul.bf16.gmra.mxu0 %v305
  %v1910 = vpop.f32.mrf.mxu0
  %v1911 = vadd.f32 %v1897, %v1910
  %v1912 = vpop.f32.mrf.mxu0
  %v1913 = vadd.f32 %v1899, %v1912
  %1914 = vdwg.mxu0
  %1915 = vmatpush.bf16.msra.mxu0 %v1521
  %1916 = vmatpush.bf16.msra.mxu0 %v1517
  %1917 = vmatpush.bf16.msra.mxu0 %v1513
  %1918 = vmatpush.bf16.msra.mxu0 %v1509
  %1919 = vmatpush.bf16.msra.mxu0 %v1505
  %1920 = vmatpush.bf16.msra.mxu0 %v1501
  %1921 = vmatpush.bf16.msra.mxu0 %v1497
  %1922 = vmatpush.bf16.msra.mxu0 %v1493
  %1923 = vmatmul.bf16.gmra.mxu0 %v306
  %v1924 = vpop.f32.mrf.mxu0
  %v1925 = vadd.f32 %v1911, %v1924
  %v1926 = vpop.f32.mrf.mxu0
  %v1927 = vadd.f32 %v1913, %v1926
  %1928 = vdwg.mxu0
  %1929 = vmatpush.bf16.msra.mxu0 %v1553
  %1930 = vmatpush.bf16.msra.mxu0 %v1549
  %1931 = vmatpush.bf16.msra.mxu0 %v1545
  %1932 = vmatpush.bf16.msra.mxu0 %v1541
  %1933 = vmatpush.bf16.msra.mxu0 %v1537
  %1934 = vmatpush.bf16.msra.mxu0 %v1533
  %1935 = vmatpush.bf16.msra.mxu0 %v1529
  %1936 = vmatpush.bf16.msra.mxu0 %v1525
  %1937 = vmatmul.bf16.gmra.mxu0 %v307
  %v1938 = vpop.f32.mrf.mxu0
  %v1939 = vadd.f32 %v1925, %v1938
  %v1940 = vpop.f32.mrf.mxu0
  %v1941 = vadd.f32 %v1927, %v1940
  %1942 = vdwg.mxu0
  %1943 = vmatpush.bf16.msra.mxu0 %v1585
  %1944 = vmatpush.bf16.msra.mxu0 %v1581
  %1945 = vmatpush.bf16.msra.mxu0 %v1577
  %1946 = vmatpush.bf16.msra.mxu0 %v1573
  %1947 = vmatpush.bf16.msra.mxu0 %v1569
  %1948 = vmatpush.bf16.msra.mxu0 %v1565
  %1949 = vmatpush.bf16.msra.mxu0 %v1561
  %1950 = vmatpush.bf16.msra.mxu0 %v1557
  %1951 = vmatmul.bf16.gmra.mxu0 %v308
  %v1952 = vpop.f32.mrf.mxu0
  %v1953 = vadd.f32 %v1939, %v1952
  %v1954 = vpop.f32.mrf.mxu0
  %v1955 = vadd.f32 %v1941, %v1954
  %1956 = vdwg.mxu0
  %1957 = vmatpush.bf16.msra.mxu0 %v1362
  %1958 = vmatpush.bf16.msra.mxu0 %v1358
  %1959 = vmatpush.bf16.msra.mxu0 %v1354
  %1960 = vmatpush.bf16.msra.mxu0 %v1350
  %1961 = vmatpush.bf16.msra.mxu0 %v1346
  %1962 = vmatpush.bf16.msra.mxu0 %v1342
  %1963 = vmatpush.bf16.msra.mxu0 %v1338
  %1964 = vmatpush.bf16.msra.mxu0 %v1334
  %1965 = vmatmul.bf16.gmra.mxu0 %v301
  %v1966 = vpop.f32.mrf.mxu0
  %v1967 = vadd.f32 0.0, %v1966
  %v1968 = vpop.f32.mrf.mxu0
  %v1969 = vadd.f32 0.0, %v1968
  %1970 = vdwg.mxu0
  %1971 = vmatpush.bf16.msra.mxu0 %v1394
  %1972 = vmatpush.bf16.msra.mxu0 %v1390
  %1973 = vmatpush.bf16.msra.mxu0 %v1386
  %1974 = vmatpush.bf16.msra.mxu0 %v1382
  %1975 = vmatpush.bf16.msra.mxu0 %v1378
  %1976 = vmatpush.bf16.msra.mxu0 %v1374
  %1977 = vmatpush.bf16.msra.mxu0 %v1370
  %1978 = vmatpush.bf16.msra.mxu0 %v1366
  %1979 = vmatmul.bf16.gmra.mxu0 %v302
  %v1980 = vpop.f32.mrf.mxu0
  %v1981 = vadd.f32 %v1967, %v1980
  %v1982 = vpop.f32.mrf.mxu0
  %v1983 = vadd.f32 %v1969, %v1982
  %1984 = vdwg.mxu0
  %1985 = vmatpush.bf16.msra.mxu0 %v1426
  %1986 = vmatpush.bf16.msra.mxu0 %v1422
  %1987 = vmatpush.bf16.msra.mxu0 %v1418
  %1988 = vmatpush.bf16.msra.mxu0 %v1414
  %1989 = vmatpush.bf16.msra.mxu0 %v1410
  %1990 = vmatpush.bf16.msra.mxu0 %v1406
  %1991 = vmatpush.bf16.msra.mxu0 %v1402
  %1992 = vmatpush.bf16.msra.mxu0 %v1398
  %1993 = vmatmul.bf16.gmra.mxu0 %v303
  %v1994 = vpop.f32.mrf.mxu0
  %v1995 = vadd.f32 %v1981, %v1994
  %v1996 = vpop.f32.mrf.mxu0
  %v1997 = vadd.f32 %v1983, %v1996
  %1998 = vdwg.mxu0
  %1999 = vmatpush.bf16.msra.mxu0 %v1458
  %2000 = vmatpush.bf16.msra.mxu0 %v1454
  %2001 = vmatpush.bf16.msra.mxu0 %v1450
  %2002 = vmatpush.bf16.msra.mxu0 %v1446
  %2003 = vmatpush.bf16.msra.mxu0 %v1442
  %2004 = vmatpush.bf16.msra.mxu0 %v1438
  %2005 = vmatpush.bf16.msra.mxu0 %v1434
  %2006 = vmatpush.bf16.msra.mxu0 %v1430
  %2007 = vmatmul.bf16.gmra.mxu0 %v304
  %v2008 = vpop.f32.mrf.mxu0
  %v2009 = vadd.f32 %v1995, %v2008
  %v2010 = vpop.f32.mrf.mxu0
  %v2011 = vadd.f32 %v1997, %v2010
  %2012 = vdwg.mxu0
  %2013 = vmatpush.bf16.msra.mxu0 %v1490
  %2014 = vmatpush.bf16.msra.mxu0 %v1486
  %2015 = vmatpush.bf16.msra.mxu0 %v1482
  %2016 = vmatpush.bf16.msra.mxu0 %v1478
  %2017 = vmatpush.bf16.msra.mxu0 %v1474
  %2018 = vmatpush.bf16.msra.mxu0 %v1470
  %2019 = vmatpush.bf16.msra.mxu0 %v1466
  %2020 = vmatpush.bf16.msra.mxu0 %v1462
  %2021 = vmatmul.bf16.gmra.mxu0 %v305
  %v2022 = vpop.f32.mrf.mxu0
  %v2023 = vadd.f32 %v2009, %v2022
  %v2024 = vpop.f32.mrf.mxu0
  %v2025 = vadd.f32 %v2011, %v2024
  %2026 = vdwg.mxu0
  %2027 = vmatpush.bf16.msra.mxu0 %v1522
  %2028 = vmatpush.bf16.msra.mxu0 %v1518
  %2029 = vmatpush.bf16.msra.mxu0 %v1514
  %2030 = vmatpush.bf16.msra.mxu0 %v1510
  %2031 = vmatpush.bf16.msra.mxu0 %v1506
  %2032 = vmatpush.bf16.msra.mxu0 %v1502
  %2033 = vmatpush.bf16.msra.mxu0 %v1498
  %2034 = vmatpush.bf16.msra.mxu0 %v1494
  %2035 = vmatmul.bf16.gmra.mxu0 %v306
  %v2036 = vpop.f32.mrf.mxu0
  %v2037 = vadd.f32 %v2023, %v2036
  %v2038 = vpop.f32.mrf.mxu0
  %v2039 = vadd.f32 %v2025, %v2038
  %2040 = vdwg.mxu0
  %2041 = vmatpush.bf16.msra.mxu0 %v1554
  %2042 = vmatpush.bf16.msra.mxu0 %v1550
  %2043 = vmatpush.bf16.msra.mxu0 %v1546
  %2044 = vmatpush.bf16.msra.mxu0 %v1542
  %2045 = vmatpush.bf16.msra.mxu0 %v1538
  %2046 = vmatpush.bf16.msra.mxu0 %v1534
  %2047 = vmatpush.bf16.msra.mxu0 %v1530
  %2048 = vmatpush.bf16.msra.mxu0 %v1526
  %2049 = vmatmul.bf16.gmra.mxu0 %v307
  %v2050 = vpop.f32.mrf.mxu0
  %v2051 = vadd.f32 %v2037, %v2050
  %v2052 = vpop.f32.mrf.mxu0
  %v2053 = vadd.f32 %v2039, %v2052
  %2054 = vdwg.mxu0
  %2055 = vmatpush.bf16.msra.mxu0 %v1586
  %2056 = vmatpush.bf16.msra.mxu0 %v1582
  %2057 = vmatpush.bf16.msra.mxu0 %v1578
  %2058 = vmatpush.bf16.msra.mxu0 %v1574
  %2059 = vmatpush.bf16.msra.mxu0 %v1570
  %2060 = vmatpush.bf16.msra.mxu0 %v1566
  %2061 = vmatpush.bf16.msra.mxu0 %v1562
  %2062 = vmatpush.bf16.msra.mxu0 %v1558
  %2063 = vmatmul.bf16.gmra.mxu0 %v308
  %v2064 = vpop.f32.mrf.mxu0
  %v2065 = vadd.f32 %v2051, %v2064
  %v2066 = vpop.f32.mrf.mxu0
  %v2067 = vadd.f32 %v2053, %v2066
  %2068 = vdwg.mxu0
  %2069 = vmatpush.bf16.msra.mxu0 %v1363
  %2070 = vmatpush.bf16.msra.mxu0 %v1359
  %2071 = vmatpush.bf16.msra.mxu0 %v1355
  %2072 = vmatpush.bf16.msra.mxu0 %v1351
  %2073 = vmatpush.bf16.msra.mxu0 %v1347
  %2074 = vmatpush.bf16.msra.mxu0 %v1343
  %2075 = vmatpush.bf16.msra.mxu0 %v1339
  %2076 = vmatpush.bf16.msra.mxu0 %v1335
  %2077 = vmatmul.bf16.gmra.mxu0 %v301
  %v2078 = vpop.f32.mrf.mxu0
  %v2079 = vadd.f32 0.0, %v2078
  %v2080 = vpop.f32.mrf.mxu0
  %v2081 = vadd.f32 0.0, %v2080
  %2082 = vdwg.mxu0
  %2083 = vmatpush.bf16.msra.mxu0 %v1395
  %2084 = vmatpush.bf16.msra.mxu0 %v1391
  %2085 = vmatpush.bf16.msra.mxu0 %v1387
  %2086 = vmatpush.bf16.msra.mxu0 %v1383
  %2087 = vmatpush.bf16.msra.mxu0 %v1379
  %2088 = vmatpush.bf16.msra.mxu0 %v1375
  %2089 = vmatpush.bf16.msra.mxu0 %v1371
  %2090 = vmatpush.bf16.msra.mxu0 %v1367
  %2091 = vmatmul.bf16.gmra.mxu0 %v302
  %v2092 = vpop.f32.mrf.mxu0
  %v2093 = vadd.f32 %v2079, %v2092
  %v2094 = vpop.f32.mrf.mxu0
  %v2095 = vadd.f32 %v2081, %v2094
  %2096 = vdwg.mxu0
  %2097 = vmatpush.bf16.msra.mxu0 %v1427
  %2098 = vmatpush.bf16.msra.mxu0 %v1423
  %2099 = vmatpush.bf16.msra.mxu0 %v1419
  %2100 = vmatpush.bf16.msra.mxu0 %v1415
  %2101 = vmatpush.bf16.msra.mxu0 %v1411
  %2102 = vmatpush.bf16.msra.mxu0 %v1407
  %2103 = vmatpush.bf16.msra.mxu0 %v1403
  %2104 = vmatpush.bf16.msra.mxu0 %v1399
  %2105 = vmatmul.bf16.gmra.mxu0 %v303
  %v2106 = vpop.f32.mrf.mxu0
  %v2107 = vadd.f32 %v2093, %v2106
  %v2108 = vpop.f32.mrf.mxu0
  %v2109 = vadd.f32 %v2095, %v2108
  %2110 = vdwg.mxu0
  %2111 = vmatpush.bf16.msra.mxu0 %v1459
  %2112 = vmatpush.bf16.msra.mxu0 %v1455
  %2113 = vmatpush.bf16.msra.mxu0 %v1451
  %2114 = vmatpush.bf16.msra.mxu0 %v1447
  %2115 = vmatpush.bf16.msra.mxu0 %v1443
  %2116 = vmatpush.bf16.msra.mxu0 %v1439
  %2117 = vmatpush.bf16.msra.mxu0 %v1435
  %2118 = vmatpush.bf16.msra.mxu0 %v1431
  %2119 = vmatmul.bf16.gmra.mxu0 %v304
  %v2120 = vpop.f32.mrf.mxu0
  %v2121 = vadd.f32 %v2107, %v2120
  %v2122 = vpop.f32.mrf.mxu0
  %v2123 = vadd.f32 %v2109, %v2122
  %2124 = vdwg.mxu0
  %2125 = vmatpush.bf16.msra.mxu0 %v1491
  %2126 = vmatpush.bf16.msra.mxu0 %v1487
  %2127 = vmatpush.bf16.msra.mxu0 %v1483
  %2128 = vmatpush.bf16.msra.mxu0 %v1479
  %2129 = vmatpush.bf16.msra.mxu0 %v1475
  %2130 = vmatpush.bf16.msra.mxu0 %v1471
  %2131 = vmatpush.bf16.msra.mxu0 %v1467
  %2132 = vmatpush.bf16.msra.mxu0 %v1463
  %2133 = vmatmul.bf16.gmra.mxu0 %v305
  %v2134 = vpop.f32.mrf.mxu0
  %v2135 = vadd.f32 %v2121, %v2134
  %v2136 = vpop.f32.mrf.mxu0
  %v2137 = vadd.f32 %v2123, %v2136
  %2138 = vdwg.mxu0
  %2139 = vmatpush.bf16.msra.mxu0 %v1523
  %2140 = vmatpush.bf16.msra.mxu0 %v1519
  %2141 = vmatpush.bf16.msra.mxu0 %v1515
  %2142 = vmatpush.bf16.msra.mxu0 %v1511
  %2143 = vmatpush.bf16.msra.mxu0 %v1507
  %2144 = vmatpush.bf16.msra.mxu0 %v1503
  %2145 = vmatpush.bf16.msra.mxu0 %v1499
  %2146 = vmatpush.bf16.msra.mxu0 %v1495
  %2147 = vmatmul.bf16.gmra.mxu0 %v306
  %v2148 = vpop.f32.mrf.mxu0
  %v2149 = vadd.f32 %v2135, %v2148
  %v2150 = vpop.f32.mrf.mxu0
  %v2151 = vadd.f32 %v2137, %v2150
  %2152 = vdwg.mxu0
  %2153 = vmatpush.bf16.msra.mxu0 %v1555
  %2154 = vmatpush.bf16.msra.mxu0 %v1551
  %2155 = vmatpush.bf16.msra.mxu0 %v1547
  %2156 = vmatpush.bf16.msra.mxu0 %v1543
  %2157 = vmatpush.bf16.msra.mxu0 %v1539
  %2158 = vmatpush.bf16.msra.mxu0 %v1535
  %2159 = vmatpush.bf16.msra.mxu0 %v1531
  %2160 = vmatpush.bf16.msra.mxu0 %v1527
  %2161 = vmatmul.bf16.gmra.mxu0 %v307
  %v2162 = vpop.f32.mrf.mxu0
  %v2163 = vadd.f32 %v2149, %v2162
  %v2164 = vpop.f32.mrf.mxu0
  %v2165 = vadd.f32 %v2151, %v2164
  %2166 = vdwg.mxu0
  %2167 = vmatpush.bf16.msra.mxu0 %v1587
  %2168 = vmatpush.bf16.msra.mxu0 %v1583
  %2169 = vmatpush.bf16.msra.mxu0 %v1579
  %2170 = vmatpush.bf16.msra.mxu0 %v1575
  %2171 = vmatpush.bf16.msra.mxu0 %v1571
  %2172 = vmatpush.bf16.msra.mxu0 %v1567
  %2173 = vmatpush.bf16.msra.mxu0 %v1563
  %2174 = vmatpush.bf16.msra.mxu0 %v1559
  %2175 = vmatmul.bf16.gmra.mxu0 %v308
  %v2176 = vpop.f32.mrf.mxu0
  %v2177 = vadd.f32 %v2163, %v2176
  %v2178 = vpop.f32.mrf.mxu0
  %v2179 = vadd.f32 %v2165, %v2178
  %2180 = vdwg.mxu0
  %2181 = vmatpush.bf16.msra.mxu0 %v1364
  %2182 = vmatpush.bf16.msra.mxu0 %v1360
  %2183 = vmatpush.bf16.msra.mxu0 %v1356
  %2184 = vmatpush.bf16.msra.mxu0 %v1352
  %2185 = vmatpush.bf16.msra.mxu0 %v1348
  %2186 = vmatpush.bf16.msra.mxu0 %v1344
  %2187 = vmatpush.bf16.msra.mxu0 %v1340
  %2188 = vmatpush.bf16.msra.mxu0 %v1336
  %2189 = vmatmul.bf16.gmra.mxu0 %v301
  %v2190 = vpop.f32.mrf.mxu0
  %v2191 = vadd.f32 0.0, %v2190
  %v2192 = vpop.f32.mrf.mxu0
  %v2193 = vadd.f32 0.0, %v2192
  %2194 = vdwg.mxu0
  %2195 = vmatpush.bf16.msra.mxu0 %v1396
  %2196 = vmatpush.bf16.msra.mxu0 %v1392
  %2197 = vmatpush.bf16.msra.mxu0 %v1388
  %2198 = vmatpush.bf16.msra.mxu0 %v1384
  %2199 = vmatpush.bf16.msra.mxu0 %v1380
  %2200 = vmatpush.bf16.msra.mxu0 %v1376
  %2201 = vmatpush.bf16.msra.mxu0 %v1372
  %2202 = vmatpush.bf16.msra.mxu0 %v1368
  %2203 = vmatmul.bf16.gmra.mxu0 %v302
  %v2204 = vpop.f32.mrf.mxu0
  %v2205 = vadd.f32 %v2191, %v2204
  %v2206 = vpop.f32.mrf.mxu0
  %v2207 = vadd.f32 %v2193, %v2206
  %2208 = vdwg.mxu0
  %2209 = vmatpush.bf16.msra.mxu0 %v1428
  %2210 = vmatpush.bf16.msra.mxu0 %v1424
  %2211 = vmatpush.bf16.msra.mxu0 %v1420
  %2212 = vmatpush.bf16.msra.mxu0 %v1416
  %2213 = vmatpush.bf16.msra.mxu0 %v1412
  %2214 = vmatpush.bf16.msra.mxu0 %v1408
  %2215 = vmatpush.bf16.msra.mxu0 %v1404
  %2216 = vmatpush.bf16.msra.mxu0 %v1400
  %2217 = vmatmul.bf16.gmra.mxu0 %v303
  %v2218 = vpop.f32.mrf.mxu0
  %v2219 = vadd.f32 %v2205, %v2218
  %v2220 = vpop.f32.mrf.mxu0
  %v2221 = vadd.f32 %v2207, %v2220
  %2222 = vdwg.mxu0
  %2223 = vmatpush.bf16.msra.mxu0 %v1460
  %2224 = vmatpush.bf16.msra.mxu0 %v1456
  %2225 = vmatpush.bf16.msra.mxu0 %v1452
  %2226 = vmatpush.bf16.msra.mxu0 %v1448
  %2227 = vmatpush.bf16.msra.mxu0 %v1444
  %2228 = vmatpush.bf16.msra.mxu0 %v1440
  %2229 = vmatpush.bf16.msra.mxu0 %v1436
  %2230 = vmatpush.bf16.msra.mxu0 %v1432
  %2231 = vmatmul.bf16.gmra.mxu0 %v304
  %v2232 = vpop.f32.mrf.mxu0
  %v2233 = vadd.f32 %v2219, %v2232
  %v2234 = vpop.f32.mrf.mxu0
  %v2235 = vadd.f32 %v2221, %v2234
  %2236 = vdwg.mxu0
  %2237 = vmatpush.bf16.msra.mxu0 %v1492
  %2238 = vmatpush.bf16.msra.mxu0 %v1488
  %2239 = vmatpush.bf16.msra.mxu0 %v1484
  %2240 = vmatpush.bf16.msra.mxu0 %v1480
  %2241 = vmatpush.bf16.msra.mxu0 %v1476
  %2242 = vmatpush.bf16.msra.mxu0 %v1472
  %2243 = vmatpush.bf16.msra.mxu0 %v1468
  %2244 = vmatpush.bf16.msra.mxu0 %v1464
  %2245 = vmatmul.bf16.gmra.mxu0 %v305
  %v2246 = vpop.f32.mrf.mxu0
  %v2247 = vadd.f32 %v2233, %v2246
  %v2248 = vpop.f32.mrf.mxu0
  %v2249 = vadd.f32 %v2235, %v2248
  %2250 = vdwg.mxu0
  %2251 = vmatpush.bf16.msra.mxu0 %v1524
  %2252 = vmatpush.bf16.msra.mxu0 %v1520
  %2253 = vmatpush.bf16.msra.mxu0 %v1516
  %2254 = vmatpush.bf16.msra.mxu0 %v1512
  %2255 = vmatpush.bf16.msra.mxu0 %v1508
  %2256 = vmatpush.bf16.msra.mxu0 %v1504
  %2257 = vmatpush.bf16.msra.mxu0 %v1500
  %2258 = vmatpush.bf16.msra.mxu0 %v1496
  %2259 = vmatmul.bf16.gmra.mxu0 %v306
  %v2260 = vpop.f32.mrf.mxu0
  %v2261 = vadd.f32 %v2247, %v2260
  %v2262 = vpop.f32.mrf.mxu0
  %v2263 = vadd.f32 %v2249, %v2262
  %2264 = vdwg.mxu0
  %2265 = vmatpush.bf16.msra.mxu0 %v1556
  %2266 = vmatpush.bf16.msra.mxu0 %v1552
  %2267 = vmatpush.bf16.msra.mxu0 %v1548
  %2268 = vmatpush.bf16.msra.mxu0 %v1544
  %2269 = vmatpush.bf16.msra.mxu0 %v1540
  %2270 = vmatpush.bf16.msra.mxu0 %v1536
  %2271 = vmatpush.bf16.msra.mxu0 %v1532
  %2272 = vmatpush.bf16.msra.mxu0 %v1528
  %2273 = vmatmul.bf16.gmra.mxu0 %v307
  %v2274 = vpop.f32.mrf.mxu0
  %v2275 = vadd.f32 %v2261, %v2274
  %v2276 = vpop.f32.mrf.mxu0
  %v2277 = vadd.f32 %v2263, %v2276
  %2278 = vdwg.mxu0
  %2279 = vmatpush.bf16.msra.mxu0 %v1588
  %2280 = vmatpush.bf16.msra.mxu0 %v1584
  %2281 = vmatpush.bf16.msra.mxu0 %v1580
  %2282 = vmatpush.bf16.msra.mxu0 %v1576
  %2283 = vmatpush.bf16.msra.mxu0 %v1572
  %2284 = vmatpush.bf16.msra.mxu0 %v1568
  %2285 = vmatpush.bf16.msra.mxu0 %v1564
  %2286 = vmatpush.bf16.msra.mxu0 %v1560
  %2287 = vmatmul.bf16.gmra.mxu0 %v308
  %v2288 = vpop.f32.mrf.mxu0
  %v2289 = vadd.f32 %v2275, %v2288
  %v2290 = vpop.f32.mrf.mxu0
  %v2291 = vadd.f32 %v2277, %v2290
  %2292 = vdwg.mxu0
  %v2293 = vpack.c.bf16 %v2065, %v1953
  %v2294 = vpack.c.bf16 %v2289, %v2177
  %v2295 = vpack.c.bf16 %v2067, %v1955
  %v2296 = vpack.c.bf16 %v2291, %v2179
  %2297 = vst [vmem:[%s4] sm:$0xff] %v2293
  %2298 = vst [vmem:[%s4 + $0x8] sm:$0xff] %v2294
  %2299 = vst [vmem:[%s4 + $0x10] sm:$0xff] %v2295
  %2300 = vst [vmem:[%s4 + $0x18] sm:$0xff] %v2296
  // Predicated region
  $region18: #{cnn_model_forward.16} parent=0 // pred_check
    _
  $region19: #{cnn_model_forward.16} parent=0 // pred_check_branch
    %2302 = sbr.rel (0) target = $region21
  $region20: #{cnn_model_forward.16} parent=0 // pred_region
    _
  $region21: #{cnn_model_forward.16} parent=0 // pred_fallthru
    _
  // Predicated region
  $region22: #{cnn_model_forward.16} parent=0 // pred_check
    _
  $region23: #{cnn_model_forward.16} parent=0 // pred_check_branch
    %2304 = sbr.rel (0) target = $region25
  $region24: #{cnn_model_forward.16} parent=0 // pred_region
    _
  $region25: #{cnn_model_forward.16} parent=0 // pred_fallthru
    _

</llo_original>
